<compile_context>
chip_gen: v7x
topology: tpu7x:2x2x1
jax: 0.10.0
libtpu: 0.0.40
codegen_flags: <defaults>
</compile_context>

<pallas_src>
from typing import Dict, List, Tuple

import numpy as np
import jax
import jax.numpy as jnp
from jax import lax
from jax.experimental import pallas as pl
from jax.experimental.pallas import tpu as pltpu

NUM_THR = 128     # lane-width threshold grid: thr_t = t / (NUM_THR - 1)
NUM_W = 8         # weight rows fed to the MXU (4 used, padded to 8 sublanes)
CHUNK = 8192      # samples per grid step (lane-dense, multiple of 128)


# ----------------------------------------------------------------------------
# Pallas kernel: streaming binary-classification sufficient statistics
# ----------------------------------------------------------------------------
def _stats_kernel(lens_ref, x_ref, o_ref):
    h = pl.program_id(0)          # metric head ("parallel" axis)
    c = pl.program_id(1)          # sample-chunk ("arbitrary" reduction axis)

    p = x_ref[0:1, :]             # (1, CHUNK) f32, lane-dense probabilities
    y = x_ref[1:2, :]             # (1, CHUNK) f32, lane-dense labels {0,1}

    # Validity mask built in-kernel from the per-head sample count (SMEM
    # scalar prefetch) -- no HBM mask stream, no wrapper-side mask array.
    lane = lax.broadcasted_iota(jnp.int32, (1, CHUNK), 1)
    valid = (lane + c * CHUNK) < lens_ref[h]                       # (1, CHUNK)

    # Per-(threshold, sample) indicator; thresholds along sublanes, samples
    # lane-dense.  bf16 is exact for {0, 1}.
    thr = (lax.broadcasted_iota(jnp.int32, (NUM_THR, 1), 0).astype(jnp.float32)
           * (1.0 / (NUM_THR - 1)))                                # (NUM_THR, 1)
    ge = (p >= thr).astype(jnp.bfloat16)                           # (NUM_THR, CHUNK)

    # Weight rows (bf16, exact 0/1):
    #   row 0: valid & y==1                  -> TP per threshold (col t=0 == #pos)
    #   row 1: valid & y==0                  -> FP per threshold (col t=0 == #neg)
    #   row 2: valid & y==1 & p>0.5          -> column t=0 == TP@0.5
    #   row 3: valid & y==0 & p>0.5          -> column t=0 == FP@0.5
    #   rows 4..7: zero padding (sublane-friendly RHS height).
    row = lax.broadcasted_iota(jnp.int32, (NUM_W, CHUNK), 0)
    pos = y > 0.5
    cls_ok = jnp.logical_xor(pos, (row & 1) == 1)     # even rows: y==1, odd: y==0
    pred_ok = jnp.logical_or(row < 2, p > 0.5)        # rows 2,3 add the 0.5 gate
    w = (valid & cls_ok & pred_ok & (row < 4)).astype(jnp.bfloat16)  # (NUM_W, CHUNK)

    # MXU: contract the CHUNK sample axis of both operands (flash-attention
    # style A.B^T pattern); exact f32 accumulation of 0/1 products.  Result is
    # (NUM_W, NUM_THR) = (8, 128): exactly one lane-dense f32 vreg.
    part = lax.dot_general(w, ge, (((1,), (1,)), ((), ())),
                           preferred_element_type=jnp.float32)     # (NUM_W, NUM_THR)

    # Single full-tile (single-vreg) accumulate into the resident output block.
    @pl.when(c == 0)
    def _init():
        o_ref[...] = jnp.zeros_like(o_ref)

    o_ref[...] += part


@jax.jit
def _stats_pallas(lens, x):
    """lens: (H,) int32; x: (H, 2, n_pad) f32 (preds row 0, labels row 1)
    -> (H, NUM_W, NUM_THR) f32 sufficient statistics."""
    H = x.shape[0]
    n_pad = x.shape[2]
    grid = (H, n_pad // CHUNK)
    return pl.pallas_call(
        _stats_kernel,
        out_shape=jax.ShapeDtypeStruct((H, NUM_W, NUM_THR), jnp.float32),
        grid_spec=pltpu.PrefetchScalarGridSpec(
            num_scalar_prefetch=1,                       # per-head sample counts
            grid=grid,
            in_specs=[
                pl.BlockSpec((None, 2, CHUNK), lambda h, c, lens_r: (h, 0, c)),
            ],
            out_specs=pl.BlockSpec((None, NUM_W, NUM_THR),
                                   lambda h, c, lens_r: (h, 0, 0)),
        ),
        compiler_params=pltpu.CompilerParams(
            # heads shard across v7x's two TensorCores; chunk axis is the
            # (sequential) reduction over the resident accumulator block.
            dimension_semantics=("parallel", "arbitrary"),
            vmem_limit_bytes=48 * 1024 * 1024),
    )(lens, x)


def _stack_and_run(preds_by_name, labels_by_name, names):
    """Fuse all metric heads of one update() into a single kernel launch."""
    ps, ys, lens = [], [], []
    for name in names:
        p = jnp.ravel(preds_by_name[name]).astype(jnp.float32)
        y = jnp.ravel(labels_by_name[name]).astype(jnp.float32)
        lens.append(int(p.shape[0]))
        ps.append(p)
        ys.append(y)
    n_pad = max(CHUNK, ((max(lens) + CHUNK - 1) // CHUNK) * CHUNK)
    P = jnp.stack([jnp.pad(p, (0, n_pad - p.shape[0])) for p in ps])   # (H, n_pad)
    Y = jnp.stack([jnp.pad(y, (0, n_pad - y.shape[0])) for y in ys])   # (H, n_pad)
    X = jnp.stack([P, Y], axis=1)                                      # (H, 2, n_pad)
    lens_arr = jnp.asarray(lens, dtype=jnp.int32)
    return _stats_pallas(lens_arr, X)


# ----------------------------------------------------------------------------
# Host glue: closed-form metric formulas from the accumulated statistics
# ----------------------------------------------------------------------------
def _safe_div(a, b):
    a = np.asarray(a, np.float64)
    b = np.asarray(b, np.float64)
    return np.where(b != 0.0, a / np.where(b != 0.0, b, 1.0), 0.0)


def _metrics_from_stats(stats: np.ndarray) -> Tuple[Dict[str, np.ndarray], np.ndarray]:
    """stats: (NUM_W, NUM_THR) float64 accumulated sufficient statistics."""
    tp_t = stats[0, :]
    fp_t = stats[1, :]
    # thr[0] == 0 and predictions are probabilities in [0, 1], so every valid
    # sample passes the first threshold: tp_t[0] == #positives, fp_t[0] == #negatives.
    pos = tp_t[0]
    neg = fp_t[0]
    tp = stats[2, 0]
    fp = stats[3, 0]
    fn = pos - tp
    tn = neg - fp
    total = pos + neg

    acc = _safe_div(tp + tn, total)
    prec = _safe_div(tp, tp + fp)
    rec = _safe_div(tp, tp + fn)
    f1 = _safe_div(2.0 * tp, 2.0 * tp + fp + fn)

    pe = _safe_div((tp + fn) * (tp + fp) + (fp + tn) * (fn + tn), total * total)
    kappa = _safe_div(acc - pe, 1.0 - pe)

    mcc_den = np.sqrt((tp + fp) * (tp + fn) * (tn + fp) * (tn + fn))
    mcc = _safe_div(tp * tn - fp * fn, mcc_den)

    # Binned ROC (thresholds ascending => fpr/tpr descending); anchor at (0, 0).
    # TODO(synk): torchmetrics' default BinaryAUROC / BinaryAveragePrecision use
    # exact sort-based curves (thresholds=None); this is the 128-bin variant.
    tpr = _safe_div(tp_t, pos)
    fpr = _safe_div(fp_t, neg)
    fpr_a = np.concatenate([[0.0], fpr[::-1]])
    tpr_a = np.concatenate([[0.0], tpr[::-1]])
    auroc = np.sum((fpr_a[1:] - fpr_a[:-1]) * (tpr_a[1:] + tpr_a[:-1]) * 0.5)

    den = tp_t + fp_t
    # bins with no predicted positives -> precision = 1 (torchmetrics convention)
    prec_t = np.where(den > 0, tp_t / np.where(den > 0, den, 1.0), 1.0)
    rec_t = _safe_div(tp_t, pos)
    rec_e = np.concatenate([rec_t, [0.0]])
    prec_e = np.concatenate([prec_t, [1.0]])
    ap = np.sum((rec_e[:-1] - rec_e[1:]) * prec_e[:-1])

    # torchmetrics convention: rows = true class, cols = predicted class.
    confmat = np.array([[tn, fp], [fn, tp]], dtype=np.int64)

    metrics = {
        "BinaryAccuracy": np.float64(acc),
        "BinaryPrecision": np.float64(prec),
        "BinaryRecall": np.float64(rec),
        "BinaryAveragePrecision": np.float64(ap),
        "BinaryF1Score": np.float64(f1),
        "BinaryCohenKappa": np.float64(kappa),
        "BinaryAUROC": np.float64(auroc),
        "BinaryMatthewsCorrCoef": np.float64(mcc),
    }
    return metrics, confmat


# ----------------------------------------------------------------------------
# The Metrics "module" (mirrors the torch.nn.Module API)
# ----------------------------------------------------------------------------
class Metrics:
    """Handles all the evaluation metrics of an experiment (JAX/Pallas version)."""

    def __init__(self, names: List[str], split: str):
        self.names = list(names)
        self.split = split
        self.reset()

    def forward(self) -> None:
        """This method is not necessary."""
        return None

    def __call__(self) -> None:
        return self.forward()

    def update(self, outputs: Dict[str, jax.Array], gold: Dict[str, jax.Array]) -> None:
        """Update all metrics with a new batch of predictions (one fused launch)."""
        names = [k.replace("pred-", "") for k in outputs]
        preds = {n: outputs["pred-" + n] for n in names}
        labels = {n: gold[n] for n in names}
        stats = jax.block_until_ready(_stack_and_run(preds, labels, names))
        # Cross-batch accumulation in float64 on host: exact counts for
        # arbitrarily long evaluation streams (f32 is exact only to 2^24).
        stats_np = np.asarray(stats, dtype=np.float64)
        for i, n in enumerate(names):
            self._stats[n] = self._stats[n] + stats_np[i]

    def compute(self) -> Tuple[Dict[str, np.ndarray], Dict[str, np.ndarray]]:
        """Return dicts with metrics and confusion matrices for all types."""
        metrics: Dict[str, np.ndarray] = {}
        confmatrices: Dict[str, np.ndarray] = {}
        for name in self.names:
            m, cm = _metrics_from_stats(self._stats[name])
            prefix = f"{self.split}_{name}_"
            for k, v in m.items():
                metrics[prefix + k] = v
            confmatrices[prefix + "BinaryConfusionMatrix"] = cm
        return metrics, confmatrices

    def reset(self) -> None:
        """Reset all metrics."""
        self._stats = {name: np.zeros((NUM_W, NUM_THR), np.float64) for name in self.names}


# ----------------------------------------------------------------------------
if __name__ == "__main__":
    key = jax.random.PRNGKey(0)
    names = ["coref", "mention"]
    metrics_mod = Metrics(names, split="val")
    assert metrics_mod.forward() is None  # forward() semantics: returns None
    assert metrics_mod() is None

    batch, seq = 4, 300  # 1200 samples/head/step -> padded to one 8192 chunk
    ref_cm = {n: np.zeros(4, np.float64) for n in names}          # tp, fp, fn, tn
    ref_tp_t = {n: np.zeros(NUM_THR, np.float64) for n in names}
    ref_fp_t = {n: np.zeros(NUM_THR, np.float64) for n in names}
    thr_f32 = np.arange(NUM_THR, dtype=np.float32) * np.float32(1.0 / (NUM_THR - 1))

    for _ in range(2):
        key, k1, k2, k3, k4 = jax.random.split(key, 5)
        outputs = {
            "pred-coref": jax.nn.sigmoid(jax.random.normal(k1, (batch, seq))),
            "pred-mention": jax.nn.sigmoid(jax.random.normal(k2, (batch, seq))),
        }
        gold = {
            "coref": (jax.random.uniform(k3, (batch, seq)) > 0.5).astype(jnp.int32),
            "mention": (jax.random.uniform(k4, (batch, seq)) > 0.5).astype(jnp.int32),
        }
        metrics_mod.update(outputs, gold)

        # numpy reference for confusion counts and the per-threshold curves
        for n in names:
            p = np.asarray(outputs[f"pred-{n}"], np.float32).reshape(-1)
            y = np.asarray(gold[n]).reshape(-1).astype(np.float64)
            pb = (p > 0.5).astype(np.float64)
            ref_cm[n] += np.array([
                np.sum(pb * y), np.sum(pb * (1 - y)),
                np.sum((1 - pb) * y), np.sum((1 - pb) * (1 - y))])
            ge = (p[None, :] >= thr_f32[:, None]).astype(np.float64)   # (128, N)
            ref_tp_t[n] += ge @ y
            ref_fp_t[n] += ge @ (1.0 - y)

    results, confmats = metrics_mod.compute()

    # sanity: kernel statistics match the numpy reference
    for n in names:
        cm = confmats[f"val_{n}_BinaryConfusionMatrix"].astype(np.float64)
        tp_r, fp_r, fn_r, tn_r = ref_cm[n]
        assert np.allclose(cm, np.array([[tn_r, fp_r], [fn_r, tp_r]])), (n, cm)
        assert np.allclose(metrics_mod._stats[n][0, :], ref_tp_t[n], atol=0.5), n
        assert np.allclose(metrics_mod._stats[n][1, :], ref_fp_t[n], atol=0.5), n
        for k, v in results.items():
            if k.startswith(f"val_{n}_"):
                assert np.isfinite(float(v)), k

    print("KERNEL_OK")
</pallas_src>

<mosaic_0001>
module attributes {stable_mosaic.version = 11 : i64} {
  func.func @_stats_kernel(%arg0: i32, %arg1: i32, %arg2: memref<2xi32, #tpu.memory_space<smem>>, %arg3: memref<1x2x8192xf32, #tpu.memory_space<vmem>>, %arg4: memref<1x8x128xf32, #tpu.memory_space<vmem>>) attributes {dimension_semantics = [#tpu.dimension_semantics<parallel>, #tpu.dimension_semantics<arbitrary>], iteration_bounds = array<i64: 2, 1>, scalar_prefetch = 1 : i64, scratch_operands = 0 : i64, tpu.core_type = #tpu.core_type<tc>, window_params = [{transform_indices = @transform_0, window_bounds = array<i64: 1, 2, 8192>}, {transform_indices = @transform_1, window_bounds = array<i64: 1, 8, 128>}]} {
    %c0 = arith.constant 0 : index
    %c0_0 = arith.constant 0 : index
    %c0_1 = arith.constant 0 : index
    %0 = vector.load %arg3[%c0, %c0_0, %c0_1] : memref<1x2x8192xf32, #tpu.memory_space<vmem>>, vector<1x1x8192xf32>
    %1 = vector.shape_cast %0 : vector<1x1x8192xf32> to vector<1x8192xf32>
    %c0_2 = arith.constant 0 : index
    %c1 = arith.constant 1 : index
    %c0_3 = arith.constant 0 : index
    %2 = vector.load %arg3[%c0_2, %c1, %c0_3] : memref<1x2x8192xf32, #tpu.memory_space<vmem>>, vector<1x1x8192xf32>
    %3 = vector.shape_cast %2 : vector<1x1x8192xf32> to vector<1x8192xf32>
    %4 = tpu.iota {dimensions = array<i32: 1>} : vector<1x8192xi32>
    %c8192_i32 = arith.constant 8192 : i32
    %5 = arith.muli %arg1, %c8192_i32 : i32
    %6 = vector.broadcast %5 : i32 to vector<1x8192xi32>
    %7 = arith.addi %4, %6 : vector<1x8192xi32>
    %8 = arith.index_cast %arg0 : i32 to index
    %9 = memref.load %arg2[%8] : memref<2xi32, #tpu.memory_space<smem>>
    %10 = vector.broadcast %9 : i32 to vector<1x8192xi32>
    %11 = arith.cmpi slt, %7, %10 : vector<1x8192xi32>
    %12 = tpu.iota {dimensions = array<i32: 0>} : vector<128x1xi32>
    %13 = arith.sitofp %12 : vector<128x1xi32> to vector<128x1xf32>
    %cst = arith.constant 0.00787401571 : f32
    %14 = vector.broadcast %cst : f32 to vector<128x1xf32>
    %15 = arith.mulf %13, %14 : vector<128x1xf32>
    %16 = vector.broadcast %1 : vector<1x8192xf32> to vector<128x8192xf32>
    %17 = vector.broadcast %15 : vector<128x1xf32> to vector<128x8192xf32>
    %18 = arith.cmpf oge, %16, %17 : vector<128x8192xf32>
    %19 = arith.extui %18 : vector<128x8192xi1> to vector<128x8192xi32>
    %20 = arith.sitofp %19 : vector<128x8192xi32> to vector<128x8192xf32>
    %21 = arith.truncf %20 : vector<128x8192xf32> to vector<128x8192xbf16>
    %22 = tpu.iota {dimensions = array<i32: 0>} : vector<8x8192xi32>
    %cst_4 = arith.constant 5.000000e-01 : f32
    %23 = vector.broadcast %cst_4 : f32 to vector<1x8192xf32>
    %24 = arith.cmpf ogt, %3, %23 : vector<1x8192xf32>
    %c1_i32 = arith.constant 1 : i32
    %25 = vector.broadcast %c1_i32 : i32 to vector<8x8192xi32>
    %26 = arith.andi %22, %25 : vector<8x8192xi32>
    %c1_i32_5 = arith.constant 1 : i32
    %27 = vector.broadcast %c1_i32_5 : i32 to vector<8x8192xi32>
    %28 = arith.cmpi eq, %26, %27 : vector<8x8192xi32>
    %29 = vector.broadcast %24 : vector<1x8192xi1> to vector<8x8192xi1>
    %30 = arith.xori %29, %28 : vector<8x8192xi1>
    %c2_i32 = arith.constant 2 : i32
    %31 = vector.broadcast %c2_i32 : i32 to vector<8x8192xi32>
    %32 = arith.cmpi slt, %22, %31 : vector<8x8192xi32>
    %cst_6 = arith.constant 5.000000e-01 : f32
    %33 = vector.broadcast %cst_6 : f32 to vector<1x8192xf32>
    %34 = arith.cmpf ogt, %1, %33 : vector<1x8192xf32>
    %35 = vector.broadcast %34 : vector<1x8192xi1> to vector<8x8192xi1>
    %36 = arith.ori %32, %35 : vector<8x8192xi1>
    %37 = vector.broadcast %11 : vector<1x8192xi1> to vector<8x8192xi1>
    %38 = arith.andi %37, %30 : vector<8x8192xi1>
    %39 = arith.andi %38, %36 : vector<8x8192xi1>
    %c4_i32 = arith.constant 4 : i32
    %40 = vector.broadcast %c4_i32 : i32 to vector<8x8192xi32>
    %41 = arith.cmpi slt, %22, %40 : vector<8x8192xi32>
    %42 = arith.andi %39, %41 : vector<8x8192xi1>
    %43 = arith.extui %42 : vector<8x8192xi1> to vector<8x8192xi32>
    %44 = arith.sitofp %43 : vector<8x8192xi32> to vector<8x8192xf32>
    %45 = arith.truncf %44 : vector<8x8192xf32> to vector<8x8192xbf16>
    %cst_7 = arith.constant dense<0.000000e+00> : vector<8x128xf32>
    %46 = tpu.matmul %45, %21, %cst_7 {dimension_numbers = #tpu.dot_dimension_numbers<[1], [1], [0], [0], [0, 0, 1, 0], [], []>} : vector<8x8192xbf16>, vector<128x8192xbf16>, vector<8x128xf32> -> vector<8x128xf32>
    %c0_i32 = arith.constant 0 : i32
    %47 = arith.cmpi eq, %arg1, %c0_i32 : i32
    %48 = arith.extui %47 : i1 to i32
    %c0_i32_8 = arith.constant 0 : i32
    %49 = arith.cmpi ne, %48, %c0_i32_8 : i32
    scf.if %49 {
      %cst_15 = arith.constant 0.000000e+00 : f32
      %56 = vector.broadcast %cst_15 : f32 to vector<8x128xf32>
      %c0_16 = arith.constant 0 : index
      %c0_17 = arith.constant 0 : index
      %c0_18 = arith.constant 0 : index
      %57 = vector.load %arg4[%c0_16, %c0_17, %c0_18] : memref<1x8x128xf32, #tpu.memory_space<vmem>>, vector<1x8x128xf32>
      %58 = vector.shape_cast %57 : vector<1x8x128xf32> to vector<8x128xf32>
      %59 = vector.shape_cast %56 : vector<8x128xf32> to vector<1x8x128xf32>
      tpu.vector_store %arg4[%c0_16, %c0_17, %c0_18], %59 {strides = array<i32>} : memref<1x8x128xf32, #tpu.memory_space<vmem>>, vector<1x8x128xf32>,
    } else {
    }
    %c0_9 = arith.constant 0 : index
    %c0_10 = arith.constant 0 : index
    %c0_11 = arith.constant 0 : index
    %50 = vector.load %arg4[%c0_9, %c0_10, %c0_11] : memref<1x8x128xf32, #tpu.memory_space<vmem>>, vector<1x8x128xf32>
    %51 = vector.shape_cast %50 : vector<1x8x128xf32> to vector<8x128xf32>
    %52 = arith.addf %51, %46 : vector<8x128xf32>
    %c0_12 = arith.constant 0 : index
    %c0_13 = arith.constant 0 : index
    %c0_14 = arith.constant 0 : index
    %53 = vector.load %arg4[%c0_12, %c0_13, %c0_14] : memref<1x8x128xf32, #tpu.memory_space<vmem>>, vector<1x8x128xf32>
    %54 = vector.shape_cast %53 : vector<1x8x128xf32> to vector<8x128xf32>
    %55 = vector.shape_cast %52 : vector<8x128xf32> to vector<1x8x128xf32>
    tpu.vector_store %arg4[%c0_12, %c0_13, %c0_14], %55 {strides = array<i32>} : memref<1x8x128xf32, #tpu.memory_space<vmem>>, vector<1x8x128xf32>,
    return
  }
  func.func @transform_0(%arg0: i32, %arg1: i32, %arg2: memref<2xi32, #tpu.memory_space<smem>>) -> (i32, i32, i32) {
    %c0_i32 = arith.constant 0 : i32
    %c0_i32_0 = arith.constant 0 : i32
    return %arg0, %c0_i32, %arg1 : i32, i32, i32
  }
  func.func @transform_1(%arg0: i32, %arg1: i32, %arg2: memref<2xi32, #tpu.memory_space<smem>>) -> (i32, i32, i32) {
    %c0_i32 = arith.constant 0 : i32
    %c0_i32_0 = arith.constant 0 : i32
    %c0_i32_1 = arith.constant 0 : i32
    return %arg0, %c0_i32, %c0_i32_0 : i32, i32, i32
  }
}

</mosaic_0001>

<llo_original>
// kernel: _stats_pallas.1
$region0: #{_stats_pallas.1}
  #allocation0 [shape = 'u32[]', space=smem, size = 0x4, offset = 0x4, fixed_abs, tag = 'smem constant byte address 0x4 - core index']
  #allocation1 [shape = 'u32[144,128]{1,0:T(1,128)}', space=vmem, size = 0x12000, scoped, tag = 'internal scratch']
  #allocation2 [shape = 's32[1]{0}', space=sflag, size = 0x4, scoped, tag = 'scoped memory for _stats_pallas.1']
  #allocation3 [shape = 'u8[512]{0}', space=smem, size = 0x200, scoped, tag = 'prefetched SMEM operand 0']
  %s0 = inlined_call_operand.hbm [shape: s32[2], index: 0, kind: input, shape index: {}]
  %s1 = inlined_call_operand.hbm [shape: f32[2,2,8192], index: 1, kind: input, shape index: {}]
  %s2 = inlined_call_operand.hbm [shape: f32[2,8,128], index: 2, kind: output, shape index: {}]
  %s3 = sld [smem:[#allocation0]]
  $region45: #{_stats_pallas.1} parent=0
    _
  %s5 = ssub.s32 1, %s3
  %s6 = scalar_select 0, %s5, %s3
  %8 = dma.hbm_to_smem %s0, 16, [#allocation3], [#allocation2]
  %9 = dma.done [#allocation2], 16
  %10 = sfence
  $region1: #{_stats_pallas.1} parent=0
    #allocation4 [shape = 'u8[131072]{0}', space=vmem, size = 0x20000, scoped, tag = 'input window, operand 1']
    #allocation5 [shape = 's32[2]{0}', space=sflag, size = 0x8, scoped, tag = 'scoped memory for _stats_pallas.1']
    #allocation6 [shape = 's32[2]{0}', space=sflag, size = 0x8, scoped, tag = 'scoped memory for _stats_pallas.1']
    #allocation7 [shape = 'u8[8192]{0}', space=vmem, size = 0x2000, scoped, tag = 'output window, operand 0']
    %11 = vsyncpa [#allocation5], 0
    %s12 = scalar_lea.sflag [#allocation5], 1
    %13 = vsyncpa %s12, 0
    %14 = vsyncpa [#allocation6], 0
    %s15 = scalar_lea.sflag [#allocation6], 1
    %16 = vsyncpa %s15, 0
    loop: start=0, step=1, limit=4
    $region2: #{_stats_pallas.1} parent=1 // loop_pre_header
      _
    $region3: #{_stats_pallas.1} parent=1 // loop_header
      %s18 = sphi 0, %s22
      %p19 = scmp.ge.s32.totalorder %s18, 4
      %s25 = sphi 0, %s37
      %s26 = sphi 0, %s33
      %s27 = sphi 0, %s25
      %s28 = sphi 0, %s26
      %s29 = sphi 0, %s27
      %s30 = sphi 0, %s28
      %s42 = sphi 0, %s44
      %s45 = sphi 0, %s42
      %s46 = sphi 0, %s45
      %s62 = sphi 0, %s46
      %s68 = sphi 0, %s70
      %s71 = sphi 0, %s68
      %s72 = sphi 0, %s71
      %s88 = sphi 0, %s72
    $region4: #{_stats_pallas.1} parent=1 // loop_header_branch
      %21 = sbr.rel (%p19) target = $region8
    $region5: #{_stats_pallas.1} parent=1 // loop_body
      %s23 = ssub.s32 %s18, 1
      %s24 = ssub.s32 %s18, 2
      %s31 = sadd.s32 1, %s26
      %p32 = scmp.ge.s32.totalorder %s31, 1
      %s33 = scalar_select %p32, 0, %s31
      %s34 = sadd.s32 1, %s25
      %s35 = scalar_select %p32, %s34, %s25
      %p36 = scmp.ge.s32.totalorder %s35, 2
      %s37 = scalar_select %p36, 0, %s35
      %s38 = ssub.s32 %s25, %s37
      %s39 = ssub.s32 %s26, %s33
      %s40 = sor.u32 %s38, %s39
      %p41 = scmp.eq.s32.totalorder %s40, 0
      %s43 = sadd.s32 %s42, 1
      %s44 = scalar_select %p41, %s42, %s43
      %p47 = pneg %p41
      %p48 = scmp.eq.s32.totalorder %s18, 1
      %p49 = por %p47, %p48
      %p50 = scmp.ne.s32.totalorder %s42, %s45
      %p51 = scmp.eq.s32.totalorder %s18, 0
      %p52 = por %p50, %p51
      %p53 = scmp.ne.s32.totalorder %s42, %s45
      %p54 = scmp.eq.s32.totalorder %s23, 1
      %p55 = por %p53, %p54
      %p56 = scmp.ne.s32.totalorder %s45, %s46
      %p57 = scmp.eq.s32.totalorder %s23, 0
      %p58 = por %p56, %p57
      %p59 = scmp.ne.s32.totalorder %s45, %s46
      %p60 = scmp.eq.s32.totalorder %s24, 1
      %p61 = por %p59, %p60
      %p63 = scmp.ne.s32.totalorder %s46, %s62
      %p64 = scmp.eq.s32.totalorder %s24, 0
      %p65 = por %p63, %p64
      %s66 = ssub.s32 %s25, %s37
      %p67 = scmp.eq.s32.totalorder %s66, 0
      %s69 = sadd.s32 %s68, 1
      %s70 = scalar_select %p67, %s68, %s69
      %p73 = pneg %p67
      %p74 = scmp.eq.s32.totalorder %s18, 1
      %p75 = por %p73, %p74
      %p76 = scmp.ne.s32.totalorder %s68, %s71
      %p77 = scmp.eq.s32.totalorder %s18, 0
      %p78 = por %p76, %p77
      %p79 = scmp.ne.s32.totalorder %s68, %s71
      %p80 = scmp.eq.s32.totalorder %s23, 1
      %p81 = por %p79, %p80
      %p82 = scmp.ne.s32.totalorder %s71, %s72
      %p83 = scmp.eq.s32.totalorder %s23, 0
      %p84 = por %p82, %p83
      %p85 = scmp.ne.s32.totalorder %s71, %s72
      %p86 = scmp.eq.s32.totalorder %s24, 1
      %p87 = por %p85, %p86
      %p89 = scmp.ne.s32.totalorder %s72, %s88
      %p90 = scmp.eq.s32.totalorder %s24, 0
      %p91 = por %p89, %p90
      %p92 = scmp.le.s32.totalorder 1, %s18
      %p93 = scmp.lt.s32.totalorder %s18, 3
      %p94 = pnand %p92, %p93
      %p95 = pneg %p94
      // Predicated region
      $region9: #{_stats_pallas.1} parent=5 // pred_check
        _
      $region10: #{_stats_pallas.1} parent=5 // pred_check_branch
        %97 = sbr.rel (%p94) target = $region12
      $region11: #{_stats_pallas.1} parent=5 // pred_region
        %s98 = ssub.s32 %s18, 1
      $region12: #{_stats_pallas.1} parent=5 // pred_fallthru
        _
      %p99 = scmp.lt.s32.totalorder %s18, 2
      // Predicated region
      $region13: #{_stats_pallas.1} parent=5 // pred_check
        %p100 = pneg %p99
      $region14: #{_stats_pallas.1} parent=5 // pred_check_branch
        %102 = sbr.rel (%p100) target = $region16
      $region15: #{_stats_pallas.1} parent=5 // pred_region
        // Predicated region
        $region17: #{_stats_pallas.1} parent=15 // pred_check
          %p103 = pneg %p52
        $region18: #{_stats_pallas.1} parent=15 // pred_check_branch
          %105 = sbr.rel (%p103) target = $region20
        $region19: #{_stats_pallas.1} parent=15 // pred_region
          %s106 = sand.u32 %s42, 1
          %s107 = scalar_lea.sflag [#allocation5], %s106
          %s108 = sand.u32 %s42, 1
          %s109 = smul.addr %s108, 128
          %s110 = scalar_lea.vmem [#allocation4], %s109
          %s111 = smul.u32 64, %s26
          %s113 = ssub.s32 2048, 2048
          %114 = vsyncadd %s107, %s113
          %s115 = smul.addr %s25, 64
          %s116 = sadd.s32 %s111, %s115
          %s117 = smul.addr %s116, 32
          %s118 = scalar_lea.hbm %s1, %s117
          %s120 = sshll.u32 %s110, 4
          %s121 = int_to_ptr.vmem [resolvable:$true] %s120
          %123 = dma.hbm_to_vmem [thread:$0]  %s118, 2048, %s121, %s107
        $region20: #{_stats_pallas.1} parent=15 // pred_fallthru
          _
      $region16: #{_stats_pallas.1} parent=5 // pred_fallthru
        _
      %p124 = scmp.le.s32.totalorder 1, %s18
      %p125 = scmp.lt.s32.totalorder %s18, 3
      %p126 = pnand %p124, %p125
      %p127 = pneg %p126
      // Predicated region
      $region21: #{_stats_pallas.1} parent=5 // pred_check
        _
      $region22: #{_stats_pallas.1} parent=5 // pred_check_branch
        %129 = sbr.rel (%p126) target = $region24
      $region23: #{_stats_pallas.1} parent=5 // pred_region
        %s130 = ssub.s32 %s18, 1
        %s131 = sand.u32 %s45, 1
        %s132 = scalar_lea.sflag [#allocation5], %s131
        %s133 = sand.u32 %s45, 1
        %s134 = smul.addr %s133, 128
        %s135 = scalar_lea.vmem [#allocation4], %s134
        // Predicated region
        $region25: #{_stats_pallas.1} parent=23 // pred_check
          %p136 = pneg %p58
        $region26: #{_stats_pallas.1} parent=23 // pred_check_branch
          %138 = sbr.rel (%p136) target = $region28
        $region27: #{_stats_pallas.1} parent=23 // pred_region
          %139 = dma.done %s132, 2048
        $region28: #{_stats_pallas.1} parent=23 // pred_fallthru
          _
        %s140 = sand.u32 %s45, 1
        %s141 = scalar_lea.sflag [#allocation5], %s140
        %s142 = sand.u32 %s45, 1
        %s143 = smul.addr %s142, 128
        %s144 = scalar_lea.vmem [#allocation4], %s143
        %p145 = pneg %p58
        %p146 = pneg %p55
        %p147 = pneg %p84
        %p148 = pneg %p81
        %s149 = sand.u32 %s71, 1
        %s150 = scalar_lea.sflag [#allocation6], %s149
        %s151 = sand.u32 %s71, 1
        %s152 = smul.addr %s151, 8
        %s153 = scalar_lea.vmem [#allocation7], %s152
        %s154 = smul.u32 64, %s28
        %v156 = vld [vmem:[%s135] ss:$2 sm:$0xff]
        %s157 = scalar_lea.vmem %s135, 16 [#allocation4]
        %v158 = vld [vmem:[%s157] ss:$2 sm:$0xff]
        %s159 = scalar_lea.vmem %s135, 32 [#allocation4]
        %v160 = vld [vmem:[%s159] ss:$2 sm:$0xff]
        %s161 = scalar_lea.vmem %s135, 48 [#allocation4]
        %v162 = vld [vmem:[%s161] ss:$2 sm:$0xff]
        %s163 = scalar_lea.vmem %s135, 64 [#allocation4]
        %v164 = vld [vmem:[%s163] ss:$2 sm:$0xff]
        %s165 = scalar_lea.vmem %s135, 80 [#allocation4]
        %v166 = vld [vmem:[%s165] ss:$2 sm:$0xff]
        %s167 = scalar_lea.vmem %s135, 96 [#allocation4]
        %v168 = vld [vmem:[%s167] ss:$2 sm:$0xff]
        %s169 = scalar_lea.vmem %s135, 112 [#allocation4]
        %v170 = vld [vmem:[%s169] ss:$2 sm:$0xff]
        %s171 = scalar_lea.vmem %s135, 1 [#allocation4]
        %v172 = vld [vmem:[%s171] ss:$2 sm:$0xff]
        %s173 = scalar_lea.vmem %s135, 17 [#allocation4]
        %v174 = vld [vmem:[%s173] ss:$2 sm:$0xff]
        %s175 = scalar_lea.vmem %s135, 33 [#allocation4]
        %v176 = vld [vmem:[%s175] ss:$2 sm:$0xff]
        %s177 = scalar_lea.vmem %s135, 49 [#allocation4]
        %v178 = vld [vmem:[%s177] ss:$2 sm:$0xff]
        %s179 = scalar_lea.vmem %s135, 65 [#allocation4]
        %v180 = vld [vmem:[%s179] ss:$2 sm:$0xff]
        %s181 = scalar_lea.vmem %s135, 81 [#allocation4]
        %v182 = vld [vmem:[%s181] ss:$2 sm:$0xff]
        %s183 = scalar_lea.vmem %s135, 97 [#allocation4]
        %v184 = vld [vmem:[%s183] ss:$2 sm:$0xff]
        %s185 = scalar_lea.vmem %s135, 113 [#allocation4]
        %v186 = vld [vmem:[%s185] ss:$2 sm:$0xff]
        %v187 = vlaneseq
        %v188 = vand.u32 %v187, 127
        %v189 = vadd.s32 %v188, 128
        %v190 = vadd.s32 %v188, 256
        %v191 = vadd.s32 %v188, 384
        %v192 = vadd.s32 %v188, 512
        %v193 = vadd.s32 %v188, 640
        %v194 = vadd.s32 %v188, 768
        %v195 = vadd.s32 %v188, 896
        %v196 = vadd.s32 %v188, 1024
        %v197 = vadd.s32 %v188, 1152
        %v198 = vadd.s32 %v188, 1280
        %v199 = vadd.s32 %v188, 1408
        %v200 = vadd.s32 %v188, 1536
        %v201 = vadd.s32 %v188, 1664
        %v202 = vadd.s32 %v188, 1792
        %v203 = vadd.s32 %v188, 1920
        %v204 = vadd.s32 %v188, 2048
        %v205 = vadd.s32 %v188, 2176
        %v206 = vadd.s32 %v188, 2304
        %v207 = vadd.s32 %v188, 2432
        %v208 = vadd.s32 %v188, 2560
        %v209 = vadd.s32 %v188, 2688
        %v210 = vadd.s32 %v188, 2816
        %v211 = vadd.s32 %v188, 2944
        %v212 = vadd.s32 %v188, 3072
        %v213 = vadd.s32 %v188, 3200
        %v214 = vadd.s32 %v188, 3328
        %v215 = vadd.s32 %v188, 3456
        %v216 = vadd.s32 %v188, 3584
        %v217 = vadd.s32 %v188, 3712
        %v218 = vadd.s32 %v188, 3840
        %v219 = vadd.s32 %v188, 3968
        %v220 = vadd.s32 %v188, 4096
        %v221 = vadd.s32 %v188, 4224
        %v222 = vadd.s32 %v188, 4352
        %v223 = vadd.s32 %v188, 4480
        %v224 = vadd.s32 %v188, 4608
        %v225 = vadd.s32 %v188, 4736
        %v226 = vadd.s32 %v188, 4864
        %v227 = vadd.s32 %v188, 4992
        %v228 = vadd.s32 %v188, 5120
        %v229 = vadd.s32 %v188, 5248
        %v230 = vadd.s32 %v188, 5376
        %v231 = vadd.s32 %v188, 5504
        %v232 = vadd.s32 %v188, 5632
        %v233 = vadd.s32 %v188, 5760
        %v234 = vadd.s32 %v188, 5888
        %v235 = vadd.s32 %v188, 6016
        %v236 = vadd.s32 %v188, 6144
        %v237 = vadd.s32 %v188, 6272
        %v238 = vadd.s32 %v188, 6400
        %v239 = vadd.s32 %v188, 6528
        %v240 = vadd.s32 %v188, 6656
        %v241 = vadd.s32 %v188, 6784
        %v242 = vadd.s32 %v188, 6912
        %v243 = vadd.s32 %v188, 7040
        %v244 = vadd.s32 %v188, 7168
        %v245 = vadd.s32 %v188, 7296
        %v246 = vadd.s32 %v188, 7424
        %v247 = vadd.s32 %v188, 7552
        %v248 = vadd.s32 %v188, 7680
        %v249 = vadd.s32 %v188, 7808
        %v250 = vadd.s32 %v188, 7936
        %v251 = vadd.s32 %v188, 8064
        %s252 = smul.u32 %s28, 8192
        %v253 = vstv %s252
        %v254 = vadd.s32 %v188, %v253
        %v255 = vadd.s32 %v189, %v253
        %v256 = vadd.s32 %v190, %v253
        %v257 = vadd.s32 %v191, %v253
        %v258 = vadd.s32 %v192, %v253
        %v259 = vadd.s32 %v193, %v253
        %v260 = vadd.s32 %v194, %v253
        %v261 = vadd.s32 %v195, %v253
        %v262 = vadd.s32 %v196, %v253
        %v263 = vadd.s32 %v197, %v253
        %v264 = vadd.s32 %v198, %v253
        %v265 = vadd.s32 %v199, %v253
        %v266 = vadd.s32 %v200, %v253
        %v267 = vadd.s32 %v201, %v253
        %v268 = vadd.s32 %v202, %v253
        %v269 = vadd.s32 %v203, %v253
        %v270 = vadd.s32 %v204, %v253
        %v271 = vadd.s32 %v205, %v253
        %v272 = vadd.s32 %v206, %v253
        %v273 = vadd.s32 %v207, %v253
        %v274 = vadd.s32 %v208, %v253
        %v275 = vadd.s32 %v209, %v253
        %v276 = vadd.s32 %v210, %v253
        %v277 = vadd.s32 %v211, %v253
        %v278 = vadd.s32 %v212, %v253
        %v279 = vadd.s32 %v213, %v253
        %v280 = vadd.s32 %v214, %v253
        %v281 = vadd.s32 %v215, %v253
        %v282 = vadd.s32 %v216, %v253
        %v283 = vadd.s32 %v217, %v253
        %v284 = vadd.s32 %v218, %v253
        %v285 = vadd.s32 %v219, %v253
        %v286 = vadd.s32 %v220, %v253
        %v287 = vadd.s32 %v221, %v253
        %v288 = vadd.s32 %v222, %v253
        %v289 = vadd.s32 %v223, %v253
        %v290 = vadd.s32 %v224, %v253
        %v291 = vadd.s32 %v225, %v253
        %v292 = vadd.s32 %v226, %v253
        %v293 = vadd.s32 %v227, %v253
        %v294 = vadd.s32 %v228, %v253
        %v295 = vadd.s32 %v229, %v253
        %v296 = vadd.s32 %v230, %v253
        %v297 = vadd.s32 %v231, %v253
        %v298 = vadd.s32 %v232, %v253
        %v299 = vadd.s32 %v233, %v253
        %v300 = vadd.s32 %v234, %v253
        %v301 = vadd.s32 %v235, %v253
        %v302 = vadd.s32 %v236, %v253
        %v303 = vadd.s32 %v237, %v253
        %v304 = vadd.s32 %v238, %v253
        %v305 = vadd.s32 %v239, %v253
        %v306 = vadd.s32 %v240, %v253
        %v307 = vadd.s32 %v241, %v253
        %v308 = vadd.s32 %v242, %v253
        %v309 = vadd.s32 %v243, %v253
        %v310 = vadd.s32 %v244, %v253
        %v311 = vadd.s32 %v245, %v253
        %v312 = vadd.s32 %v246, %v253
        %v313 = vadd.s32 %v247, %v253
        %v314 = vadd.s32 %v248, %v253
        %v315 = vadd.s32 %v249, %v253
        %v316 = vadd.s32 %v250, %v253
        %v317 = vadd.s32 %v251, %v253
        %s318 = sld [smem:[#allocation3 + %s27]]
        %v319 = vstv %s318
        %vm320 = vcmp.lt.s32.totalorder %v254, %v319
        %vm321 = vcmp.lt.s32.totalorder %v255, %v319
        %vm322 = vcmp.lt.s32.totalorder %v256, %v319
        %vm323 = vcmp.lt.s32.totalorder %v257, %v319
        %vm324 = vcmp.lt.s32.totalorder %v258, %v319
        %vm325 = vcmp.lt.s32.totalorder %v259, %v319
        %vm326 = vcmp.lt.s32.totalorder %v260, %v319
        %vm327 = vcmp.lt.s32.totalorder %v261, %v319
        %vm328 = vcmp.lt.s32.totalorder %v262, %v319
        %vm329 = vcmp.lt.s32.totalorder %v263, %v319
        %vm330 = vcmp.lt.s32.totalorder %v264, %v319
        %vm331 = vcmp.lt.s32.totalorder %v265, %v319
        %vm332 = vcmp.lt.s32.totalorder %v266, %v319
        %vm333 = vcmp.lt.s32.totalorder %v267, %v319
        %vm334 = vcmp.lt.s32.totalorder %v268, %v319
        %vm335 = vcmp.lt.s32.totalorder %v269, %v319
        %vm336 = vcmp.lt.s32.totalorder %v270, %v319
        %vm337 = vcmp.lt.s32.totalorder %v271, %v319
        %vm338 = vcmp.lt.s32.totalorder %v272, %v319
        %vm339 = vcmp.lt.s32.totalorder %v273, %v319
        %vm340 = vcmp.lt.s32.totalorder %v274, %v319
        %vm341 = vcmp.lt.s32.totalorder %v275, %v319
        %vm342 = vcmp.lt.s32.totalorder %v276, %v319
        %vm343 = vcmp.lt.s32.totalorder %v277, %v319
        %vm344 = vcmp.lt.s32.totalorder %v278, %v319
        %vm345 = vcmp.lt.s32.totalorder %v279, %v319
        %vm346 = vcmp.lt.s32.totalorder %v280, %v319
        %vm347 = vcmp.lt.s32.totalorder %v281, %v319
        %vm348 = vcmp.lt.s32.totalorder %v282, %v319
        %vm349 = vcmp.lt.s32.totalorder %v283, %v319
        %vm350 = vcmp.lt.s32.totalorder %v284, %v319
        %vm351 = vcmp.lt.s32.totalorder %v285, %v319
        %vm352 = vcmp.lt.s32.totalorder %v286, %v319
        %vm353 = vcmp.lt.s32.totalorder %v287, %v319
        %vm354 = vcmp.lt.s32.totalorder %v288, %v319
        %vm355 = vcmp.lt.s32.totalorder %v289, %v319
        %vm356 = vcmp.lt.s32.totalorder %v290, %v319
        %vm357 = vcmp.lt.s32.totalorder %v291, %v319
        %vm358 = vcmp.lt.s32.totalorder %v292, %v319
        %vm359 = vcmp.lt.s32.totalorder %v293, %v319
        %vm360 = vcmp.lt.s32.totalorder %v294, %v319
        %vm361 = vcmp.lt.s32.totalorder %v295, %v319
        %vm362 = vcmp.lt.s32.totalorder %v296, %v319
        %vm363 = vcmp.lt.s32.totalorder %v297, %v319
        %vm364 = vcmp.lt.s32.totalorder %v298, %v319
        %vm365 = vcmp.lt.s32.totalorder %v299, %v319
        %vm366 = vcmp.lt.s32.totalorder %v300, %v319
        %vm367 = vcmp.lt.s32.totalorder %v301, %v319
        %vm368 = vcmp.lt.s32.totalorder %v302, %v319
        %vm369 = vcmp.lt.s32.totalorder %v303, %v319
        %vm370 = vcmp.lt.s32.totalorder %v304, %v319
        %vm371 = vcmp.lt.s32.totalorder %v305, %v319
        %vm372 = vcmp.lt.s32.totalorder %v306, %v319
        %vm373 = vcmp.lt.s32.totalorder %v307, %v319
        %vm374 = vcmp.lt.s32.totalorder %v308, %v319
        %vm375 = vcmp.lt.s32.totalorder %v309, %v319
        %vm376 = vcmp.lt.s32.totalorder %v310, %v319
        %vm377 = vcmp.lt.s32.totalorder %v311, %v319
        %vm378 = vcmp.lt.s32.totalorder %v312, %v319
        %vm379 = vcmp.lt.s32.totalorder %v313, %v319
        %vm380 = vcmp.lt.s32.totalorder %v314, %v319
        %vm381 = vcmp.lt.s32.totalorder %v315, %v319
        %vm382 = vcmp.lt.s32.totalorder %v316, %v319
        %vm383 = vcmp.lt.s32.totalorder %v317, %v319
        %v384 = vlaneseq
        %v385 = vshrl.u32 %v384, 7
        %v386 = vadd.s32 %v385, 8
        %v387 = vadd.s32 %v385, 16
        %v388 = vadd.s32 %v385, 24
        %v389 = vadd.s32 %v385, 32
        %v390 = vadd.s32 %v385, 40
        %v391 = vadd.s32 %v385, 48
        %v392 = vadd.s32 %v385, 56
        %v393 = vadd.s32 %v385, 64
        %v394 = vadd.s32 %v385, 72
        %v395 = vadd.s32 %v385, 80
        %v396 = vadd.s32 %v385, 88
        %v397 = vadd.s32 %v385, 96
        %v398 = vadd.s32 %v385, 104
        %v399 = vadd.s32 %v385, 112
        %v400 = vadd.s32 %v385, 120
        %v401 = vcvt.s32.f32 %v385
        %v402 = vcvt.s32.f32 %v386
        %v403 = vcvt.s32.f32 %v387
        %v404 = vcvt.s32.f32 %v388
        %v405 = vcvt.s32.f32 %v389
        %v406 = vcvt.s32.f32 %v390
        %v407 = vcvt.s32.f32 %v391
        %v408 = vcvt.s32.f32 %v392
        %v409 = vcvt.s32.f32 %v393
        %v410 = vcvt.s32.f32 %v394
        %v411 = vcvt.s32.f32 %v395
        %v412 = vcvt.s32.f32 %v396
        %v413 = vcvt.s32.f32 %v397
        %v414 = vcvt.s32.f32 %v398
        %v415 = vcvt.s32.f32 %v399
        %v416 = vcvt.s32.f32 %v400
        %v417 = vmul.f32 %v401, 0.007874016
        %v418 = vmul.f32 %v402, 0.007874016
        %v419 = vmul.f32 %v403, 0.007874016
        %v420 = vmul.f32 %v404, 0.007874016
        %v421 = vmul.f32 %v405, 0.007874016
        %v422 = vmul.f32 %v406, 0.007874016
        %v423 = vmul.f32 %v407, 0.007874016
        %v424 = vmul.f32 %v408, 0.007874016
        %v425 = vmul.f32 %v409, 0.007874016
        %v426 = vmul.f32 %v410, 0.007874016
        %v427 = vmul.f32 %v411, 0.007874016
        %v428 = vmul.f32 %v412, 0.007874016
        %v429 = vmul.f32 %v413, 0.007874016
        %v430 = vmul.f32 %v414, 0.007874016
        %v431 = vmul.f32 %v415, 0.007874016
        %v432 = vmul.f32 %v416, 0.007874016
        %v441 = vlaneseq
        %v442 = vshrl.u32 %v441, 7
        %v443 = vsub.s32 0, %v442
        %v444 = vrot.slane %v156, %v443
        %v445 = vlaneseq
        %v446 = vshrl.u32 %v445, 7
        %v447 = vsub.s32 1, %v446
        %v448 = vrot.slane %v156, %v447
        %v449 = vlaneseq
        %v450 = vshrl.u32 %v449, 7
        %v451 = vsub.s32 2, %v450
        %v452 = vrot.slane %v156, %v451
        %v453 = vlaneseq
        %v454 = vshrl.u32 %v453, 7
        %v455 = vsub.s32 3, %v454
        %v456 = vrot.slane %v156, %v455
        %v457 = vlaneseq
        %v458 = vshrl.u32 %v457, 7
        %v459 = vsub.s32 4, %v458
        %v460 = vrot.slane %v156, %v459
        %v461 = vlaneseq
        %v462 = vshrl.u32 %v461, 7
        %v463 = vsub.s32 5, %v462
        %v464 = vrot.slane %v156, %v463
        %v465 = vlaneseq
        %v466 = vshrl.u32 %v465, 7
        %v467 = vsub.s32 6, %v466
        %v468 = vrot.slane %v156, %v467
        %v469 = vlaneseq
        %v470 = vshrl.u32 %v469, 7
        %v471 = vsub.s32 7, %v470
        %v472 = vrot.slane %v156, %v471
        %v473 = vlaneseq
        %v474 = vshrl.u32 %v473, 7
        %v475 = vsub.s32 0, %v474
        %v476 = vrot.slane %v158, %v475
        %v477 = vlaneseq
        %v478 = vshrl.u32 %v477, 7
        %v479 = vsub.s32 1, %v478
        %v480 = vrot.slane %v158, %v479
        %v481 = vlaneseq
        %v482 = vshrl.u32 %v481, 7
        %v483 = vsub.s32 2, %v482
        %v484 = vrot.slane %v158, %v483
        %v485 = vlaneseq
        %v486 = vshrl.u32 %v485, 7
        %v487 = vsub.s32 3, %v486
        %v488 = vrot.slane %v158, %v487
        %v489 = vlaneseq
        %v490 = vshrl.u32 %v489, 7
        %v491 = vsub.s32 4, %v490
        %v492 = vrot.slane %v158, %v491
        %v493 = vlaneseq
        %v494 = vshrl.u32 %v493, 7
        %v495 = vsub.s32 5, %v494
        %v496 = vrot.slane %v158, %v495
        %v497 = vlaneseq
        %v498 = vshrl.u32 %v497, 7
        %v499 = vsub.s32 6, %v498
        %v500 = vrot.slane %v158, %v499
        %v501 = vlaneseq
        %v502 = vshrl.u32 %v501, 7
        %v503 = vsub.s32 7, %v502
        %v504 = vrot.slane %v158, %v503
        %v505 = vlaneseq
        %v506 = vshrl.u32 %v505, 7
        %v507 = vsub.s32 0, %v506
        %v508 = vrot.slane %v160, %v507
        %v509 = vlaneseq
        %v510 = vshrl.u32 %v509, 7
        %v511 = vsub.s32 1, %v510
        %v512 = vrot.slane %v160, %v511
        %v513 = vlaneseq
        %v514 = vshrl.u32 %v513, 7
        %v515 = vsub.s32 2, %v514
        %v516 = vrot.slane %v160, %v515
        %v517 = vlaneseq
        %v518 = vshrl.u32 %v517, 7
        %v519 = vsub.s32 3, %v518
        %v520 = vrot.slane %v160, %v519
        %v521 = vlaneseq
        %v522 = vshrl.u32 %v521, 7
        %v523 = vsub.s32 4, %v522
        %v524 = vrot.slane %v160, %v523
        %v525 = vlaneseq
        %v526 = vshrl.u32 %v525, 7
        %v527 = vsub.s32 5, %v526
        %v528 = vrot.slane %v160, %v527
        %v529 = vlaneseq
        %v530 = vshrl.u32 %v529, 7
        %v531 = vsub.s32 6, %v530
        %v532 = vrot.slane %v160, %v531
        %v533 = vlaneseq
        %v534 = vshrl.u32 %v533, 7
        %v535 = vsub.s32 7, %v534
        %v536 = vrot.slane %v160, %v535
        %v537 = vlaneseq
        %v538 = vshrl.u32 %v537, 7
        %v539 = vsub.s32 0, %v538
        %v540 = vrot.slane %v162, %v539
        %v541 = vlaneseq
        %v542 = vshrl.u32 %v541, 7
        %v543 = vsub.s32 1, %v542
        %v544 = vrot.slane %v162, %v543
        %v545 = vlaneseq
        %v546 = vshrl.u32 %v545, 7
        %v547 = vsub.s32 2, %v546
        %v548 = vrot.slane %v162, %v547
        %v549 = vlaneseq
        %v550 = vshrl.u32 %v549, 7
        %v551 = vsub.s32 3, %v550
        %v552 = vrot.slane %v162, %v551
        %v553 = vlaneseq
        %v554 = vshrl.u32 %v553, 7
        %v555 = vsub.s32 4, %v554
        %v556 = vrot.slane %v162, %v555
        %v557 = vlaneseq
        %v558 = vshrl.u32 %v557, 7
        %v559 = vsub.s32 5, %v558
        %v560 = vrot.slane %v162, %v559
        %v561 = vlaneseq
        %v562 = vshrl.u32 %v561, 7
        %v563 = vsub.s32 6, %v562
        %v564 = vrot.slane %v162, %v563
        %v565 = vlaneseq
        %v566 = vshrl.u32 %v565, 7
        %v567 = vsub.s32 7, %v566
        %v568 = vrot.slane %v162, %v567
        %v569 = vlaneseq
        %v570 = vshrl.u32 %v569, 7
        %v571 = vsub.s32 0, %v570
        %v572 = vrot.slane %v164, %v571
        %v573 = vlaneseq
        %v574 = vshrl.u32 %v573, 7
        %v575 = vsub.s32 1, %v574
        %v576 = vrot.slane %v164, %v575
        %v577 = vlaneseq
        %v578 = vshrl.u32 %v577, 7
        %v579 = vsub.s32 2, %v578
        %v580 = vrot.slane %v164, %v579
        %v581 = vlaneseq
        %v582 = vshrl.u32 %v581, 7
        %v583 = vsub.s32 3, %v582
        %v584 = vrot.slane %v164, %v583
        %v585 = vlaneseq
        %v586 = vshrl.u32 %v585, 7
        %v587 = vsub.s32 4, %v586
        %v588 = vrot.slane %v164, %v587
        %v589 = vlaneseq
        %v590 = vshrl.u32 %v589, 7
        %v591 = vsub.s32 5, %v590
        %v592 = vrot.slane %v164, %v591
        %v593 = vlaneseq
        %v594 = vshrl.u32 %v593, 7
        %v595 = vsub.s32 6, %v594
        %v596 = vrot.slane %v164, %v595
        %v597 = vlaneseq
        %v598 = vshrl.u32 %v597, 7
        %v599 = vsub.s32 7, %v598
        %v600 = vrot.slane %v164, %v599
        %v601 = vlaneseq
        %v602 = vshrl.u32 %v601, 7
        %v603 = vsub.s32 0, %v602
        %v604 = vrot.slane %v166, %v603
        %v605 = vlaneseq
        %v606 = vshrl.u32 %v605, 7
        %v607 = vsub.s32 1, %v606
        %v608 = vrot.slane %v166, %v607
        %v609 = vlaneseq
        %v610 = vshrl.u32 %v609, 7
        %v611 = vsub.s32 2, %v610
        %v612 = vrot.slane %v166, %v611
        %v613 = vlaneseq
        %v614 = vshrl.u32 %v613, 7
        %v615 = vsub.s32 3, %v614
        %v616 = vrot.slane %v166, %v615
        %v617 = vlaneseq
        %v618 = vshrl.u32 %v617, 7
        %v619 = vsub.s32 4, %v618
        %v620 = vrot.slane %v166, %v619
        %v621 = vlaneseq
        %v622 = vshrl.u32 %v621, 7
        %v623 = vsub.s32 5, %v622
        %v624 = vrot.slane %v166, %v623
        %v625 = vlaneseq
        %v626 = vshrl.u32 %v625, 7
        %v627 = vsub.s32 6, %v626
        %v628 = vrot.slane %v166, %v627
        %v629 = vlaneseq
        %v630 = vshrl.u32 %v629, 7
        %v631 = vsub.s32 7, %v630
        %v632 = vrot.slane %v166, %v631
        %v633 = vlaneseq
        %v634 = vshrl.u32 %v633, 7
        %v635 = vsub.s32 0, %v634
        %v636 = vrot.slane %v168, %v635
        %v637 = vlaneseq
        %v638 = vshrl.u32 %v637, 7
        %v639 = vsub.s32 1, %v638
        %v640 = vrot.slane %v168, %v639
        %v641 = vlaneseq
        %v642 = vshrl.u32 %v641, 7
        %v643 = vsub.s32 2, %v642
        %v644 = vrot.slane %v168, %v643
        %v645 = vlaneseq
        %v646 = vshrl.u32 %v645, 7
        %v647 = vsub.s32 3, %v646
        %v648 = vrot.slane %v168, %v647
        %v649 = vlaneseq
        %v650 = vshrl.u32 %v649, 7
        %v651 = vsub.s32 4, %v650
        %v652 = vrot.slane %v168, %v651
        %v653 = vlaneseq
        %v654 = vshrl.u32 %v653, 7
        %v655 = vsub.s32 5, %v654
        %v656 = vrot.slane %v168, %v655
        %v657 = vlaneseq
        %v658 = vshrl.u32 %v657, 7
        %v659 = vsub.s32 6, %v658
        %v660 = vrot.slane %v168, %v659
        %v661 = vlaneseq
        %v662 = vshrl.u32 %v661, 7
        %v663 = vsub.s32 7, %v662
        %v664 = vrot.slane %v168, %v663
        %v665 = vlaneseq
        %v666 = vshrl.u32 %v665, 7
        %v667 = vsub.s32 0, %v666
        %v668 = vrot.slane %v170, %v667
        %v669 = vlaneseq
        %v670 = vshrl.u32 %v669, 7
        %v671 = vsub.s32 1, %v670
        %v672 = vrot.slane %v170, %v671
        %v673 = vlaneseq
        %v674 = vshrl.u32 %v673, 7
        %v675 = vsub.s32 2, %v674
        %v676 = vrot.slane %v170, %v675
        %v677 = vlaneseq
        %v678 = vshrl.u32 %v677, 7
        %v679 = vsub.s32 3, %v678
        %v680 = vrot.slane %v170, %v679
        %v681 = vlaneseq
        %v682 = vshrl.u32 %v681, 7
        %v683 = vsub.s32 4, %v682
        %v684 = vrot.slane %v170, %v683
        %v685 = vlaneseq
        %v686 = vshrl.u32 %v685, 7
        %v687 = vsub.s32 5, %v686
        %v688 = vrot.slane %v170, %v687
        %v689 = vlaneseq
        %v690 = vshrl.u32 %v689, 7
        %v691 = vsub.s32 6, %v690
        %v692 = vrot.slane %v170, %v691
        %v693 = vlaneseq
        %v694 = vshrl.u32 %v693, 7
        %v695 = vsub.s32 7, %v694
        %v696 = vrot.slane %v170, %v695
        %vm761 = vcmp.ge.f32.partialorder %v444, %v417
        %vm762 = vcmp.ge.f32.partialorder %v448, %v417
        %vm763 = vcmp.ge.f32.partialorder %v452, %v417
        %vm764 = vcmp.ge.f32.partialorder %v456, %v417
        %vm765 = vcmp.ge.f32.partialorder %v460, %v417
        %vm766 = vcmp.ge.f32.partialorder %v464, %v417
        %vm767 = vcmp.ge.f32.partialorder %v468, %v417
        %vm768 = vcmp.ge.f32.partialorder %v472, %v417
        %vm769 = vcmp.ge.f32.partialorder %v476, %v417
        %vm770 = vcmp.ge.f32.partialorder %v480, %v417
        %vm771 = vcmp.ge.f32.partialorder %v484, %v417
        %vm772 = vcmp.ge.f32.partialorder %v488, %v417
        %vm773 = vcmp.ge.f32.partialorder %v492, %v417
        %vm774 = vcmp.ge.f32.partialorder %v496, %v417
        %vm775 = vcmp.ge.f32.partialorder %v500, %v417
        %vm776 = vcmp.ge.f32.partialorder %v504, %v417
        %vm777 = vcmp.ge.f32.partialorder %v508, %v417
        %vm778 = vcmp.ge.f32.partialorder %v512, %v417
        %vm779 = vcmp.ge.f32.partialorder %v516, %v417
        %vm780 = vcmp.ge.f32.partialorder %v520, %v417
        %vm781 = vcmp.ge.f32.partialorder %v524, %v417
        %vm782 = vcmp.ge.f32.partialorder %v528, %v417
        %vm783 = vcmp.ge.f32.partialorder %v532, %v417
        %vm784 = vcmp.ge.f32.partialorder %v536, %v417
        %vm785 = vcmp.ge.f32.partialorder %v540, %v417
        %vm786 = vcmp.ge.f32.partialorder %v544, %v417
        %vm787 = vcmp.ge.f32.partialorder %v548, %v417
        %vm788 = vcmp.ge.f32.partialorder %v552, %v417
        %vm789 = vcmp.ge.f32.partialorder %v556, %v417
        %vm790 = vcmp.ge.f32.partialorder %v560, %v417
        %vm791 = vcmp.ge.f32.partialorder %v564, %v417
        %vm792 = vcmp.ge.f32.partialorder %v568, %v417
        %vm793 = vcmp.ge.f32.partialorder %v572, %v417
        %vm794 = vcmp.ge.f32.partialorder %v576, %v417
        %vm795 = vcmp.ge.f32.partialorder %v580, %v417
        %vm796 = vcmp.ge.f32.partialorder %v584, %v417
        %vm797 = vcmp.ge.f32.partialorder %v588, %v417
        %vm798 = vcmp.ge.f32.partialorder %v592, %v417
        %vm799 = vcmp.ge.f32.partialorder %v596, %v417
        %vm800 = vcmp.ge.f32.partialorder %v600, %v417
        %vm801 = vcmp.ge.f32.partialorder %v604, %v417
        %vm802 = vcmp.ge.f32.partialorder %v608, %v417
        %vm803 = vcmp.ge.f32.partialorder %v612, %v417
        %vm804 = vcmp.ge.f32.partialorder %v616, %v417
        %vm805 = vcmp.ge.f32.partialorder %v620, %v417
        %vm806 = vcmp.ge.f32.partialorder %v624, %v417
        %vm807 = vcmp.ge.f32.partialorder %v628, %v417
        %vm808 = vcmp.ge.f32.partialorder %v632, %v417
        %vm809 = vcmp.ge.f32.partialorder %v636, %v417
        %vm810 = vcmp.ge.f32.partialorder %v640, %v417
        %vm811 = vcmp.ge.f32.partialorder %v644, %v417
        %vm812 = vcmp.ge.f32.partialorder %v648, %v417
        %vm813 = vcmp.ge.f32.partialorder %v652, %v417
        %vm814 = vcmp.ge.f32.partialorder %v656, %v417
        %vm815 = vcmp.ge.f32.partialorder %v660, %v417
        %vm816 = vcmp.ge.f32.partialorder %v664, %v417
        %vm817 = vcmp.ge.f32.partialorder %v668, %v417
        %vm818 = vcmp.ge.f32.partialorder %v672, %v417
        %vm819 = vcmp.ge.f32.partialorder %v676, %v417
        %vm820 = vcmp.ge.f32.partialorder %v680, %v417
        %vm821 = vcmp.ge.f32.partialorder %v684, %v417
        %vm822 = vcmp.ge.f32.partialorder %v688, %v417
        %vm823 = vcmp.ge.f32.partialorder %v692, %v417
        %vm824 = vcmp.ge.f32.partialorder %v696, %v417
        %vm825 = vcmp.ge.f32.partialorder %v444, %v418
        %vm826 = vcmp.ge.f32.partialorder %v448, %v418
        %vm827 = vcmp.ge.f32.partialorder %v452, %v418
        %vm828 = vcmp.ge.f32.partialorder %v456, %v418
        %vm829 = vcmp.ge.f32.partialorder %v460, %v418
        %vm830 = vcmp.ge.f32.partialorder %v464, %v418
        %vm831 = vcmp.ge.f32.partialorder %v468, %v418
        %vm832 = vcmp.ge.f32.partialorder %v472, %v418
        %vm833 = vcmp.ge.f32.partialorder %v476, %v418
        %vm834 = vcmp.ge.f32.partialorder %v480, %v418
        %vm835 = vcmp.ge.f32.partialorder %v484, %v418
        %vm836 = vcmp.ge.f32.partialorder %v488, %v418
        %vm837 = vcmp.ge.f32.partialorder %v492, %v418
        %vm838 = vcmp.ge.f32.partialorder %v496, %v418
        %vm839 = vcmp.ge.f32.partialorder %v500, %v418
        %vm840 = vcmp.ge.f32.partialorder %v504, %v418
        %vm841 = vcmp.ge.f32.partialorder %v508, %v418
        %vm842 = vcmp.ge.f32.partialorder %v512, %v418
        %vm843 = vcmp.ge.f32.partialorder %v516, %v418
        %vm844 = vcmp.ge.f32.partialorder %v520, %v418
        %vm845 = vcmp.ge.f32.partialorder %v524, %v418
        %vm846 = vcmp.ge.f32.partialorder %v528, %v418
        %vm847 = vcmp.ge.f32.partialorder %v532, %v418
        %vm848 = vcmp.ge.f32.partialorder %v536, %v418
        %vm849 = vcmp.ge.f32.partialorder %v540, %v418
        %vm850 = vcmp.ge.f32.partialorder %v544, %v418
        %vm851 = vcmp.ge.f32.partialorder %v548, %v418
        %vm852 = vcmp.ge.f32.partialorder %v552, %v418
        %vm853 = vcmp.ge.f32.partialorder %v556, %v418
        %vm854 = vcmp.ge.f32.partialorder %v560, %v418
        %vm855 = vcmp.ge.f32.partialorder %v564, %v418
        %vm856 = vcmp.ge.f32.partialorder %v568, %v418
        %vm857 = vcmp.ge.f32.partialorder %v572, %v418
        %vm858 = vcmp.ge.f32.partialorder %v576, %v418
        %vm859 = vcmp.ge.f32.partialorder %v580, %v418
        %vm860 = vcmp.ge.f32.partialorder %v584, %v418
        %vm861 = vcmp.ge.f32.partialorder %v588, %v418
        %vm862 = vcmp.ge.f32.partialorder %v592, %v418
        %vm863 = vcmp.ge.f32.partialorder %v596, %v418
        %vm864 = vcmp.ge.f32.partialorder %v600, %v418
        %vm865 = vcmp.ge.f32.partialorder %v604, %v418
        %vm866 = vcmp.ge.f32.partialorder %v608, %v418
        %vm867 = vcmp.ge.f32.partialorder %v612, %v418
        %vm868 = vcmp.ge.f32.partialorder %v616, %v418
        %vm869 = vcmp.ge.f32.partialorder %v620, %v418
        %vm870 = vcmp.ge.f32.partialorder %v624, %v418
        %vm871 = vcmp.ge.f32.partialorder %v628, %v418
        %vm872 = vcmp.ge.f32.partialorder %v632, %v418
        %vm873 = vcmp.ge.f32.partialorder %v636, %v418
        %vm874 = vcmp.ge.f32.partialorder %v640, %v418
        %vm875 = vcmp.ge.f32.partialorder %v644, %v418
        %vm876 = vcmp.ge.f32.partialorder %v648, %v418
        %vm877 = vcmp.ge.f32.partialorder %v652, %v418
        %vm878 = vcmp.ge.f32.partialorder %v656, %v418
        %vm879 = vcmp.ge.f32.partialorder %v660, %v418
        %vm880 = vcmp.ge.f32.partialorder %v664, %v418
        %vm881 = vcmp.ge.f32.partialorder %v668, %v418
        %vm882 = vcmp.ge.f32.partialorder %v672, %v418
        %vm883 = vcmp.ge.f32.partialorder %v676, %v418
        %vm884 = vcmp.ge.f32.partialorder %v680, %v418
        %vm885 = vcmp.ge.f32.partialorder %v684, %v418
        %vm886 = vcmp.ge.f32.partialorder %v688, %v418
        %vm887 = vcmp.ge.f32.partialorder %v692, %v418
        %vm888 = vcmp.ge.f32.partialorder %v696, %v418
        %vm889 = vcmp.ge.f32.partialorder %v444, %v419
        %vm890 = vcmp.ge.f32.partialorder %v448, %v419
        %vm891 = vcmp.ge.f32.partialorder %v452, %v419
        %vm892 = vcmp.ge.f32.partialorder %v456, %v419
        %vm893 = vcmp.ge.f32.partialorder %v460, %v419
        %vm894 = vcmp.ge.f32.partialorder %v464, %v419
        %vm895 = vcmp.ge.f32.partialorder %v468, %v419
        %vm896 = vcmp.ge.f32.partialorder %v472, %v419
        %vm897 = vcmp.ge.f32.partialorder %v476, %v419
        %vm898 = vcmp.ge.f32.partialorder %v480, %v419
        %vm899 = vcmp.ge.f32.partialorder %v484, %v419
        %vm900 = vcmp.ge.f32.partialorder %v488, %v419
        %vm901 = vcmp.ge.f32.partialorder %v492, %v419
        %vm902 = vcmp.ge.f32.partialorder %v496, %v419
        %vm903 = vcmp.ge.f32.partialorder %v500, %v419
        %vm904 = vcmp.ge.f32.partialorder %v504, %v419
        %vm905 = vcmp.ge.f32.partialorder %v508, %v419
        %vm906 = vcmp.ge.f32.partialorder %v512, %v419
        %vm907 = vcmp.ge.f32.partialorder %v516, %v419
        %vm908 = vcmp.ge.f32.partialorder %v520, %v419
        %vm909 = vcmp.ge.f32.partialorder %v524, %v419
        %vm910 = vcmp.ge.f32.partialorder %v528, %v419
        %vm911 = vcmp.ge.f32.partialorder %v532, %v419
        %vm912 = vcmp.ge.f32.partialorder %v536, %v419
        %vm913 = vcmp.ge.f32.partialorder %v540, %v419
        %vm914 = vcmp.ge.f32.partialorder %v544, %v419
        %vm915 = vcmp.ge.f32.partialorder %v548, %v419
        %vm916 = vcmp.ge.f32.partialorder %v552, %v419
        %vm917 = vcmp.ge.f32.partialorder %v556, %v419
        %vm918 = vcmp.ge.f32.partialorder %v560, %v419
        %vm919 = vcmp.ge.f32.partialorder %v564, %v419
        %vm920 = vcmp.ge.f32.partialorder %v568, %v419
        %vm921 = vcmp.ge.f32.partialorder %v572, %v419
        %vm922 = vcmp.ge.f32.partialorder %v576, %v419
        %vm923 = vcmp.ge.f32.partialorder %v580, %v419
        %vm924 = vcmp.ge.f32.partialorder %v584, %v419
        %vm925 = vcmp.ge.f32.partialorder %v588, %v419
        %vm926 = vcmp.ge.f32.partialorder %v592, %v419
        %vm927 = vcmp.ge.f32.partialorder %v596, %v419
        %vm928 = vcmp.ge.f32.partialorder %v600, %v419
        %vm929 = vcmp.ge.f32.partialorder %v604, %v419
        %vm930 = vcmp.ge.f32.partialorder %v608, %v419
        %vm931 = vcmp.ge.f32.partialorder %v612, %v419
        %vm932 = vcmp.ge.f32.partialorder %v616, %v419
        %vm933 = vcmp.ge.f32.partialorder %v620, %v419
        %vm934 = vcmp.ge.f32.partialorder %v624, %v419
        %vm935 = vcmp.ge.f32.partialorder %v628, %v419
        %vm936 = vcmp.ge.f32.partialorder %v632, %v419
        %vm937 = vcmp.ge.f32.partialorder %v636, %v419
        %vm938 = vcmp.ge.f32.partialorder %v640, %v419
        %vm939 = vcmp.ge.f32.partialorder %v644, %v419
        %vm940 = vcmp.ge.f32.partialorder %v648, %v419
        %vm941 = vcmp.ge.f32.partialorder %v652, %v419
        %vm942 = vcmp.ge.f32.partialorder %v656, %v419
        %vm943 = vcmp.ge.f32.partialorder %v660, %v419
        %vm944 = vcmp.ge.f32.partialorder %v664, %v419
        %vm945 = vcmp.ge.f32.partialorder %v668, %v419
        %vm946 = vcmp.ge.f32.partialorder %v672, %v419
        %vm947 = vcmp.ge.f32.partialorder %v676, %v419
        %vm948 = vcmp.ge.f32.partialorder %v680, %v419
        %vm949 = vcmp.ge.f32.partialorder %v684, %v419
        %vm950 = vcmp.ge.f32.partialorder %v688, %v419
        %vm951 = vcmp.ge.f32.partialorder %v692, %v419
        %vm952 = vcmp.ge.f32.partialorder %v696, %v419
        %vm953 = vcmp.ge.f32.partialorder %v444, %v420
        %vm954 = vcmp.ge.f32.partialorder %v448, %v420
        %vm955 = vcmp.ge.f32.partialorder %v452, %v420
        %vm956 = vcmp.ge.f32.partialorder %v456, %v420
        %vm957 = vcmp.ge.f32.partialorder %v460, %v420
        %vm958 = vcmp.ge.f32.partialorder %v464, %v420
        %vm959 = vcmp.ge.f32.partialorder %v468, %v420
        %vm960 = vcmp.ge.f32.partialorder %v472, %v420
        %vm961 = vcmp.ge.f32.partialorder %v476, %v420
        %vm962 = vcmp.ge.f32.partialorder %v480, %v420
        %vm963 = vcmp.ge.f32.partialorder %v484, %v420
        %vm964 = vcmp.ge.f32.partialorder %v488, %v420
        %vm965 = vcmp.ge.f32.partialorder %v492, %v420
        %vm966 = vcmp.ge.f32.partialorder %v496, %v420
        %vm967 = vcmp.ge.f32.partialorder %v500, %v420
        %vm968 = vcmp.ge.f32.partialorder %v504, %v420
        %vm969 = vcmp.ge.f32.partialorder %v508, %v420
        %vm970 = vcmp.ge.f32.partialorder %v512, %v420
        %vm971 = vcmp.ge.f32.partialorder %v516, %v420
        %vm972 = vcmp.ge.f32.partialorder %v520, %v420
        %vm973 = vcmp.ge.f32.partialorder %v524, %v420
        %vm974 = vcmp.ge.f32.partialorder %v528, %v420
        %vm975 = vcmp.ge.f32.partialorder %v532, %v420
        %vm976 = vcmp.ge.f32.partialorder %v536, %v420
        %vm977 = vcmp.ge.f32.partialorder %v540, %v420
        %vm978 = vcmp.ge.f32.partialorder %v544, %v420
        %vm979 = vcmp.ge.f32.partialorder %v548, %v420
        %vm980 = vcmp.ge.f32.partialorder %v552, %v420
        %vm981 = vcmp.ge.f32.partialorder %v556, %v420
        %vm982 = vcmp.ge.f32.partialorder %v560, %v420
        %vm983 = vcmp.ge.f32.partialorder %v564, %v420
        %vm984 = vcmp.ge.f32.partialorder %v568, %v420
        %vm985 = vcmp.ge.f32.partialorder %v572, %v420
        %vm986 = vcmp.ge.f32.partialorder %v576, %v420
        %vm987 = vcmp.ge.f32.partialorder %v580, %v420
        %vm988 = vcmp.ge.f32.partialorder %v584, %v420
        %vm989 = vcmp.ge.f32.partialorder %v588, %v420
        %vm990 = vcmp.ge.f32.partialorder %v592, %v420
        %vm991 = vcmp.ge.f32.partialorder %v596, %v420
        %vm992 = vcmp.ge.f32.partialorder %v600, %v420
        %vm993 = vcmp.ge.f32.partialorder %v604, %v420
        %vm994 = vcmp.ge.f32.partialorder %v608, %v420
        %vm995 = vcmp.ge.f32.partialorder %v612, %v420
        %vm996 = vcmp.ge.f32.partialorder %v616, %v420
        %vm997 = vcmp.ge.f32.partialorder %v620, %v420
        %vm998 = vcmp.ge.f32.partialorder %v624, %v420
        %vm999 = vcmp.ge.f32.partialorder %v628, %v420
        %vm1000 = vcmp.ge.f32.partialorder %v632, %v420
        %vm1001 = vcmp.ge.f32.partialorder %v636, %v420
        %vm1002 = vcmp.ge.f32.partialorder %v640, %v420
        %vm1003 = vcmp.ge.f32.partialorder %v644, %v420
        %vm1004 = vcmp.ge.f32.partialorder %v648, %v420
        %vm1005 = vcmp.ge.f32.partialorder %v652, %v420
        %vm1006 = vcmp.ge.f32.partialorder %v656, %v420
        %vm1007 = vcmp.ge.f32.partialorder %v660, %v420
        %vm1008 = vcmp.ge.f32.partialorder %v664, %v420
        %vm1009 = vcmp.ge.f32.partialorder %v668, %v420
        %vm1010 = vcmp.ge.f32.partialorder %v672, %v420
        %vm1011 = vcmp.ge.f32.partialorder %v676, %v420
        %vm1012 = vcmp.ge.f32.partialorder %v680, %v420
        %vm1013 = vcmp.ge.f32.partialorder %v684, %v420
        %vm1014 = vcmp.ge.f32.partialorder %v688, %v420
        %vm1015 = vcmp.ge.f32.partialorder %v692, %v420
        %vm1016 = vcmp.ge.f32.partialorder %v696, %v420
        %vm1017 = vcmp.ge.f32.partialorder %v444, %v421
        %vm1018 = vcmp.ge.f32.partialorder %v448, %v421
        %vm1019 = vcmp.ge.f32.partialorder %v452, %v421
        %vm1020 = vcmp.ge.f32.partialorder %v456, %v421
        %vm1021 = vcmp.ge.f32.partialorder %v460, %v421
        %vm1022 = vcmp.ge.f32.partialorder %v464, %v421
        %vm1023 = vcmp.ge.f32.partialorder %v468, %v421
        %vm1024 = vcmp.ge.f32.partialorder %v472, %v421
        %vm1025 = vcmp.ge.f32.partialorder %v476, %v421
        %vm1026 = vcmp.ge.f32.partialorder %v480, %v421
        %vm1027 = vcmp.ge.f32.partialorder %v484, %v421
        %vm1028 = vcmp.ge.f32.partialorder %v488, %v421
        %vm1029 = vcmp.ge.f32.partialorder %v492, %v421
        %vm1030 = vcmp.ge.f32.partialorder %v496, %v421
        %vm1031 = vcmp.ge.f32.partialorder %v500, %v421
        %vm1032 = vcmp.ge.f32.partialorder %v504, %v421
        %vm1033 = vcmp.ge.f32.partialorder %v508, %v421
        %vm1034 = vcmp.ge.f32.partialorder %v512, %v421
        %vm1035 = vcmp.ge.f32.partialorder %v516, %v421
        %vm1036 = vcmp.ge.f32.partialorder %v520, %v421
        %vm1037 = vcmp.ge.f32.partialorder %v524, %v421
        %vm1038 = vcmp.ge.f32.partialorder %v528, %v421
        %vm1039 = vcmp.ge.f32.partialorder %v532, %v421
        %vm1040 = vcmp.ge.f32.partialorder %v536, %v421
        %vm1041 = vcmp.ge.f32.partialorder %v540, %v421
        %vm1042 = vcmp.ge.f32.partialorder %v544, %v421
        %vm1043 = vcmp.ge.f32.partialorder %v548, %v421
        %vm1044 = vcmp.ge.f32.partialorder %v552, %v421
        %vm1045 = vcmp.ge.f32.partialorder %v556, %v421
        %vm1046 = vcmp.ge.f32.partialorder %v560, %v421
        %vm1047 = vcmp.ge.f32.partialorder %v564, %v421
        %vm1048 = vcmp.ge.f32.partialorder %v568, %v421
        %vm1049 = vcmp.ge.f32.partialorder %v572, %v421
        %vm1050 = vcmp.ge.f32.partialorder %v576, %v421
        %vm1051 = vcmp.ge.f32.partialorder %v580, %v421
        %vm1052 = vcmp.ge.f32.partialorder %v584, %v421
        %vm1053 = vcmp.ge.f32.partialorder %v588, %v421
        %vm1054 = vcmp.ge.f32.partialorder %v592, %v421
        %vm1055 = vcmp.ge.f32.partialorder %v596, %v421
        %vm1056 = vcmp.ge.f32.partialorder %v600, %v421
        %vm1057 = vcmp.ge.f32.partialorder %v604, %v421
        %vm1058 = vcmp.ge.f32.partialorder %v608, %v421
        %vm1059 = vcmp.ge.f32.partialorder %v612, %v421
        %vm1060 = vcmp.ge.f32.partialorder %v616, %v421
        %vm1061 = vcmp.ge.f32.partialorder %v620, %v421
        %vm1062 = vcmp.ge.f32.partialorder %v624, %v421
        %vm1063 = vcmp.ge.f32.partialorder %v628, %v421
        %vm1064 = vcmp.ge.f32.partialorder %v632, %v421
        %vm1065 = vcmp.ge.f32.partialorder %v636, %v421
        %vm1066 = vcmp.ge.f32.partialorder %v640, %v421
        %vm1067 = vcmp.ge.f32.partialorder %v644, %v421
        %vm1068 = vcmp.ge.f32.partialorder %v648, %v421
        %vm1069 = vcmp.ge.f32.partialorder %v652, %v421
        %vm1070 = vcmp.ge.f32.partialorder %v656, %v421
        %vm1071 = vcmp.ge.f32.partialorder %v660, %v421
        %vm1072 = vcmp.ge.f32.partialorder %v664, %v421
        %vm1073 = vcmp.ge.f32.partialorder %v668, %v421
        %vm1074 = vcmp.ge.f32.partialorder %v672, %v421
        %vm1075 = vcmp.ge.f32.partialorder %v676, %v421
        %vm1076 = vcmp.ge.f32.partialorder %v680, %v421
        %vm1077 = vcmp.ge.f32.partialorder %v684, %v421
        %vm1078 = vcmp.ge.f32.partialorder %v688, %v421
        %vm1079 = vcmp.ge.f32.partialorder %v692, %v421
        %vm1080 = vcmp.ge.f32.partialorder %v696, %v421
        %vm1081 = vcmp.ge.f32.partialorder %v444, %v422
        %vm1082 = vcmp.ge.f32.partialorder %v448, %v422
        %vm1083 = vcmp.ge.f32.partialorder %v452, %v422
        %vm1084 = vcmp.ge.f32.partialorder %v456, %v422
        %vm1085 = vcmp.ge.f32.partialorder %v460, %v422
        %vm1086 = vcmp.ge.f32.partialorder %v464, %v422
        %vm1087 = vcmp.ge.f32.partialorder %v468, %v422
        %vm1088 = vcmp.ge.f32.partialorder %v472, %v422
        %vm1089 = vcmp.ge.f32.partialorder %v476, %v422
        %vm1090 = vcmp.ge.f32.partialorder %v480, %v422
        %vm1091 = vcmp.ge.f32.partialorder %v484, %v422
        %vm1092 = vcmp.ge.f32.partialorder %v488, %v422
        %vm1093 = vcmp.ge.f32.partialorder %v492, %v422
        %vm1094 = vcmp.ge.f32.partialorder %v496, %v422
        %vm1095 = vcmp.ge.f32.partialorder %v500, %v422
        %vm1096 = vcmp.ge.f32.partialorder %v504, %v422
        %vm1097 = vcmp.ge.f32.partialorder %v508, %v422
        %vm1098 = vcmp.ge.f32.partialorder %v512, %v422
        %vm1099 = vcmp.ge.f32.partialorder %v516, %v422
        %vm1100 = vcmp.ge.f32.partialorder %v520, %v422
        %vm1101 = vcmp.ge.f32.partialorder %v524, %v422
        %vm1102 = vcmp.ge.f32.partialorder %v528, %v422
        %vm1103 = vcmp.ge.f32.partialorder %v532, %v422
        %vm1104 = vcmp.ge.f32.partialorder %v536, %v422
        %vm1105 = vcmp.ge.f32.partialorder %v540, %v422
        %vm1106 = vcmp.ge.f32.partialorder %v544, %v422
        %vm1107 = vcmp.ge.f32.partialorder %v548, %v422
        %vm1108 = vcmp.ge.f32.partialorder %v552, %v422
        %vm1109 = vcmp.ge.f32.partialorder %v556, %v422
        %vm1110 = vcmp.ge.f32.partialorder %v560, %v422
        %vm1111 = vcmp.ge.f32.partialorder %v564, %v422
        %vm1112 = vcmp.ge.f32.partialorder %v568, %v422
        %vm1113 = vcmp.ge.f32.partialorder %v572, %v422
        %vm1114 = vcmp.ge.f32.partialorder %v576, %v422
        %vm1115 = vcmp.ge.f32.partialorder %v580, %v422
        %vm1116 = vcmp.ge.f32.partialorder %v584, %v422
        %vm1117 = vcmp.ge.f32.partialorder %v588, %v422
        %vm1118 = vcmp.ge.f32.partialorder %v592, %v422
        %vm1119 = vcmp.ge.f32.partialorder %v596, %v422
        %vm1120 = vcmp.ge.f32.partialorder %v600, %v422
        %vm1121 = vcmp.ge.f32.partialorder %v604, %v422
        %vm1122 = vcmp.ge.f32.partialorder %v608, %v422
        %vm1123 = vcmp.ge.f32.partialorder %v612, %v422
        %vm1124 = vcmp.ge.f32.partialorder %v616, %v422
        %vm1125 = vcmp.ge.f32.partialorder %v620, %v422
        %vm1126 = vcmp.ge.f32.partialorder %v624, %v422
        %vm1127 = vcmp.ge.f32.partialorder %v628, %v422
        %vm1128 = vcmp.ge.f32.partialorder %v632, %v422
        %vm1129 = vcmp.ge.f32.partialorder %v636, %v422
        %vm1130 = vcmp.ge.f32.partialorder %v640, %v422
        %vm1131 = vcmp.ge.f32.partialorder %v644, %v422
        %vm1132 = vcmp.ge.f32.partialorder %v648, %v422
        %vm1133 = vcmp.ge.f32.partialorder %v652, %v422
        %vm1134 = vcmp.ge.f32.partialorder %v656, %v422
        %vm1135 = vcmp.ge.f32.partialorder %v660, %v422
        %vm1136 = vcmp.ge.f32.partialorder %v664, %v422
        %vm1137 = vcmp.ge.f32.partialorder %v668, %v422
        %vm1138 = vcmp.ge.f32.partialorder %v672, %v422
        %vm1139 = vcmp.ge.f32.partialorder %v676, %v422
        %vm1140 = vcmp.ge.f32.partialorder %v680, %v422
        %vm1141 = vcmp.ge.f32.partialorder %v684, %v422
        %vm1142 = vcmp.ge.f32.partialorder %v688, %v422
        %vm1143 = vcmp.ge.f32.partialorder %v692, %v422
        %vm1144 = vcmp.ge.f32.partialorder %v696, %v422
        %vm1145 = vcmp.ge.f32.partialorder %v444, %v423
        %vm1146 = vcmp.ge.f32.partialorder %v448, %v423
        %vm1147 = vcmp.ge.f32.partialorder %v452, %v423
        %vm1148 = vcmp.ge.f32.partialorder %v456, %v423
        %vm1149 = vcmp.ge.f32.partialorder %v460, %v423
        %vm1150 = vcmp.ge.f32.partialorder %v464, %v423
        %vm1151 = vcmp.ge.f32.partialorder %v468, %v423
        %vm1152 = vcmp.ge.f32.partialorder %v472, %v423
        %vm1153 = vcmp.ge.f32.partialorder %v476, %v423
        %vm1154 = vcmp.ge.f32.partialorder %v480, %v423
        %vm1155 = vcmp.ge.f32.partialorder %v484, %v423
        %vm1156 = vcmp.ge.f32.partialorder %v488, %v423
        %vm1157 = vcmp.ge.f32.partialorder %v492, %v423
        %vm1158 = vcmp.ge.f32.partialorder %v496, %v423
        %vm1159 = vcmp.ge.f32.partialorder %v500, %v423
        %vm1160 = vcmp.ge.f32.partialorder %v504, %v423
        %vm1161 = vcmp.ge.f32.partialorder %v508, %v423
        %vm1162 = vcmp.ge.f32.partialorder %v512, %v423
        %vm1163 = vcmp.ge.f32.partialorder %v516, %v423
        %vm1164 = vcmp.ge.f32.partialorder %v520, %v423
        %vm1165 = vcmp.ge.f32.partialorder %v524, %v423
        %vm1166 = vcmp.ge.f32.partialorder %v528, %v423
        %vm1167 = vcmp.ge.f32.partialorder %v532, %v423
        %vm1168 = vcmp.ge.f32.partialorder %v536, %v423
        %vm1169 = vcmp.ge.f32.partialorder %v540, %v423
        %vm1170 = vcmp.ge.f32.partialorder %v544, %v423
        %vm1171 = vcmp.ge.f32.partialorder %v548, %v423
        %vm1172 = vcmp.ge.f32.partialorder %v552, %v423
        %vm1173 = vcmp.ge.f32.partialorder %v556, %v423
        %vm1174 = vcmp.ge.f32.partialorder %v560, %v423
        %vm1175 = vcmp.ge.f32.partialorder %v564, %v423
        %vm1176 = vcmp.ge.f32.partialorder %v568, %v423
        %vm1177 = vcmp.ge.f32.partialorder %v572, %v423
        %vm1178 = vcmp.ge.f32.partialorder %v576, %v423
        %vm1179 = vcmp.ge.f32.partialorder %v580, %v423
        %vm1180 = vcmp.ge.f32.partialorder %v584, %v423
        %vm1181 = vcmp.ge.f32.partialorder %v588, %v423
        %vm1182 = vcmp.ge.f32.partialorder %v592, %v423
        %vm1183 = vcmp.ge.f32.partialorder %v596, %v423
        %vm1184 = vcmp.ge.f32.partialorder %v600, %v423
        %vm1185 = vcmp.ge.f32.partialorder %v604, %v423
        %vm1186 = vcmp.ge.f32.partialorder %v608, %v423
        %vm1187 = vcmp.ge.f32.partialorder %v612, %v423
        %vm1188 = vcmp.ge.f32.partialorder %v616, %v423
        %vm1189 = vcmp.ge.f32.partialorder %v620, %v423
        %vm1190 = vcmp.ge.f32.partialorder %v624, %v423
        %vm1191 = vcmp.ge.f32.partialorder %v628, %v423
        %vm1192 = vcmp.ge.f32.partialorder %v632, %v423
        %vm1193 = vcmp.ge.f32.partialorder %v636, %v423
        %vm1194 = vcmp.ge.f32.partialorder %v640, %v423
        %vm1195 = vcmp.ge.f32.partialorder %v644, %v423
        %vm1196 = vcmp.ge.f32.partialorder %v648, %v423
        %vm1197 = vcmp.ge.f32.partialorder %v652, %v423
        %vm1198 = vcmp.ge.f32.partialorder %v656, %v423
        %vm1199 = vcmp.ge.f32.partialorder %v660, %v423
        %vm1200 = vcmp.ge.f32.partialorder %v664, %v423
        %vm1201 = vcmp.ge.f32.partialorder %v668, %v423
        %vm1202 = vcmp.ge.f32.partialorder %v672, %v423
        %vm1203 = vcmp.ge.f32.partialorder %v676, %v423
        %vm1204 = vcmp.ge.f32.partialorder %v680, %v423
        %vm1205 = vcmp.ge.f32.partialorder %v684, %v423
        %vm1206 = vcmp.ge.f32.partialorder %v688, %v423
        %vm1207 = vcmp.ge.f32.partialorder %v692, %v423
        %vm1208 = vcmp.ge.f32.partialorder %v696, %v423
        %vm1209 = vcmp.ge.f32.partialorder %v444, %v424
        %vm1210 = vcmp.ge.f32.partialorder %v448, %v424
        %vm1211 = vcmp.ge.f32.partialorder %v452, %v424
        %vm1212 = vcmp.ge.f32.partialorder %v456, %v424
        %vm1213 = vcmp.ge.f32.partialorder %v460, %v424
        %vm1214 = vcmp.ge.f32.partialorder %v464, %v424
        %vm1215 = vcmp.ge.f32.partialorder %v468, %v424
        %vm1216 = vcmp.ge.f32.partialorder %v472, %v424
        %vm1217 = vcmp.ge.f32.partialorder %v476, %v424
        %vm1218 = vcmp.ge.f32.partialorder %v480, %v424
        %vm1219 = vcmp.ge.f32.partialorder %v484, %v424
        %vm1220 = vcmp.ge.f32.partialorder %v488, %v424
        %vm1221 = vcmp.ge.f32.partialorder %v492, %v424
        %vm1222 = vcmp.ge.f32.partialorder %v496, %v424
        %vm1223 = vcmp.ge.f32.partialorder %v500, %v424
        %vm1224 = vcmp.ge.f32.partialorder %v504, %v424
        %vm1225 = vcmp.ge.f32.partialorder %v508, %v424
        %vm1226 = vcmp.ge.f32.partialorder %v512, %v424
        %vm1227 = vcmp.ge.f32.partialorder %v516, %v424
        %vm1228 = vcmp.ge.f32.partialorder %v520, %v424
        %vm1229 = vcmp.ge.f32.partialorder %v524, %v424
        %vm1230 = vcmp.ge.f32.partialorder %v528, %v424
        %vm1231 = vcmp.ge.f32.partialorder %v532, %v424
        %vm1232 = vcmp.ge.f32.partialorder %v536, %v424
        %vm1233 = vcmp.ge.f32.partialorder %v540, %v424
        %vm1234 = vcmp.ge.f32.partialorder %v544, %v424
        %vm1235 = vcmp.ge.f32.partialorder %v548, %v424
        %vm1236 = vcmp.ge.f32.partialorder %v552, %v424
        %vm1237 = vcmp.ge.f32.partialorder %v556, %v424
        %vm1238 = vcmp.ge.f32.partialorder %v560, %v424
        %vm1239 = vcmp.ge.f32.partialorder %v564, %v424
        %vm1240 = vcmp.ge.f32.partialorder %v568, %v424
        %vm1241 = vcmp.ge.f32.partialorder %v572, %v424
        %vm1242 = vcmp.ge.f32.partialorder %v576, %v424
        %vm1243 = vcmp.ge.f32.partialorder %v580, %v424
        %vm1244 = vcmp.ge.f32.partialorder %v584, %v424
        %vm1245 = vcmp.ge.f32.partialorder %v588, %v424
        %vm1246 = vcmp.ge.f32.partialorder %v592, %v424
        %vm1247 = vcmp.ge.f32.partialorder %v596, %v424
        %vm1248 = vcmp.ge.f32.partialorder %v600, %v424
        %vm1249 = vcmp.ge.f32.partialorder %v604, %v424
        %vm1250 = vcmp.ge.f32.partialorder %v608, %v424
        %vm1251 = vcmp.ge.f32.partialorder %v612, %v424
        %vm1252 = vcmp.ge.f32.partialorder %v616, %v424
        %vm1253 = vcmp.ge.f32.partialorder %v620, %v424
        %vm1254 = vcmp.ge.f32.partialorder %v624, %v424
        %vm1255 = vcmp.ge.f32.partialorder %v628, %v424
        %vm1256 = vcmp.ge.f32.partialorder %v632, %v424
        %vm1257 = vcmp.ge.f32.partialorder %v636, %v424
        %vm1258 = vcmp.ge.f32.partialorder %v640, %v424
        %vm1259 = vcmp.ge.f32.partialorder %v644, %v424
        %vm1260 = vcmp.ge.f32.partialorder %v648, %v424
        %vm1261 = vcmp.ge.f32.partialorder %v652, %v424
        %vm1262 = vcmp.ge.f32.partialorder %v656, %v424
        %vm1263 = vcmp.ge.f32.partialorder %v660, %v424
        %vm1264 = vcmp.ge.f32.partialorder %v664, %v424
        %vm1265 = vcmp.ge.f32.partialorder %v668, %v424
        %vm1266 = vcmp.ge.f32.partialorder %v672, %v424
        %vm1267 = vcmp.ge.f32.partialorder %v676, %v424
        %vm1268 = vcmp.ge.f32.partialorder %v680, %v424
        %vm1269 = vcmp.ge.f32.partialorder %v684, %v424
        %vm1270 = vcmp.ge.f32.partialorder %v688, %v424
        %vm1271 = vcmp.ge.f32.partialorder %v692, %v424
        %vm1272 = vcmp.ge.f32.partialorder %v696, %v424
        %vm1273 = vcmp.ge.f32.partialorder %v444, %v425
        %vm1274 = vcmp.ge.f32.partialorder %v448, %v425
        %vm1275 = vcmp.ge.f32.partialorder %v452, %v425
        %vm1276 = vcmp.ge.f32.partialorder %v456, %v425
        %vm1277 = vcmp.ge.f32.partialorder %v460, %v425
        %vm1278 = vcmp.ge.f32.partialorder %v464, %v425
        %vm1279 = vcmp.ge.f32.partialorder %v468, %v425
        %vm1280 = vcmp.ge.f32.partialorder %v472, %v425
        %vm1281 = vcmp.ge.f32.partialorder %v476, %v425
        %vm1282 = vcmp.ge.f32.partialorder %v480, %v425
        %vm1283 = vcmp.ge.f32.partialorder %v484, %v425
        %vm1284 = vcmp.ge.f32.partialorder %v488, %v425
        %vm1285 = vcmp.ge.f32.partialorder %v492, %v425
        %vm1286 = vcmp.ge.f32.partialorder %v496, %v425
        %vm1287 = vcmp.ge.f32.partialorder %v500, %v425
        %vm1288 = vcmp.ge.f32.partialorder %v504, %v425
        %vm1289 = vcmp.ge.f32.partialorder %v508, %v425
        %vm1290 = vcmp.ge.f32.partialorder %v512, %v425
        %vm1291 = vcmp.ge.f32.partialorder %v516, %v425
        %vm1292 = vcmp.ge.f32.partialorder %v520, %v425
        %vm1293 = vcmp.ge.f32.partialorder %v524, %v425
        %vm1294 = vcmp.ge.f32.partialorder %v528, %v425
        %vm1295 = vcmp.ge.f32.partialorder %v532, %v425
        %vm1296 = vcmp.ge.f32.partialorder %v536, %v425
        %vm1297 = vcmp.ge.f32.partialorder %v540, %v425
        %vm1298 = vcmp.ge.f32.partialorder %v544, %v425
        %vm1299 = vcmp.ge.f32.partialorder %v548, %v425
        %vm1300 = vcmp.ge.f32.partialorder %v552, %v425
        %vm1301 = vcmp.ge.f32.partialorder %v556, %v425
        %vm1302 = vcmp.ge.f32.partialorder %v560, %v425
        %vm1303 = vcmp.ge.f32.partialorder %v564, %v425
        %vm1304 = vcmp.ge.f32.partialorder %v568, %v425
        %vm1305 = vcmp.ge.f32.partialorder %v572, %v425
        %vm1306 = vcmp.ge.f32.partialorder %v576, %v425
        %vm1307 = vcmp.ge.f32.partialorder %v580, %v425
        %vm1308 = vcmp.ge.f32.partialorder %v584, %v425
        %vm1309 = vcmp.ge.f32.partialorder %v588, %v425
        %vm1310 = vcmp.ge.f32.partialorder %v592, %v425
        %vm1311 = vcmp.ge.f32.partialorder %v596, %v425
        %vm1312 = vcmp.ge.f32.partialorder %v600, %v425
        %vm1313 = vcmp.ge.f32.partialorder %v604, %v425
        %vm1314 = vcmp.ge.f32.partialorder %v608, %v425
        %vm1315 = vcmp.ge.f32.partialorder %v612, %v425
        %vm1316 = vcmp.ge.f32.partialorder %v616, %v425
        %vm1317 = vcmp.ge.f32.partialorder %v620, %v425
        %vm1318 = vcmp.ge.f32.partialorder %v624, %v425
        %vm1319 = vcmp.ge.f32.partialorder %v628, %v425
        %vm1320 = vcmp.ge.f32.partialorder %v632, %v425
        %vm1321 = vcmp.ge.f32.partialorder %v636, %v425
        %vm1322 = vcmp.ge.f32.partialorder %v640, %v425
        %vm1323 = vcmp.ge.f32.partialorder %v644, %v425
        %vm1324 = vcmp.ge.f32.partialorder %v648, %v425
        %vm1325 = vcmp.ge.f32.partialorder %v652, %v425
        %vm1326 = vcmp.ge.f32.partialorder %v656, %v425
        %vm1327 = vcmp.ge.f32.partialorder %v660, %v425
        %vm1328 = vcmp.ge.f32.partialorder %v664, %v425
        %vm1329 = vcmp.ge.f32.partialorder %v668, %v425
        %vm1330 = vcmp.ge.f32.partialorder %v672, %v425
        %vm1331 = vcmp.ge.f32.partialorder %v676, %v425
        %vm1332 = vcmp.ge.f32.partialorder %v680, %v425
        %vm1333 = vcmp.ge.f32.partialorder %v684, %v425
        %vm1334 = vcmp.ge.f32.partialorder %v688, %v425
        %vm1335 = vcmp.ge.f32.partialorder %v692, %v425
        %vm1336 = vcmp.ge.f32.partialorder %v696, %v425
        %vm1337 = vcmp.ge.f32.partialorder %v444, %v426
        %vm1338 = vcmp.ge.f32.partialorder %v448, %v426
        %vm1339 = vcmp.ge.f32.partialorder %v452, %v426
        %vm1340 = vcmp.ge.f32.partialorder %v456, %v426
        %vm1341 = vcmp.ge.f32.partialorder %v460, %v426
        %vm1342 = vcmp.ge.f32.partialorder %v464, %v426
        %vm1343 = vcmp.ge.f32.partialorder %v468, %v426
        %vm1344 = vcmp.ge.f32.partialorder %v472, %v426
        %vm1345 = vcmp.ge.f32.partialorder %v476, %v426
        %vm1346 = vcmp.ge.f32.partialorder %v480, %v426
        %vm1347 = vcmp.ge.f32.partialorder %v484, %v426
        %vm1348 = vcmp.ge.f32.partialorder %v488, %v426
        %vm1349 = vcmp.ge.f32.partialorder %v492, %v426
        %vm1350 = vcmp.ge.f32.partialorder %v496, %v426
        %vm1351 = vcmp.ge.f32.partialorder %v500, %v426
        %vm1352 = vcmp.ge.f32.partialorder %v504, %v426
        %vm1353 = vcmp.ge.f32.partialorder %v508, %v426
        %vm1354 = vcmp.ge.f32.partialorder %v512, %v426
        %vm1355 = vcmp.ge.f32.partialorder %v516, %v426
        %vm1356 = vcmp.ge.f32.partialorder %v520, %v426
        %vm1357 = vcmp.ge.f32.partialorder %v524, %v426
        %vm1358 = vcmp.ge.f32.partialorder %v528, %v426
        %vm1359 = vcmp.ge.f32.partialorder %v532, %v426
        %vm1360 = vcmp.ge.f32.partialorder %v536, %v426
        %vm1361 = vcmp.ge.f32.partialorder %v540, %v426
        %vm1362 = vcmp.ge.f32.partialorder %v544, %v426
        %vm1363 = vcmp.ge.f32.partialorder %v548, %v426
        %vm1364 = vcmp.ge.f32.partialorder %v552, %v426
        %vm1365 = vcmp.ge.f32.partialorder %v556, %v426
        %vm1366 = vcmp.ge.f32.partialorder %v560, %v426
        %vm1367 = vcmp.ge.f32.partialorder %v564, %v426
        %vm1368 = vcmp.ge.f32.partialorder %v568, %v426
        %vm1369 = vcmp.ge.f32.partialorder %v572, %v426
        %vm1370 = vcmp.ge.f32.partialorder %v576, %v426
        %vm1371 = vcmp.ge.f32.partialorder %v580, %v426
        %vm1372 = vcmp.ge.f32.partialorder %v584, %v426
        %vm1373 = vcmp.ge.f32.partialorder %v588, %v426
        %vm1374 = vcmp.ge.f32.partialorder %v592, %v426
        %vm1375 = vcmp.ge.f32.partialorder %v596, %v426
        %vm1376 = vcmp.ge.f32.partialorder %v600, %v426
        %vm1377 = vcmp.ge.f32.partialorder %v604, %v426
        %vm1378 = vcmp.ge.f32.partialorder %v608, %v426
        %vm1379 = vcmp.ge.f32.partialorder %v612, %v426
        %vm1380 = vcmp.ge.f32.partialorder %v616, %v426
        %vm1381 = vcmp.ge.f32.partialorder %v620, %v426
        %vm1382 = vcmp.ge.f32.partialorder %v624, %v426
        %vm1383 = vcmp.ge.f32.partialorder %v628, %v426
        %vm1384 = vcmp.ge.f32.partialorder %v632, %v426
        %vm1385 = vcmp.ge.f32.partialorder %v636, %v426
        %vm1386 = vcmp.ge.f32.partialorder %v640, %v426
        %vm1387 = vcmp.ge.f32.partialorder %v644, %v426
        %vm1388 = vcmp.ge.f32.partialorder %v648, %v426
        %vm1389 = vcmp.ge.f32.partialorder %v652, %v426
        %vm1390 = vcmp.ge.f32.partialorder %v656, %v426
        %vm1391 = vcmp.ge.f32.partialorder %v660, %v426
        %vm1392 = vcmp.ge.f32.partialorder %v664, %v426
        %vm1393 = vcmp.ge.f32.partialorder %v668, %v426
        %vm1394 = vcmp.ge.f32.partialorder %v672, %v426
        %vm1395 = vcmp.ge.f32.partialorder %v676, %v426
        %vm1396 = vcmp.ge.f32.partialorder %v680, %v426
        %vm1397 = vcmp.ge.f32.partialorder %v684, %v426
        %vm1398 = vcmp.ge.f32.partialorder %v688, %v426
        %vm1399 = vcmp.ge.f32.partialorder %v692, %v426
        %vm1400 = vcmp.ge.f32.partialorder %v696, %v426
        %vm1401 = vcmp.ge.f32.partialorder %v444, %v427
        %vm1402 = vcmp.ge.f32.partialorder %v448, %v427
        %vm1403 = vcmp.ge.f32.partialorder %v452, %v427
        %vm1404 = vcmp.ge.f32.partialorder %v456, %v427
        %vm1405 = vcmp.ge.f32.partialorder %v460, %v427
        %vm1406 = vcmp.ge.f32.partialorder %v464, %v427
        %vm1407 = vcmp.ge.f32.partialorder %v468, %v427
        %vm1408 = vcmp.ge.f32.partialorder %v472, %v427
        %vm1409 = vcmp.ge.f32.partialorder %v476, %v427
        %vm1410 = vcmp.ge.f32.partialorder %v480, %v427
        %vm1411 = vcmp.ge.f32.partialorder %v484, %v427
        %vm1412 = vcmp.ge.f32.partialorder %v488, %v427
        %vm1413 = vcmp.ge.f32.partialorder %v492, %v427
        %vm1414 = vcmp.ge.f32.partialorder %v496, %v427
        %vm1415 = vcmp.ge.f32.partialorder %v500, %v427
        %vm1416 = vcmp.ge.f32.partialorder %v504, %v427
        %vm1417 = vcmp.ge.f32.partialorder %v508, %v427
        %vm1418 = vcmp.ge.f32.partialorder %v512, %v427
        %vm1419 = vcmp.ge.f32.partialorder %v516, %v427
        %vm1420 = vcmp.ge.f32.partialorder %v520, %v427
        %vm1421 = vcmp.ge.f32.partialorder %v524, %v427
        %vm1422 = vcmp.ge.f32.partialorder %v528, %v427
        %vm1423 = vcmp.ge.f32.partialorder %v532, %v427
        %vm1424 = vcmp.ge.f32.partialorder %v536, %v427
        %vm1425 = vcmp.ge.f32.partialorder %v540, %v427
        %vm1426 = vcmp.ge.f32.partialorder %v544, %v427
        %vm1427 = vcmp.ge.f32.partialorder %v548, %v427
        %vm1428 = vcmp.ge.f32.partialorder %v552, %v427
        %vm1429 = vcmp.ge.f32.partialorder %v556, %v427
        %vm1430 = vcmp.ge.f32.partialorder %v560, %v427
        %vm1431 = vcmp.ge.f32.partialorder %v564, %v427
        %vm1432 = vcmp.ge.f32.partialorder %v568, %v427
        %vm1433 = vcmp.ge.f32.partialorder %v572, %v427
        %vm1434 = vcmp.ge.f32.partialorder %v576, %v427
        %vm1435 = vcmp.ge.f32.partialorder %v580, %v427
        %vm1436 = vcmp.ge.f32.partialorder %v584, %v427
        %vm1437 = vcmp.ge.f32.partialorder %v588, %v427
        %vm1438 = vcmp.ge.f32.partialorder %v592, %v427
        %vm1439 = vcmp.ge.f32.partialorder %v596, %v427
        %vm1440 = vcmp.ge.f32.partialorder %v600, %v427
        %vm1441 = vcmp.ge.f32.partialorder %v604, %v427
        %vm1442 = vcmp.ge.f32.partialorder %v608, %v427
        %vm1443 = vcmp.ge.f32.partialorder %v612, %v427
        %vm1444 = vcmp.ge.f32.partialorder %v616, %v427
        %vm1445 = vcmp.ge.f32.partialorder %v620, %v427
        %vm1446 = vcmp.ge.f32.partialorder %v624, %v427
        %vm1447 = vcmp.ge.f32.partialorder %v628, %v427
        %vm1448 = vcmp.ge.f32.partialorder %v632, %v427
        %vm1449 = vcmp.ge.f32.partialorder %v636, %v427
        %vm1450 = vcmp.ge.f32.partialorder %v640, %v427
        %vm1451 = vcmp.ge.f32.partialorder %v644, %v427
        %vm1452 = vcmp.ge.f32.partialorder %v648, %v427
        %vm1453 = vcmp.ge.f32.partialorder %v652, %v427
        %vm1454 = vcmp.ge.f32.partialorder %v656, %v427
        %vm1455 = vcmp.ge.f32.partialorder %v660, %v427
        %vm1456 = vcmp.ge.f32.partialorder %v664, %v427
        %vm1457 = vcmp.ge.f32.partialorder %v668, %v427
        %vm1458 = vcmp.ge.f32.partialorder %v672, %v427
        %vm1459 = vcmp.ge.f32.partialorder %v676, %v427
        %vm1460 = vcmp.ge.f32.partialorder %v680, %v427
        %vm1461 = vcmp.ge.f32.partialorder %v684, %v427
        %vm1462 = vcmp.ge.f32.partialorder %v688, %v427
        %vm1463 = vcmp.ge.f32.partialorder %v692, %v427
        %vm1464 = vcmp.ge.f32.partialorder %v696, %v427
        %vm1465 = vcmp.ge.f32.partialorder %v444, %v428
        %vm1466 = vcmp.ge.f32.partialorder %v448, %v428
        %vm1467 = vcmp.ge.f32.partialorder %v452, %v428
        %vm1468 = vcmp.ge.f32.partialorder %v456, %v428
        %vm1469 = vcmp.ge.f32.partialorder %v460, %v428
        %vm1470 = vcmp.ge.f32.partialorder %v464, %v428
        %vm1471 = vcmp.ge.f32.partialorder %v468, %v428
        %vm1472 = vcmp.ge.f32.partialorder %v472, %v428
        %vm1473 = vcmp.ge.f32.partialorder %v476, %v428
        %vm1474 = vcmp.ge.f32.partialorder %v480, %v428
        %vm1475 = vcmp.ge.f32.partialorder %v484, %v428
        %vm1476 = vcmp.ge.f32.partialorder %v488, %v428
        %vm1477 = vcmp.ge.f32.partialorder %v492, %v428
        %vm1478 = vcmp.ge.f32.partialorder %v496, %v428
        %vm1479 = vcmp.ge.f32.partialorder %v500, %v428
        %vm1480 = vcmp.ge.f32.partialorder %v504, %v428
        %vm1481 = vcmp.ge.f32.partialorder %v508, %v428
        %vm1482 = vcmp.ge.f32.partialorder %v512, %v428
        %vm1483 = vcmp.ge.f32.partialorder %v516, %v428
        %vm1484 = vcmp.ge.f32.partialorder %v520, %v428
        %vm1485 = vcmp.ge.f32.partialorder %v524, %v428
        %vm1486 = vcmp.ge.f32.partialorder %v528, %v428
        %vm1487 = vcmp.ge.f32.partialorder %v532, %v428
        %vm1488 = vcmp.ge.f32.partialorder %v536, %v428
        %vm1489 = vcmp.ge.f32.partialorder %v540, %v428
        %vm1490 = vcmp.ge.f32.partialorder %v544, %v428
        %vm1491 = vcmp.ge.f32.partialorder %v548, %v428
        %vm1492 = vcmp.ge.f32.partialorder %v552, %v428
        %vm1493 = vcmp.ge.f32.partialorder %v556, %v428
        %vm1494 = vcmp.ge.f32.partialorder %v560, %v428
        %vm1495 = vcmp.ge.f32.partialorder %v564, %v428
        %vm1496 = vcmp.ge.f32.partialorder %v568, %v428
        %vm1497 = vcmp.ge.f32.partialorder %v572, %v428
        %vm1498 = vcmp.ge.f32.partialorder %v576, %v428
        %vm1499 = vcmp.ge.f32.partialorder %v580, %v428
        %vm1500 = vcmp.ge.f32.partialorder %v584, %v428
        %vm1501 = vcmp.ge.f32.partialorder %v588, %v428
        %vm1502 = vcmp.ge.f32.partialorder %v592, %v428
        %vm1503 = vcmp.ge.f32.partialorder %v596, %v428
        %vm1504 = vcmp.ge.f32.partialorder %v600, %v428
        %vm1505 = vcmp.ge.f32.partialorder %v604, %v428
        %vm1506 = vcmp.ge.f32.partialorder %v608, %v428
        %vm1507 = vcmp.ge.f32.partialorder %v612, %v428
        %vm1508 = vcmp.ge.f32.partialorder %v616, %v428
        %vm1509 = vcmp.ge.f32.partialorder %v620, %v428
        %vm1510 = vcmp.ge.f32.partialorder %v624, %v428
        %vm1511 = vcmp.ge.f32.partialorder %v628, %v428
        %vm1512 = vcmp.ge.f32.partialorder %v632, %v428
        %vm1513 = vcmp.ge.f32.partialorder %v636, %v428
        %vm1514 = vcmp.ge.f32.partialorder %v640, %v428
        %vm1515 = vcmp.ge.f32.partialorder %v644, %v428
        %vm1516 = vcmp.ge.f32.partialorder %v648, %v428
        %vm1517 = vcmp.ge.f32.partialorder %v652, %v428
        %vm1518 = vcmp.ge.f32.partialorder %v656, %v428
        %vm1519 = vcmp.ge.f32.partialorder %v660, %v428
        %vm1520 = vcmp.ge.f32.partialorder %v664, %v428
        %vm1521 = vcmp.ge.f32.partialorder %v668, %v428
        %vm1522 = vcmp.ge.f32.partialorder %v672, %v428
        %vm1523 = vcmp.ge.f32.partialorder %v676, %v428
        %vm1524 = vcmp.ge.f32.partialorder %v680, %v428
        %vm1525 = vcmp.ge.f32.partialorder %v684, %v428
        %vm1526 = vcmp.ge.f32.partialorder %v688, %v428
        %vm1527 = vcmp.ge.f32.partialorder %v692, %v428
        %vm1528 = vcmp.ge.f32.partialorder %v696, %v428
        %vm1529 = vcmp.ge.f32.partialorder %v444, %v429
        %vm1530 = vcmp.ge.f32.partialorder %v448, %v429
        %vm1531 = vcmp.ge.f32.partialorder %v452, %v429
        %vm1532 = vcmp.ge.f32.partialorder %v456, %v429
        %vm1533 = vcmp.ge.f32.partialorder %v460, %v429
        %vm1534 = vcmp.ge.f32.partialorder %v464, %v429
        %vm1535 = vcmp.ge.f32.partialorder %v468, %v429
        %vm1536 = vcmp.ge.f32.partialorder %v472, %v429
        %vm1537 = vcmp.ge.f32.partialorder %v476, %v429
        %vm1538 = vcmp.ge.f32.partialorder %v480, %v429
        %vm1539 = vcmp.ge.f32.partialorder %v484, %v429
        %vm1540 = vcmp.ge.f32.partialorder %v488, %v429
        %vm1541 = vcmp.ge.f32.partialorder %v492, %v429
        %vm1542 = vcmp.ge.f32.partialorder %v496, %v429
        %vm1543 = vcmp.ge.f32.partialorder %v500, %v429
        %vm1544 = vcmp.ge.f32.partialorder %v504, %v429
        %vm1545 = vcmp.ge.f32.partialorder %v508, %v429
        %vm1546 = vcmp.ge.f32.partialorder %v512, %v429
        %vm1547 = vcmp.ge.f32.partialorder %v516, %v429
        %vm1548 = vcmp.ge.f32.partialorder %v520, %v429
        %vm1549 = vcmp.ge.f32.partialorder %v524, %v429
        %vm1550 = vcmp.ge.f32.partialorder %v528, %v429
        %vm1551 = vcmp.ge.f32.partialorder %v532, %v429
        %vm1552 = vcmp.ge.f32.partialorder %v536, %v429
        %vm1553 = vcmp.ge.f32.partialorder %v540, %v429
        %vm1554 = vcmp.ge.f32.partialorder %v544, %v429
        %vm1555 = vcmp.ge.f32.partialorder %v548, %v429
        %vm1556 = vcmp.ge.f32.partialorder %v552, %v429
        %vm1557 = vcmp.ge.f32.partialorder %v556, %v429
        %vm1558 = vcmp.ge.f32.partialorder %v560, %v429
        %vm1559 = vcmp.ge.f32.partialorder %v564, %v429
        %vm1560 = vcmp.ge.f32.partialorder %v568, %v429
        %vm1561 = vcmp.ge.f32.partialorder %v572, %v429
        %vm1562 = vcmp.ge.f32.partialorder %v576, %v429
        %vm1563 = vcmp.ge.f32.partialorder %v580, %v429
        %vm1564 = vcmp.ge.f32.partialorder %v584, %v429
        %vm1565 = vcmp.ge.f32.partialorder %v588, %v429
        %vm1566 = vcmp.ge.f32.partialorder %v592, %v429
        %vm1567 = vcmp.ge.f32.partialorder %v596, %v429
        %vm1568 = vcmp.ge.f32.partialorder %v600, %v429
        %vm1569 = vcmp.ge.f32.partialorder %v604, %v429
        %vm1570 = vcmp.ge.f32.partialorder %v608, %v429
        %vm1571 = vcmp.ge.f32.partialorder %v612, %v429
        %vm1572 = vcmp.ge.f32.partialorder %v616, %v429
        %vm1573 = vcmp.ge.f32.partialorder %v620, %v429
        %vm1574 = vcmp.ge.f32.partialorder %v624, %v429
        %vm1575 = vcmp.ge.f32.partialorder %v628, %v429
        %vm1576 = vcmp.ge.f32.partialorder %v632, %v429
        %vm1577 = vcmp.ge.f32.partialorder %v636, %v429
        %vm1578 = vcmp.ge.f32.partialorder %v640, %v429
        %vm1579 = vcmp.ge.f32.partialorder %v644, %v429
        %vm1580 = vcmp.ge.f32.partialorder %v648, %v429
        %vm1581 = vcmp.ge.f32.partialorder %v652, %v429
        %vm1582 = vcmp.ge.f32.partialorder %v656, %v429
        %vm1583 = vcmp.ge.f32.partialorder %v660, %v429
        %vm1584 = vcmp.ge.f32.partialorder %v664, %v429
        %vm1585 = vcmp.ge.f32.partialorder %v668, %v429
        %vm1586 = vcmp.ge.f32.partialorder %v672, %v429
        %vm1587 = vcmp.ge.f32.partialorder %v676, %v429
        %vm1588 = vcmp.ge.f32.partialorder %v680, %v429
        %vm1589 = vcmp.ge.f32.partialorder %v684, %v429
        %vm1590 = vcmp.ge.f32.partialorder %v688, %v429
        %vm1591 = vcmp.ge.f32.partialorder %v692, %v429
        %vm1592 = vcmp.ge.f32.partialorder %v696, %v429
        %vm1593 = vcmp.ge.f32.partialorder %v444, %v430
        %vm1594 = vcmp.ge.f32.partialorder %v448, %v430
        %vm1595 = vcmp.ge.f32.partialorder %v452, %v430
        %vm1596 = vcmp.ge.f32.partialorder %v456, %v430
        %vm1597 = vcmp.ge.f32.partialorder %v460, %v430
        %vm1598 = vcmp.ge.f32.partialorder %v464, %v430
        %vm1599 = vcmp.ge.f32.partialorder %v468, %v430
        %vm1600 = vcmp.ge.f32.partialorder %v472, %v430
        %vm1601 = vcmp.ge.f32.partialorder %v476, %v430
        %vm1602 = vcmp.ge.f32.partialorder %v480, %v430
        %vm1603 = vcmp.ge.f32.partialorder %v484, %v430
        %vm1604 = vcmp.ge.f32.partialorder %v488, %v430
        %vm1605 = vcmp.ge.f32.partialorder %v492, %v430
        %vm1606 = vcmp.ge.f32.partialorder %v496, %v430
        %vm1607 = vcmp.ge.f32.partialorder %v500, %v430
        %vm1608 = vcmp.ge.f32.partialorder %v504, %v430
        %vm1609 = vcmp.ge.f32.partialorder %v508, %v430
        %vm1610 = vcmp.ge.f32.partialorder %v512, %v430
        %vm1611 = vcmp.ge.f32.partialorder %v516, %v430
        %vm1612 = vcmp.ge.f32.partialorder %v520, %v430
        %vm1613 = vcmp.ge.f32.partialorder %v524, %v430
        %vm1614 = vcmp.ge.f32.partialorder %v528, %v430
        %vm1615 = vcmp.ge.f32.partialorder %v532, %v430
        %vm1616 = vcmp.ge.f32.partialorder %v536, %v430
        %vm1617 = vcmp.ge.f32.partialorder %v540, %v430
        %vm1618 = vcmp.ge.f32.partialorder %v544, %v430
        %vm1619 = vcmp.ge.f32.partialorder %v548, %v430
        %vm1620 = vcmp.ge.f32.partialorder %v552, %v430
        %vm1621 = vcmp.ge.f32.partialorder %v556, %v430
        %vm1622 = vcmp.ge.f32.partialorder %v560, %v430
        %vm1623 = vcmp.ge.f32.partialorder %v564, %v430
        %vm1624 = vcmp.ge.f32.partialorder %v568, %v430
        %vm1625 = vcmp.ge.f32.partialorder %v572, %v430
        %vm1626 = vcmp.ge.f32.partialorder %v576, %v430
        %vm1627 = vcmp.ge.f32.partialorder %v580, %v430
        %vm1628 = vcmp.ge.f32.partialorder %v584, %v430
        %vm1629 = vcmp.ge.f32.partialorder %v588, %v430
        %vm1630 = vcmp.ge.f32.partialorder %v592, %v430
        %vm1631 = vcmp.ge.f32.partialorder %v596, %v430
        %vm1632 = vcmp.ge.f32.partialorder %v600, %v430
        %vm1633 = vcmp.ge.f32.partialorder %v604, %v430
        %vm1634 = vcmp.ge.f32.partialorder %v608, %v430
        %vm1635 = vcmp.ge.f32.partialorder %v612, %v430
        %vm1636 = vcmp.ge.f32.partialorder %v616, %v430
        %vm1637 = vcmp.ge.f32.partialorder %v620, %v430
        %vm1638 = vcmp.ge.f32.partialorder %v624, %v430
        %vm1639 = vcmp.ge.f32.partialorder %v628, %v430
        %vm1640 = vcmp.ge.f32.partialorder %v632, %v430
        %vm1641 = vcmp.ge.f32.partialorder %v636, %v430
        %vm1642 = vcmp.ge.f32.partialorder %v640, %v430
        %vm1643 = vcmp.ge.f32.partialorder %v644, %v430
        %vm1644 = vcmp.ge.f32.partialorder %v648, %v430
        %vm1645 = vcmp.ge.f32.partialorder %v652, %v430
        %vm1646 = vcmp.ge.f32.partialorder %v656, %v430
        %vm1647 = vcmp.ge.f32.partialorder %v660, %v430
        %vm1648 = vcmp.ge.f32.partialorder %v664, %v430
        %vm1649 = vcmp.ge.f32.partialorder %v668, %v430
        %vm1650 = vcmp.ge.f32.partialorder %v672, %v430
        %vm1651 = vcmp.ge.f32.partialorder %v676, %v430
        %vm1652 = vcmp.ge.f32.partialorder %v680, %v430
        %vm1653 = vcmp.ge.f32.partialorder %v684, %v430
        %vm1654 = vcmp.ge.f32.partialorder %v688, %v430
        %vm1655 = vcmp.ge.f32.partialorder %v692, %v430
        %vm1656 = vcmp.ge.f32.partialorder %v696, %v430
        %vm1657 = vcmp.ge.f32.partialorder %v444, %v431
        %vm1658 = vcmp.ge.f32.partialorder %v448, %v431
        %vm1659 = vcmp.ge.f32.partialorder %v452, %v431
        %vm1660 = vcmp.ge.f32.partialorder %v456, %v431
        %vm1661 = vcmp.ge.f32.partialorder %v460, %v431
        %vm1662 = vcmp.ge.f32.partialorder %v464, %v431
        %vm1663 = vcmp.ge.f32.partialorder %v468, %v431
        %vm1664 = vcmp.ge.f32.partialorder %v472, %v431
        %vm1665 = vcmp.ge.f32.partialorder %v476, %v431
        %vm1666 = vcmp.ge.f32.partialorder %v480, %v431
        %vm1667 = vcmp.ge.f32.partialorder %v484, %v431
        %vm1668 = vcmp.ge.f32.partialorder %v488, %v431
        %vm1669 = vcmp.ge.f32.partialorder %v492, %v431
        %vm1670 = vcmp.ge.f32.partialorder %v496, %v431
        %vm1671 = vcmp.ge.f32.partialorder %v500, %v431
        %vm1672 = vcmp.ge.f32.partialorder %v504, %v431
        %vm1673 = vcmp.ge.f32.partialorder %v508, %v431
        %vm1674 = vcmp.ge.f32.partialorder %v512, %v431
        %vm1675 = vcmp.ge.f32.partialorder %v516, %v431
        %vm1676 = vcmp.ge.f32.partialorder %v520, %v431
        %vm1677 = vcmp.ge.f32.partialorder %v524, %v431
        %vm1678 = vcmp.ge.f32.partialorder %v528, %v431
        %vm1679 = vcmp.ge.f32.partialorder %v532, %v431
        %vm1680 = vcmp.ge.f32.partialorder %v536, %v431
        %vm1681 = vcmp.ge.f32.partialorder %v540, %v431
        %vm1682 = vcmp.ge.f32.partialorder %v544, %v431
        %vm1683 = vcmp.ge.f32.partialorder %v548, %v431
        %vm1684 = vcmp.ge.f32.partialorder %v552, %v431
        %vm1685 = vcmp.ge.f32.partialorder %v556, %v431
        %vm1686 = vcmp.ge.f32.partialorder %v560, %v431
        %vm1687 = vcmp.ge.f32.partialorder %v564, %v431
        %vm1688 = vcmp.ge.f32.partialorder %v568, %v431
        %vm1689 = vcmp.ge.f32.partialorder %v572, %v431
        %vm1690 = vcmp.ge.f32.partialorder %v576, %v431
        %vm1691 = vcmp.ge.f32.partialorder %v580, %v431
        %vm1692 = vcmp.ge.f32.partialorder %v584, %v431
        %vm1693 = vcmp.ge.f32.partialorder %v588, %v431
        %vm1694 = vcmp.ge.f32.partialorder %v592, %v431
        %vm1695 = vcmp.ge.f32.partialorder %v596, %v431
        %vm1696 = vcmp.ge.f32.partialorder %v600, %v431
        %vm1697 = vcmp.ge.f32.partialorder %v604, %v431
        %vm1698 = vcmp.ge.f32.partialorder %v608, %v431
        %vm1699 = vcmp.ge.f32.partialorder %v612, %v431
        %vm1700 = vcmp.ge.f32.partialorder %v616, %v431
        %vm1701 = vcmp.ge.f32.partialorder %v620, %v431
        %vm1702 = vcmp.ge.f32.partialorder %v624, %v431
        %vm1703 = vcmp.ge.f32.partialorder %v628, %v431
        %vm1704 = vcmp.ge.f32.partialorder %v632, %v431
        %vm1705 = vcmp.ge.f32.partialorder %v636, %v431
        %vm1706 = vcmp.ge.f32.partialorder %v640, %v431
        %vm1707 = vcmp.ge.f32.partialorder %v644, %v431
        %vm1708 = vcmp.ge.f32.partialorder %v648, %v431
        %vm1709 = vcmp.ge.f32.partialorder %v652, %v431
        %vm1710 = vcmp.ge.f32.partialorder %v656, %v431
        %vm1711 = vcmp.ge.f32.partialorder %v660, %v431
        %vm1712 = vcmp.ge.f32.partialorder %v664, %v431
        %vm1713 = vcmp.ge.f32.partialorder %v668, %v431
        %vm1714 = vcmp.ge.f32.partialorder %v672, %v431
        %vm1715 = vcmp.ge.f32.partialorder %v676, %v431
        %vm1716 = vcmp.ge.f32.partialorder %v680, %v431
        %vm1717 = vcmp.ge.f32.partialorder %v684, %v431
        %vm1718 = vcmp.ge.f32.partialorder %v688, %v431
        %vm1719 = vcmp.ge.f32.partialorder %v692, %v431
        %vm1720 = vcmp.ge.f32.partialorder %v696, %v431
        %vm1721 = vcmp.ge.f32.partialorder %v444, %v432
        %vm1722 = vcmp.ge.f32.partialorder %v448, %v432
        %vm1723 = vcmp.ge.f32.partialorder %v452, %v432
        %vm1724 = vcmp.ge.f32.partialorder %v456, %v432
        %vm1725 = vcmp.ge.f32.partialorder %v460, %v432
        %vm1726 = vcmp.ge.f32.partialorder %v464, %v432
        %vm1727 = vcmp.ge.f32.partialorder %v468, %v432
        %vm1728 = vcmp.ge.f32.partialorder %v472, %v432
        %vm1729 = vcmp.ge.f32.partialorder %v476, %v432
        %vm1730 = vcmp.ge.f32.partialorder %v480, %v432
        %vm1731 = vcmp.ge.f32.partialorder %v484, %v432
        %vm1732 = vcmp.ge.f32.partialorder %v488, %v432
        %vm1733 = vcmp.ge.f32.partialorder %v492, %v432
        %vm1734 = vcmp.ge.f32.partialorder %v496, %v432
        %vm1735 = vcmp.ge.f32.partialorder %v500, %v432
        %vm1736 = vcmp.ge.f32.partialorder %v504, %v432
        %vm1737 = vcmp.ge.f32.partialorder %v508, %v432
        %vm1738 = vcmp.ge.f32.partialorder %v512, %v432
        %vm1739 = vcmp.ge.f32.partialorder %v516, %v432
        %vm1740 = vcmp.ge.f32.partialorder %v520, %v432
        %vm1741 = vcmp.ge.f32.partialorder %v524, %v432
        %vm1742 = vcmp.ge.f32.partialorder %v528, %v432
        %vm1743 = vcmp.ge.f32.partialorder %v532, %v432
        %vm1744 = vcmp.ge.f32.partialorder %v536, %v432
        %vm1745 = vcmp.ge.f32.partialorder %v540, %v432
        %vm1746 = vcmp.ge.f32.partialorder %v544, %v432
        %vm1747 = vcmp.ge.f32.partialorder %v548, %v432
        %vm1748 = vcmp.ge.f32.partialorder %v552, %v432
        %vm1749 = vcmp.ge.f32.partialorder %v556, %v432
        %vm1750 = vcmp.ge.f32.partialorder %v560, %v432
        %vm1751 = vcmp.ge.f32.partialorder %v564, %v432
        %vm1752 = vcmp.ge.f32.partialorder %v568, %v432
        %vm1753 = vcmp.ge.f32.partialorder %v572, %v432
        %vm1754 = vcmp.ge.f32.partialorder %v576, %v432
        %vm1755 = vcmp.ge.f32.partialorder %v580, %v432
        %vm1756 = vcmp.ge.f32.partialorder %v584, %v432
        %vm1757 = vcmp.ge.f32.partialorder %v588, %v432
        %vm1758 = vcmp.ge.f32.partialorder %v592, %v432
        %vm1759 = vcmp.ge.f32.partialorder %v596, %v432
        %vm1760 = vcmp.ge.f32.partialorder %v600, %v432
        %vm1761 = vcmp.ge.f32.partialorder %v604, %v432
        %vm1762 = vcmp.ge.f32.partialorder %v608, %v432
        %vm1763 = vcmp.ge.f32.partialorder %v612, %v432
        %vm1764 = vcmp.ge.f32.partialorder %v616, %v432
        %vm1765 = vcmp.ge.f32.partialorder %v620, %v432
        %vm1766 = vcmp.ge.f32.partialorder %v624, %v432
        %vm1767 = vcmp.ge.f32.partialorder %v628, %v432
        %vm1768 = vcmp.ge.f32.partialorder %v632, %v432
        %vm1769 = vcmp.ge.f32.partialorder %v636, %v432
        %vm1770 = vcmp.ge.f32.partialorder %v640, %v432
        %vm1771 = vcmp.ge.f32.partialorder %v644, %v432
        %vm1772 = vcmp.ge.f32.partialorder %v648, %v432
        %vm1773 = vcmp.ge.f32.partialorder %v652, %v432
        %vm1774 = vcmp.ge.f32.partialorder %v656, %v432
        %vm1775 = vcmp.ge.f32.partialorder %v660, %v432
        %vm1776 = vcmp.ge.f32.partialorder %v664, %v432
        %vm1777 = vcmp.ge.f32.partialorder %v668, %v432
        %vm1778 = vcmp.ge.f32.partialorder %v672, %v432
        %vm1779 = vcmp.ge.f32.partialorder %v676, %v432
        %vm1780 = vcmp.ge.f32.partialorder %v680, %v432
        %vm1781 = vcmp.ge.f32.partialorder %v684, %v432
        %vm1782 = vcmp.ge.f32.partialorder %v688, %v432
        %vm1783 = vcmp.ge.f32.partialorder %v692, %v432
        %vm1784 = vcmp.ge.f32.partialorder %v696, %v432
        %v1785 = vsel %vm761, 1, 0
        %v1786 = vsel %vm762, 1, 0
        %v1787 = vsel %vm763, 1, 0
        %v1788 = vsel %vm764, 1, 0
        %v1789 = vsel %vm765, 1, 0
        %v1790 = vsel %vm766, 1, 0
        %v1791 = vsel %vm767, 1, 0
        %v1792 = vsel %vm768, 1, 0
        %v1793 = vsel %vm769, 1, 0
        %v1794 = vsel %vm770, 1, 0
        %v1795 = vsel %vm771, 1, 0
        %v1796 = vsel %vm772, 1, 0
        %v1797 = vsel %vm773, 1, 0
        %v1798 = vsel %vm774, 1, 0
        %v1799 = vsel %vm775, 1, 0
        %v1800 = vsel %vm776, 1, 0
        %v1801 = vsel %vm777, 1, 0
        %v1802 = vsel %vm778, 1, 0
        %v1803 = vsel %vm779, 1, 0
        %v1804 = vsel %vm780, 1, 0
        %v1805 = vsel %vm781, 1, 0
        %v1806 = vsel %vm782, 1, 0
        %v1807 = vsel %vm783, 1, 0
        %v1808 = vsel %vm784, 1, 0
        %v1809 = vsel %vm785, 1, 0
        %v1810 = vsel %vm786, 1, 0
        %v1811 = vsel %vm787, 1, 0
        %v1812 = vsel %vm788, 1, 0
        %v1813 = vsel %vm789, 1, 0
        %v1814 = vsel %vm790, 1, 0
        %v1815 = vsel %vm791, 1, 0
        %v1816 = vsel %vm792, 1, 0
        %v1817 = vsel %vm793, 1, 0
        %v1818 = vsel %vm794, 1, 0
        %v1819 = vsel %vm795, 1, 0
        %v1820 = vsel %vm796, 1, 0
        %v1821 = vsel %vm797, 1, 0
        %v1822 = vsel %vm798, 1, 0
        %v1823 = vsel %vm799, 1, 0
        %v1824 = vsel %vm800, 1, 0
        %v1825 = vsel %vm801, 1, 0
        %v1826 = vsel %vm802, 1, 0
        %v1827 = vsel %vm803, 1, 0
        %v1828 = vsel %vm804, 1, 0
        %v1829 = vsel %vm805, 1, 0
        %v1830 = vsel %vm806, 1, 0
        %v1831 = vsel %vm807, 1, 0
        %v1832 = vsel %vm808, 1, 0
        %v1833 = vsel %vm809, 1, 0
        %v1834 = vsel %vm810, 1, 0
        %v1835 = vsel %vm811, 1, 0
        %v1836 = vsel %vm812, 1, 0
        %v1837 = vsel %vm813, 1, 0
        %v1838 = vsel %vm814, 1, 0
        %v1839 = vsel %vm815, 1, 0
        %v1840 = vsel %vm816, 1, 0
        %v1841 = vsel %vm817, 1, 0
        %v1842 = vsel %vm818, 1, 0
        %v1843 = vsel %vm819, 1, 0
        %v1844 = vsel %vm820, 1, 0
        %v1845 = vsel %vm821, 1, 0
        %v1846 = vsel %vm822, 1, 0
        %v1847 = vsel %vm823, 1, 0
        %v1848 = vsel %vm824, 1, 0
        %v1849 = vsel %vm825, 1, 0
        %v1850 = vsel %vm826, 1, 0
        %v1851 = vsel %vm827, 1, 0
        %v1852 = vsel %vm828, 1, 0
        %v1853 = vsel %vm829, 1, 0
        %v1854 = vsel %vm830, 1, 0
        %v1855 = vsel %vm831, 1, 0
        %v1856 = vsel %vm832, 1, 0
        %v1857 = vsel %vm833, 1, 0
        %v1858 = vsel %vm834, 1, 0
        %v1859 = vsel %vm835, 1, 0
        %v1860 = vsel %vm836, 1, 0
        %v1861 = vsel %vm837, 1, 0
        %v1862 = vsel %vm838, 1, 0
        %v1863 = vsel %vm839, 1, 0
        %v1864 = vsel %vm840, 1, 0
        %v1865 = vsel %vm841, 1, 0
        %v1866 = vsel %vm842, 1, 0
        %v1867 = vsel %vm843, 1, 0
        %v1868 = vsel %vm844, 1, 0
        %v1869 = vsel %vm845, 1, 0
        %v1870 = vsel %vm846, 1, 0
        %v1871 = vsel %vm847, 1, 0
        %v1872 = vsel %vm848, 1, 0
        %v1873 = vsel %vm849, 1, 0
        %v1874 = vsel %vm850, 1, 0
        %v1875 = vsel %vm851, 1, 0
        %v1876 = vsel %vm852, 1, 0
        %v1877 = vsel %vm853, 1, 0
        %v1878 = vsel %vm854, 1, 0
        %v1879 = vsel %vm855, 1, 0
        %v1880 = vsel %vm856, 1, 0
        %v1881 = vsel %vm857, 1, 0
        %v1882 = vsel %vm858, 1, 0
        %v1883 = vsel %vm859, 1, 0
        %v1884 = vsel %vm860, 1, 0
        %v1885 = vsel %vm861, 1, 0
        %v1886 = vsel %vm862, 1, 0
        %v1887 = vsel %vm863, 1, 0
        %v1888 = vsel %vm864, 1, 0
        %v1889 = vsel %vm865, 1, 0
        %v1890 = vsel %vm866, 1, 0
        %v1891 = vsel %vm867, 1, 0
        %v1892 = vsel %vm868, 1, 0
        %v1893 = vsel %vm869, 1, 0
        %v1894 = vsel %vm870, 1, 0
        %v1895 = vsel %vm871, 1, 0
        %v1896 = vsel %vm872, 1, 0
        %v1897 = vsel %vm873, 1, 0
        %v1898 = vsel %vm874, 1, 0
        %v1899 = vsel %vm875, 1, 0
        %v1900 = vsel %vm876, 1, 0
        %v1901 = vsel %vm877, 1, 0
        %v1902 = vsel %vm878, 1, 0
        %v1903 = vsel %vm879, 1, 0
        %v1904 = vsel %vm880, 1, 0
        %v1905 = vsel %vm881, 1, 0
        %v1906 = vsel %vm882, 1, 0
        %v1907 = vsel %vm883, 1, 0
        %v1908 = vsel %vm884, 1, 0
        %v1909 = vsel %vm885, 1, 0
        %v1910 = vsel %vm886, 1, 0
        %v1911 = vsel %vm887, 1, 0
        %v1912 = vsel %vm888, 1, 0
        %v1913 = vsel %vm889, 1, 0
        %v1914 = vsel %vm890, 1, 0
        %v1915 = vsel %vm891, 1, 0
        %v1916 = vsel %vm892, 1, 0
        %v1917 = vsel %vm893, 1, 0
        %v1918 = vsel %vm894, 1, 0
        %v1919 = vsel %vm895, 1, 0
        %v1920 = vsel %vm896, 1, 0
        %v1921 = vsel %vm897, 1, 0
        %v1922 = vsel %vm898, 1, 0
        %v1923 = vsel %vm899, 1, 0
        %v1924 = vsel %vm900, 1, 0
        %v1925 = vsel %vm901, 1, 0
        %v1926 = vsel %vm902, 1, 0
        %v1927 = vsel %vm903, 1, 0
        %v1928 = vsel %vm904, 1, 0
        %v1929 = vsel %vm905, 1, 0
        %v1930 = vsel %vm906, 1, 0
        %v1931 = vsel %vm907, 1, 0
        %v1932 = vsel %vm908, 1, 0
        %v1933 = vsel %vm909, 1, 0
        %v1934 = vsel %vm910, 1, 0
        %v1935 = vsel %vm911, 1, 0
        %v1936 = vsel %vm912, 1, 0
        %v1937 = vsel %vm913, 1, 0
        %v1938 = vsel %vm914, 1, 0
        %v1939 = vsel %vm915, 1, 0
        %v1940 = vsel %vm916, 1, 0
        %v1941 = vsel %vm917, 1, 0
        %v1942 = vsel %vm918, 1, 0
        %v1943 = vsel %vm919, 1, 0
        %v1944 = vsel %vm920, 1, 0
        %v1945 = vsel %vm921, 1, 0
        %v1946 = vsel %vm922, 1, 0
        %v1947 = vsel %vm923, 1, 0
        %v1948 = vsel %vm924, 1, 0
        %v1949 = vsel %vm925, 1, 0
        %v1950 = vsel %vm926, 1, 0
        %v1951 = vsel %vm927, 1, 0
        %v1952 = vsel %vm928, 1, 0
        %v1953 = vsel %vm929, 1, 0
        %v1954 = vsel %vm930, 1, 0
        %v1955 = vsel %vm931, 1, 0
        %v1956 = vsel %vm932, 1, 0
        %v1957 = vsel %vm933, 1, 0
        %v1958 = vsel %vm934, 1, 0
        %v1959 = vsel %vm935, 1, 0
        %v1960 = vsel %vm936, 1, 0
        %v1961 = vsel %vm937, 1, 0
        %v1962 = vsel %vm938, 1, 0
        %v1963 = vsel %vm939, 1, 0
        %v1964 = vsel %vm940, 1, 0
        %v1965 = vsel %vm941, 1, 0
        %v1966 = vsel %vm942, 1, 0
        %v1967 = vsel %vm943, 1, 0
        %v1968 = vsel %vm944, 1, 0
        %v1969 = vsel %vm945, 1, 0
        %v1970 = vsel %vm946, 1, 0
        %v1971 = vsel %vm947, 1, 0
        %v1972 = vsel %vm948, 1, 0
        %v1973 = vsel %vm949, 1, 0
        %v1974 = vsel %vm950, 1, 0
        %v1975 = vsel %vm951, 1, 0
        %v1976 = vsel %vm952, 1, 0
        %v1977 = vsel %vm953, 1, 0
        %v1978 = vsel %vm954, 1, 0
        %v1979 = vsel %vm955, 1, 0
        %v1980 = vsel %vm956, 1, 0
        %v1981 = vsel %vm957, 1, 0
        %v1982 = vsel %vm958, 1, 0
        %v1983 = vsel %vm959, 1, 0
        %v1984 = vsel %vm960, 1, 0
        %v1985 = vsel %vm961, 1, 0
        %v1986 = vsel %vm962, 1, 0
        %v1987 = vsel %vm963, 1, 0
        %v1988 = vsel %vm964, 1, 0
        %v1989 = vsel %vm965, 1, 0
        %v1990 = vsel %vm966, 1, 0
        %v1991 = vsel %vm967, 1, 0
        %v1992 = vsel %vm968, 1, 0
        %v1993 = vsel %vm969, 1, 0
        %v1994 = vsel %vm970, 1, 0
        %v1995 = vsel %vm971, 1, 0
        %v1996 = vsel %vm972, 1, 0
        %v1997 = vsel %vm973, 1, 0
        %v1998 = vsel %vm974, 1, 0
        %v1999 = vsel %vm975, 1, 0
        %v2000 = vsel %vm976, 1, 0
        %v2001 = vsel %vm977, 1, 0
        %v2002 = vsel %vm978, 1, 0
        %v2003 = vsel %vm979, 1, 0
        %v2004 = vsel %vm980, 1, 0
        %v2005 = vsel %vm981, 1, 0
        %v2006 = vsel %vm982, 1, 0
        %v2007 = vsel %vm983, 1, 0
        %v2008 = vsel %vm984, 1, 0
        %v2009 = vsel %vm985, 1, 0
        %v2010 = vsel %vm986, 1, 0
        %v2011 = vsel %vm987, 1, 0
        %v2012 = vsel %vm988, 1, 0
        %v2013 = vsel %vm989, 1, 0
        %v2014 = vsel %vm990, 1, 0
        %v2015 = vsel %vm991, 1, 0
        %v2016 = vsel %vm992, 1, 0
        %v2017 = vsel %vm993, 1, 0
        %v2018 = vsel %vm994, 1, 0
        %v2019 = vsel %vm995, 1, 0
        %v2020 = vsel %vm996, 1, 0
        %v2021 = vsel %vm997, 1, 0
        %v2022 = vsel %vm998, 1, 0
        %v2023 = vsel %vm999, 1, 0
        %v2024 = vsel %vm1000, 1, 0
        %v2025 = vsel %vm1001, 1, 0
        %v2026 = vsel %vm1002, 1, 0
        %v2027 = vsel %vm1003, 1, 0
        %v2028 = vsel %vm1004, 1, 0
        %v2029 = vsel %vm1005, 1, 0
        %v2030 = vsel %vm1006, 1, 0
        %v2031 = vsel %vm1007, 1, 0
        %v2032 = vsel %vm1008, 1, 0
        %v2033 = vsel %vm1009, 1, 0
        %v2034 = vsel %vm1010, 1, 0
        %v2035 = vsel %vm1011, 1, 0
        %v2036 = vsel %vm1012, 1, 0
        %v2037 = vsel %vm1013, 1, 0
        %v2038 = vsel %vm1014, 1, 0
        %v2039 = vsel %vm1015, 1, 0
        %v2040 = vsel %vm1016, 1, 0
        %v2041 = vsel %vm1017, 1, 0
        %v2042 = vsel %vm1018, 1, 0
        %v2043 = vsel %vm1019, 1, 0
        %v2044 = vsel %vm1020, 1, 0
        %v2045 = vsel %vm1021, 1, 0
        %v2046 = vsel %vm1022, 1, 0
        %v2047 = vsel %vm1023, 1, 0
        %v2048 = vsel %vm1024, 1, 0
        %v2049 = vsel %vm1025, 1, 0
        %v2050 = vsel %vm1026, 1, 0
        %v2051 = vsel %vm1027, 1, 0
        %v2052 = vsel %vm1028, 1, 0
        %v2053 = vsel %vm1029, 1, 0
        %v2054 = vsel %vm1030, 1, 0
        %v2055 = vsel %vm1031, 1, 0
        %v2056 = vsel %vm1032, 1, 0
        %v2057 = vsel %vm1033, 1, 0
        %v2058 = vsel %vm1034, 1, 0
        %v2059 = vsel %vm1035, 1, 0
        %v2060 = vsel %vm1036, 1, 0
        %v2061 = vsel %vm1037, 1, 0
        %v2062 = vsel %vm1038, 1, 0
        %v2063 = vsel %vm1039, 1, 0
        %v2064 = vsel %vm1040, 1, 0
        %v2065 = vsel %vm1041, 1, 0
        %v2066 = vsel %vm1042, 1, 0
        %v2067 = vsel %vm1043, 1, 0
        %v2068 = vsel %vm1044, 1, 0
        %v2069 = vsel %vm1045, 1, 0
        %v2070 = vsel %vm1046, 1, 0
        %v2071 = vsel %vm1047, 1, 0
        %v2072 = vsel %vm1048, 1, 0
        %v2073 = vsel %vm1049, 1, 0
        %v2074 = vsel %vm1050, 1, 0
        %v2075 = vsel %vm1051, 1, 0
        %v2076 = vsel %vm1052, 1, 0
        %v2077 = vsel %vm1053, 1, 0
        %v2078 = vsel %vm1054, 1, 0
        %v2079 = vsel %vm1055, 1, 0
        %v2080 = vsel %vm1056, 1, 0
        %v2081 = vsel %vm1057, 1, 0
        %v2082 = vsel %vm1058, 1, 0
        %v2083 = vsel %vm1059, 1, 0
        %v2084 = vsel %vm1060, 1, 0
        %v2085 = vsel %vm1061, 1, 0
        %v2086 = vsel %vm1062, 1, 0
        %v2087 = vsel %vm1063, 1, 0
        %v2088 = vsel %vm1064, 1, 0
        %v2089 = vsel %vm1065, 1, 0
        %v2090 = vsel %vm1066, 1, 0
        %v2091 = vsel %vm1067, 1, 0
        %v2092 = vsel %vm1068, 1, 0
        %v2093 = vsel %vm1069, 1, 0
        %v2094 = vsel %vm1070, 1, 0
        %v2095 = vsel %vm1071, 1, 0
        %v2096 = vsel %vm1072, 1, 0
        %v2097 = vsel %vm1073, 1, 0
        %v2098 = vsel %vm1074, 1, 0
        %v2099 = vsel %vm1075, 1, 0
        %v2100 = vsel %vm1076, 1, 0
        %v2101 = vsel %vm1077, 1, 0
        %v2102 = vsel %vm1078, 1, 0
        %v2103 = vsel %vm1079, 1, 0
        %v2104 = vsel %vm1080, 1, 0
        %v2105 = vsel %vm1081, 1, 0
        %v2106 = vsel %vm1082, 1, 0
        %v2107 = vsel %vm1083, 1, 0
        %v2108 = vsel %vm1084, 1, 0
        %v2109 = vsel %vm1085, 1, 0
        %v2110 = vsel %vm1086, 1, 0
        %v2111 = vsel %vm1087, 1, 0
        %v2112 = vsel %vm1088, 1, 0
        %v2113 = vsel %vm1089, 1, 0
        %v2114 = vsel %vm1090, 1, 0
        %v2115 = vsel %vm1091, 1, 0
        %v2116 = vsel %vm1092, 1, 0
        %v2117 = vsel %vm1093, 1, 0
        %v2118 = vsel %vm1094, 1, 0
        %v2119 = vsel %vm1095, 1, 0
        %v2120 = vsel %vm1096, 1, 0
        %v2121 = vsel %vm1097, 1, 0
        %v2122 = vsel %vm1098, 1, 0
        %v2123 = vsel %vm1099, 1, 0
        %v2124 = vsel %vm1100, 1, 0
        %v2125 = vsel %vm1101, 1, 0
        %v2126 = vsel %vm1102, 1, 0
        %v2127 = vsel %vm1103, 1, 0
        %v2128 = vsel %vm1104, 1, 0
        %v2129 = vsel %vm1105, 1, 0
        %v2130 = vsel %vm1106, 1, 0
        %v2131 = vsel %vm1107, 1, 0
        %v2132 = vsel %vm1108, 1, 0
        %v2133 = vsel %vm1109, 1, 0
        %v2134 = vsel %vm1110, 1, 0
        %v2135 = vsel %vm1111, 1, 0
        %v2136 = vsel %vm1112, 1, 0
        %v2137 = vsel %vm1113, 1, 0
        %v2138 = vsel %vm1114, 1, 0
        %v2139 = vsel %vm1115, 1, 0
        %v2140 = vsel %vm1116, 1, 0
        %v2141 = vsel %vm1117, 1, 0
        %v2142 = vsel %vm1118, 1, 0
        %v2143 = vsel %vm1119, 1, 0
        %v2144 = vsel %vm1120, 1, 0
        %v2145 = vsel %vm1121, 1, 0
        %v2146 = vsel %vm1122, 1, 0
        %v2147 = vsel %vm1123, 1, 0
        %v2148 = vsel %vm1124, 1, 0
        %v2149 = vsel %vm1125, 1, 0
        %v2150 = vsel %vm1126, 1, 0
        %v2151 = vsel %vm1127, 1, 0
        %v2152 = vsel %vm1128, 1, 0
        %v2153 = vsel %vm1129, 1, 0
        %v2154 = vsel %vm1130, 1, 0
        %v2155 = vsel %vm1131, 1, 0
        %v2156 = vsel %vm1132, 1, 0
        %v2157 = vsel %vm1133, 1, 0
        %v2158 = vsel %vm1134, 1, 0
        %v2159 = vsel %vm1135, 1, 0
        %v2160 = vsel %vm1136, 1, 0
        %v2161 = vsel %vm1137, 1, 0
        %v2162 = vsel %vm1138, 1, 0
        %v2163 = vsel %vm1139, 1, 0
        %v2164 = vsel %vm1140, 1, 0
        %v2165 = vsel %vm1141, 1, 0
        %v2166 = vsel %vm1142, 1, 0
        %v2167 = vsel %vm1143, 1, 0
        %v2168 = vsel %vm1144, 1, 0
        %v2169 = vsel %vm1145, 1, 0
        %v2170 = vsel %vm1146, 1, 0
        %v2171 = vsel %vm1147, 1, 0
        %v2172 = vsel %vm1148, 1, 0
        %v2173 = vsel %vm1149, 1, 0
        %v2174 = vsel %vm1150, 1, 0
        %v2175 = vsel %vm1151, 1, 0
        %v2176 = vsel %vm1152, 1, 0
        %v2177 = vsel %vm1153, 1, 0
        %v2178 = vsel %vm1154, 1, 0
        %v2179 = vsel %vm1155, 1, 0
        %v2180 = vsel %vm1156, 1, 0
        %v2181 = vsel %vm1157, 1, 0
        %v2182 = vsel %vm1158, 1, 0
        %v2183 = vsel %vm1159, 1, 0
        %v2184 = vsel %vm1160, 1, 0
        %v2185 = vsel %vm1161, 1, 0
        %v2186 = vsel %vm1162, 1, 0
        %v2187 = vsel %vm1163, 1, 0
        %v2188 = vsel %vm1164, 1, 0
        %v2189 = vsel %vm1165, 1, 0
        %v2190 = vsel %vm1166, 1, 0
        %v2191 = vsel %vm1167, 1, 0
        %v2192 = vsel %vm1168, 1, 0
        %v2193 = vsel %vm1169, 1, 0
        %v2194 = vsel %vm1170, 1, 0
        %v2195 = vsel %vm1171, 1, 0
        %v2196 = vsel %vm1172, 1, 0
        %v2197 = vsel %vm1173, 1, 0
        %v2198 = vsel %vm1174, 1, 0
        %v2199 = vsel %vm1175, 1, 0
        %v2200 = vsel %vm1176, 1, 0
        %v2201 = vsel %vm1177, 1, 0
        %v2202 = vsel %vm1178, 1, 0
        %v2203 = vsel %vm1179, 1, 0
        %v2204 = vsel %vm1180, 1, 0
        %v2205 = vsel %vm1181, 1, 0
        %v2206 = vsel %vm1182, 1, 0
        %v2207 = vsel %vm1183, 1, 0
        %v2208 = vsel %vm1184, 1, 0
        %v2209 = vsel %vm1185, 1, 0
        %v2210 = vsel %vm1186, 1, 0
        %v2211 = vsel %vm1187, 1, 0
        %v2212 = vsel %vm1188, 1, 0
        %v2213 = vsel %vm1189, 1, 0
        %v2214 = vsel %vm1190, 1, 0
        %v2215 = vsel %vm1191, 1, 0
        %v2216 = vsel %vm1192, 1, 0
        %v2217 = vsel %vm1193, 1, 0
        %v2218 = vsel %vm1194, 1, 0
        %v2219 = vsel %vm1195, 1, 0
        %v2220 = vsel %vm1196, 1, 0
        %v2221 = vsel %vm1197, 1, 0
        %v2222 = vsel %vm1198, 1, 0
        %v2223 = vsel %vm1199, 1, 0
        %v2224 = vsel %vm1200, 1, 0
        %v2225 = vsel %vm1201, 1, 0
        %v2226 = vsel %vm1202, 1, 0
        %v2227 = vsel %vm1203, 1, 0
        %v2228 = vsel %vm1204, 1, 0
        %v2229 = vsel %vm1205, 1, 0
        %v2230 = vsel %vm1206, 1, 0
        %v2231 = vsel %vm1207, 1, 0
        %v2232 = vsel %vm1208, 1, 0
        %v2233 = vsel %vm1209, 1, 0
        %v2234 = vsel %vm1210, 1, 0
        %v2235 = vsel %vm1211, 1, 0
        %v2236 = vsel %vm1212, 1, 0
        %v2237 = vsel %vm1213, 1, 0
        %v2238 = vsel %vm1214, 1, 0
        %v2239 = vsel %vm1215, 1, 0
        %v2240 = vsel %vm1216, 1, 0
        %v2241 = vsel %vm1217, 1, 0
        %v2242 = vsel %vm1218, 1, 0
        %v2243 = vsel %vm1219, 1, 0
        %v2244 = vsel %vm1220, 1, 0
        %v2245 = vsel %vm1221, 1, 0
        %v2246 = vsel %vm1222, 1, 0
        %v2247 = vsel %vm1223, 1, 0
        %v2248 = vsel %vm1224, 1, 0
        %v2249 = vsel %vm1225, 1, 0
        %v2250 = vsel %vm1226, 1, 0
        %v2251 = vsel %vm1227, 1, 0
        %v2252 = vsel %vm1228, 1, 0
        %v2253 = vsel %vm1229, 1, 0
        %v2254 = vsel %vm1230, 1, 0
        %v2255 = vsel %vm1231, 1, 0
        %v2256 = vsel %vm1232, 1, 0
        %v2257 = vsel %vm1233, 1, 0
        %v2258 = vsel %vm1234, 1, 0
        %v2259 = vsel %vm1235, 1, 0
        %v2260 = vsel %vm1236, 1, 0
        %v2261 = vsel %vm1237, 1, 0
        %v2262 = vsel %vm1238, 1, 0
        %v2263 = vsel %vm1239, 1, 0
        %v2264 = vsel %vm1240, 1, 0
        %v2265 = vsel %vm1241, 1, 0
        %v2266 = vsel %vm1242, 1, 0
        %v2267 = vsel %vm1243, 1, 0
        %v2268 = vsel %vm1244, 1, 0
        %v2269 = vsel %vm1245, 1, 0
        %v2270 = vsel %vm1246, 1, 0
        %v2271 = vsel %vm1247, 1, 0
        %v2272 = vsel %vm1248, 1, 0
        %v2273 = vsel %vm1249, 1, 0
        %v2274 = vsel %vm1250, 1, 0
        %v2275 = vsel %vm1251, 1, 0
        %v2276 = vsel %vm1252, 1, 0
        %v2277 = vsel %vm1253, 1, 0
        %v2278 = vsel %vm1254, 1, 0
        %v2279 = vsel %vm1255, 1, 0
        %v2280 = vsel %vm1256, 1, 0
        %v2281 = vsel %vm1257, 1, 0
        %v2282 = vsel %vm1258, 1, 0
        %v2283 = vsel %vm1259, 1, 0
        %v2284 = vsel %vm1260, 1, 0
        %v2285 = vsel %vm1261, 1, 0
        %v2286 = vsel %vm1262, 1, 0
        %v2287 = vsel %vm1263, 1, 0
        %v2288 = vsel %vm1264, 1, 0
        %v2289 = vsel %vm1265, 1, 0
        %v2290 = vsel %vm1266, 1, 0
        %v2291 = vsel %vm1267, 1, 0
        %v2292 = vsel %vm1268, 1, 0
        %v2293 = vsel %vm1269, 1, 0
        %v2294 = vsel %vm1270, 1, 0
        %v2295 = vsel %vm1271, 1, 0
        %v2296 = vsel %vm1272, 1, 0
        %v2297 = vsel %vm1273, 1, 0
        %v2298 = vsel %vm1274, 1, 0
        %v2299 = vsel %vm1275, 1, 0
        %v2300 = vsel %vm1276, 1, 0
        %v2301 = vsel %vm1277, 1, 0
        %v2302 = vsel %vm1278, 1, 0
        %v2303 = vsel %vm1279, 1, 0
        %v2304 = vsel %vm1280, 1, 0
        %v2305 = vsel %vm1281, 1, 0
        %v2306 = vsel %vm1282, 1, 0
        %v2307 = vsel %vm1283, 1, 0
        %v2308 = vsel %vm1284, 1, 0
        %v2309 = vsel %vm1285, 1, 0
        %v2310 = vsel %vm1286, 1, 0
        %v2311 = vsel %vm1287, 1, 0
        %v2312 = vsel %vm1288, 1, 0
        %v2313 = vsel %vm1289, 1, 0
        %v2314 = vsel %vm1290, 1, 0
        %v2315 = vsel %vm1291, 1, 0
        %v2316 = vsel %vm1292, 1, 0
        %v2317 = vsel %vm1293, 1, 0
        %v2318 = vsel %vm1294, 1, 0
        %v2319 = vsel %vm1295, 1, 0
        %v2320 = vsel %vm1296, 1, 0
        %v2321 = vsel %vm1297, 1, 0
        %v2322 = vsel %vm1298, 1, 0
        %v2323 = vsel %vm1299, 1, 0
        %v2324 = vsel %vm1300, 1, 0
        %v2325 = vsel %vm1301, 1, 0
        %v2326 = vsel %vm1302, 1, 0
        %v2327 = vsel %vm1303, 1, 0
        %v2328 = vsel %vm1304, 1, 0
        %v2329 = vsel %vm1305, 1, 0
        %v2330 = vsel %vm1306, 1, 0
        %v2331 = vsel %vm1307, 1, 0
        %v2332 = vsel %vm1308, 1, 0
        %v2333 = vsel %vm1309, 1, 0
        %v2334 = vsel %vm1310, 1, 0
        %v2335 = vsel %vm1311, 1, 0
        %v2336 = vsel %vm1312, 1, 0
        %v2337 = vsel %vm1313, 1, 0
        %v2338 = vsel %vm1314, 1, 0
        %v2339 = vsel %vm1315, 1, 0
        %v2340 = vsel %vm1316, 1, 0
        %v2341 = vsel %vm1317, 1, 0
        %v2342 = vsel %vm1318, 1, 0
        %v2343 = vsel %vm1319, 1, 0
        %v2344 = vsel %vm1320, 1, 0
        %v2345 = vsel %vm1321, 1, 0
        %v2346 = vsel %vm1322, 1, 0
        %v2347 = vsel %vm1323, 1, 0
        %v2348 = vsel %vm1324, 1, 0
        %v2349 = vsel %vm1325, 1, 0
        %v2350 = vsel %vm1326, 1, 0
        %v2351 = vsel %vm1327, 1, 0
        %v2352 = vsel %vm1328, 1, 0
        %v2353 = vsel %vm1329, 1, 0
        %v2354 = vsel %vm1330, 1, 0
        %v2355 = vsel %vm1331, 1, 0
        %v2356 = vsel %vm1332, 1, 0
        %v2357 = vsel %vm1333, 1, 0
        %v2358 = vsel %vm1334, 1, 0
        %v2359 = vsel %vm1335, 1, 0
        %v2360 = vsel %vm1336, 1, 0
        %v2361 = vsel %vm1337, 1, 0
        %v2362 = vsel %vm1338, 1, 0
        %v2363 = vsel %vm1339, 1, 0
        %v2364 = vsel %vm1340, 1, 0
        %v2365 = vsel %vm1341, 1, 0
        %v2366 = vsel %vm1342, 1, 0
        %v2367 = vsel %vm1343, 1, 0
        %v2368 = vsel %vm1344, 1, 0
        %v2369 = vsel %vm1345, 1, 0
        %v2370 = vsel %vm1346, 1, 0
        %v2371 = vsel %vm1347, 1, 0
        %v2372 = vsel %vm1348, 1, 0
        %v2373 = vsel %vm1349, 1, 0
        %v2374 = vsel %vm1350, 1, 0
        %v2375 = vsel %vm1351, 1, 0
        %v2376 = vsel %vm1352, 1, 0
        %v2377 = vsel %vm1353, 1, 0
        %v2378 = vsel %vm1354, 1, 0
        %v2379 = vsel %vm1355, 1, 0
        %v2380 = vsel %vm1356, 1, 0
        %v2381 = vsel %vm1357, 1, 0
        %v2382 = vsel %vm1358, 1, 0
        %v2383 = vsel %vm1359, 1, 0
        %v2384 = vsel %vm1360, 1, 0
        %v2385 = vsel %vm1361, 1, 0
        %v2386 = vsel %vm1362, 1, 0
        %v2387 = vsel %vm1363, 1, 0
        %v2388 = vsel %vm1364, 1, 0
        %v2389 = vsel %vm1365, 1, 0
        %v2390 = vsel %vm1366, 1, 0
        %v2391 = vsel %vm1367, 1, 0
        %v2392 = vsel %vm1368, 1, 0
        %v2393 = vsel %vm1369, 1, 0
        %v2394 = vsel %vm1370, 1, 0
        %v2395 = vsel %vm1371, 1, 0
        %v2396 = vsel %vm1372, 1, 0
        %v2397 = vsel %vm1373, 1, 0
        %v2398 = vsel %vm1374, 1, 0
        %v2399 = vsel %vm1375, 1, 0
        %v2400 = vsel %vm1376, 1, 0
        %v2401 = vsel %vm1377, 1, 0
        %v2402 = vsel %vm1378, 1, 0
        %v2403 = vsel %vm1379, 1, 0
        %v2404 = vsel %vm1380, 1, 0
        %v2405 = vsel %vm1381, 1, 0
        %v2406 = vsel %vm1382, 1, 0
        %v2407 = vsel %vm1383, 1, 0
        %v2408 = vsel %vm1384, 1, 0
        %v2409 = vsel %vm1385, 1, 0
        %v2410 = vsel %vm1386, 1, 0
        %v2411 = vsel %vm1387, 1, 0
        %v2412 = vsel %vm1388, 1, 0
        %v2413 = vsel %vm1389, 1, 0
        %v2414 = vsel %vm1390, 1, 0
        %v2415 = vsel %vm1391, 1, 0
        %v2416 = vsel %vm1392, 1, 0
        %v2417 = vsel %vm1393, 1, 0
        %v2418 = vsel %vm1394, 1, 0
        %v2419 = vsel %vm1395, 1, 0
        %v2420 = vsel %vm1396, 1, 0
        %v2421 = vsel %vm1397, 1, 0
        %v2422 = vsel %vm1398, 1, 0
        %v2423 = vsel %vm1399, 1, 0
        %v2424 = vsel %vm1400, 1, 0
        %v2425 = vsel %vm1401, 1, 0
        %v2426 = vsel %vm1402, 1, 0
        %v2427 = vsel %vm1403, 1, 0
        %v2428 = vsel %vm1404, 1, 0
        %v2429 = vsel %vm1405, 1, 0
        %v2430 = vsel %vm1406, 1, 0
        %v2431 = vsel %vm1407, 1, 0
        %v2432 = vsel %vm1408, 1, 0
        %v2433 = vsel %vm1409, 1, 0
        %v2434 = vsel %vm1410, 1, 0
        %v2435 = vsel %vm1411, 1, 0
        %v2436 = vsel %vm1412, 1, 0
        %v2437 = vsel %vm1413, 1, 0
        %v2438 = vsel %vm1414, 1, 0
        %v2439 = vsel %vm1415, 1, 0
        %v2440 = vsel %vm1416, 1, 0
        %v2441 = vsel %vm1417, 1, 0
        %v2442 = vsel %vm1418, 1, 0
        %v2443 = vsel %vm1419, 1, 0
        %v2444 = vsel %vm1420, 1, 0
        %v2445 = vsel %vm1421, 1, 0
        %v2446 = vsel %vm1422, 1, 0
        %v2447 = vsel %vm1423, 1, 0
        %v2448 = vsel %vm1424, 1, 0
        %v2449 = vsel %vm1425, 1, 0
        %v2450 = vsel %vm1426, 1, 0
        %v2451 = vsel %vm1427, 1, 0
        %v2452 = vsel %vm1428, 1, 0
        %v2453 = vsel %vm1429, 1, 0
        %v2454 = vsel %vm1430, 1, 0
        %v2455 = vsel %vm1431, 1, 0
        %v2456 = vsel %vm1432, 1, 0
        %v2457 = vsel %vm1433, 1, 0
        %v2458 = vsel %vm1434, 1, 0
        %v2459 = vsel %vm1435, 1, 0
        %v2460 = vsel %vm1436, 1, 0
        %v2461 = vsel %vm1437, 1, 0
        %v2462 = vsel %vm1438, 1, 0
        %v2463 = vsel %vm1439, 1, 0
        %v2464 = vsel %vm1440, 1, 0
        %v2465 = vsel %vm1441, 1, 0
        %v2466 = vsel %vm1442, 1, 0
        %v2467 = vsel %vm1443, 1, 0
        %v2468 = vsel %vm1444, 1, 0
        %v2469 = vsel %vm1445, 1, 0
        %v2470 = vsel %vm1446, 1, 0
        %v2471 = vsel %vm1447, 1, 0
        %v2472 = vsel %vm1448, 1, 0
        %v2473 = vsel %vm1449, 1, 0
        %v2474 = vsel %vm1450, 1, 0
        %v2475 = vsel %vm1451, 1, 0
        %v2476 = vsel %vm1452, 1, 0
        %v2477 = vsel %vm1453, 1, 0
        %v2478 = vsel %vm1454, 1, 0
        %v2479 = vsel %vm1455, 1, 0
        %v2480 = vsel %vm1456, 1, 0
        %v2481 = vsel %vm1457, 1, 0
        %v2482 = vsel %vm1458, 1, 0
        %v2483 = vsel %vm1459, 1, 0
        %v2484 = vsel %vm1460, 1, 0
        %v2485 = vsel %vm1461, 1, 0
        %v2486 = vsel %vm1462, 1, 0
        %v2487 = vsel %vm1463, 1, 0
        %v2488 = vsel %vm1464, 1, 0
        %v2489 = vsel %vm1465, 1, 0
        %v2490 = vsel %vm1466, 1, 0
        %v2491 = vsel %vm1467, 1, 0
        %v2492 = vsel %vm1468, 1, 0
        %v2493 = vsel %vm1469, 1, 0
        %v2494 = vsel %vm1470, 1, 0
        %v2495 = vsel %vm1471, 1, 0
        %v2496 = vsel %vm1472, 1, 0
        %v2497 = vsel %vm1473, 1, 0
        %v2498 = vsel %vm1474, 1, 0
        %v2499 = vsel %vm1475, 1, 0
        %v2500 = vsel %vm1476, 1, 0
        %v2501 = vsel %vm1477, 1, 0
        %v2502 = vsel %vm1478, 1, 0
        %v2503 = vsel %vm1479, 1, 0
        %v2504 = vsel %vm1480, 1, 0
        %v2505 = vsel %vm1481, 1, 0
        %v2506 = vsel %vm1482, 1, 0
        %v2507 = vsel %vm1483, 1, 0
        %v2508 = vsel %vm1484, 1, 0
        %v2509 = vsel %vm1485, 1, 0
        %v2510 = vsel %vm1486, 1, 0
        %v2511 = vsel %vm1487, 1, 0
        %v2512 = vsel %vm1488, 1, 0
        %v2513 = vsel %vm1489, 1, 0
        %v2514 = vsel %vm1490, 1, 0
        %v2515 = vsel %vm1491, 1, 0
        %v2516 = vsel %vm1492, 1, 0
        %v2517 = vsel %vm1493, 1, 0
        %v2518 = vsel %vm1494, 1, 0
        %v2519 = vsel %vm1495, 1, 0
        %v2520 = vsel %vm1496, 1, 0
        %v2521 = vsel %vm1497, 1, 0
        %v2522 = vsel %vm1498, 1, 0
        %v2523 = vsel %vm1499, 1, 0
        %v2524 = vsel %vm1500, 1, 0
        %v2525 = vsel %vm1501, 1, 0
        %v2526 = vsel %vm1502, 1, 0
        %v2527 = vsel %vm1503, 1, 0
        %v2528 = vsel %vm1504, 1, 0
        %v2529 = vsel %vm1505, 1, 0
        %v2530 = vsel %vm1506, 1, 0
        %v2531 = vsel %vm1507, 1, 0
        %v2532 = vsel %vm1508, 1, 0
        %v2533 = vsel %vm1509, 1, 0
        %v2534 = vsel %vm1510, 1, 0
        %v2535 = vsel %vm1511, 1, 0
        %v2536 = vsel %vm1512, 1, 0
        %v2537 = vsel %vm1513, 1, 0
        %v2538 = vsel %vm1514, 1, 0
        %v2539 = vsel %vm1515, 1, 0
        %v2540 = vsel %vm1516, 1, 0
        %v2541 = vsel %vm1517, 1, 0
        %v2542 = vsel %vm1518, 1, 0
        %v2543 = vsel %vm1519, 1, 0
        %v2544 = vsel %vm1520, 1, 0
        %v2545 = vsel %vm1521, 1, 0
        %v2546 = vsel %vm1522, 1, 0
        %v2547 = vsel %vm1523, 1, 0
        %v2548 = vsel %vm1524, 1, 0
        %v2549 = vsel %vm1525, 1, 0
        %v2550 = vsel %vm1526, 1, 0
        %v2551 = vsel %vm1527, 1, 0
        %v2552 = vsel %vm1528, 1, 0
        %v2553 = vsel %vm1529, 1, 0
        %v2554 = vsel %vm1530, 1, 0
        %v2555 = vsel %vm1531, 1, 0
        %v2556 = vsel %vm1532, 1, 0
        %v2557 = vsel %vm1533, 1, 0
        %v2558 = vsel %vm1534, 1, 0
        %v2559 = vsel %vm1535, 1, 0
        %v2560 = vsel %vm1536, 1, 0
        %v2561 = vsel %vm1537, 1, 0
        %v2562 = vsel %vm1538, 1, 0
        %v2563 = vsel %vm1539, 1, 0
        %v2564 = vsel %vm1540, 1, 0
        %v2565 = vsel %vm1541, 1, 0
        %v2566 = vsel %vm1542, 1, 0
        %v2567 = vsel %vm1543, 1, 0
        %v2568 = vsel %vm1544, 1, 0
        %v2569 = vsel %vm1545, 1, 0
        %v2570 = vsel %vm1546, 1, 0
        %v2571 = vsel %vm1547, 1, 0
        %v2572 = vsel %vm1548, 1, 0
        %v2573 = vsel %vm1549, 1, 0
        %v2574 = vsel %vm1550, 1, 0
        %v2575 = vsel %vm1551, 1, 0
        %v2576 = vsel %vm1552, 1, 0
        %v2577 = vsel %vm1553, 1, 0
        %v2578 = vsel %vm1554, 1, 0
        %v2579 = vsel %vm1555, 1, 0
        %v2580 = vsel %vm1556, 1, 0
        %v2581 = vsel %vm1557, 1, 0
        %v2582 = vsel %vm1558, 1, 0
        %v2583 = vsel %vm1559, 1, 0
        %v2584 = vsel %vm1560, 1, 0
        %v2585 = vsel %vm1561, 1, 0
        %v2586 = vsel %vm1562, 1, 0
        %v2587 = vsel %vm1563, 1, 0
        %v2588 = vsel %vm1564, 1, 0
        %v2589 = vsel %vm1565, 1, 0
        %v2590 = vsel %vm1566, 1, 0
        %v2591 = vsel %vm1567, 1, 0
        %v2592 = vsel %vm1568, 1, 0
        %v2593 = vsel %vm1569, 1, 0
        %v2594 = vsel %vm1570, 1, 0
        %v2595 = vsel %vm1571, 1, 0
        %v2596 = vsel %vm1572, 1, 0
        %v2597 = vsel %vm1573, 1, 0
        %v2598 = vsel %vm1574, 1, 0
        %v2599 = vsel %vm1575, 1, 0
        %v2600 = vsel %vm1576, 1, 0
        %v2601 = vsel %vm1577, 1, 0
        %v2602 = vsel %vm1578, 1, 0
        %v2603 = vsel %vm1579, 1, 0
        %v2604 = vsel %vm1580, 1, 0
        %v2605 = vsel %vm1581, 1, 0
        %v2606 = vsel %vm1582, 1, 0
        %v2607 = vsel %vm1583, 1, 0
        %v2608 = vsel %vm1584, 1, 0
        %v2609 = vsel %vm1585, 1, 0
        %v2610 = vsel %vm1586, 1, 0
        %v2611 = vsel %vm1587, 1, 0
        %v2612 = vsel %vm1588, 1, 0
        %v2613 = vsel %vm1589, 1, 0
        %v2614 = vsel %vm1590, 1, 0
        %v2615 = vsel %vm1591, 1, 0
        %v2616 = vsel %vm1592, 1, 0
        %v2617 = vsel %vm1593, 1, 0
        %v2618 = vsel %vm1594, 1, 0
        %v2619 = vsel %vm1595, 1, 0
        %v2620 = vsel %vm1596, 1, 0
        %v2621 = vsel %vm1597, 1, 0
        %v2622 = vsel %vm1598, 1, 0
        %v2623 = vsel %vm1599, 1, 0
        %v2624 = vsel %vm1600, 1, 0
        %v2625 = vsel %vm1601, 1, 0
        %v2626 = vsel %vm1602, 1, 0
        %v2627 = vsel %vm1603, 1, 0
        %v2628 = vsel %vm1604, 1, 0
        %v2629 = vsel %vm1605, 1, 0
        %v2630 = vsel %vm1606, 1, 0
        %v2631 = vsel %vm1607, 1, 0
        %v2632 = vsel %vm1608, 1, 0
        %v2633 = vsel %vm1609, 1, 0
        %v2634 = vsel %vm1610, 1, 0
        %v2635 = vsel %vm1611, 1, 0
        %v2636 = vsel %vm1612, 1, 0
        %v2637 = vsel %vm1613, 1, 0
        %v2638 = vsel %vm1614, 1, 0
        %v2639 = vsel %vm1615, 1, 0
        %v2640 = vsel %vm1616, 1, 0
        %v2641 = vsel %vm1617, 1, 0
        %v2642 = vsel %vm1618, 1, 0
        %v2643 = vsel %vm1619, 1, 0
        %v2644 = vsel %vm1620, 1, 0
        %v2645 = vsel %vm1621, 1, 0
        %v2646 = vsel %vm1622, 1, 0
        %v2647 = vsel %vm1623, 1, 0
        %v2648 = vsel %vm1624, 1, 0
        %v2649 = vsel %vm1625, 1, 0
        %v2650 = vsel %vm1626, 1, 0
        %v2651 = vsel %vm1627, 1, 0
        %v2652 = vsel %vm1628, 1, 0
        %v2653 = vsel %vm1629, 1, 0
        %v2654 = vsel %vm1630, 1, 0
        %v2655 = vsel %vm1631, 1, 0
        %v2656 = vsel %vm1632, 1, 0
        %v2657 = vsel %vm1633, 1, 0
        %v2658 = vsel %vm1634, 1, 0
        %v2659 = vsel %vm1635, 1, 0
        %v2660 = vsel %vm1636, 1, 0
        %v2661 = vsel %vm1637, 1, 0
        %v2662 = vsel %vm1638, 1, 0
        %v2663 = vsel %vm1639, 1, 0
        %v2664 = vsel %vm1640, 1, 0
        %v2665 = vsel %vm1641, 1, 0
        %v2666 = vsel %vm1642, 1, 0
        %v2667 = vsel %vm1643, 1, 0
        %v2668 = vsel %vm1644, 1, 0
        %v2669 = vsel %vm1645, 1, 0
        %v2670 = vsel %vm1646, 1, 0
        %v2671 = vsel %vm1647, 1, 0
        %v2672 = vsel %vm1648, 1, 0
        %v2673 = vsel %vm1649, 1, 0
        %v2674 = vsel %vm1650, 1, 0
        %v2675 = vsel %vm1651, 1, 0
        %v2676 = vsel %vm1652, 1, 0
        %v2677 = vsel %vm1653, 1, 0
        %v2678 = vsel %vm1654, 1, 0
        %v2679 = vsel %vm1655, 1, 0
        %v2680 = vsel %vm1656, 1, 0
        %v2681 = vsel %vm1657, 1, 0
        %v2682 = vsel %vm1658, 1, 0
        %v2683 = vsel %vm1659, 1, 0
        %v2684 = vsel %vm1660, 1, 0
        %v2685 = vsel %vm1661, 1, 0
        %v2686 = vsel %vm1662, 1, 0
        %v2687 = vsel %vm1663, 1, 0
        %v2688 = vsel %vm1664, 1, 0
        %v2689 = vsel %vm1665, 1, 0
        %v2690 = vsel %vm1666, 1, 0
        %v2691 = vsel %vm1667, 1, 0
        %v2692 = vsel %vm1668, 1, 0
        %v2693 = vsel %vm1669, 1, 0
        %v2694 = vsel %vm1670, 1, 0
        %v2695 = vsel %vm1671, 1, 0
        %v2696 = vsel %vm1672, 1, 0
        %v2697 = vsel %vm1673, 1, 0
        %v2698 = vsel %vm1674, 1, 0
        %v2699 = vsel %vm1675, 1, 0
        %v2700 = vsel %vm1676, 1, 0
        %v2701 = vsel %vm1677, 1, 0
        %v2702 = vsel %vm1678, 1, 0
        %v2703 = vsel %vm1679, 1, 0
        %v2704 = vsel %vm1680, 1, 0
        %v2705 = vsel %vm1681, 1, 0
        %v2706 = vsel %vm1682, 1, 0
        %v2707 = vsel %vm1683, 1, 0
        %v2708 = vsel %vm1684, 1, 0
        %v2709 = vsel %vm1685, 1, 0
        %v2710 = vsel %vm1686, 1, 0
        %v2711 = vsel %vm1687, 1, 0
        %v2712 = vsel %vm1688, 1, 0
        %v2713 = vsel %vm1689, 1, 0
        %v2714 = vsel %vm1690, 1, 0
        %v2715 = vsel %vm1691, 1, 0
        %v2716 = vsel %vm1692, 1, 0
        %v2717 = vsel %vm1693, 1, 0
        %v2718 = vsel %vm1694, 1, 0
        %v2719 = vsel %vm1695, 1, 0
        %v2720 = vsel %vm1696, 1, 0
        %v2721 = vsel %vm1697, 1, 0
        %v2722 = vsel %vm1698, 1, 0
        %v2723 = vsel %vm1699, 1, 0
        %v2724 = vsel %vm1700, 1, 0
        %v2725 = vsel %vm1701, 1, 0
        %v2726 = vsel %vm1702, 1, 0
        %v2727 = vsel %vm1703, 1, 0
        %v2728 = vsel %vm1704, 1, 0
        %v2729 = vsel %vm1705, 1, 0
        %v2730 = vsel %vm1706, 1, 0
        %v2731 = vsel %vm1707, 1, 0
        %v2732 = vsel %vm1708, 1, 0
        %v2733 = vsel %vm1709, 1, 0
        %v2734 = vsel %vm1710, 1, 0
        %v2735 = vsel %vm1711, 1, 0
        %v2736 = vsel %vm1712, 1, 0
        %v2737 = vsel %vm1713, 1, 0
        %v2738 = vsel %vm1714, 1, 0
        %v2739 = vsel %vm1715, 1, 0
        %v2740 = vsel %vm1716, 1, 0
        %v2741 = vsel %vm1717, 1, 0
        %v2742 = vsel %vm1718, 1, 0
        %v2743 = vsel %vm1719, 1, 0
        %v2744 = vsel %vm1720, 1, 0
        %v2745 = vsel %vm1721, 1, 0
        %v2746 = vsel %vm1722, 1, 0
        %v2747 = vsel %vm1723, 1, 0
        %v2748 = vsel %vm1724, 1, 0
        %v2749 = vsel %vm1725, 1, 0
        %v2750 = vsel %vm1726, 1, 0
        %v2751 = vsel %vm1727, 1, 0
        %v2752 = vsel %vm1728, 1, 0
        %v2753 = vsel %vm1729, 1, 0
        %v2754 = vsel %vm1730, 1, 0
        %v2755 = vsel %vm1731, 1, 0
        %v2756 = vsel %vm1732, 1, 0
        %v2757 = vsel %vm1733, 1, 0
        %v2758 = vsel %vm1734, 1, 0
        %v2759 = vsel %vm1735, 1, 0
        %v2760 = vsel %vm1736, 1, 0
        %v2761 = vsel %vm1737, 1, 0
        %v2762 = vsel %vm1738, 1, 0
        %v2763 = vsel %vm1739, 1, 0
        %v2764 = vsel %vm1740, 1, 0
        %v2765 = vsel %vm1741, 1, 0
        %v2766 = vsel %vm1742, 1, 0
        %v2767 = vsel %vm1743, 1, 0
        %v2768 = vsel %vm1744, 1, 0
        %v2769 = vsel %vm1745, 1, 0
        %v2770 = vsel %vm1746, 1, 0
        %v2771 = vsel %vm1747, 1, 0
        %v2772 = vsel %vm1748, 1, 0
        %v2773 = vsel %vm1749, 1, 0
        %v2774 = vsel %vm1750, 1, 0
        %v2775 = vsel %vm1751, 1, 0
        %v2776 = vsel %vm1752, 1, 0
        %v2777 = vsel %vm1753, 1, 0
        %v2778 = vsel %vm1754, 1, 0
        %v2779 = vsel %vm1755, 1, 0
        %v2780 = vsel %vm1756, 1, 0
        %v2781 = vsel %vm1757, 1, 0
        %v2782 = vsel %vm1758, 1, 0
        %v2783 = vsel %vm1759, 1, 0
        %v2784 = vsel %vm1760, 1, 0
        %v2785 = vsel %vm1761, 1, 0
        %v2786 = vsel %vm1762, 1, 0
        %v2787 = vsel %vm1763, 1, 0
        %v2788 = vsel %vm1764, 1, 0
        %v2789 = vsel %vm1765, 1, 0
        %v2790 = vsel %vm1766, 1, 0
        %v2791 = vsel %vm1767, 1, 0
        %v2792 = vsel %vm1768, 1, 0
        %v2793 = vsel %vm1769, 1, 0
        %v2794 = vsel %vm1770, 1, 0
        %v2795 = vsel %vm1771, 1, 0
        %v2796 = vsel %vm1772, 1, 0
        %v2797 = vsel %vm1773, 1, 0
        %v2798 = vsel %vm1774, 1, 0
        %v2799 = vsel %vm1775, 1, 0
        %v2800 = vsel %vm1776, 1, 0
        %v2801 = vsel %vm1777, 1, 0
        %v2802 = vsel %vm1778, 1, 0
        %v2803 = vsel %vm1779, 1, 0
        %v2804 = vsel %vm1780, 1, 0
        %v2805 = vsel %vm1781, 1, 0
        %v2806 = vsel %vm1782, 1, 0
        %v2807 = vsel %vm1783, 1, 0
        %v2808 = vsel %vm1784, 1, 0
        %v2809 = vcvt.s32.f32 %v1785
        %v2810 = vcvt.s32.f32 %v1786
        %v2811 = vcvt.s32.f32 %v1787
        %v2812 = vcvt.s32.f32 %v1788
        %v2813 = vcvt.s32.f32 %v1789
        %v2814 = vcvt.s32.f32 %v1790
        %v2815 = vcvt.s32.f32 %v1791
        %v2816 = vcvt.s32.f32 %v1792
        %v2817 = vcvt.s32.f32 %v1793
        %v2818 = vcvt.s32.f32 %v1794
        %v2819 = vcvt.s32.f32 %v1795
        %v2820 = vcvt.s32.f32 %v1796
        %v2821 = vcvt.s32.f32 %v1797
        %v2822 = vcvt.s32.f32 %v1798
        %v2823 = vcvt.s32.f32 %v1799
        %v2824 = vcvt.s32.f32 %v1800
        %v2825 = vcvt.s32.f32 %v1801
        %v2826 = vcvt.s32.f32 %v1802
        %v2827 = vcvt.s32.f32 %v1803
        %v2828 = vcvt.s32.f32 %v1804
        %v2829 = vcvt.s32.f32 %v1805
        %v2830 = vcvt.s32.f32 %v1806
        %v2831 = vcvt.s32.f32 %v1807
        %v2832 = vcvt.s32.f32 %v1808
        %v2833 = vcvt.s32.f32 %v1809
        %v2834 = vcvt.s32.f32 %v1810
        %v2835 = vcvt.s32.f32 %v1811
        %v2836 = vcvt.s32.f32 %v1812
        %v2837 = vcvt.s32.f32 %v1813
        %v2838 = vcvt.s32.f32 %v1814
        %v2839 = vcvt.s32.f32 %v1815
        %v2840 = vcvt.s32.f32 %v1816
        %v2841 = vcvt.s32.f32 %v1817
        %v2842 = vcvt.s32.f32 %v1818
        %v2843 = vcvt.s32.f32 %v1819
        %v2844 = vcvt.s32.f32 %v1820
        %v2845 = vcvt.s32.f32 %v1821
        %v2846 = vcvt.s32.f32 %v1822
        %v2847 = vcvt.s32.f32 %v1823
        %v2848 = vcvt.s32.f32 %v1824
        %v2849 = vcvt.s32.f32 %v1825
        %v2850 = vcvt.s32.f32 %v1826
        %v2851 = vcvt.s32.f32 %v1827
        %v2852 = vcvt.s32.f32 %v1828
        %v2853 = vcvt.s32.f32 %v1829
        %v2854 = vcvt.s32.f32 %v1830
        %v2855 = vcvt.s32.f32 %v1831
        %v2856 = vcvt.s32.f32 %v1832
        %v2857 = vcvt.s32.f32 %v1833
        %v2858 = vcvt.s32.f32 %v1834
        %v2859 = vcvt.s32.f32 %v1835
        %v2860 = vcvt.s32.f32 %v1836
        %v2861 = vcvt.s32.f32 %v1837
        %v2862 = vcvt.s32.f32 %v1838
        %v2863 = vcvt.s32.f32 %v1839
        %v2864 = vcvt.s32.f32 %v1840
        %v2865 = vcvt.s32.f32 %v1841
        %v2866 = vcvt.s32.f32 %v1842
        %v2867 = vcvt.s32.f32 %v1843
        %v2868 = vcvt.s32.f32 %v1844
        %v2869 = vcvt.s32.f32 %v1845
        %v2870 = vcvt.s32.f32 %v1846
        %v2871 = vcvt.s32.f32 %v1847
        %v2872 = vcvt.s32.f32 %v1848
        %v2873 = vcvt.s32.f32 %v1849
        %v2874 = vcvt.s32.f32 %v1850
        %v2875 = vcvt.s32.f32 %v1851
        %v2876 = vcvt.s32.f32 %v1852
        %v2877 = vcvt.s32.f32 %v1853
        %v2878 = vcvt.s32.f32 %v1854
        %v2879 = vcvt.s32.f32 %v1855
        %v2880 = vcvt.s32.f32 %v1856
        %v2881 = vcvt.s32.f32 %v1857
        %v2882 = vcvt.s32.f32 %v1858
        %v2883 = vcvt.s32.f32 %v1859
        %v2884 = vcvt.s32.f32 %v1860
        %v2885 = vcvt.s32.f32 %v1861
        %v2886 = vcvt.s32.f32 %v1862
        %v2887 = vcvt.s32.f32 %v1863
        %v2888 = vcvt.s32.f32 %v1864
        %v2889 = vcvt.s32.f32 %v1865
        %v2890 = vcvt.s32.f32 %v1866
        %v2891 = vcvt.s32.f32 %v1867
        %v2892 = vcvt.s32.f32 %v1868
        %v2893 = vcvt.s32.f32 %v1869
        %v2894 = vcvt.s32.f32 %v1870
        %v2895 = vcvt.s32.f32 %v1871
        %v2896 = vcvt.s32.f32 %v1872
        %v2897 = vcvt.s32.f32 %v1873
        %v2898 = vcvt.s32.f32 %v1874
        %v2899 = vcvt.s32.f32 %v1875
        %v2900 = vcvt.s32.f32 %v1876
        %v2901 = vcvt.s32.f32 %v1877
        %v2902 = vcvt.s32.f32 %v1878
        %v2903 = vcvt.s32.f32 %v1879
        %v2904 = vcvt.s32.f32 %v1880
        %v2905 = vcvt.s32.f32 %v1881
        %v2906 = vcvt.s32.f32 %v1882
        %v2907 = vcvt.s32.f32 %v1883
        %v2908 = vcvt.s32.f32 %v1884
        %v2909 = vcvt.s32.f32 %v1885
        %v2910 = vcvt.s32.f32 %v1886
        %v2911 = vcvt.s32.f32 %v1887
        %v2912 = vcvt.s32.f32 %v1888
        %v2913 = vcvt.s32.f32 %v1889
        %v2914 = vcvt.s32.f32 %v1890
        %v2915 = vcvt.s32.f32 %v1891
        %v2916 = vcvt.s32.f32 %v1892
        %v2917 = vcvt.s32.f32 %v1893
        %v2918 = vcvt.s32.f32 %v1894
        %v2919 = vcvt.s32.f32 %v1895
        %v2920 = vcvt.s32.f32 %v1896
        %v2921 = vcvt.s32.f32 %v1897
        %v2922 = vcvt.s32.f32 %v1898
        %v2923 = vcvt.s32.f32 %v1899
        %v2924 = vcvt.s32.f32 %v1900
        %v2925 = vcvt.s32.f32 %v1901
        %v2926 = vcvt.s32.f32 %v1902
        %v2927 = vcvt.s32.f32 %v1903
        %v2928 = vcvt.s32.f32 %v1904
        %v2929 = vcvt.s32.f32 %v1905
        %v2930 = vcvt.s32.f32 %v1906
        %v2931 = vcvt.s32.f32 %v1907
        %v2932 = vcvt.s32.f32 %v1908
        %v2933 = vcvt.s32.f32 %v1909
        %v2934 = vcvt.s32.f32 %v1910
        %v2935 = vcvt.s32.f32 %v1911
        %v2936 = vcvt.s32.f32 %v1912
        %v2937 = vcvt.s32.f32 %v1913
        %v2938 = vcvt.s32.f32 %v1914
        %v2939 = vcvt.s32.f32 %v1915
        %v2940 = vcvt.s32.f32 %v1916
        %v2941 = vcvt.s32.f32 %v1917
        %v2942 = vcvt.s32.f32 %v1918
        %v2943 = vcvt.s32.f32 %v1919
        %v2944 = vcvt.s32.f32 %v1920
        %v2945 = vcvt.s32.f32 %v1921
        %v2946 = vcvt.s32.f32 %v1922
        %v2947 = vcvt.s32.f32 %v1923
        %v2948 = vcvt.s32.f32 %v1924
        %v2949 = vcvt.s32.f32 %v1925
        %v2950 = vcvt.s32.f32 %v1926
        %v2951 = vcvt.s32.f32 %v1927
        %v2952 = vcvt.s32.f32 %v1928
        %v2953 = vcvt.s32.f32 %v1929
        %v2954 = vcvt.s32.f32 %v1930
        %v2955 = vcvt.s32.f32 %v1931
        %v2956 = vcvt.s32.f32 %v1932
        %v2957 = vcvt.s32.f32 %v1933
        %v2958 = vcvt.s32.f32 %v1934
        %v2959 = vcvt.s32.f32 %v1935
        %v2960 = vcvt.s32.f32 %v1936
        %v2961 = vcvt.s32.f32 %v1937
        %v2962 = vcvt.s32.f32 %v1938
        %v2963 = vcvt.s32.f32 %v1939
        %v2964 = vcvt.s32.f32 %v1940
        %v2965 = vcvt.s32.f32 %v1941
        %v2966 = vcvt.s32.f32 %v1942
        %v2967 = vcvt.s32.f32 %v1943
        %v2968 = vcvt.s32.f32 %v1944
        %v2969 = vcvt.s32.f32 %v1945
        %v2970 = vcvt.s32.f32 %v1946
        %v2971 = vcvt.s32.f32 %v1947
        %v2972 = vcvt.s32.f32 %v1948
        %v2973 = vcvt.s32.f32 %v1949
        %v2974 = vcvt.s32.f32 %v1950
        %v2975 = vcvt.s32.f32 %v1951
        %v2976 = vcvt.s32.f32 %v1952
        %v2977 = vcvt.s32.f32 %v1953
        %v2978 = vcvt.s32.f32 %v1954
        %v2979 = vcvt.s32.f32 %v1955
        %v2980 = vcvt.s32.f32 %v1956
        %v2981 = vcvt.s32.f32 %v1957
        %v2982 = vcvt.s32.f32 %v1958
        %v2983 = vcvt.s32.f32 %v1959
        %v2984 = vcvt.s32.f32 %v1960
        %v2985 = vcvt.s32.f32 %v1961
        %v2986 = vcvt.s32.f32 %v1962
        %v2987 = vcvt.s32.f32 %v1963
        %v2988 = vcvt.s32.f32 %v1964
        %v2989 = vcvt.s32.f32 %v1965
        %v2990 = vcvt.s32.f32 %v1966
        %v2991 = vcvt.s32.f32 %v1967
        %v2992 = vcvt.s32.f32 %v1968
        %v2993 = vcvt.s32.f32 %v1969
        %v2994 = vcvt.s32.f32 %v1970
        %v2995 = vcvt.s32.f32 %v1971
        %v2996 = vcvt.s32.f32 %v1972
        %v2997 = vcvt.s32.f32 %v1973
        %v2998 = vcvt.s32.f32 %v1974
        %v2999 = vcvt.s32.f32 %v1975
        %v3000 = vcvt.s32.f32 %v1976
        %v3001 = vcvt.s32.f32 %v1977
        %v3002 = vcvt.s32.f32 %v1978
        %v3003 = vcvt.s32.f32 %v1979
        %v3004 = vcvt.s32.f32 %v1980
        %v3005 = vcvt.s32.f32 %v1981
        %v3006 = vcvt.s32.f32 %v1982
        %v3007 = vcvt.s32.f32 %v1983
        %v3008 = vcvt.s32.f32 %v1984
        %v3009 = vcvt.s32.f32 %v1985
        %v3010 = vcvt.s32.f32 %v1986
        %v3011 = vcvt.s32.f32 %v1987
        %v3012 = vcvt.s32.f32 %v1988
        %v3013 = vcvt.s32.f32 %v1989
        %v3014 = vcvt.s32.f32 %v1990
        %v3015 = vcvt.s32.f32 %v1991
        %v3016 = vcvt.s32.f32 %v1992
        %v3017 = vcvt.s32.f32 %v1993
        %v3018 = vcvt.s32.f32 %v1994
        %v3019 = vcvt.s32.f32 %v1995
        %v3020 = vcvt.s32.f32 %v1996
        %v3021 = vcvt.s32.f32 %v1997
        %v3022 = vcvt.s32.f32 %v1998
        %v3023 = vcvt.s32.f32 %v1999
        %v3024 = vcvt.s32.f32 %v2000
        %v3025 = vcvt.s32.f32 %v2001
        %v3026 = vcvt.s32.f32 %v2002
        %v3027 = vcvt.s32.f32 %v2003
        %v3028 = vcvt.s32.f32 %v2004
        %v3029 = vcvt.s32.f32 %v2005
        %v3030 = vcvt.s32.f32 %v2006
        %v3031 = vcvt.s32.f32 %v2007
        %v3032 = vcvt.s32.f32 %v2008
        %v3033 = vcvt.s32.f32 %v2009
        %v3034 = vcvt.s32.f32 %v2010
        %v3035 = vcvt.s32.f32 %v2011
        %v3036 = vcvt.s32.f32 %v2012
        %v3037 = vcvt.s32.f32 %v2013
        %v3038 = vcvt.s32.f32 %v2014
        %v3039 = vcvt.s32.f32 %v2015
        %v3040 = vcvt.s32.f32 %v2016
        %v3041 = vcvt.s32.f32 %v2017
        %v3042 = vcvt.s32.f32 %v2018
        %v3043 = vcvt.s32.f32 %v2019
        %v3044 = vcvt.s32.f32 %v2020
        %v3045 = vcvt.s32.f32 %v2021
        %v3046 = vcvt.s32.f32 %v2022
        %v3047 = vcvt.s32.f32 %v2023
        %v3048 = vcvt.s32.f32 %v2024
        %v3049 = vcvt.s32.f32 %v2025
        %v3050 = vcvt.s32.f32 %v2026
        %v3051 = vcvt.s32.f32 %v2027
        %v3052 = vcvt.s32.f32 %v2028
        %v3053 = vcvt.s32.f32 %v2029
        %v3054 = vcvt.s32.f32 %v2030
        %v3055 = vcvt.s32.f32 %v2031
        %v3056 = vcvt.s32.f32 %v2032
        %v3057 = vcvt.s32.f32 %v2033
        %v3058 = vcvt.s32.f32 %v2034
        %v3059 = vcvt.s32.f32 %v2035
        %v3060 = vcvt.s32.f32 %v2036
        %v3061 = vcvt.s32.f32 %v2037
        %v3062 = vcvt.s32.f32 %v2038
        %v3063 = vcvt.s32.f32 %v2039
        %v3064 = vcvt.s32.f32 %v2040
        %v3065 = vcvt.s32.f32 %v2041
        %v3066 = vcvt.s32.f32 %v2042
        %v3067 = vcvt.s32.f32 %v2043
        %v3068 = vcvt.s32.f32 %v2044
        %v3069 = vcvt.s32.f32 %v2045
        %v3070 = vcvt.s32.f32 %v2046
        %v3071 = vcvt.s32.f32 %v2047
        %v3072 = vcvt.s32.f32 %v2048
        %v3073 = vcvt.s32.f32 %v2049
        %v3074 = vcvt.s32.f32 %v2050
        %v3075 = vcvt.s32.f32 %v2051
        %v3076 = vcvt.s32.f32 %v2052
        %v3077 = vcvt.s32.f32 %v2053
        %v3078 = vcvt.s32.f32 %v2054
        %v3079 = vcvt.s32.f32 %v2055
        %v3080 = vcvt.s32.f32 %v2056
        %v3081 = vcvt.s32.f32 %v2057
        %v3082 = vcvt.s32.f32 %v2058
        %v3083 = vcvt.s32.f32 %v2059
        %v3084 = vcvt.s32.f32 %v2060
        %v3085 = vcvt.s32.f32 %v2061
        %v3086 = vcvt.s32.f32 %v2062
        %v3087 = vcvt.s32.f32 %v2063
        %v3088 = vcvt.s32.f32 %v2064
        %v3089 = vcvt.s32.f32 %v2065
        %v3090 = vcvt.s32.f32 %v2066
        %v3091 = vcvt.s32.f32 %v2067
        %v3092 = vcvt.s32.f32 %v2068
        %v3093 = vcvt.s32.f32 %v2069
        %v3094 = vcvt.s32.f32 %v2070
        %v3095 = vcvt.s32.f32 %v2071
        %v3096 = vcvt.s32.f32 %v2072
        %v3097 = vcvt.s32.f32 %v2073
        %v3098 = vcvt.s32.f32 %v2074
        %v3099 = vcvt.s32.f32 %v2075
        %v3100 = vcvt.s32.f32 %v2076
        %v3101 = vcvt.s32.f32 %v2077
        %v3102 = vcvt.s32.f32 %v2078
        %v3103 = vcvt.s32.f32 %v2079
        %v3104 = vcvt.s32.f32 %v2080
        %v3105 = vcvt.s32.f32 %v2081
        %v3106 = vcvt.s32.f32 %v2082
        %v3107 = vcvt.s32.f32 %v2083
        %v3108 = vcvt.s32.f32 %v2084
        %v3109 = vcvt.s32.f32 %v2085
        %v3110 = vcvt.s32.f32 %v2086
        %v3111 = vcvt.s32.f32 %v2087
        %v3112 = vcvt.s32.f32 %v2088
        %v3113 = vcvt.s32.f32 %v2089
        %v3114 = vcvt.s32.f32 %v2090
        %v3115 = vcvt.s32.f32 %v2091
        %v3116 = vcvt.s32.f32 %v2092
        %v3117 = vcvt.s32.f32 %v2093
        %v3118 = vcvt.s32.f32 %v2094
        %v3119 = vcvt.s32.f32 %v2095
        %v3120 = vcvt.s32.f32 %v2096
        %v3121 = vcvt.s32.f32 %v2097
        %v3122 = vcvt.s32.f32 %v2098
        %v3123 = vcvt.s32.f32 %v2099
        %v3124 = vcvt.s32.f32 %v2100
        %v3125 = vcvt.s32.f32 %v2101
        %v3126 = vcvt.s32.f32 %v2102
        %v3127 = vcvt.s32.f32 %v2103
        %v3128 = vcvt.s32.f32 %v2104
        %v3129 = vcvt.s32.f32 %v2105
        %v3130 = vcvt.s32.f32 %v2106
        %v3131 = vcvt.s32.f32 %v2107
        %v3132 = vcvt.s32.f32 %v2108
        %v3133 = vcvt.s32.f32 %v2109
        %v3134 = vcvt.s32.f32 %v2110
        %v3135 = vcvt.s32.f32 %v2111
        %v3136 = vcvt.s32.f32 %v2112
        %v3137 = vcvt.s32.f32 %v2113
        %v3138 = vcvt.s32.f32 %v2114
        %v3139 = vcvt.s32.f32 %v2115
        %v3140 = vcvt.s32.f32 %v2116
        %v3141 = vcvt.s32.f32 %v2117
        %v3142 = vcvt.s32.f32 %v2118
        %v3143 = vcvt.s32.f32 %v2119
        %v3144 = vcvt.s32.f32 %v2120
        %v3145 = vcvt.s32.f32 %v2121
        %v3146 = vcvt.s32.f32 %v2122
        %v3147 = vcvt.s32.f32 %v2123
        %v3148 = vcvt.s32.f32 %v2124
        %v3149 = vcvt.s32.f32 %v2125
        %v3150 = vcvt.s32.f32 %v2126
        %v3151 = vcvt.s32.f32 %v2127
        %v3152 = vcvt.s32.f32 %v2128
        %v3153 = vcvt.s32.f32 %v2129
        %v3154 = vcvt.s32.f32 %v2130
        %v3155 = vcvt.s32.f32 %v2131
        %v3156 = vcvt.s32.f32 %v2132
        %v3157 = vcvt.s32.f32 %v2133
        %v3158 = vcvt.s32.f32 %v2134
        %v3159 = vcvt.s32.f32 %v2135
        %v3160 = vcvt.s32.f32 %v2136
        %v3161 = vcvt.s32.f32 %v2137
        %v3162 = vcvt.s32.f32 %v2138
        %v3163 = vcvt.s32.f32 %v2139
        %v3164 = vcvt.s32.f32 %v2140
        %v3165 = vcvt.s32.f32 %v2141
        %v3166 = vcvt.s32.f32 %v2142
        %v3167 = vcvt.s32.f32 %v2143
        %v3168 = vcvt.s32.f32 %v2144
        %v3169 = vcvt.s32.f32 %v2145
        %v3170 = vcvt.s32.f32 %v2146
        %v3171 = vcvt.s32.f32 %v2147
        %v3172 = vcvt.s32.f32 %v2148
        %v3173 = vcvt.s32.f32 %v2149
        %v3174 = vcvt.s32.f32 %v2150
        %v3175 = vcvt.s32.f32 %v2151
        %v3176 = vcvt.s32.f32 %v2152
        %v3177 = vcvt.s32.f32 %v2153
        %v3178 = vcvt.s32.f32 %v2154
        %v3179 = vcvt.s32.f32 %v2155
        %v3180 = vcvt.s32.f32 %v2156
        %v3181 = vcvt.s32.f32 %v2157
        %v3182 = vcvt.s32.f32 %v2158
        %v3183 = vcvt.s32.f32 %v2159
        %v3184 = vcvt.s32.f32 %v2160
        %v3185 = vcvt.s32.f32 %v2161
        %v3186 = vcvt.s32.f32 %v2162
        %v3187 = vcvt.s32.f32 %v2163
        %v3188 = vcvt.s32.f32 %v2164
        %v3189 = vcvt.s32.f32 %v2165
        %v3190 = vcvt.s32.f32 %v2166
        %v3191 = vcvt.s32.f32 %v2167
        %v3192 = vcvt.s32.f32 %v2168
        %v3193 = vcvt.s32.f32 %v2169
        %v3194 = vcvt.s32.f32 %v2170
        %v3195 = vcvt.s32.f32 %v2171
        %v3196 = vcvt.s32.f32 %v2172
        %v3197 = vcvt.s32.f32 %v2173
        %v3198 = vcvt.s32.f32 %v2174
        %v3199 = vcvt.s32.f32 %v2175
        %v3200 = vcvt.s32.f32 %v2176
        %v3201 = vcvt.s32.f32 %v2177
        %v3202 = vcvt.s32.f32 %v2178
        %v3203 = vcvt.s32.f32 %v2179
        %v3204 = vcvt.s32.f32 %v2180
        %v3205 = vcvt.s32.f32 %v2181
        %v3206 = vcvt.s32.f32 %v2182
        %v3207 = vcvt.s32.f32 %v2183
        %v3208 = vcvt.s32.f32 %v2184
        %v3209 = vcvt.s32.f32 %v2185
        %v3210 = vcvt.s32.f32 %v2186
        %v3211 = vcvt.s32.f32 %v2187
        %v3212 = vcvt.s32.f32 %v2188
        %v3213 = vcvt.s32.f32 %v2189
        %v3214 = vcvt.s32.f32 %v2190
        %v3215 = vcvt.s32.f32 %v2191
        %v3216 = vcvt.s32.f32 %v2192
        %v3217 = vcvt.s32.f32 %v2193
        %v3218 = vcvt.s32.f32 %v2194
        %v3219 = vcvt.s32.f32 %v2195
        %v3220 = vcvt.s32.f32 %v2196
        %v3221 = vcvt.s32.f32 %v2197
        %v3222 = vcvt.s32.f32 %v2198
        %v3223 = vcvt.s32.f32 %v2199
        %v3224 = vcvt.s32.f32 %v2200
        %v3225 = vcvt.s32.f32 %v2201
        %v3226 = vcvt.s32.f32 %v2202
        %v3227 = vcvt.s32.f32 %v2203
        %v3228 = vcvt.s32.f32 %v2204
        %v3229 = vcvt.s32.f32 %v2205
        %v3230 = vcvt.s32.f32 %v2206
        %v3231 = vcvt.s32.f32 %v2207
        %v3232 = vcvt.s32.f32 %v2208
        %v3233 = vcvt.s32.f32 %v2209
        %v3234 = vcvt.s32.f32 %v2210
        %v3235 = vcvt.s32.f32 %v2211
        %v3236 = vcvt.s32.f32 %v2212
        %v3237 = vcvt.s32.f32 %v2213
        %v3238 = vcvt.s32.f32 %v2214
        %v3239 = vcvt.s32.f32 %v2215
        %v3240 = vcvt.s32.f32 %v2216
        %v3241 = vcvt.s32.f32 %v2217
        %v3242 = vcvt.s32.f32 %v2218
        %v3243 = vcvt.s32.f32 %v2219
        %v3244 = vcvt.s32.f32 %v2220
        %v3245 = vcvt.s32.f32 %v2221
        %v3246 = vcvt.s32.f32 %v2222
        %v3247 = vcvt.s32.f32 %v2223
        %v3248 = vcvt.s32.f32 %v2224
        %v3249 = vcvt.s32.f32 %v2225
        %v3250 = vcvt.s32.f32 %v2226
        %v3251 = vcvt.s32.f32 %v2227
        %v3252 = vcvt.s32.f32 %v2228
        %v3253 = vcvt.s32.f32 %v2229
        %v3254 = vcvt.s32.f32 %v2230
        %v3255 = vcvt.s32.f32 %v2231
        %v3256 = vcvt.s32.f32 %v2232
        %v3257 = vcvt.s32.f32 %v2233
        %v3258 = vcvt.s32.f32 %v2234
        %v3259 = vcvt.s32.f32 %v2235
        %v3260 = vcvt.s32.f32 %v2236
        %v3261 = vcvt.s32.f32 %v2237
        %v3262 = vcvt.s32.f32 %v2238
        %v3263 = vcvt.s32.f32 %v2239
        %v3264 = vcvt.s32.f32 %v2240
        %v3265 = vcvt.s32.f32 %v2241
        %v3266 = vcvt.s32.f32 %v2242
        %v3267 = vcvt.s32.f32 %v2243
        %v3268 = vcvt.s32.f32 %v2244
        %v3269 = vcvt.s32.f32 %v2245
        %v3270 = vcvt.s32.f32 %v2246
        %v3271 = vcvt.s32.f32 %v2247
        %v3272 = vcvt.s32.f32 %v2248
        %v3273 = vcvt.s32.f32 %v2249
        %v3274 = vcvt.s32.f32 %v2250
        %v3275 = vcvt.s32.f32 %v2251
        %v3276 = vcvt.s32.f32 %v2252
        %v3277 = vcvt.s32.f32 %v2253
        %v3278 = vcvt.s32.f32 %v2254
        %v3279 = vcvt.s32.f32 %v2255
        %v3280 = vcvt.s32.f32 %v2256
        %v3281 = vcvt.s32.f32 %v2257
        %v3282 = vcvt.s32.f32 %v2258
        %v3283 = vcvt.s32.f32 %v2259
        %v3284 = vcvt.s32.f32 %v2260
        %v3285 = vcvt.s32.f32 %v2261
        %v3286 = vcvt.s32.f32 %v2262
        %v3287 = vcvt.s32.f32 %v2263
        %v3288 = vcvt.s32.f32 %v2264
        %v3289 = vcvt.s32.f32 %v2265
        %v3290 = vcvt.s32.f32 %v2266
        %v3291 = vcvt.s32.f32 %v2267
        %v3292 = vcvt.s32.f32 %v2268
        %v3293 = vcvt.s32.f32 %v2269
        %v3294 = vcvt.s32.f32 %v2270
        %v3295 = vcvt.s32.f32 %v2271
        %v3296 = vcvt.s32.f32 %v2272
        %v3297 = vcvt.s32.f32 %v2273
        %v3298 = vcvt.s32.f32 %v2274
        %v3299 = vcvt.s32.f32 %v2275
        %v3300 = vcvt.s32.f32 %v2276
        %v3301 = vcvt.s32.f32 %v2277
        %v3302 = vcvt.s32.f32 %v2278
        %v3303 = vcvt.s32.f32 %v2279
        %v3304 = vcvt.s32.f32 %v2280
        %v3305 = vcvt.s32.f32 %v2281
        %v3306 = vcvt.s32.f32 %v2282
        %v3307 = vcvt.s32.f32 %v2283
        %v3308 = vcvt.s32.f32 %v2284
        %v3309 = vcvt.s32.f32 %v2285
        %v3310 = vcvt.s32.f32 %v2286
        %v3311 = vcvt.s32.f32 %v2287
        %v3312 = vcvt.s32.f32 %v2288
        %v3313 = vcvt.s32.f32 %v2289
        %v3314 = vcvt.s32.f32 %v2290
        %v3315 = vcvt.s32.f32 %v2291
        %v3316 = vcvt.s32.f32 %v2292
        %v3317 = vcvt.s32.f32 %v2293
        %v3318 = vcvt.s32.f32 %v2294
        %v3319 = vcvt.s32.f32 %v2295
        %v3320 = vcvt.s32.f32 %v2296
        %v3321 = vcvt.s32.f32 %v2297
        %v3322 = vcvt.s32.f32 %v2298
        %v3323 = vcvt.s32.f32 %v2299
        %v3324 = vcvt.s32.f32 %v2300
        %v3325 = vcvt.s32.f32 %v2301
        %v3326 = vcvt.s32.f32 %v2302
        %v3327 = vcvt.s32.f32 %v2303
        %v3328 = vcvt.s32.f32 %v2304
        %v3329 = vcvt.s32.f32 %v2305
        %v3330 = vcvt.s32.f32 %v2306
        %v3331 = vcvt.s32.f32 %v2307
        %v3332 = vcvt.s32.f32 %v2308
        %v3333 = vcvt.s32.f32 %v2309
        %v3334 = vcvt.s32.f32 %v2310
        %v3335 = vcvt.s32.f32 %v2311
        %v3336 = vcvt.s32.f32 %v2312
        %v3337 = vcvt.s32.f32 %v2313
        %v3338 = vcvt.s32.f32 %v2314
        %v3339 = vcvt.s32.f32 %v2315
        %v3340 = vcvt.s32.f32 %v2316
        %v3341 = vcvt.s32.f32 %v2317
        %v3342 = vcvt.s32.f32 %v2318
        %v3343 = vcvt.s32.f32 %v2319
        %v3344 = vcvt.s32.f32 %v2320
        %v3345 = vcvt.s32.f32 %v2321
        %v3346 = vcvt.s32.f32 %v2322
        %v3347 = vcvt.s32.f32 %v2323
        %v3348 = vcvt.s32.f32 %v2324
        %v3349 = vcvt.s32.f32 %v2325
        %v3350 = vcvt.s32.f32 %v2326
        %v3351 = vcvt.s32.f32 %v2327
        %v3352 = vcvt.s32.f32 %v2328
        %v3353 = vcvt.s32.f32 %v2329
        %v3354 = vcvt.s32.f32 %v2330
        %v3355 = vcvt.s32.f32 %v2331
        %v3356 = vcvt.s32.f32 %v2332
        %v3357 = vcvt.s32.f32 %v2333
        %v3358 = vcvt.s32.f32 %v2334
        %v3359 = vcvt.s32.f32 %v2335
        %v3360 = vcvt.s32.f32 %v2336
        %v3361 = vcvt.s32.f32 %v2337
        %v3362 = vcvt.s32.f32 %v2338
        %v3363 = vcvt.s32.f32 %v2339
        %v3364 = vcvt.s32.f32 %v2340
        %v3365 = vcvt.s32.f32 %v2341
        %v3366 = vcvt.s32.f32 %v2342
        %v3367 = vcvt.s32.f32 %v2343
        %v3368 = vcvt.s32.f32 %v2344
        %v3369 = vcvt.s32.f32 %v2345
        %v3370 = vcvt.s32.f32 %v2346
        %v3371 = vcvt.s32.f32 %v2347
        %v3372 = vcvt.s32.f32 %v2348
        %v3373 = vcvt.s32.f32 %v2349
        %v3374 = vcvt.s32.f32 %v2350
        %v3375 = vcvt.s32.f32 %v2351
        %v3376 = vcvt.s32.f32 %v2352
        %v3377 = vcvt.s32.f32 %v2353
        %v3378 = vcvt.s32.f32 %v2354
        %v3379 = vcvt.s32.f32 %v2355
        %v3380 = vcvt.s32.f32 %v2356
        %v3381 = vcvt.s32.f32 %v2357
        %v3382 = vcvt.s32.f32 %v2358
        %v3383 = vcvt.s32.f32 %v2359
        %v3384 = vcvt.s32.f32 %v2360
        %v3385 = vcvt.s32.f32 %v2361
        %v3386 = vcvt.s32.f32 %v2362
        %v3387 = vcvt.s32.f32 %v2363
        %v3388 = vcvt.s32.f32 %v2364
        %v3389 = vcvt.s32.f32 %v2365
        %v3390 = vcvt.s32.f32 %v2366
        %v3391 = vcvt.s32.f32 %v2367
        %v3392 = vcvt.s32.f32 %v2368
        %v3393 = vcvt.s32.f32 %v2369
        %v3394 = vcvt.s32.f32 %v2370
        %v3395 = vcvt.s32.f32 %v2371
        %v3396 = vcvt.s32.f32 %v2372
        %v3397 = vcvt.s32.f32 %v2373
        %v3398 = vcvt.s32.f32 %v2374
        %v3399 = vcvt.s32.f32 %v2375
        %v3400 = vcvt.s32.f32 %v2376
        %v3401 = vcvt.s32.f32 %v2377
        %v3402 = vcvt.s32.f32 %v2378
        %v3403 = vcvt.s32.f32 %v2379
        %v3404 = vcvt.s32.f32 %v2380
        %v3405 = vcvt.s32.f32 %v2381
        %v3406 = vcvt.s32.f32 %v2382
        %v3407 = vcvt.s32.f32 %v2383
        %v3408 = vcvt.s32.f32 %v2384
        %v3409 = vcvt.s32.f32 %v2385
        %v3410 = vcvt.s32.f32 %v2386
        %v3411 = vcvt.s32.f32 %v2387
        %v3412 = vcvt.s32.f32 %v2388
        %v3413 = vcvt.s32.f32 %v2389
        %v3414 = vcvt.s32.f32 %v2390
        %v3415 = vcvt.s32.f32 %v2391
        %v3416 = vcvt.s32.f32 %v2392
        %v3417 = vcvt.s32.f32 %v2393
        %v3418 = vcvt.s32.f32 %v2394
        %v3419 = vcvt.s32.f32 %v2395
        %v3420 = vcvt.s32.f32 %v2396
        %v3421 = vcvt.s32.f32 %v2397
        %v3422 = vcvt.s32.f32 %v2398
        %v3423 = vcvt.s32.f32 %v2399
        %v3424 = vcvt.s32.f32 %v2400
        %v3425 = vcvt.s32.f32 %v2401
        %v3426 = vcvt.s32.f32 %v2402
        %v3427 = vcvt.s32.f32 %v2403
        %v3428 = vcvt.s32.f32 %v2404
        %v3429 = vcvt.s32.f32 %v2405
        %v3430 = vcvt.s32.f32 %v2406
        %v3431 = vcvt.s32.f32 %v2407
        %v3432 = vcvt.s32.f32 %v2408
        %v3433 = vcvt.s32.f32 %v2409
        %v3434 = vcvt.s32.f32 %v2410
        %v3435 = vcvt.s32.f32 %v2411
        %v3436 = vcvt.s32.f32 %v2412
        %v3437 = vcvt.s32.f32 %v2413
        %v3438 = vcvt.s32.f32 %v2414
        %v3439 = vcvt.s32.f32 %v2415
        %v3440 = vcvt.s32.f32 %v2416
        %v3441 = vcvt.s32.f32 %v2417
        %v3442 = vcvt.s32.f32 %v2418
        %v3443 = vcvt.s32.f32 %v2419
        %v3444 = vcvt.s32.f32 %v2420
        %v3445 = vcvt.s32.f32 %v2421
        %v3446 = vcvt.s32.f32 %v2422
        %v3447 = vcvt.s32.f32 %v2423
        %v3448 = vcvt.s32.f32 %v2424
        %v3449 = vcvt.s32.f32 %v2425
        %v3450 = vcvt.s32.f32 %v2426
        %v3451 = vcvt.s32.f32 %v2427
        %v3452 = vcvt.s32.f32 %v2428
        %v3453 = vcvt.s32.f32 %v2429
        %v3454 = vcvt.s32.f32 %v2430
        %v3455 = vcvt.s32.f32 %v2431
        %v3456 = vcvt.s32.f32 %v2432
        %v3457 = vcvt.s32.f32 %v2433
        %v3458 = vcvt.s32.f32 %v2434
        %v3459 = vcvt.s32.f32 %v2435
        %v3460 = vcvt.s32.f32 %v2436
        %v3461 = vcvt.s32.f32 %v2437
        %v3462 = vcvt.s32.f32 %v2438
        %v3463 = vcvt.s32.f32 %v2439
        %v3464 = vcvt.s32.f32 %v2440
        %v3465 = vcvt.s32.f32 %v2441
        %v3466 = vcvt.s32.f32 %v2442
        %v3467 = vcvt.s32.f32 %v2443
        %v3468 = vcvt.s32.f32 %v2444
        %v3469 = vcvt.s32.f32 %v2445
        %v3470 = vcvt.s32.f32 %v2446
        %v3471 = vcvt.s32.f32 %v2447
        %v3472 = vcvt.s32.f32 %v2448
        %v3473 = vcvt.s32.f32 %v2449
        %v3474 = vcvt.s32.f32 %v2450
        %v3475 = vcvt.s32.f32 %v2451
        %v3476 = vcvt.s32.f32 %v2452
        %v3477 = vcvt.s32.f32 %v2453
        %v3478 = vcvt.s32.f32 %v2454
        %v3479 = vcvt.s32.f32 %v2455
        %v3480 = vcvt.s32.f32 %v2456
        %v3481 = vcvt.s32.f32 %v2457
        %v3482 = vcvt.s32.f32 %v2458
        %v3483 = vcvt.s32.f32 %v2459
        %v3484 = vcvt.s32.f32 %v2460
        %v3485 = vcvt.s32.f32 %v2461
        %v3486 = vcvt.s32.f32 %v2462
        %v3487 = vcvt.s32.f32 %v2463
        %v3488 = vcvt.s32.f32 %v2464
        %v3489 = vcvt.s32.f32 %v2465
        %v3490 = vcvt.s32.f32 %v2466
        %v3491 = vcvt.s32.f32 %v2467
        %v3492 = vcvt.s32.f32 %v2468
        %v3493 = vcvt.s32.f32 %v2469
        %v3494 = vcvt.s32.f32 %v2470
        %v3495 = vcvt.s32.f32 %v2471
        %v3496 = vcvt.s32.f32 %v2472
        %v3497 = vcvt.s32.f32 %v2473
        %v3498 = vcvt.s32.f32 %v2474
        %v3499 = vcvt.s32.f32 %v2475
        %v3500 = vcvt.s32.f32 %v2476
        %v3501 = vcvt.s32.f32 %v2477
        %v3502 = vcvt.s32.f32 %v2478
        %v3503 = vcvt.s32.f32 %v2479
        %v3504 = vcvt.s32.f32 %v2480
        %v3505 = vcvt.s32.f32 %v2481
        %v3506 = vcvt.s32.f32 %v2482
        %v3507 = vcvt.s32.f32 %v2483
        %v3508 = vcvt.s32.f32 %v2484
        %v3509 = vcvt.s32.f32 %v2485
        %v3510 = vcvt.s32.f32 %v2486
        %v3511 = vcvt.s32.f32 %v2487
        %v3512 = vcvt.s32.f32 %v2488
        %v3513 = vcvt.s32.f32 %v2489
        %v3514 = vcvt.s32.f32 %v2490
        %v3515 = vcvt.s32.f32 %v2491
        %v3516 = vcvt.s32.f32 %v2492
        %v3517 = vcvt.s32.f32 %v2493
        %v3518 = vcvt.s32.f32 %v2494
        %v3519 = vcvt.s32.f32 %v2495
        %v3520 = vcvt.s32.f32 %v2496
        %v3521 = vcvt.s32.f32 %v2497
        %v3522 = vcvt.s32.f32 %v2498
        %v3523 = vcvt.s32.f32 %v2499
        %v3524 = vcvt.s32.f32 %v2500
        %v3525 = vcvt.s32.f32 %v2501
        %v3526 = vcvt.s32.f32 %v2502
        %v3527 = vcvt.s32.f32 %v2503
        %v3528 = vcvt.s32.f32 %v2504
        %v3529 = vcvt.s32.f32 %v2505
        %v3530 = vcvt.s32.f32 %v2506
        %v3531 = vcvt.s32.f32 %v2507
        %v3532 = vcvt.s32.f32 %v2508
        %v3533 = vcvt.s32.f32 %v2509
        %v3534 = vcvt.s32.f32 %v2510
        %v3535 = vcvt.s32.f32 %v2511
        %v3536 = vcvt.s32.f32 %v2512
        %v3537 = vcvt.s32.f32 %v2513
        %v3538 = vcvt.s32.f32 %v2514
        %v3539 = vcvt.s32.f32 %v2515
        %v3540 = vcvt.s32.f32 %v2516
        %v3541 = vcvt.s32.f32 %v2517
        %v3542 = vcvt.s32.f32 %v2518
        %v3543 = vcvt.s32.f32 %v2519
        %v3544 = vcvt.s32.f32 %v2520
        %v3545 = vcvt.s32.f32 %v2521
        %v3546 = vcvt.s32.f32 %v2522
        %v3547 = vcvt.s32.f32 %v2523
        %v3548 = vcvt.s32.f32 %v2524
        %v3549 = vcvt.s32.f32 %v2525
        %v3550 = vcvt.s32.f32 %v2526
        %v3551 = vcvt.s32.f32 %v2527
        %v3552 = vcvt.s32.f32 %v2528
        %v3553 = vcvt.s32.f32 %v2529
        %v3554 = vcvt.s32.f32 %v2530
        %v3555 = vcvt.s32.f32 %v2531
        %v3556 = vcvt.s32.f32 %v2532
        %v3557 = vcvt.s32.f32 %v2533
        %v3558 = vcvt.s32.f32 %v2534
        %v3559 = vcvt.s32.f32 %v2535
        %v3560 = vcvt.s32.f32 %v2536
        %v3561 = vcvt.s32.f32 %v2537
        %v3562 = vcvt.s32.f32 %v2538
        %v3563 = vcvt.s32.f32 %v2539
        %v3564 = vcvt.s32.f32 %v2540
        %v3565 = vcvt.s32.f32 %v2541
        %v3566 = vcvt.s32.f32 %v2542
        %v3567 = vcvt.s32.f32 %v2543
        %v3568 = vcvt.s32.f32 %v2544
        %v3569 = vcvt.s32.f32 %v2545
        %v3570 = vcvt.s32.f32 %v2546
        %v3571 = vcvt.s32.f32 %v2547
        %v3572 = vcvt.s32.f32 %v2548
        %v3573 = vcvt.s32.f32 %v2549
        %v3574 = vcvt.s32.f32 %v2550
        %v3575 = vcvt.s32.f32 %v2551
        %v3576 = vcvt.s32.f32 %v2552
        %v3577 = vcvt.s32.f32 %v2553
        %v3578 = vcvt.s32.f32 %v2554
        %v3579 = vcvt.s32.f32 %v2555
        %v3580 = vcvt.s32.f32 %v2556
        %v3581 = vcvt.s32.f32 %v2557
        %v3582 = vcvt.s32.f32 %v2558
        %v3583 = vcvt.s32.f32 %v2559
        %v3584 = vcvt.s32.f32 %v2560
        %v3585 = vcvt.s32.f32 %v2561
        %v3586 = vcvt.s32.f32 %v2562
        %v3587 = vcvt.s32.f32 %v2563
        %v3588 = vcvt.s32.f32 %v2564
        %v3589 = vcvt.s32.f32 %v2565
        %v3590 = vcvt.s32.f32 %v2566
        %v3591 = vcvt.s32.f32 %v2567
        %v3592 = vcvt.s32.f32 %v2568
        %v3593 = vcvt.s32.f32 %v2569
        %v3594 = vcvt.s32.f32 %v2570
        %v3595 = vcvt.s32.f32 %v2571
        %v3596 = vcvt.s32.f32 %v2572
        %v3597 = vcvt.s32.f32 %v2573
        %v3598 = vcvt.s32.f32 %v2574
        %v3599 = vcvt.s32.f32 %v2575
        %v3600 = vcvt.s32.f32 %v2576
        %v3601 = vcvt.s32.f32 %v2577
        %v3602 = vcvt.s32.f32 %v2578
        %v3603 = vcvt.s32.f32 %v2579
        %v3604 = vcvt.s32.f32 %v2580
        %v3605 = vcvt.s32.f32 %v2581
        %v3606 = vcvt.s32.f32 %v2582
        %v3607 = vcvt.s32.f32 %v2583
        %v3608 = vcvt.s32.f32 %v2584
        %v3609 = vcvt.s32.f32 %v2585
        %v3610 = vcvt.s32.f32 %v2586
        %v3611 = vcvt.s32.f32 %v2587
        %v3612 = vcvt.s32.f32 %v2588
        %v3613 = vcvt.s32.f32 %v2589
        %v3614 = vcvt.s32.f32 %v2590
        %v3615 = vcvt.s32.f32 %v2591
        %v3616 = vcvt.s32.f32 %v2592
        %v3617 = vcvt.s32.f32 %v2593
        %v3618 = vcvt.s32.f32 %v2594
        %v3619 = vcvt.s32.f32 %v2595
        %v3620 = vcvt.s32.f32 %v2596
        %v3621 = vcvt.s32.f32 %v2597
        %v3622 = vcvt.s32.f32 %v2598
        %v3623 = vcvt.s32.f32 %v2599
        %v3624 = vcvt.s32.f32 %v2600
        %v3625 = vcvt.s32.f32 %v2601
        %v3626 = vcvt.s32.f32 %v2602
        %v3627 = vcvt.s32.f32 %v2603
        %v3628 = vcvt.s32.f32 %v2604
        %v3629 = vcvt.s32.f32 %v2605
        %v3630 = vcvt.s32.f32 %v2606
        %v3631 = vcvt.s32.f32 %v2607
        %v3632 = vcvt.s32.f32 %v2608
        %v3633 = vcvt.s32.f32 %v2609
        %v3634 = vcvt.s32.f32 %v2610
        %v3635 = vcvt.s32.f32 %v2611
        %v3636 = vcvt.s32.f32 %v2612
        %v3637 = vcvt.s32.f32 %v2613
        %v3638 = vcvt.s32.f32 %v2614
        %v3639 = vcvt.s32.f32 %v2615
        %v3640 = vcvt.s32.f32 %v2616
        %v3641 = vcvt.s32.f32 %v2617
        %v3642 = vcvt.s32.f32 %v2618
        %v3643 = vcvt.s32.f32 %v2619
        %v3644 = vcvt.s32.f32 %v2620
        %v3645 = vcvt.s32.f32 %v2621
        %v3646 = vcvt.s32.f32 %v2622
        %v3647 = vcvt.s32.f32 %v2623
        %v3648 = vcvt.s32.f32 %v2624
        %v3649 = vcvt.s32.f32 %v2625
        %v3650 = vcvt.s32.f32 %v2626
        %v3651 = vcvt.s32.f32 %v2627
        %v3652 = vcvt.s32.f32 %v2628
        %v3653 = vcvt.s32.f32 %v2629
        %v3654 = vcvt.s32.f32 %v2630
        %v3655 = vcvt.s32.f32 %v2631
        %v3656 = vcvt.s32.f32 %v2632
        %v3657 = vcvt.s32.f32 %v2633
        %v3658 = vcvt.s32.f32 %v2634
        %v3659 = vcvt.s32.f32 %v2635
        %v3660 = vcvt.s32.f32 %v2636
        %v3661 = vcvt.s32.f32 %v2637
        %v3662 = vcvt.s32.f32 %v2638
        %v3663 = vcvt.s32.f32 %v2639
        %v3664 = vcvt.s32.f32 %v2640
        %v3665 = vcvt.s32.f32 %v2641
        %v3666 = vcvt.s32.f32 %v2642
        %v3667 = vcvt.s32.f32 %v2643
        %v3668 = vcvt.s32.f32 %v2644
        %v3669 = vcvt.s32.f32 %v2645
        %v3670 = vcvt.s32.f32 %v2646
        %v3671 = vcvt.s32.f32 %v2647
        %v3672 = vcvt.s32.f32 %v2648
        %v3673 = vcvt.s32.f32 %v2649
        %v3674 = vcvt.s32.f32 %v2650
        %v3675 = vcvt.s32.f32 %v2651
        %v3676 = vcvt.s32.f32 %v2652
        %v3677 = vcvt.s32.f32 %v2653
        %v3678 = vcvt.s32.f32 %v2654
        %v3679 = vcvt.s32.f32 %v2655
        %v3680 = vcvt.s32.f32 %v2656
        %v3681 = vcvt.s32.f32 %v2657
        %v3682 = vcvt.s32.f32 %v2658
        %v3683 = vcvt.s32.f32 %v2659
        %v3684 = vcvt.s32.f32 %v2660
        %v3685 = vcvt.s32.f32 %v2661
        %v3686 = vcvt.s32.f32 %v2662
        %v3687 = vcvt.s32.f32 %v2663
        %v3688 = vcvt.s32.f32 %v2664
        %v3689 = vcvt.s32.f32 %v2665
        %v3690 = vcvt.s32.f32 %v2666
        %v3691 = vcvt.s32.f32 %v2667
        %v3692 = vcvt.s32.f32 %v2668
        %v3693 = vcvt.s32.f32 %v2669
        %v3694 = vcvt.s32.f32 %v2670
        %v3695 = vcvt.s32.f32 %v2671
        %v3696 = vcvt.s32.f32 %v2672
        %v3697 = vcvt.s32.f32 %v2673
        %v3698 = vcvt.s32.f32 %v2674
        %v3699 = vcvt.s32.f32 %v2675
        %v3700 = vcvt.s32.f32 %v2676
        %v3701 = vcvt.s32.f32 %v2677
        %v3702 = vcvt.s32.f32 %v2678
        %v3703 = vcvt.s32.f32 %v2679
        %v3704 = vcvt.s32.f32 %v2680
        %v3705 = vcvt.s32.f32 %v2681
        %v3706 = vcvt.s32.f32 %v2682
        %v3707 = vcvt.s32.f32 %v2683
        %v3708 = vcvt.s32.f32 %v2684
        %v3709 = vcvt.s32.f32 %v2685
        %v3710 = vcvt.s32.f32 %v2686
        %v3711 = vcvt.s32.f32 %v2687
        %v3712 = vcvt.s32.f32 %v2688
        %v3713 = vcvt.s32.f32 %v2689
        %v3714 = vcvt.s32.f32 %v2690
        %v3715 = vcvt.s32.f32 %v2691
        %v3716 = vcvt.s32.f32 %v2692
        %v3717 = vcvt.s32.f32 %v2693
        %v3718 = vcvt.s32.f32 %v2694
        %v3719 = vcvt.s32.f32 %v2695
        %v3720 = vcvt.s32.f32 %v2696
        %v3721 = vcvt.s32.f32 %v2697
        %v3722 = vcvt.s32.f32 %v2698
        %v3723 = vcvt.s32.f32 %v2699
        %v3724 = vcvt.s32.f32 %v2700
        %v3725 = vcvt.s32.f32 %v2701
        %v3726 = vcvt.s32.f32 %v2702
        %v3727 = vcvt.s32.f32 %v2703
        %v3728 = vcvt.s32.f32 %v2704
        %v3729 = vcvt.s32.f32 %v2705
        %v3730 = vcvt.s32.f32 %v2706
        %v3731 = vcvt.s32.f32 %v2707
        %v3732 = vcvt.s32.f32 %v2708
        %v3733 = vcvt.s32.f32 %v2709
        %v3734 = vcvt.s32.f32 %v2710
        %v3735 = vcvt.s32.f32 %v2711
        %v3736 = vcvt.s32.f32 %v2712
        %v3737 = vcvt.s32.f32 %v2713
        %v3738 = vcvt.s32.f32 %v2714
        %v3739 = vcvt.s32.f32 %v2715
        %v3740 = vcvt.s32.f32 %v2716
        %v3741 = vcvt.s32.f32 %v2717
        %v3742 = vcvt.s32.f32 %v2718
        %v3743 = vcvt.s32.f32 %v2719
        %v3744 = vcvt.s32.f32 %v2720
        %v3745 = vcvt.s32.f32 %v2721
        %v3746 = vcvt.s32.f32 %v2722
        %v3747 = vcvt.s32.f32 %v2723
        %v3748 = vcvt.s32.f32 %v2724
        %v3749 = vcvt.s32.f32 %v2725
        %v3750 = vcvt.s32.f32 %v2726
        %v3751 = vcvt.s32.f32 %v2727
        %v3752 = vcvt.s32.f32 %v2728
        %v3753 = vcvt.s32.f32 %v2729
        %v3754 = vcvt.s32.f32 %v2730
        %v3755 = vcvt.s32.f32 %v2731
        %v3756 = vcvt.s32.f32 %v2732
        %v3757 = vcvt.s32.f32 %v2733
        %v3758 = vcvt.s32.f32 %v2734
        %v3759 = vcvt.s32.f32 %v2735
        %v3760 = vcvt.s32.f32 %v2736
        %v3761 = vcvt.s32.f32 %v2737
        %v3762 = vcvt.s32.f32 %v2738
        %v3763 = vcvt.s32.f32 %v2739
        %v3764 = vcvt.s32.f32 %v2740
        %v3765 = vcvt.s32.f32 %v2741
        %v3766 = vcvt.s32.f32 %v2742
        %v3767 = vcvt.s32.f32 %v2743
        %v3768 = vcvt.s32.f32 %v2744
        %v3769 = vcvt.s32.f32 %v2745
        %v3770 = vcvt.s32.f32 %v2746
        %v3771 = vcvt.s32.f32 %v2747
        %v3772 = vcvt.s32.f32 %v2748
        %v3773 = vcvt.s32.f32 %v2749
        %v3774 = vcvt.s32.f32 %v2750
        %v3775 = vcvt.s32.f32 %v2751
        %v3776 = vcvt.s32.f32 %v2752
        %v3777 = vcvt.s32.f32 %v2753
        %v3778 = vcvt.s32.f32 %v2754
        %v3779 = vcvt.s32.f32 %v2755
        %v3780 = vcvt.s32.f32 %v2756
        %v3781 = vcvt.s32.f32 %v2757
        %v3782 = vcvt.s32.f32 %v2758
        %v3783 = vcvt.s32.f32 %v2759
        %v3784 = vcvt.s32.f32 %v2760
        %v3785 = vcvt.s32.f32 %v2761
        %v3786 = vcvt.s32.f32 %v2762
        %v3787 = vcvt.s32.f32 %v2763
        %v3788 = vcvt.s32.f32 %v2764
        %v3789 = vcvt.s32.f32 %v2765
        %v3790 = vcvt.s32.f32 %v2766
        %v3791 = vcvt.s32.f32 %v2767
        %v3792 = vcvt.s32.f32 %v2768
        %v3793 = vcvt.s32.f32 %v2769
        %v3794 = vcvt.s32.f32 %v2770
        %v3795 = vcvt.s32.f32 %v2771
        %v3796 = vcvt.s32.f32 %v2772
        %v3797 = vcvt.s32.f32 %v2773
        %v3798 = vcvt.s32.f32 %v2774
        %v3799 = vcvt.s32.f32 %v2775
        %v3800 = vcvt.s32.f32 %v2776
        %v3801 = vcvt.s32.f32 %v2777
        %v3802 = vcvt.s32.f32 %v2778
        %v3803 = vcvt.s32.f32 %v2779
        %v3804 = vcvt.s32.f32 %v2780
        %v3805 = vcvt.s32.f32 %v2781
        %v3806 = vcvt.s32.f32 %v2782
        %v3807 = vcvt.s32.f32 %v2783
        %v3808 = vcvt.s32.f32 %v2784
        %v3809 = vcvt.s32.f32 %v2785
        %v3810 = vcvt.s32.f32 %v2786
        %v3811 = vcvt.s32.f32 %v2787
        %v3812 = vcvt.s32.f32 %v2788
        %v3813 = vcvt.s32.f32 %v2789
        %v3814 = vcvt.s32.f32 %v2790
        %v3815 = vcvt.s32.f32 %v2791
        %v3816 = vcvt.s32.f32 %v2792
        %v3817 = vcvt.s32.f32 %v2793
        %v3818 = vcvt.s32.f32 %v2794
        %v3819 = vcvt.s32.f32 %v2795
        %v3820 = vcvt.s32.f32 %v2796
        %v3821 = vcvt.s32.f32 %v2797
        %v3822 = vcvt.s32.f32 %v2798
        %v3823 = vcvt.s32.f32 %v2799
        %v3824 = vcvt.s32.f32 %v2800
        %v3825 = vcvt.s32.f32 %v2801
        %v3826 = vcvt.s32.f32 %v2802
        %v3827 = vcvt.s32.f32 %v2803
        %v3828 = vcvt.s32.f32 %v2804
        %v3829 = vcvt.s32.f32 %v2805
        %v3830 = vcvt.s32.f32 %v2806
        %v3831 = vcvt.s32.f32 %v2807
        %v3832 = vcvt.s32.f32 %v2808
        %v3833 = vpack.c.bf16 %v2873, %v2809
        %v3834 = vpack.c.bf16 %v2874, %v2810
        %v3835 = vpack.c.bf16 %v2875, %v2811
        %v3836 = vpack.c.bf16 %v2876, %v2812
        %v3837 = vpack.c.bf16 %v2877, %v2813
        %v3838 = vpack.c.bf16 %v2878, %v2814
        %v3839 = vpack.c.bf16 %v2879, %v2815
        %v3840 = vpack.c.bf16 %v2880, %v2816
        %v3841 = vpack.c.bf16 %v2881, %v2817
        %v3842 = vpack.c.bf16 %v2882, %v2818
        %v3843 = vpack.c.bf16 %v2883, %v2819
        %v3844 = vpack.c.bf16 %v2884, %v2820
        %v3845 = vpack.c.bf16 %v2885, %v2821
        %v3846 = vpack.c.bf16 %v2886, %v2822
        %v3847 = vpack.c.bf16 %v2887, %v2823
        %v3848 = vpack.c.bf16 %v2888, %v2824
        %v3849 = vpack.c.bf16 %v2889, %v2825
        %v3850 = vpack.c.bf16 %v2890, %v2826
        %v3851 = vpack.c.bf16 %v2891, %v2827
        %v3852 = vpack.c.bf16 %v2892, %v2828
        %v3853 = vpack.c.bf16 %v2893, %v2829
        %v3854 = vpack.c.bf16 %v2894, %v2830
        %v3855 = vpack.c.bf16 %v2895, %v2831
        %v3856 = vpack.c.bf16 %v2896, %v2832
        %v3857 = vpack.c.bf16 %v2897, %v2833
        %v3858 = vpack.c.bf16 %v2898, %v2834
        %v3859 = vpack.c.bf16 %v2899, %v2835
        %v3860 = vpack.c.bf16 %v2900, %v2836
        %v3861 = vpack.c.bf16 %v2901, %v2837
        %v3862 = vpack.c.bf16 %v2902, %v2838
        %v3863 = vpack.c.bf16 %v2903, %v2839
        %v3864 = vpack.c.bf16 %v2904, %v2840
        %v3865 = vpack.c.bf16 %v2905, %v2841
        %v3866 = vpack.c.bf16 %v2906, %v2842
        %v3867 = vpack.c.bf16 %v2907, %v2843
        %v3868 = vpack.c.bf16 %v2908, %v2844
        %v3869 = vpack.c.bf16 %v2909, %v2845
        %v3870 = vpack.c.bf16 %v2910, %v2846
        %v3871 = vpack.c.bf16 %v2911, %v2847
        %v3872 = vpack.c.bf16 %v2912, %v2848
        %v3873 = vpack.c.bf16 %v2913, %v2849
        %v3874 = vpack.c.bf16 %v2914, %v2850
        %v3875 = vpack.c.bf16 %v2915, %v2851
        %v3876 = vpack.c.bf16 %v2916, %v2852
        %v3877 = vpack.c.bf16 %v2917, %v2853
        %v3878 = vpack.c.bf16 %v2918, %v2854
        %v3879 = vpack.c.bf16 %v2919, %v2855
        %v3880 = vpack.c.bf16 %v2920, %v2856
        %v3881 = vpack.c.bf16 %v2921, %v2857
        %v3882 = vpack.c.bf16 %v2922, %v2858
        %v3883 = vpack.c.bf16 %v2923, %v2859
        %v3884 = vpack.c.bf16 %v2924, %v2860
        %v3885 = vpack.c.bf16 %v2925, %v2861
        %v3886 = vpack.c.bf16 %v2926, %v2862
        %v3887 = vpack.c.bf16 %v2927, %v2863
        %v3888 = vpack.c.bf16 %v2928, %v2864
        %v3889 = vpack.c.bf16 %v2929, %v2865
        %v3890 = vpack.c.bf16 %v2930, %v2866
        %v3891 = vpack.c.bf16 %v2931, %v2867
        %v3892 = vpack.c.bf16 %v2932, %v2868
        %v3893 = vpack.c.bf16 %v2933, %v2869
        %v3894 = vpack.c.bf16 %v2934, %v2870
        %v3895 = vpack.c.bf16 %v2935, %v2871
        %v3896 = vpack.c.bf16 %v2936, %v2872
        %v3897 = vpack.c.bf16 %v3001, %v2937
        %v3898 = vpack.c.bf16 %v3002, %v2938
        %v3899 = vpack.c.bf16 %v3003, %v2939
        %v3900 = vpack.c.bf16 %v3004, %v2940
        %v3901 = vpack.c.bf16 %v3005, %v2941
        %v3902 = vpack.c.bf16 %v3006, %v2942
        %v3903 = vpack.c.bf16 %v3007, %v2943
        %v3904 = vpack.c.bf16 %v3008, %v2944
        %v3905 = vpack.c.bf16 %v3009, %v2945
        %v3906 = vpack.c.bf16 %v3010, %v2946
        %v3907 = vpack.c.bf16 %v3011, %v2947
        %v3908 = vpack.c.bf16 %v3012, %v2948
        %v3909 = vpack.c.bf16 %v3013, %v2949
        %v3910 = vpack.c.bf16 %v3014, %v2950
        %v3911 = vpack.c.bf16 %v3015, %v2951
        %v3912 = vpack.c.bf16 %v3016, %v2952
        %v3913 = vpack.c.bf16 %v3017, %v2953
        %v3914 = vpack.c.bf16 %v3018, %v2954
        %v3915 = vpack.c.bf16 %v3019, %v2955
        %v3916 = vpack.c.bf16 %v3020, %v2956
        %v3917 = vpack.c.bf16 %v3021, %v2957
        %v3918 = vpack.c.bf16 %v3022, %v2958
        %v3919 = vpack.c.bf16 %v3023, %v2959
        %v3920 = vpack.c.bf16 %v3024, %v2960
        %v3921 = vpack.c.bf16 %v3025, %v2961
        %v3922 = vpack.c.bf16 %v3026, %v2962
        %v3923 = vpack.c.bf16 %v3027, %v2963
        %v3924 = vpack.c.bf16 %v3028, %v2964
        %v3925 = vpack.c.bf16 %v3029, %v2965
        %v3926 = vpack.c.bf16 %v3030, %v2966
        %v3927 = vpack.c.bf16 %v3031, %v2967
        %v3928 = vpack.c.bf16 %v3032, %v2968
        %v3929 = vpack.c.bf16 %v3033, %v2969
        %v3930 = vpack.c.bf16 %v3034, %v2970
        %v3931 = vpack.c.bf16 %v3035, %v2971
        %v3932 = vpack.c.bf16 %v3036, %v2972
        %v3933 = vpack.c.bf16 %v3037, %v2973
        %v3934 = vpack.c.bf16 %v3038, %v2974
        %v3935 = vpack.c.bf16 %v3039, %v2975
        %v3936 = vpack.c.bf16 %v3040, %v2976
        %v3937 = vpack.c.bf16 %v3041, %v2977
        %v3938 = vpack.c.bf16 %v3042, %v2978
        %v3939 = vpack.c.bf16 %v3043, %v2979
        %v3940 = vpack.c.bf16 %v3044, %v2980
        %v3941 = vpack.c.bf16 %v3045, %v2981
        %v3942 = vpack.c.bf16 %v3046, %v2982
        %v3943 = vpack.c.bf16 %v3047, %v2983
        %v3944 = vpack.c.bf16 %v3048, %v2984
        %v3945 = vpack.c.bf16 %v3049, %v2985
        %v3946 = vpack.c.bf16 %v3050, %v2986
        %v3947 = vpack.c.bf16 %v3051, %v2987
        %v3948 = vpack.c.bf16 %v3052, %v2988
        %v3949 = vpack.c.bf16 %v3053, %v2989
        %v3950 = vpack.c.bf16 %v3054, %v2990
        %v3951 = vpack.c.bf16 %v3055, %v2991
        %v3952 = vpack.c.bf16 %v3056, %v2992
        %v3953 = vpack.c.bf16 %v3057, %v2993
        %v3954 = vpack.c.bf16 %v3058, %v2994
        %v3955 = vpack.c.bf16 %v3059, %v2995
        %v3956 = vpack.c.bf16 %v3060, %v2996
        %v3957 = vpack.c.bf16 %v3061, %v2997
        %v3958 = vpack.c.bf16 %v3062, %v2998
        %v3959 = vpack.c.bf16 %v3063, %v2999
        %v3960 = vpack.c.bf16 %v3064, %v3000
        %v3961 = vpack.c.bf16 %v3129, %v3065
        %v3962 = vpack.c.bf16 %v3130, %v3066
        %v3963 = vpack.c.bf16 %v3131, %v3067
        %v3964 = vpack.c.bf16 %v3132, %v3068
        %v3965 = vpack.c.bf16 %v3133, %v3069
        %v3966 = vpack.c.bf16 %v3134, %v3070
        %v3967 = vpack.c.bf16 %v3135, %v3071
        %v3968 = vpack.c.bf16 %v3136, %v3072
        %v3969 = vpack.c.bf16 %v3137, %v3073
        %v3970 = vpack.c.bf16 %v3138, %v3074
        %v3971 = vpack.c.bf16 %v3139, %v3075
        %v3972 = vpack.c.bf16 %v3140, %v3076
        %v3973 = vpack.c.bf16 %v3141, %v3077
        %v3974 = vpack.c.bf16 %v3142, %v3078
        %v3975 = vpack.c.bf16 %v3143, %v3079
        %v3976 = vpack.c.bf16 %v3144, %v3080
        %v3977 = vpack.c.bf16 %v3145, %v3081
        %v3978 = vpack.c.bf16 %v3146, %v3082
        %v3979 = vpack.c.bf16 %v3147, %v3083
        %v3980 = vpack.c.bf16 %v3148, %v3084
        %v3981 = vpack.c.bf16 %v3149, %v3085
        %v3982 = vpack.c.bf16 %v3150, %v3086
        %v3983 = vpack.c.bf16 %v3151, %v3087
        %v3984 = vpack.c.bf16 %v3152, %v3088
        %v3985 = vpack.c.bf16 %v3153, %v3089
        %v3986 = vpack.c.bf16 %v3154, %v3090
        %v3987 = vpack.c.bf16 %v3155, %v3091
        %v3988 = vpack.c.bf16 %v3156, %v3092
        %v3989 = vpack.c.bf16 %v3157, %v3093
        %v3990 = vpack.c.bf16 %v3158, %v3094
        %v3991 = vpack.c.bf16 %v3159, %v3095
        %v3992 = vpack.c.bf16 %v3160, %v3096
        %v3993 = vpack.c.bf16 %v3161, %v3097
        %v3994 = vpack.c.bf16 %v3162, %v3098
        %v3995 = vpack.c.bf16 %v3163, %v3099
        %v3996 = vpack.c.bf16 %v3164, %v3100
        %v3997 = vpack.c.bf16 %v3165, %v3101
        %v3998 = vpack.c.bf16 %v3166, %v3102
        %v3999 = vpack.c.bf16 %v3167, %v3103
        %v4000 = vpack.c.bf16 %v3168, %v3104
        %v4001 = vpack.c.bf16 %v3169, %v3105
        %v4002 = vpack.c.bf16 %v3170, %v3106
        %v4003 = vpack.c.bf16 %v3171, %v3107
        %v4004 = vpack.c.bf16 %v3172, %v3108
        %v4005 = vpack.c.bf16 %v3173, %v3109
        %v4006 = vpack.c.bf16 %v3174, %v3110
        %v4007 = vpack.c.bf16 %v3175, %v3111
        %v4008 = vpack.c.bf16 %v3176, %v3112
        %v4009 = vpack.c.bf16 %v3177, %v3113
        %v4010 = vpack.c.bf16 %v3178, %v3114
        %v4011 = vpack.c.bf16 %v3179, %v3115
        %v4012 = vpack.c.bf16 %v3180, %v3116
        %v4013 = vpack.c.bf16 %v3181, %v3117
        %v4014 = vpack.c.bf16 %v3182, %v3118
        %v4015 = vpack.c.bf16 %v3183, %v3119
        %v4016 = vpack.c.bf16 %v3184, %v3120
        %v4017 = vpack.c.bf16 %v3185, %v3121
        %v4018 = vpack.c.bf16 %v3186, %v3122
        %v4019 = vpack.c.bf16 %v3187, %v3123
        %v4020 = vpack.c.bf16 %v3188, %v3124
        %v4021 = vpack.c.bf16 %v3189, %v3125
        %v4022 = vpack.c.bf16 %v3190, %v3126
        %v4023 = vpack.c.bf16 %v3191, %v3127
        %v4024 = vpack.c.bf16 %v3192, %v3128
        %v4025 = vpack.c.bf16 %v3257, %v3193
        %v4026 = vpack.c.bf16 %v3258, %v3194
        %v4027 = vpack.c.bf16 %v3259, %v3195
        %v4028 = vpack.c.bf16 %v3260, %v3196
        %v4029 = vpack.c.bf16 %v3261, %v3197
        %v4030 = vpack.c.bf16 %v3262, %v3198
        %v4031 = vpack.c.bf16 %v3263, %v3199
        %v4032 = vpack.c.bf16 %v3264, %v3200
        %v4033 = vpack.c.bf16 %v3265, %v3201
        %v4034 = vpack.c.bf16 %v3266, %v3202
        %v4035 = vpack.c.bf16 %v3267, %v3203
        %v4036 = vpack.c.bf16 %v3268, %v3204
        %v4037 = vpack.c.bf16 %v3269, %v3205
        %v4038 = vpack.c.bf16 %v3270, %v3206
        %v4039 = vpack.c.bf16 %v3271, %v3207
        %v4040 = vpack.c.bf16 %v3272, %v3208
        %v4041 = vpack.c.bf16 %v3273, %v3209
        %v4042 = vpack.c.bf16 %v3274, %v3210
        %v4043 = vpack.c.bf16 %v3275, %v3211
        %v4044 = vpack.c.bf16 %v3276, %v3212
        %v4045 = vpack.c.bf16 %v3277, %v3213
        %v4046 = vpack.c.bf16 %v3278, %v3214
        %v4047 = vpack.c.bf16 %v3279, %v3215
        %v4048 = vpack.c.bf16 %v3280, %v3216
        %v4049 = vpack.c.bf16 %v3281, %v3217
        %v4050 = vpack.c.bf16 %v3282, %v3218
        %v4051 = vpack.c.bf16 %v3283, %v3219
        %v4052 = vpack.c.bf16 %v3284, %v3220
        %v4053 = vpack.c.bf16 %v3285, %v3221
        %v4054 = vpack.c.bf16 %v3286, %v3222
        %v4055 = vpack.c.bf16 %v3287, %v3223
        %v4056 = vpack.c.bf16 %v3288, %v3224
        %v4057 = vpack.c.bf16 %v3289, %v3225
        %v4058 = vpack.c.bf16 %v3290, %v3226
        %v4059 = vpack.c.bf16 %v3291, %v3227
        %v4060 = vpack.c.bf16 %v3292, %v3228
        %v4061 = vpack.c.bf16 %v3293, %v3229
        %v4062 = vpack.c.bf16 %v3294, %v3230
        %v4063 = vpack.c.bf16 %v3295, %v3231
        %v4064 = vpack.c.bf16 %v3296, %v3232
        %v4065 = vpack.c.bf16 %v3297, %v3233
        %v4066 = vpack.c.bf16 %v3298, %v3234
        %v4067 = vpack.c.bf16 %v3299, %v3235
        %v4068 = vpack.c.bf16 %v3300, %v3236
        %v4069 = vpack.c.bf16 %v3301, %v3237
        %v4070 = vpack.c.bf16 %v3302, %v3238
        %v4071 = vpack.c.bf16 %v3303, %v3239
        %v4072 = vpack.c.bf16 %v3304, %v3240
        %v4073 = vpack.c.bf16 %v3305, %v3241
        %v4074 = vpack.c.bf16 %v3306, %v3242
        %v4075 = vpack.c.bf16 %v3307, %v3243
        %v4076 = vpack.c.bf16 %v3308, %v3244
        %v4077 = vpack.c.bf16 %v3309, %v3245
        %v4078 = vpack.c.bf16 %v3310, %v3246
        %v4079 = vpack.c.bf16 %v3311, %v3247
        %v4080 = vpack.c.bf16 %v3312, %v3248
        %v4081 = vpack.c.bf16 %v3313, %v3249
        %v4082 = vpack.c.bf16 %v3314, %v3250
        %v4083 = vpack.c.bf16 %v3315, %v3251
        %v4084 = vpack.c.bf16 %v3316, %v3252
        %v4085 = vpack.c.bf16 %v3317, %v3253
        %v4086 = vpack.c.bf16 %v3318, %v3254
        %v4087 = vpack.c.bf16 %v3319, %v3255
        %v4088 = vpack.c.bf16 %v3320, %v3256
        %v4089 = vpack.c.bf16 %v3385, %v3321
        %v4090 = vpack.c.bf16 %v3386, %v3322
        %v4091 = vpack.c.bf16 %v3387, %v3323
        %v4092 = vpack.c.bf16 %v3388, %v3324
        %v4093 = vpack.c.bf16 %v3389, %v3325
        %v4094 = vpack.c.bf16 %v3390, %v3326
        %v4095 = vpack.c.bf16 %v3391, %v3327
        %v4096 = vpack.c.bf16 %v3392, %v3328
        %v4097 = vpack.c.bf16 %v3393, %v3329
        %v4098 = vpack.c.bf16 %v3394, %v3330
        %v4099 = vpack.c.bf16 %v3395, %v3331
        %v4100 = vpack.c.bf16 %v3396, %v3332
        %v4101 = vpack.c.bf16 %v3397, %v3333
        %v4102 = vpack.c.bf16 %v3398, %v3334
        %v4103 = vpack.c.bf16 %v3399, %v3335
        %v4104 = vpack.c.bf16 %v3400, %v3336
        %v4105 = vpack.c.bf16 %v3401, %v3337
        %v4106 = vpack.c.bf16 %v3402, %v3338
        %v4107 = vpack.c.bf16 %v3403, %v3339
        %v4108 = vpack.c.bf16 %v3404, %v3340
        %v4109 = vpack.c.bf16 %v3405, %v3341
        %v4110 = vpack.c.bf16 %v3406, %v3342
        %v4111 = vpack.c.bf16 %v3407, %v3343
        %v4112 = vpack.c.bf16 %v3408, %v3344
        %v4113 = vpack.c.bf16 %v3409, %v3345
        %v4114 = vpack.c.bf16 %v3410, %v3346
        %v4115 = vpack.c.bf16 %v3411, %v3347
        %v4116 = vpack.c.bf16 %v3412, %v3348
        %v4117 = vpack.c.bf16 %v3413, %v3349
        %v4118 = vpack.c.bf16 %v3414, %v3350
        %v4119 = vpack.c.bf16 %v3415, %v3351
        %v4120 = vpack.c.bf16 %v3416, %v3352
        %v4121 = vpack.c.bf16 %v3417, %v3353
        %v4122 = vpack.c.bf16 %v3418, %v3354
        %v4123 = vpack.c.bf16 %v3419, %v3355
        %v4124 = vpack.c.bf16 %v3420, %v3356
        %v4125 = vpack.c.bf16 %v3421, %v3357
        %v4126 = vpack.c.bf16 %v3422, %v3358
        %v4127 = vpack.c.bf16 %v3423, %v3359
        %v4128 = vpack.c.bf16 %v3424, %v3360
        %v4129 = vpack.c.bf16 %v3425, %v3361
        %v4130 = vpack.c.bf16 %v3426, %v3362
        %v4131 = vpack.c.bf16 %v3427, %v3363
        %v4132 = vpack.c.bf16 %v3428, %v3364
        %v4133 = vpack.c.bf16 %v3429, %v3365
        %v4134 = vpack.c.bf16 %v3430, %v3366
        %v4135 = vpack.c.bf16 %v3431, %v3367
        %v4136 = vpack.c.bf16 %v3432, %v3368
        %v4137 = vpack.c.bf16 %v3433, %v3369
        %v4138 = vpack.c.bf16 %v3434, %v3370
        %v4139 = vpack.c.bf16 %v3435, %v3371
        %v4140 = vpack.c.bf16 %v3436, %v3372
        %v4141 = vpack.c.bf16 %v3437, %v3373
        %v4142 = vpack.c.bf16 %v3438, %v3374
        %v4143 = vpack.c.bf16 %v3439, %v3375
        %v4144 = vpack.c.bf16 %v3440, %v3376
        %v4145 = vpack.c.bf16 %v3441, %v3377
        %v4146 = vpack.c.bf16 %v3442, %v3378
        %v4147 = vpack.c.bf16 %v3443, %v3379
        %v4148 = vpack.c.bf16 %v3444, %v3380
        %v4149 = vpack.c.bf16 %v3445, %v3381
        %v4150 = vpack.c.bf16 %v3446, %v3382
        %v4151 = vpack.c.bf16 %v3447, %v3383
        %v4152 = vpack.c.bf16 %v3448, %v3384
        %v4153 = vpack.c.bf16 %v3513, %v3449
        %v4154 = vpack.c.bf16 %v3514, %v3450
        %v4155 = vpack.c.bf16 %v3515, %v3451
        %v4156 = vpack.c.bf16 %v3516, %v3452
        %v4157 = vpack.c.bf16 %v3517, %v3453
        %v4158 = vpack.c.bf16 %v3518, %v3454
        %v4159 = vpack.c.bf16 %v3519, %v3455
        %v4160 = vpack.c.bf16 %v3520, %v3456
        %v4161 = vpack.c.bf16 %v3521, %v3457
        %v4162 = vpack.c.bf16 %v3522, %v3458
        %v4163 = vpack.c.bf16 %v3523, %v3459
        %v4164 = vpack.c.bf16 %v3524, %v3460
        %v4165 = vpack.c.bf16 %v3525, %v3461
        %v4166 = vpack.c.bf16 %v3526, %v3462
        %v4167 = vpack.c.bf16 %v3527, %v3463
        %v4168 = vpack.c.bf16 %v3528, %v3464
        %v4169 = vpack.c.bf16 %v3529, %v3465
        %v4170 = vpack.c.bf16 %v3530, %v3466
        %v4171 = vpack.c.bf16 %v3531, %v3467
        %v4172 = vpack.c.bf16 %v3532, %v3468
        %v4173 = vpack.c.bf16 %v3533, %v3469
        %v4174 = vpack.c.bf16 %v3534, %v3470
        %v4175 = vpack.c.bf16 %v3535, %v3471
        %v4176 = vpack.c.bf16 %v3536, %v3472
        %v4177 = vpack.c.bf16 %v3537, %v3473
        %v4178 = vpack.c.bf16 %v3538, %v3474
        %v4179 = vpack.c.bf16 %v3539, %v3475
        %v4180 = vpack.c.bf16 %v3540, %v3476
        %v4181 = vpack.c.bf16 %v3541, %v3477
        %v4182 = vpack.c.bf16 %v3542, %v3478
        %v4183 = vpack.c.bf16 %v3543, %v3479
        %v4184 = vpack.c.bf16 %v3544, %v3480
        %v4185 = vpack.c.bf16 %v3545, %v3481
        %v4186 = vpack.c.bf16 %v3546, %v3482
        %v4187 = vpack.c.bf16 %v3547, %v3483
        %v4188 = vpack.c.bf16 %v3548, %v3484
        %v4189 = vpack.c.bf16 %v3549, %v3485
        %v4190 = vpack.c.bf16 %v3550, %v3486
        %v4191 = vpack.c.bf16 %v3551, %v3487
        %v4192 = vpack.c.bf16 %v3552, %v3488
        %v4193 = vpack.c.bf16 %v3553, %v3489
        %v4194 = vpack.c.bf16 %v3554, %v3490
        %v4195 = vpack.c.bf16 %v3555, %v3491
        %v4196 = vpack.c.bf16 %v3556, %v3492
        %v4197 = vpack.c.bf16 %v3557, %v3493
        %v4198 = vpack.c.bf16 %v3558, %v3494
        %v4199 = vpack.c.bf16 %v3559, %v3495
        %v4200 = vpack.c.bf16 %v3560, %v3496
        %v4201 = vpack.c.bf16 %v3561, %v3497
        %v4202 = vpack.c.bf16 %v3562, %v3498
        %v4203 = vpack.c.bf16 %v3563, %v3499
        %v4204 = vpack.c.bf16 %v3564, %v3500
        %v4205 = vpack.c.bf16 %v3565, %v3501
        %v4206 = vpack.c.bf16 %v3566, %v3502
        %v4207 = vpack.c.bf16 %v3567, %v3503
        %v4208 = vpack.c.bf16 %v3568, %v3504
        %v4209 = vpack.c.bf16 %v3569, %v3505
        %v4210 = vpack.c.bf16 %v3570, %v3506
        %v4211 = vpack.c.bf16 %v3571, %v3507
        %v4212 = vpack.c.bf16 %v3572, %v3508
        %v4213 = vpack.c.bf16 %v3573, %v3509
        %v4214 = vpack.c.bf16 %v3574, %v3510
        %v4215 = vpack.c.bf16 %v3575, %v3511
        %v4216 = vpack.c.bf16 %v3576, %v3512
        %v4217 = vpack.c.bf16 %v3641, %v3577
        %v4218 = vpack.c.bf16 %v3642, %v3578
        %v4219 = vpack.c.bf16 %v3643, %v3579
        %v4220 = vpack.c.bf16 %v3644, %v3580
        %v4221 = vpack.c.bf16 %v3645, %v3581
        %v4222 = vpack.c.bf16 %v3646, %v3582
        %v4223 = vpack.c.bf16 %v3647, %v3583
        %v4224 = vpack.c.bf16 %v3648, %v3584
        %v4225 = vpack.c.bf16 %v3649, %v3585
        %v4226 = vpack.c.bf16 %v3650, %v3586
        %v4227 = vpack.c.bf16 %v3651, %v3587
        %v4228 = vpack.c.bf16 %v3652, %v3588
        %v4229 = vpack.c.bf16 %v3653, %v3589
        %v4230 = vpack.c.bf16 %v3654, %v3590
        %v4231 = vpack.c.bf16 %v3655, %v3591
        %v4232 = vpack.c.bf16 %v3656, %v3592
        %v4233 = vpack.c.bf16 %v3657, %v3593
        %v4234 = vpack.c.bf16 %v3658, %v3594
        %v4235 = vpack.c.bf16 %v3659, %v3595
        %v4236 = vpack.c.bf16 %v3660, %v3596
        %v4237 = vpack.c.bf16 %v3661, %v3597
        %v4238 = vpack.c.bf16 %v3662, %v3598
        %v4239 = vpack.c.bf16 %v3663, %v3599
        %v4240 = vpack.c.bf16 %v3664, %v3600
        %v4241 = vpack.c.bf16 %v3665, %v3601
        %v4242 = vpack.c.bf16 %v3666, %v3602
        %v4243 = vpack.c.bf16 %v3667, %v3603
        %v4244 = vpack.c.bf16 %v3668, %v3604
        %v4245 = vpack.c.bf16 %v3669, %v3605
        %v4246 = vpack.c.bf16 %v3670, %v3606
        %v4247 = vpack.c.bf16 %v3671, %v3607
        %v4248 = vpack.c.bf16 %v3672, %v3608
        %v4249 = vpack.c.bf16 %v3673, %v3609
        %v4250 = vpack.c.bf16 %v3674, %v3610
        %v4251 = vpack.c.bf16 %v3675, %v3611
        %v4252 = vpack.c.bf16 %v3676, %v3612
        %v4253 = vpack.c.bf16 %v3677, %v3613
        %v4254 = vpack.c.bf16 %v3678, %v3614
        %v4255 = vpack.c.bf16 %v3679, %v3615
        %v4256 = vpack.c.bf16 %v3680, %v3616
        %v4257 = vpack.c.bf16 %v3681, %v3617
        %v4258 = vpack.c.bf16 %v3682, %v3618
        %v4259 = vpack.c.bf16 %v3683, %v3619
        %v4260 = vpack.c.bf16 %v3684, %v3620
        %v4261 = vpack.c.bf16 %v3685, %v3621
        %v4262 = vpack.c.bf16 %v3686, %v3622
        %v4263 = vpack.c.bf16 %v3687, %v3623
        %v4264 = vpack.c.bf16 %v3688, %v3624
        %v4265 = vpack.c.bf16 %v3689, %v3625
        %v4266 = vpack.c.bf16 %v3690, %v3626
        %v4267 = vpack.c.bf16 %v3691, %v3627
        %v4268 = vpack.c.bf16 %v3692, %v3628
        %v4269 = vpack.c.bf16 %v3693, %v3629
        %v4270 = vpack.c.bf16 %v3694, %v3630
        %v4271 = vpack.c.bf16 %v3695, %v3631
        %v4272 = vpack.c.bf16 %v3696, %v3632
        %v4273 = vpack.c.bf16 %v3697, %v3633
        %v4274 = vpack.c.bf16 %v3698, %v3634
        %v4275 = vpack.c.bf16 %v3699, %v3635
        %v4276 = vpack.c.bf16 %v3700, %v3636
        %v4277 = vpack.c.bf16 %v3701, %v3637
        %v4278 = vpack.c.bf16 %v3702, %v3638
        %v4279 = vpack.c.bf16 %v3703, %v3639
        %v4280 = vpack.c.bf16 %v3704, %v3640
        %v4281 = vpack.c.bf16 %v3769, %v3705
        %v4282 = vpack.c.bf16 %v3770, %v3706
        %v4283 = vpack.c.bf16 %v3771, %v3707
        %v4284 = vpack.c.bf16 %v3772, %v3708
        %v4285 = vpack.c.bf16 %v3773, %v3709
        %v4286 = vpack.c.bf16 %v3774, %v3710
        %v4287 = vpack.c.bf16 %v3775, %v3711
        %v4288 = vpack.c.bf16 %v3776, %v3712
        %v4289 = vpack.c.bf16 %v3777, %v3713
        %v4290 = vpack.c.bf16 %v3778, %v3714
        %v4291 = vpack.c.bf16 %v3779, %v3715
        %v4292 = vpack.c.bf16 %v3780, %v3716
        %v4293 = vpack.c.bf16 %v3781, %v3717
        %v4294 = vpack.c.bf16 %v3782, %v3718
        %v4295 = vpack.c.bf16 %v3783, %v3719
        %v4296 = vpack.c.bf16 %v3784, %v3720
        %v4297 = vpack.c.bf16 %v3785, %v3721
        %v4298 = vpack.c.bf16 %v3786, %v3722
        %v4299 = vpack.c.bf16 %v3787, %v3723
        %v4300 = vpack.c.bf16 %v3788, %v3724
        %v4301 = vpack.c.bf16 %v3789, %v3725
        %v4302 = vpack.c.bf16 %v3790, %v3726
        %v4303 = vpack.c.bf16 %v3791, %v3727
        %v4304 = vpack.c.bf16 %v3792, %v3728
        %v4305 = vpack.c.bf16 %v3793, %v3729
        %v4306 = vpack.c.bf16 %v3794, %v3730
        %v4307 = vpack.c.bf16 %v3795, %v3731
        %v4308 = vpack.c.bf16 %v3796, %v3732
        %v4309 = vpack.c.bf16 %v3797, %v3733
        %v4310 = vpack.c.bf16 %v3798, %v3734
        %v4311 = vpack.c.bf16 %v3799, %v3735
        %v4312 = vpack.c.bf16 %v3800, %v3736
        %v4313 = vpack.c.bf16 %v3801, %v3737
        %v4314 = vpack.c.bf16 %v3802, %v3738
        %v4315 = vpack.c.bf16 %v3803, %v3739
        %v4316 = vpack.c.bf16 %v3804, %v3740
        %v4317 = vpack.c.bf16 %v3805, %v3741
        %v4318 = vpack.c.bf16 %v3806, %v3742
        %v4319 = vpack.c.bf16 %v3807, %v3743
        %v4320 = vpack.c.bf16 %v3808, %v3744
        %v4321 = vpack.c.bf16 %v3809, %v3745
        %v4322 = vpack.c.bf16 %v3810, %v3746
        %v4323 = vpack.c.bf16 %v3811, %v3747
        %v4324 = vpack.c.bf16 %v3812, %v3748
        %v4325 = vpack.c.bf16 %v3813, %v3749
        %v4326 = vpack.c.bf16 %v3814, %v3750
        %v4327 = vpack.c.bf16 %v3815, %v3751
        %v4328 = vpack.c.bf16 %v3816, %v3752
        %v4329 = vpack.c.bf16 %v3817, %v3753
        %v4330 = vpack.c.bf16 %v3818, %v3754
        %v4331 = vpack.c.bf16 %v3819, %v3755
        %v4332 = vpack.c.bf16 %v3820, %v3756
        %v4333 = vpack.c.bf16 %v3821, %v3757
        %v4334 = vpack.c.bf16 %v3822, %v3758
        %v4335 = vpack.c.bf16 %v3823, %v3759
        %v4336 = vpack.c.bf16 %v3824, %v3760
        %v4337 = vpack.c.bf16 %v3825, %v3761
        %v4338 = vpack.c.bf16 %v3826, %v3762
        %v4339 = vpack.c.bf16 %v3827, %v3763
        %v4340 = vpack.c.bf16 %v3828, %v3764
        %v4341 = vpack.c.bf16 %v3829, %v3765
        %v4342 = vpack.c.bf16 %v3830, %v3766
        %v4343 = vpack.c.bf16 %v3831, %v3767
        %v4344 = vpack.c.bf16 %v3832, %v3768
        %vm4345 = vcmp.gt.f32.partialorder %v172, 0.5
        %vm4346 = vcmp.gt.f32.partialorder %v174, 0.5
        %vm4347 = vcmp.gt.f32.partialorder %v176, 0.5
        %vm4348 = vcmp.gt.f32.partialorder %v178, 0.5
        %vm4349 = vcmp.gt.f32.partialorder %v180, 0.5
        %vm4350 = vcmp.gt.f32.partialorder %v182, 0.5
        %vm4351 = vcmp.gt.f32.partialorder %v184, 0.5
        %vm4352 = vcmp.gt.f32.partialorder %v186, 0.5
        %v4353 = vand.u32 %v385, 1
        %vm4354 = vcmp.eq.s32.totalorder %v4353, 1
        %v4355 = vsel %vm4345, 1, 0
        %v4356 = vsel %vm4346, 1, 0
        %v4357 = vsel %vm4347, 1, 0
        %v4358 = vsel %vm4348, 1, 0
        %v4359 = vsel %vm4349, 1, 0
        %v4360 = vsel %vm4350, 1, 0
        %v4361 = vsel %vm4351, 1, 0
        %v4362 = vsel %vm4352, 1, 0
        %v4363 = vlaneseq
        %v4364 = vshrl.u32 %v4363, 7
        %v4365 = vsub.s32 0, %v4364
        %v4366 = vrot.slane %v4355, %v4365
        %v4367 = vlaneseq
        %v4368 = vshrl.u32 %v4367, 7
        %v4369 = vsub.s32 1, %v4368
        %v4370 = vrot.slane %v4355, %v4369
        %v4371 = vlaneseq
        %v4372 = vshrl.u32 %v4371, 7
        %v4373 = vsub.s32 2, %v4372
        %v4374 = vrot.slane %v4355, %v4373
        %v4375 = vlaneseq
        %v4376 = vshrl.u32 %v4375, 7
        %v4377 = vsub.s32 3, %v4376
        %v4378 = vrot.slane %v4355, %v4377
        %v4379 = vlaneseq
        %v4380 = vshrl.u32 %v4379, 7
        %v4381 = vsub.s32 4, %v4380
        %v4382 = vrot.slane %v4355, %v4381
        %v4383 = vlaneseq
        %v4384 = vshrl.u32 %v4383, 7
        %v4385 = vsub.s32 5, %v4384
        %v4386 = vrot.slane %v4355, %v4385
        %v4387 = vlaneseq
        %v4388 = vshrl.u32 %v4387, 7
        %v4389 = vsub.s32 6, %v4388
        %v4390 = vrot.slane %v4355, %v4389
        %v4391 = vlaneseq
        %v4392 = vshrl.u32 %v4391, 7
        %v4393 = vsub.s32 7, %v4392
        %v4394 = vrot.slane %v4355, %v4393
        %v4395 = vlaneseq
        %v4396 = vshrl.u32 %v4395, 7
        %v4397 = vsub.s32 0, %v4396
        %v4398 = vrot.slane %v4356, %v4397
        %v4399 = vlaneseq
        %v4400 = vshrl.u32 %v4399, 7
        %v4401 = vsub.s32 1, %v4400
        %v4402 = vrot.slane %v4356, %v4401
        %v4403 = vlaneseq
        %v4404 = vshrl.u32 %v4403, 7
        %v4405 = vsub.s32 2, %v4404
        %v4406 = vrot.slane %v4356, %v4405
        %v4407 = vlaneseq
        %v4408 = vshrl.u32 %v4407, 7
        %v4409 = vsub.s32 3, %v4408
        %v4410 = vrot.slane %v4356, %v4409
        %v4411 = vlaneseq
        %v4412 = vshrl.u32 %v4411, 7
        %v4413 = vsub.s32 4, %v4412
        %v4414 = vrot.slane %v4356, %v4413
        %v4415 = vlaneseq
        %v4416 = vshrl.u32 %v4415, 7
        %v4417 = vsub.s32 5, %v4416
        %v4418 = vrot.slane %v4356, %v4417
        %v4419 = vlaneseq
        %v4420 = vshrl.u32 %v4419, 7
        %v4421 = vsub.s32 6, %v4420
        %v4422 = vrot.slane %v4356, %v4421
        %v4423 = vlaneseq
        %v4424 = vshrl.u32 %v4423, 7
        %v4425 = vsub.s32 7, %v4424
        %v4426 = vrot.slane %v4356, %v4425
        %v4427 = vlaneseq
        %v4428 = vshrl.u32 %v4427, 7
        %v4429 = vsub.s32 0, %v4428
        %v4430 = vrot.slane %v4357, %v4429
        %v4431 = vlaneseq
        %v4432 = vshrl.u32 %v4431, 7
        %v4433 = vsub.s32 1, %v4432
        %v4434 = vrot.slane %v4357, %v4433
        %v4435 = vlaneseq
        %v4436 = vshrl.u32 %v4435, 7
        %v4437 = vsub.s32 2, %v4436
        %v4438 = vrot.slane %v4357, %v4437
        %v4439 = vlaneseq
        %v4440 = vshrl.u32 %v4439, 7
        %v4441 = vsub.s32 3, %v4440
        %v4442 = vrot.slane %v4357, %v4441
        %v4443 = vlaneseq
        %v4444 = vshrl.u32 %v4443, 7
        %v4445 = vsub.s32 4, %v4444
        %v4446 = vrot.slane %v4357, %v4445
        %v4447 = vlaneseq
        %v4448 = vshrl.u32 %v4447, 7
        %v4449 = vsub.s32 5, %v4448
        %v4450 = vrot.slane %v4357, %v4449
        %v4451 = vlaneseq
        %v4452 = vshrl.u32 %v4451, 7
        %v4453 = vsub.s32 6, %v4452
        %v4454 = vrot.slane %v4357, %v4453
        %v4455 = vlaneseq
        %v4456 = vshrl.u32 %v4455, 7
        %v4457 = vsub.s32 7, %v4456
        %v4458 = vrot.slane %v4357, %v4457
        %v4459 = vlaneseq
        %v4460 = vshrl.u32 %v4459, 7
        %v4461 = vsub.s32 0, %v4460
        %v4462 = vrot.slane %v4358, %v4461
        %v4463 = vlaneseq
        %v4464 = vshrl.u32 %v4463, 7
        %v4465 = vsub.s32 1, %v4464
        %v4466 = vrot.slane %v4358, %v4465
        %v4467 = vlaneseq
        %v4468 = vshrl.u32 %v4467, 7
        %v4469 = vsub.s32 2, %v4468
        %v4470 = vrot.slane %v4358, %v4469
        %v4471 = vlaneseq
        %v4472 = vshrl.u32 %v4471, 7
        %v4473 = vsub.s32 3, %v4472
        %v4474 = vrot.slane %v4358, %v4473
        %v4475 = vlaneseq
        %v4476 = vshrl.u32 %v4475, 7
        %v4477 = vsub.s32 4, %v4476
        %v4478 = vrot.slane %v4358, %v4477
        %v4479 = vlaneseq
        %v4480 = vshrl.u32 %v4479, 7
        %v4481 = vsub.s32 5, %v4480
        %v4482 = vrot.slane %v4358, %v4481
        %v4483 = vlaneseq
        %v4484 = vshrl.u32 %v4483, 7
        %v4485 = vsub.s32 6, %v4484
        %v4486 = vrot.slane %v4358, %v4485
        %v4487 = vlaneseq
        %v4488 = vshrl.u32 %v4487, 7
        %v4489 = vsub.s32 7, %v4488
        %v4490 = vrot.slane %v4358, %v4489
        %v4491 = vlaneseq
        %v4492 = vshrl.u32 %v4491, 7
        %v4493 = vsub.s32 0, %v4492
        %v4494 = vrot.slane %v4359, %v4493
        %v4495 = vlaneseq
        %v4496 = vshrl.u32 %v4495, 7
        %v4497 = vsub.s32 1, %v4496
        %v4498 = vrot.slane %v4359, %v4497
        %v4499 = vlaneseq
        %v4500 = vshrl.u32 %v4499, 7
        %v4501 = vsub.s32 2, %v4500
        %v4502 = vrot.slane %v4359, %v4501
        %v4503 = vlaneseq
        %v4504 = vshrl.u32 %v4503, 7
        %v4505 = vsub.s32 3, %v4504
        %v4506 = vrot.slane %v4359, %v4505
        %v4507 = vlaneseq
        %v4508 = vshrl.u32 %v4507, 7
        %v4509 = vsub.s32 4, %v4508
        %v4510 = vrot.slane %v4359, %v4509
        %v4511 = vlaneseq
        %v4512 = vshrl.u32 %v4511, 7
        %v4513 = vsub.s32 5, %v4512
        %v4514 = vrot.slane %v4359, %v4513
        %v4515 = vlaneseq
        %v4516 = vshrl.u32 %v4515, 7
        %v4517 = vsub.s32 6, %v4516
        %v4518 = vrot.slane %v4359, %v4517
        %v4519 = vlaneseq
        %v4520 = vshrl.u32 %v4519, 7
        %v4521 = vsub.s32 7, %v4520
        %v4522 = vrot.slane %v4359, %v4521
        %v4523 = vlaneseq
        %v4524 = vshrl.u32 %v4523, 7
        %v4525 = vsub.s32 0, %v4524
        %v4526 = vrot.slane %v4360, %v4525
        %v4527 = vlaneseq
        %v4528 = vshrl.u32 %v4527, 7
        %v4529 = vsub.s32 1, %v4528
        %v4530 = vrot.slane %v4360, %v4529
        %v4531 = vlaneseq
        %v4532 = vshrl.u32 %v4531, 7
        %v4533 = vsub.s32 2, %v4532
        %v4534 = vrot.slane %v4360, %v4533
        %v4535 = vlaneseq
        %v4536 = vshrl.u32 %v4535, 7
        %v4537 = vsub.s32 3, %v4536
        %v4538 = vrot.slane %v4360, %v4537
        %v4539 = vlaneseq
        %v4540 = vshrl.u32 %v4539, 7
        %v4541 = vsub.s32 4, %v4540
        %v4542 = vrot.slane %v4360, %v4541
        %v4543 = vlaneseq
        %v4544 = vshrl.u32 %v4543, 7
        %v4545 = vsub.s32 5, %v4544
        %v4546 = vrot.slane %v4360, %v4545
        %v4547 = vlaneseq
        %v4548 = vshrl.u32 %v4547, 7
        %v4549 = vsub.s32 6, %v4548
        %v4550 = vrot.slane %v4360, %v4549
        %v4551 = vlaneseq
        %v4552 = vshrl.u32 %v4551, 7
        %v4553 = vsub.s32 7, %v4552
        %v4554 = vrot.slane %v4360, %v4553
        %v4555 = vlaneseq
        %v4556 = vshrl.u32 %v4555, 7
        %v4557 = vsub.s32 0, %v4556
        %v4558 = vrot.slane %v4361, %v4557
        %v4559 = vlaneseq
        %v4560 = vshrl.u32 %v4559, 7
        %v4561 = vsub.s32 1, %v4560
        %v4562 = vrot.slane %v4361, %v4561
        %v4563 = vlaneseq
        %v4564 = vshrl.u32 %v4563, 7
        %v4565 = vsub.s32 2, %v4564
        %v4566 = vrot.slane %v4361, %v4565
        %v4567 = vlaneseq
        %v4568 = vshrl.u32 %v4567, 7
        %v4569 = vsub.s32 3, %v4568
        %v4570 = vrot.slane %v4361, %v4569
        %v4571 = vlaneseq
        %v4572 = vshrl.u32 %v4571, 7
        %v4573 = vsub.s32 4, %v4572
        %v4574 = vrot.slane %v4361, %v4573
        %v4575 = vlaneseq
        %v4576 = vshrl.u32 %v4575, 7
        %v4577 = vsub.s32 5, %v4576
        %v4578 = vrot.slane %v4361, %v4577
        %v4579 = vlaneseq
        %v4580 = vshrl.u32 %v4579, 7
        %v4581 = vsub.s32 6, %v4580
        %v4582 = vrot.slane %v4361, %v4581
        %v4583 = vlaneseq
        %v4584 = vshrl.u32 %v4583, 7
        %v4585 = vsub.s32 7, %v4584
        %v4586 = vrot.slane %v4361, %v4585
        %v4587 = vlaneseq
        %v4588 = vshrl.u32 %v4587, 7
        %v4589 = vsub.s32 0, %v4588
        %v4590 = vrot.slane %v4362, %v4589
        %v4591 = vlaneseq
        %v4592 = vshrl.u32 %v4591, 7
        %v4593 = vsub.s32 1, %v4592
        %v4594 = vrot.slane %v4362, %v4593
        %v4595 = vlaneseq
        %v4596 = vshrl.u32 %v4595, 7
        %v4597 = vsub.s32 2, %v4596
        %v4598 = vrot.slane %v4362, %v4597
        %v4599 = vlaneseq
        %v4600 = vshrl.u32 %v4599, 7
        %v4601 = vsub.s32 3, %v4600
        %v4602 = vrot.slane %v4362, %v4601
        %v4603 = vlaneseq
        %v4604 = vshrl.u32 %v4603, 7
        %v4605 = vsub.s32 4, %v4604
        %v4606 = vrot.slane %v4362, %v4605
        %v4607 = vlaneseq
        %v4608 = vshrl.u32 %v4607, 7
        %v4609 = vsub.s32 5, %v4608
        %v4610 = vrot.slane %v4362, %v4609
        %v4611 = vlaneseq
        %v4612 = vshrl.u32 %v4611, 7
        %v4613 = vsub.s32 6, %v4612
        %v4614 = vrot.slane %v4362, %v4613
        %v4615 = vlaneseq
        %v4616 = vshrl.u32 %v4615, 7
        %v4617 = vsub.s32 7, %v4616
        %v4618 = vrot.slane %v4362, %v4617
        %vm4619 = vcmp.eq.s32.totalorder %v4366, 1
        %vm4620 = vcmp.eq.s32.totalorder %v4370, 1
        %vm4621 = vcmp.eq.s32.totalorder %v4374, 1
        %vm4622 = vcmp.eq.s32.totalorder %v4378, 1
        %vm4623 = vcmp.eq.s32.totalorder %v4382, 1
        %vm4624 = vcmp.eq.s32.totalorder %v4386, 1
        %vm4625 = vcmp.eq.s32.totalorder %v4390, 1
        %vm4626 = vcmp.eq.s32.totalorder %v4394, 1
        %vm4627 = vcmp.eq.s32.totalorder %v4398, 1
        %vm4628 = vcmp.eq.s32.totalorder %v4402, 1
        %vm4629 = vcmp.eq.s32.totalorder %v4406, 1
        %vm4630 = vcmp.eq.s32.totalorder %v4410, 1
        %vm4631 = vcmp.eq.s32.totalorder %v4414, 1
        %vm4632 = vcmp.eq.s32.totalorder %v4418, 1
        %vm4633 = vcmp.eq.s32.totalorder %v4422, 1
        %vm4634 = vcmp.eq.s32.totalorder %v4426, 1
        %vm4635 = vcmp.eq.s32.totalorder %v4430, 1
        %vm4636 = vcmp.eq.s32.totalorder %v4434, 1
        %vm4637 = vcmp.eq.s32.totalorder %v4438, 1
        %vm4638 = vcmp.eq.s32.totalorder %v4442, 1
        %vm4639 = vcmp.eq.s32.totalorder %v4446, 1
        %vm4640 = vcmp.eq.s32.totalorder %v4450, 1
        %vm4641 = vcmp.eq.s32.totalorder %v4454, 1
        %vm4642 = vcmp.eq.s32.totalorder %v4458, 1
        %vm4643 = vcmp.eq.s32.totalorder %v4462, 1
        %vm4644 = vcmp.eq.s32.totalorder %v4466, 1
        %vm4645 = vcmp.eq.s32.totalorder %v4470, 1
        %vm4646 = vcmp.eq.s32.totalorder %v4474, 1
        %vm4647 = vcmp.eq.s32.totalorder %v4478, 1
        %vm4648 = vcmp.eq.s32.totalorder %v4482, 1
        %vm4649 = vcmp.eq.s32.totalorder %v4486, 1
        %vm4650 = vcmp.eq.s32.totalorder %v4490, 1
        %vm4651 = vcmp.eq.s32.totalorder %v4494, 1
        %vm4652 = vcmp.eq.s32.totalorder %v4498, 1
        %vm4653 = vcmp.eq.s32.totalorder %v4502, 1
        %vm4654 = vcmp.eq.s32.totalorder %v4506, 1
        %vm4655 = vcmp.eq.s32.totalorder %v4510, 1
        %vm4656 = vcmp.eq.s32.totalorder %v4514, 1
        %vm4657 = vcmp.eq.s32.totalorder %v4518, 1
        %vm4658 = vcmp.eq.s32.totalorder %v4522, 1
        %vm4659 = vcmp.eq.s32.totalorder %v4526, 1
        %vm4660 = vcmp.eq.s32.totalorder %v4530, 1
        %vm4661 = vcmp.eq.s32.totalorder %v4534, 1
        %vm4662 = vcmp.eq.s32.totalorder %v4538, 1
        %vm4663 = vcmp.eq.s32.totalorder %v4542, 1
        %vm4664 = vcmp.eq.s32.totalorder %v4546, 1
        %vm4665 = vcmp.eq.s32.totalorder %v4550, 1
        %vm4666 = vcmp.eq.s32.totalorder %v4554, 1
        %vm4667 = vcmp.eq.s32.totalorder %v4558, 1
        %vm4668 = vcmp.eq.s32.totalorder %v4562, 1
        %vm4669 = vcmp.eq.s32.totalorder %v4566, 1
        %vm4670 = vcmp.eq.s32.totalorder %v4570, 1
        %vm4671 = vcmp.eq.s32.totalorder %v4574, 1
        %vm4672 = vcmp.eq.s32.totalorder %v4578, 1
        %vm4673 = vcmp.eq.s32.totalorder %v4582, 1
        %vm4674 = vcmp.eq.s32.totalorder %v4586, 1
        %vm4675 = vcmp.eq.s32.totalorder %v4590, 1
        %vm4676 = vcmp.eq.s32.totalorder %v4594, 1
        %vm4677 = vcmp.eq.s32.totalorder %v4598, 1
        %vm4678 = vcmp.eq.s32.totalorder %v4602, 1
        %vm4679 = vcmp.eq.s32.totalorder %v4606, 1
        %vm4680 = vcmp.eq.s32.totalorder %v4610, 1
        %vm4681 = vcmp.eq.s32.totalorder %v4614, 1
        %vm4682 = vcmp.eq.s32.totalorder %v4618, 1
        %vm4683 = vmxor %vm4619, %vm4354
        %vm4684 = vmxor %vm4620, %vm4354
        %vm4685 = vmxor %vm4621, %vm4354
        %vm4686 = vmxor %vm4622, %vm4354
        %vm4687 = vmxor %vm4623, %vm4354
        %vm4688 = vmxor %vm4624, %vm4354
        %vm4689 = vmxor %vm4625, %vm4354
        %vm4690 = vmxor %vm4626, %vm4354
        %vm4691 = vmxor %vm4627, %vm4354
        %vm4692 = vmxor %vm4628, %vm4354
        %vm4693 = vmxor %vm4629, %vm4354
        %vm4694 = vmxor %vm4630, %vm4354
        %vm4695 = vmxor %vm4631, %vm4354
        %vm4696 = vmxor %vm4632, %vm4354
        %vm4697 = vmxor %vm4633, %vm4354
        %vm4698 = vmxor %vm4634, %vm4354
        %vm4699 = vmxor %vm4635, %vm4354
        %vm4700 = vmxor %vm4636, %vm4354
        %vm4701 = vmxor %vm4637, %vm4354
        %vm4702 = vmxor %vm4638, %vm4354
        %vm4703 = vmxor %vm4639, %vm4354
        %vm4704 = vmxor %vm4640, %vm4354
        %vm4705 = vmxor %vm4641, %vm4354
        %vm4706 = vmxor %vm4642, %vm4354
        %vm4707 = vmxor %vm4643, %vm4354
        %vm4708 = vmxor %vm4644, %vm4354
        %vm4709 = vmxor %vm4645, %vm4354
        %vm4710 = vmxor %vm4646, %vm4354
        %vm4711 = vmxor %vm4647, %vm4354
        %vm4712 = vmxor %vm4648, %vm4354
        %vm4713 = vmxor %vm4649, %vm4354
        %vm4714 = vmxor %vm4650, %vm4354
        %vm4715 = vmxor %vm4651, %vm4354
        %vm4716 = vmxor %vm4652, %vm4354
        %vm4717 = vmxor %vm4653, %vm4354
        %vm4718 = vmxor %vm4654, %vm4354
        %vm4719 = vmxor %vm4655, %vm4354
        %vm4720 = vmxor %vm4656, %vm4354
        %vm4721 = vmxor %vm4657, %vm4354
        %vm4722 = vmxor %vm4658, %vm4354
        %vm4723 = vmxor %vm4659, %vm4354
        %vm4724 = vmxor %vm4660, %vm4354
        %vm4725 = vmxor %vm4661, %vm4354
        %vm4726 = vmxor %vm4662, %vm4354
        %vm4727 = vmxor %vm4663, %vm4354
        %vm4728 = vmxor %vm4664, %vm4354
        %vm4729 = vmxor %vm4665, %vm4354
        %vm4730 = vmxor %vm4666, %vm4354
        %vm4731 = vmxor %vm4667, %vm4354
        %vm4732 = vmxor %vm4668, %vm4354
        %vm4733 = vmxor %vm4669, %vm4354
        %vm4734 = vmxor %vm4670, %vm4354
        %vm4735 = vmxor %vm4671, %vm4354
        %vm4736 = vmxor %vm4672, %vm4354
        %vm4737 = vmxor %vm4673, %vm4354
        %vm4738 = vmxor %vm4674, %vm4354
        %vm4739 = vmxor %vm4675, %vm4354
        %vm4740 = vmxor %vm4676, %vm4354
        %vm4741 = vmxor %vm4677, %vm4354
        %vm4742 = vmxor %vm4678, %vm4354
        %vm4743 = vmxor %vm4679, %vm4354
        %vm4744 = vmxor %vm4680, %vm4354
        %vm4745 = vmxor %vm4681, %vm4354
        %vm4746 = vmxor %vm4682, %vm4354
        %vm4747 = vcmp.lt.s32.totalorder %v385, 2
        %vm4748 = vcmp.gt.f32.partialorder %v156, 0.5
        %vm4749 = vcmp.gt.f32.partialorder %v158, 0.5
        %vm4750 = vcmp.gt.f32.partialorder %v160, 0.5
        %vm4751 = vcmp.gt.f32.partialorder %v162, 0.5
        %vm4752 = vcmp.gt.f32.partialorder %v164, 0.5
        %vm4753 = vcmp.gt.f32.partialorder %v166, 0.5
        %vm4754 = vcmp.gt.f32.partialorder %v168, 0.5
        %vm4755 = vcmp.gt.f32.partialorder %v170, 0.5
        %v4756 = vsel %vm4748, 1, 0
        %v4757 = vsel %vm4749, 1, 0
        %v4758 = vsel %vm4750, 1, 0
        %v4759 = vsel %vm4751, 1, 0
        %v4760 = vsel %vm4752, 1, 0
        %v4761 = vsel %vm4753, 1, 0
        %v4762 = vsel %vm4754, 1, 0
        %v4763 = vsel %vm4755, 1, 0
        %v4764 = vlaneseq
        %v4765 = vshrl.u32 %v4764, 7
        %v4766 = vsub.s32 0, %v4765
        %v4767 = vrot.slane %v4756, %v4766
        %v4768 = vlaneseq
        %v4769 = vshrl.u32 %v4768, 7
        %v4770 = vsub.s32 1, %v4769
        %v4771 = vrot.slane %v4756, %v4770
        %v4772 = vlaneseq
        %v4773 = vshrl.u32 %v4772, 7
        %v4774 = vsub.s32 2, %v4773
        %v4775 = vrot.slane %v4756, %v4774
        %v4776 = vlaneseq
        %v4777 = vshrl.u32 %v4776, 7
        %v4778 = vsub.s32 3, %v4777
        %v4779 = vrot.slane %v4756, %v4778
        %v4780 = vlaneseq
        %v4781 = vshrl.u32 %v4780, 7
        %v4782 = vsub.s32 4, %v4781
        %v4783 = vrot.slane %v4756, %v4782
        %v4784 = vlaneseq
        %v4785 = vshrl.u32 %v4784, 7
        %v4786 = vsub.s32 5, %v4785
        %v4787 = vrot.slane %v4756, %v4786
        %v4788 = vlaneseq
        %v4789 = vshrl.u32 %v4788, 7
        %v4790 = vsub.s32 6, %v4789
        %v4791 = vrot.slane %v4756, %v4790
        %v4792 = vlaneseq
        %v4793 = vshrl.u32 %v4792, 7
        %v4794 = vsub.s32 7, %v4793
        %v4795 = vrot.slane %v4756, %v4794
        %v4796 = vlaneseq
        %v4797 = vshrl.u32 %v4796, 7
        %v4798 = vsub.s32 0, %v4797
        %v4799 = vrot.slane %v4757, %v4798
        %v4800 = vlaneseq
        %v4801 = vshrl.u32 %v4800, 7
        %v4802 = vsub.s32 1, %v4801
        %v4803 = vrot.slane %v4757, %v4802
        %v4804 = vlaneseq
        %v4805 = vshrl.u32 %v4804, 7
        %v4806 = vsub.s32 2, %v4805
        %v4807 = vrot.slane %v4757, %v4806
        %v4808 = vlaneseq
        %v4809 = vshrl.u32 %v4808, 7
        %v4810 = vsub.s32 3, %v4809
        %v4811 = vrot.slane %v4757, %v4810
        %v4812 = vlaneseq
        %v4813 = vshrl.u32 %v4812, 7
        %v4814 = vsub.s32 4, %v4813
        %v4815 = vrot.slane %v4757, %v4814
        %v4816 = vlaneseq
        %v4817 = vshrl.u32 %v4816, 7
        %v4818 = vsub.s32 5, %v4817
        %v4819 = vrot.slane %v4757, %v4818
        %v4820 = vlaneseq
        %v4821 = vshrl.u32 %v4820, 7
        %v4822 = vsub.s32 6, %v4821
        %v4823 = vrot.slane %v4757, %v4822
        %v4824 = vlaneseq
        %v4825 = vshrl.u32 %v4824, 7
        %v4826 = vsub.s32 7, %v4825
        %v4827 = vrot.slane %v4757, %v4826
        %v4828 = vlaneseq
        %v4829 = vshrl.u32 %v4828, 7
        %v4830 = vsub.s32 0, %v4829
        %v4831 = vrot.slane %v4758, %v4830
        %v4832 = vlaneseq
        %v4833 = vshrl.u32 %v4832, 7
        %v4834 = vsub.s32 1, %v4833
        %v4835 = vrot.slane %v4758, %v4834
        %v4836 = vlaneseq
        %v4837 = vshrl.u32 %v4836, 7
        %v4838 = vsub.s32 2, %v4837
        %v4839 = vrot.slane %v4758, %v4838
        %v4840 = vlaneseq
        %v4841 = vshrl.u32 %v4840, 7
        %v4842 = vsub.s32 3, %v4841
        %v4843 = vrot.slane %v4758, %v4842
        %v4844 = vlaneseq
        %v4845 = vshrl.u32 %v4844, 7
        %v4846 = vsub.s32 4, %v4845
        %v4847 = vrot.slane %v4758, %v4846
        %v4848 = vlaneseq
        %v4849 = vshrl.u32 %v4848, 7
        %v4850 = vsub.s32 5, %v4849
        %v4851 = vrot.slane %v4758, %v4850
        %v4852 = vlaneseq
        %v4853 = vshrl.u32 %v4852, 7
        %v4854 = vsub.s32 6, %v4853
        %v4855 = vrot.slane %v4758, %v4854
        %v4856 = vlaneseq
        %v4857 = vshrl.u32 %v4856, 7
        %v4858 = vsub.s32 7, %v4857
        %v4859 = vrot.slane %v4758, %v4858
        %v4860 = vlaneseq
        %v4861 = vshrl.u32 %v4860, 7
        %v4862 = vsub.s32 0, %v4861
        %v4863 = vrot.slane %v4759, %v4862
        %v4864 = vlaneseq
        %v4865 = vshrl.u32 %v4864, 7
        %v4866 = vsub.s32 1, %v4865
        %v4867 = vrot.slane %v4759, %v4866
        %v4868 = vlaneseq
        %v4869 = vshrl.u32 %v4868, 7
        %v4870 = vsub.s32 2, %v4869
        %v4871 = vrot.slane %v4759, %v4870
        %v4872 = vlaneseq
        %v4873 = vshrl.u32 %v4872, 7
        %v4874 = vsub.s32 3, %v4873
        %v4875 = vrot.slane %v4759, %v4874
        %v4876 = vlaneseq
        %v4877 = vshrl.u32 %v4876, 7
        %v4878 = vsub.s32 4, %v4877
        %v4879 = vrot.slane %v4759, %v4878
        %v4880 = vlaneseq
        %v4881 = vshrl.u32 %v4880, 7
        %v4882 = vsub.s32 5, %v4881
        %v4883 = vrot.slane %v4759, %v4882
        %v4884 = vlaneseq
        %v4885 = vshrl.u32 %v4884, 7
        %v4886 = vsub.s32 6, %v4885
        %v4887 = vrot.slane %v4759, %v4886
        %v4888 = vlaneseq
        %v4889 = vshrl.u32 %v4888, 7
        %v4890 = vsub.s32 7, %v4889
        %v4891 = vrot.slane %v4759, %v4890
        %v4892 = vlaneseq
        %v4893 = vshrl.u32 %v4892, 7
        %v4894 = vsub.s32 0, %v4893
        %v4895 = vrot.slane %v4760, %v4894
        %v4896 = vlaneseq
        %v4897 = vshrl.u32 %v4896, 7
        %v4898 = vsub.s32 1, %v4897
        %v4899 = vrot.slane %v4760, %v4898
        %v4900 = vlaneseq
        %v4901 = vshrl.u32 %v4900, 7
        %v4902 = vsub.s32 2, %v4901
        %v4903 = vrot.slane %v4760, %v4902
        %v4904 = vlaneseq
        %v4905 = vshrl.u32 %v4904, 7
        %v4906 = vsub.s32 3, %v4905
        %v4907 = vrot.slane %v4760, %v4906
        %v4908 = vlaneseq
        %v4909 = vshrl.u32 %v4908, 7
        %v4910 = vsub.s32 4, %v4909
        %v4911 = vrot.slane %v4760, %v4910
        %v4912 = vlaneseq
        %v4913 = vshrl.u32 %v4912, 7
        %v4914 = vsub.s32 5, %v4913
        %v4915 = vrot.slane %v4760, %v4914
        %v4916 = vlaneseq
        %v4917 = vshrl.u32 %v4916, 7
        %v4918 = vsub.s32 6, %v4917
        %v4919 = vrot.slane %v4760, %v4918
        %v4920 = vlaneseq
        %v4921 = vshrl.u32 %v4920, 7
        %v4922 = vsub.s32 7, %v4921
        %v4923 = vrot.slane %v4760, %v4922
        %v4924 = vlaneseq
        %v4925 = vshrl.u32 %v4924, 7
        %v4926 = vsub.s32 0, %v4925
        %v4927 = vrot.slane %v4761, %v4926
        %v4928 = vlaneseq
        %v4929 = vshrl.u32 %v4928, 7
        %v4930 = vsub.s32 1, %v4929
        %v4931 = vrot.slane %v4761, %v4930
        %v4932 = vlaneseq
        %v4933 = vshrl.u32 %v4932, 7
        %v4934 = vsub.s32 2, %v4933
        %v4935 = vrot.slane %v4761, %v4934
        %v4936 = vlaneseq
        %v4937 = vshrl.u32 %v4936, 7
        %v4938 = vsub.s32 3, %v4937
        %v4939 = vrot.slane %v4761, %v4938
        %v4940 = vlaneseq
        %v4941 = vshrl.u32 %v4940, 7
        %v4942 = vsub.s32 4, %v4941
        %v4943 = vrot.slane %v4761, %v4942
        %v4944 = vlaneseq
        %v4945 = vshrl.u32 %v4944, 7
        %v4946 = vsub.s32 5, %v4945
        %v4947 = vrot.slane %v4761, %v4946
        %v4948 = vlaneseq
        %v4949 = vshrl.u32 %v4948, 7
        %v4950 = vsub.s32 6, %v4949
        %v4951 = vrot.slane %v4761, %v4950
        %v4952 = vlaneseq
        %v4953 = vshrl.u32 %v4952, 7
        %v4954 = vsub.s32 7, %v4953
        %v4955 = vrot.slane %v4761, %v4954
        %v4956 = vlaneseq
        %v4957 = vshrl.u32 %v4956, 7
        %v4958 = vsub.s32 0, %v4957
        %v4959 = vrot.slane %v4762, %v4958
        %v4960 = vlaneseq
        %v4961 = vshrl.u32 %v4960, 7
        %v4962 = vsub.s32 1, %v4961
        %v4963 = vrot.slane %v4762, %v4962
        %v4964 = vlaneseq
        %v4965 = vshrl.u32 %v4964, 7
        %v4966 = vsub.s32 2, %v4965
        %v4967 = vrot.slane %v4762, %v4966
        %v4968 = vlaneseq
        %v4969 = vshrl.u32 %v4968, 7
        %v4970 = vsub.s32 3, %v4969
        %v4971 = vrot.slane %v4762, %v4970
        %v4972 = vlaneseq
        %v4973 = vshrl.u32 %v4972, 7
        %v4974 = vsub.s32 4, %v4973
        %v4975 = vrot.slane %v4762, %v4974
        %v4976 = vlaneseq
        %v4977 = vshrl.u32 %v4976, 7
        %v4978 = vsub.s32 5, %v4977
        %v4979 = vrot.slane %v4762, %v4978
        %v4980 = vlaneseq
        %v4981 = vshrl.u32 %v4980, 7
        %v4982 = vsub.s32 6, %v4981
        %v4983 = vrot.slane %v4762, %v4982
        %v4984 = vlaneseq
        %v4985 = vshrl.u32 %v4984, 7
        %v4986 = vsub.s32 7, %v4985
        %v4987 = vrot.slane %v4762, %v4986
        %v4988 = vlaneseq
        %v4989 = vshrl.u32 %v4988, 7
        %v4990 = vsub.s32 0, %v4989
        %v4991 = vrot.slane %v4763, %v4990
        %v4992 = vlaneseq
        %v4993 = vshrl.u32 %v4992, 7
        %v4994 = vsub.s32 1, %v4993
        %v4995 = vrot.slane %v4763, %v4994
        %v4996 = vlaneseq
        %v4997 = vshrl.u32 %v4996, 7
        %v4998 = vsub.s32 2, %v4997
        %v4999 = vrot.slane %v4763, %v4998
        %v5000 = vlaneseq
        %v5001 = vshrl.u32 %v5000, 7
        %v5002 = vsub.s32 3, %v5001
        %v5003 = vrot.slane %v4763, %v5002
        %v5004 = vlaneseq
        %v5005 = vshrl.u32 %v5004, 7
        %v5006 = vsub.s32 4, %v5005
        %v5007 = vrot.slane %v4763, %v5006
        %v5008 = vlaneseq
        %v5009 = vshrl.u32 %v5008, 7
        %v5010 = vsub.s32 5, %v5009
        %v5011 = vrot.slane %v4763, %v5010
        %v5012 = vlaneseq
        %v5013 = vshrl.u32 %v5012, 7
        %v5014 = vsub.s32 6, %v5013
        %v5015 = vrot.slane %v4763, %v5014
        %v5016 = vlaneseq
        %v5017 = vshrl.u32 %v5016, 7
        %v5018 = vsub.s32 7, %v5017
        %v5019 = vrot.slane %v4763, %v5018
        %vm5020 = vcmp.eq.s32.totalorder %v4767, 1
        %vm5021 = vcmp.eq.s32.totalorder %v4771, 1
        %vm5022 = vcmp.eq.s32.totalorder %v4775, 1
        %vm5023 = vcmp.eq.s32.totalorder %v4779, 1
        %vm5024 = vcmp.eq.s32.totalorder %v4783, 1
        %vm5025 = vcmp.eq.s32.totalorder %v4787, 1
        %vm5026 = vcmp.eq.s32.totalorder %v4791, 1
        %vm5027 = vcmp.eq.s32.totalorder %v4795, 1
        %vm5028 = vcmp.eq.s32.totalorder %v4799, 1
        %vm5029 = vcmp.eq.s32.totalorder %v4803, 1
        %vm5030 = vcmp.eq.s32.totalorder %v4807, 1
        %vm5031 = vcmp.eq.s32.totalorder %v4811, 1
        %vm5032 = vcmp.eq.s32.totalorder %v4815, 1
        %vm5033 = vcmp.eq.s32.totalorder %v4819, 1
        %vm5034 = vcmp.eq.s32.totalorder %v4823, 1
        %vm5035 = vcmp.eq.s32.totalorder %v4827, 1
        %vm5036 = vcmp.eq.s32.totalorder %v4831, 1
        %vm5037 = vcmp.eq.s32.totalorder %v4835, 1
        %vm5038 = vcmp.eq.s32.totalorder %v4839, 1
        %vm5039 = vcmp.eq.s32.totalorder %v4843, 1
        %vm5040 = vcmp.eq.s32.totalorder %v4847, 1
        %vm5041 = vcmp.eq.s32.totalorder %v4851, 1
        %vm5042 = vcmp.eq.s32.totalorder %v4855, 1
        %vm5043 = vcmp.eq.s32.totalorder %v4859, 1
        %vm5044 = vcmp.eq.s32.totalorder %v4863, 1
        %vm5045 = vcmp.eq.s32.totalorder %v4867, 1
        %vm5046 = vcmp.eq.s32.totalorder %v4871, 1
        %vm5047 = vcmp.eq.s32.totalorder %v4875, 1
        %vm5048 = vcmp.eq.s32.totalorder %v4879, 1
        %vm5049 = vcmp.eq.s32.totalorder %v4883, 1
        %vm5050 = vcmp.eq.s32.totalorder %v4887, 1
        %vm5051 = vcmp.eq.s32.totalorder %v4891, 1
        %vm5052 = vcmp.eq.s32.totalorder %v4895, 1
        %vm5053 = vcmp.eq.s32.totalorder %v4899, 1
        %vm5054 = vcmp.eq.s32.totalorder %v4903, 1
        %vm5055 = vcmp.eq.s32.totalorder %v4907, 1
        %vm5056 = vcmp.eq.s32.totalorder %v4911, 1
        %vm5057 = vcmp.eq.s32.totalorder %v4915, 1
        %vm5058 = vcmp.eq.s32.totalorder %v4919, 1
        %vm5059 = vcmp.eq.s32.totalorder %v4923, 1
        %vm5060 = vcmp.eq.s32.totalorder %v4927, 1
        %vm5061 = vcmp.eq.s32.totalorder %v4931, 1
        %vm5062 = vcmp.eq.s32.totalorder %v4935, 1
        %vm5063 = vcmp.eq.s32.totalorder %v4939, 1
        %vm5064 = vcmp.eq.s32.totalorder %v4943, 1
        %vm5065 = vcmp.eq.s32.totalorder %v4947, 1
        %vm5066 = vcmp.eq.s32.totalorder %v4951, 1
        %vm5067 = vcmp.eq.s32.totalorder %v4955, 1
        %vm5068 = vcmp.eq.s32.totalorder %v4959, 1
        %vm5069 = vcmp.eq.s32.totalorder %v4963, 1
        %vm5070 = vcmp.eq.s32.totalorder %v4967, 1
        %vm5071 = vcmp.eq.s32.totalorder %v4971, 1
        %vm5072 = vcmp.eq.s32.totalorder %v4975, 1
        %vm5073 = vcmp.eq.s32.totalorder %v4979, 1
        %vm5074 = vcmp.eq.s32.totalorder %v4983, 1
        %vm5075 = vcmp.eq.s32.totalorder %v4987, 1
        %vm5076 = vcmp.eq.s32.totalorder %v4991, 1
        %vm5077 = vcmp.eq.s32.totalorder %v4995, 1
        %vm5078 = vcmp.eq.s32.totalorder %v4999, 1
        %vm5079 = vcmp.eq.s32.totalorder %v5003, 1
        %vm5080 = vcmp.eq.s32.totalorder %v5007, 1
        %vm5081 = vcmp.eq.s32.totalorder %v5011, 1
        %vm5082 = vcmp.eq.s32.totalorder %v5015, 1
        %vm5083 = vcmp.eq.s32.totalorder %v5019, 1
        %vm5084 = vmor %vm4747, %vm5020
        %vm5085 = vmor %vm4747, %vm5021
        %vm5086 = vmor %vm4747, %vm5022
        %vm5087 = vmor %vm4747, %vm5023
        %vm5088 = vmor %vm4747, %vm5024
        %vm5089 = vmor %vm4747, %vm5025
        %vm5090 = vmor %vm4747, %vm5026
        %vm5091 = vmor %vm4747, %vm5027
        %vm5092 = vmor %vm4747, %vm5028
        %vm5093 = vmor %vm4747, %vm5029
        %vm5094 = vmor %vm4747, %vm5030
        %vm5095 = vmor %vm4747, %vm5031
        %vm5096 = vmor %vm4747, %vm5032
        %vm5097 = vmor %vm4747, %vm5033
        %vm5098 = vmor %vm4747, %vm5034
        %vm5099 = vmor %vm4747, %vm5035
        %vm5100 = vmor %vm4747, %vm5036
        %vm5101 = vmor %vm4747, %vm5037
        %vm5102 = vmor %vm4747, %vm5038
        %vm5103 = vmor %vm4747, %vm5039
        %vm5104 = vmor %vm4747, %vm5040
        %vm5105 = vmor %vm4747, %vm5041
        %vm5106 = vmor %vm4747, %vm5042
        %vm5107 = vmor %vm4747, %vm5043
        %vm5108 = vmor %vm4747, %vm5044
        %vm5109 = vmor %vm4747, %vm5045
        %vm5110 = vmor %vm4747, %vm5046
        %vm5111 = vmor %vm4747, %vm5047
        %vm5112 = vmor %vm4747, %vm5048
        %vm5113 = vmor %vm4747, %vm5049
        %vm5114 = vmor %vm4747, %vm5050
        %vm5115 = vmor %vm4747, %vm5051
        %vm5116 = vmor %vm4747, %vm5052
        %vm5117 = vmor %vm4747, %vm5053
        %vm5118 = vmor %vm4747, %vm5054
        %vm5119 = vmor %vm4747, %vm5055
        %vm5120 = vmor %vm4747, %vm5056
        %vm5121 = vmor %vm4747, %vm5057
        %vm5122 = vmor %vm4747, %vm5058
        %vm5123 = vmor %vm4747, %vm5059
        %vm5124 = vmor %vm4747, %vm5060
        %vm5125 = vmor %vm4747, %vm5061
        %vm5126 = vmor %vm4747, %vm5062
        %vm5127 = vmor %vm4747, %vm5063
        %vm5128 = vmor %vm4747, %vm5064
        %vm5129 = vmor %vm4747, %vm5065
        %vm5130 = vmor %vm4747, %vm5066
        %vm5131 = vmor %vm4747, %vm5067
        %vm5132 = vmor %vm4747, %vm5068
        %vm5133 = vmor %vm4747, %vm5069
        %vm5134 = vmor %vm4747, %vm5070
        %vm5135 = vmor %vm4747, %vm5071
        %vm5136 = vmor %vm4747, %vm5072
        %vm5137 = vmor %vm4747, %vm5073
        %vm5138 = vmor %vm4747, %vm5074
        %vm5139 = vmor %vm4747, %vm5075
        %vm5140 = vmor %vm4747, %vm5076
        %vm5141 = vmor %vm4747, %vm5077
        %vm5142 = vmor %vm4747, %vm5078
        %vm5143 = vmor %vm4747, %vm5079
        %vm5144 = vmor %vm4747, %vm5080
        %vm5145 = vmor %vm4747, %vm5081
        %vm5146 = vmor %vm4747, %vm5082
        %vm5147 = vmor %vm4747, %vm5083
        %v5148 = vsel %vm320, 1, 0
        %v5149 = vsel %vm321, 1, 0
        %v5150 = vsel %vm322, 1, 0
        %v5151 = vsel %vm323, 1, 0
        %v5152 = vsel %vm324, 1, 0
        %v5153 = vsel %vm325, 1, 0
        %v5154 = vsel %vm326, 1, 0
        %v5155 = vsel %vm327, 1, 0
        %v5156 = vsel %vm328, 1, 0
        %v5157 = vsel %vm329, 1, 0
        %v5158 = vsel %vm330, 1, 0
        %v5159 = vsel %vm331, 1, 0
        %v5160 = vsel %vm332, 1, 0
        %v5161 = vsel %vm333, 1, 0
        %v5162 = vsel %vm334, 1, 0
        %v5163 = vsel %vm335, 1, 0
        %v5164 = vsel %vm336, 1, 0
        %v5165 = vsel %vm337, 1, 0
        %v5166 = vsel %vm338, 1, 0
        %v5167 = vsel %vm339, 1, 0
        %v5168 = vsel %vm340, 1, 0
        %v5169 = vsel %vm341, 1, 0
        %v5170 = vsel %vm342, 1, 0
        %v5171 = vsel %vm343, 1, 0
        %v5172 = vsel %vm344, 1, 0
        %v5173 = vsel %vm345, 1, 0
        %v5174 = vsel %vm346, 1, 0
        %v5175 = vsel %vm347, 1, 0
        %v5176 = vsel %vm348, 1, 0
        %v5177 = vsel %vm349, 1, 0
        %v5178 = vsel %vm350, 1, 0
        %v5179 = vsel %vm351, 1, 0
        %v5180 = vsel %vm352, 1, 0
        %v5181 = vsel %vm353, 1, 0
        %v5182 = vsel %vm354, 1, 0
        %v5183 = vsel %vm355, 1, 0
        %v5184 = vsel %vm356, 1, 0
        %v5185 = vsel %vm357, 1, 0
        %v5186 = vsel %vm358, 1, 0
        %v5187 = vsel %vm359, 1, 0
        %v5188 = vsel %vm360, 1, 0
        %v5189 = vsel %vm361, 1, 0
        %v5190 = vsel %vm362, 1, 0
        %v5191 = vsel %vm363, 1, 0
        %v5192 = vsel %vm364, 1, 0
        %v5193 = vsel %vm365, 1, 0
        %v5194 = vsel %vm366, 1, 0
        %v5195 = vsel %vm367, 1, 0
        %v5196 = vsel %vm368, 1, 0
        %v5197 = vsel %vm369, 1, 0
        %v5198 = vsel %vm370, 1, 0
        %v5199 = vsel %vm371, 1, 0
        %v5200 = vsel %vm372, 1, 0
        %v5201 = vsel %vm373, 1, 0
        %v5202 = vsel %vm374, 1, 0
        %v5203 = vsel %vm375, 1, 0
        %v5204 = vsel %vm376, 1, 0
        %v5205 = vsel %vm377, 1, 0
        %v5206 = vsel %vm378, 1, 0
        %v5207 = vsel %vm379, 1, 0
        %v5208 = vsel %vm380, 1, 0
        %v5209 = vsel %vm381, 1, 0
        %v5210 = vsel %vm382, 1, 0
        %v5211 = vsel %vm383, 1, 0
        %vm5212 = vcmp.eq.s32.totalorder %v5148, 1
        %vm5213 = vcmp.eq.s32.totalorder %v5149, 1
        %vm5214 = vcmp.eq.s32.totalorder %v5150, 1
        %vm5215 = vcmp.eq.s32.totalorder %v5151, 1
        %vm5216 = vcmp.eq.s32.totalorder %v5152, 1
        %vm5217 = vcmp.eq.s32.totalorder %v5153, 1
        %vm5218 = vcmp.eq.s32.totalorder %v5154, 1
        %vm5219 = vcmp.eq.s32.totalorder %v5155, 1
        %vm5220 = vcmp.eq.s32.totalorder %v5156, 1
        %vm5221 = vcmp.eq.s32.totalorder %v5157, 1
        %vm5222 = vcmp.eq.s32.totalorder %v5158, 1
        %vm5223 = vcmp.eq.s32.totalorder %v5159, 1
        %vm5224 = vcmp.eq.s32.totalorder %v5160, 1
        %vm5225 = vcmp.eq.s32.totalorder %v5161, 1
        %vm5226 = vcmp.eq.s32.totalorder %v5162, 1
        %vm5227 = vcmp.eq.s32.totalorder %v5163, 1
        %vm5228 = vcmp.eq.s32.totalorder %v5164, 1
        %vm5229 = vcmp.eq.s32.totalorder %v5165, 1
        %vm5230 = vcmp.eq.s32.totalorder %v5166, 1
        %vm5231 = vcmp.eq.s32.totalorder %v5167, 1
        %vm5232 = vcmp.eq.s32.totalorder %v5168, 1
        %vm5233 = vcmp.eq.s32.totalorder %v5169, 1
        %vm5234 = vcmp.eq.s32.totalorder %v5170, 1
        %vm5235 = vcmp.eq.s32.totalorder %v5171, 1
        %vm5236 = vcmp.eq.s32.totalorder %v5172, 1
        %vm5237 = vcmp.eq.s32.totalorder %v5173, 1
        %vm5238 = vcmp.eq.s32.totalorder %v5174, 1
        %vm5239 = vcmp.eq.s32.totalorder %v5175, 1
        %vm5240 = vcmp.eq.s32.totalorder %v5176, 1
        %vm5241 = vcmp.eq.s32.totalorder %v5177, 1
        %vm5242 = vcmp.eq.s32.totalorder %v5178, 1
        %vm5243 = vcmp.eq.s32.totalorder %v5179, 1
        %vm5244 = vcmp.eq.s32.totalorder %v5180, 1
        %vm5245 = vcmp.eq.s32.totalorder %v5181, 1
        %vm5246 = vcmp.eq.s32.totalorder %v5182, 1
        %vm5247 = vcmp.eq.s32.totalorder %v5183, 1
        %vm5248 = vcmp.eq.s32.totalorder %v5184, 1
        %vm5249 = vcmp.eq.s32.totalorder %v5185, 1
        %vm5250 = vcmp.eq.s32.totalorder %v5186, 1
        %vm5251 = vcmp.eq.s32.totalorder %v5187, 1
        %vm5252 = vcmp.eq.s32.totalorder %v5188, 1
        %vm5253 = vcmp.eq.s32.totalorder %v5189, 1
        %vm5254 = vcmp.eq.s32.totalorder %v5190, 1
        %vm5255 = vcmp.eq.s32.totalorder %v5191, 1
        %vm5256 = vcmp.eq.s32.totalorder %v5192, 1
        %vm5257 = vcmp.eq.s32.totalorder %v5193, 1
        %vm5258 = vcmp.eq.s32.totalorder %v5194, 1
        %vm5259 = vcmp.eq.s32.totalorder %v5195, 1
        %vm5260 = vcmp.eq.s32.totalorder %v5196, 1
        %vm5261 = vcmp.eq.s32.totalorder %v5197, 1
        %vm5262 = vcmp.eq.s32.totalorder %v5198, 1
        %vm5263 = vcmp.eq.s32.totalorder %v5199, 1
        %vm5264 = vcmp.eq.s32.totalorder %v5200, 1
        %vm5265 = vcmp.eq.s32.totalorder %v5201, 1
        %vm5266 = vcmp.eq.s32.totalorder %v5202, 1
        %vm5267 = vcmp.eq.s32.totalorder %v5203, 1
        %vm5268 = vcmp.eq.s32.totalorder %v5204, 1
        %vm5269 = vcmp.eq.s32.totalorder %v5205, 1
        %vm5270 = vcmp.eq.s32.totalorder %v5206, 1
        %vm5271 = vcmp.eq.s32.totalorder %v5207, 1
        %vm5272 = vcmp.eq.s32.totalorder %v5208, 1
        %vm5273 = vcmp.eq.s32.totalorder %v5209, 1
        %vm5274 = vcmp.eq.s32.totalorder %v5210, 1
        %vm5275 = vcmp.eq.s32.totalorder %v5211, 1
        %vm5276 = vmand %vm5212, %vm4683
        %vm5277 = vmand %vm5213, %vm4684
        %vm5278 = vmand %vm5214, %vm4685
        %vm5279 = vmand %vm5215, %vm4686
        %vm5280 = vmand %vm5216, %vm4687
        %vm5281 = vmand %vm5217, %vm4688
        %vm5282 = vmand %vm5218, %vm4689
        %vm5283 = vmand %vm5219, %vm4690
        %vm5284 = vmand %vm5220, %vm4691
        %vm5285 = vmand %vm5221, %vm4692
        %vm5286 = vmand %vm5222, %vm4693
        %vm5287 = vmand %vm5223, %vm4694
        %vm5288 = vmand %vm5224, %vm4695
        %vm5289 = vmand %vm5225, %vm4696
        %vm5290 = vmand %vm5226, %vm4697
        %vm5291 = vmand %vm5227, %vm4698
        %vm5292 = vmand %vm5228, %vm4699
        %vm5293 = vmand %vm5229, %vm4700
        %vm5294 = vmand %vm5230, %vm4701
        %vm5295 = vmand %vm5231, %vm4702
        %vm5296 = vmand %vm5232, %vm4703
        %vm5297 = vmand %vm5233, %vm4704
        %vm5298 = vmand %vm5234, %vm4705
        %vm5299 = vmand %vm5235, %vm4706
        %vm5300 = vmand %vm5236, %vm4707
        %vm5301 = vmand %vm5237, %vm4708
        %vm5302 = vmand %vm5238, %vm4709
        %vm5303 = vmand %vm5239, %vm4710
        %vm5304 = vmand %vm5240, %vm4711
        %vm5305 = vmand %vm5241, %vm4712
        %vm5306 = vmand %vm5242, %vm4713
        %vm5307 = vmand %vm5243, %vm4714
        %vm5308 = vmand %vm5244, %vm4715
        %vm5309 = vmand %vm5245, %vm4716
        %vm5310 = vmand %vm5246, %vm4717
        %vm5311 = vmand %vm5247, %vm4718
        %vm5312 = vmand %vm5248, %vm4719
        %vm5313 = vmand %vm5249, %vm4720
        %vm5314 = vmand %vm5250, %vm4721
        %vm5315 = vmand %vm5251, %vm4722
        %vm5316 = vmand %vm5252, %vm4723
        %vm5317 = vmand %vm5253, %vm4724
        %vm5318 = vmand %vm5254, %vm4725
        %vm5319 = vmand %vm5255, %vm4726
        %vm5320 = vmand %vm5256, %vm4727
        %vm5321 = vmand %vm5257, %vm4728
        %vm5322 = vmand %vm5258, %vm4729
        %vm5323 = vmand %vm5259, %vm4730
        %vm5324 = vmand %vm5260, %vm4731
        %vm5325 = vmand %vm5261, %vm4732
        %vm5326 = vmand %vm5262, %vm4733
        %vm5327 = vmand %vm5263, %vm4734
        %vm5328 = vmand %vm5264, %vm4735
        %vm5329 = vmand %vm5265, %vm4736
        %vm5330 = vmand %vm5266, %vm4737
        %vm5331 = vmand %vm5267, %vm4738
        %vm5332 = vmand %vm5268, %vm4739
        %vm5333 = vmand %vm5269, %vm4740
        %vm5334 = vmand %vm5270, %vm4741
        %vm5335 = vmand %vm5271, %vm4742
        %vm5336 = vmand %vm5272, %vm4743
        %vm5337 = vmand %vm5273, %vm4744
        %vm5338 = vmand %vm5274, %vm4745
        %vm5339 = vmand %vm5275, %vm4746
        %vm5340 = vmand %vm5276, %vm5084
        %vm5341 = vmand %vm5277, %vm5085
        %vm5342 = vmand %vm5278, %vm5086
        %vm5343 = vmand %vm5279, %vm5087
        %vm5344 = vmand %vm5280, %vm5088
        %vm5345 = vmand %vm5281, %vm5089
        %vm5346 = vmand %vm5282, %vm5090
        %vm5347 = vmand %vm5283, %vm5091
        %vm5348 = vmand %vm5284, %vm5092
        %vm5349 = vmand %vm5285, %vm5093
        %vm5350 = vmand %vm5286, %vm5094
        %vm5351 = vmand %vm5287, %vm5095
        %vm5352 = vmand %vm5288, %vm5096
        %vm5353 = vmand %vm5289, %vm5097
        %vm5354 = vmand %vm5290, %vm5098
        %vm5355 = vmand %vm5291, %vm5099
        %vm5356 = vmand %vm5292, %vm5100
        %vm5357 = vmand %vm5293, %vm5101
        %vm5358 = vmand %vm5294, %vm5102
        %vm5359 = vmand %vm5295, %vm5103
        %vm5360 = vmand %vm5296, %vm5104
        %vm5361 = vmand %vm5297, %vm5105
        %vm5362 = vmand %vm5298, %vm5106
        %vm5363 = vmand %vm5299, %vm5107
        %vm5364 = vmand %vm5300, %vm5108
        %vm5365 = vmand %vm5301, %vm5109
        %vm5366 = vmand %vm5302, %vm5110
        %vm5367 = vmand %vm5303, %vm5111
        %vm5368 = vmand %vm5304, %vm5112
        %vm5369 = vmand %vm5305, %vm5113
        %vm5370 = vmand %vm5306, %vm5114
        %vm5371 = vmand %vm5307, %vm5115
        %vm5372 = vmand %vm5308, %vm5116
        %vm5373 = vmand %vm5309, %vm5117
        %vm5374 = vmand %vm5310, %vm5118
        %vm5375 = vmand %vm5311, %vm5119
        %vm5376 = vmand %vm5312, %vm5120
        %vm5377 = vmand %vm5313, %vm5121
        %vm5378 = vmand %vm5314, %vm5122
        %vm5379 = vmand %vm5315, %vm5123
        %vm5380 = vmand %vm5316, %vm5124
        %vm5381 = vmand %vm5317, %vm5125
        %vm5382 = vmand %vm5318, %vm5126
        %vm5383 = vmand %vm5319, %vm5127
        %vm5384 = vmand %vm5320, %vm5128
        %vm5385 = vmand %vm5321, %vm5129
        %vm5386 = vmand %vm5322, %vm5130
        %vm5387 = vmand %vm5323, %vm5131
        %vm5388 = vmand %vm5324, %vm5132
        %vm5389 = vmand %vm5325, %vm5133
        %vm5390 = vmand %vm5326, %vm5134
        %vm5391 = vmand %vm5327, %vm5135
        %vm5392 = vmand %vm5328, %vm5136
        %vm5393 = vmand %vm5329, %vm5137
        %vm5394 = vmand %vm5330, %vm5138
        %vm5395 = vmand %vm5331, %vm5139
        %vm5396 = vmand %vm5332, %vm5140
        %vm5397 = vmand %vm5333, %vm5141
        %vm5398 = vmand %vm5334, %vm5142
        %vm5399 = vmand %vm5335, %vm5143
        %vm5400 = vmand %vm5336, %vm5144
        %vm5401 = vmand %vm5337, %vm5145
        %vm5402 = vmand %vm5338, %vm5146
        %vm5403 = vmand %vm5339, %vm5147
        %vm5404 = vcmp.lt.s32.totalorder %v385, 4
        %vm5405 = vmand %vm5340, %vm5404
        %vm5406 = vmand %vm5341, %vm5404
        %vm5407 = vmand %vm5342, %vm5404
        %vm5408 = vmand %vm5343, %vm5404
        %vm5409 = vmand %vm5344, %vm5404
        %vm5410 = vmand %vm5345, %vm5404
        %vm5411 = vmand %vm5346, %vm5404
        %vm5412 = vmand %vm5347, %vm5404
        %vm5413 = vmand %vm5348, %vm5404
        %vm5414 = vmand %vm5349, %vm5404
        %vm5415 = vmand %vm5350, %vm5404
        %vm5416 = vmand %vm5351, %vm5404
        %vm5417 = vmand %vm5352, %vm5404
        %vm5418 = vmand %vm5353, %vm5404
        %vm5419 = vmand %vm5354, %vm5404
        %vm5420 = vmand %vm5355, %vm5404
        %vm5421 = vmand %vm5356, %vm5404
        %vm5422 = vmand %vm5357, %vm5404
        %vm5423 = vmand %vm5358, %vm5404
        %vm5424 = vmand %vm5359, %vm5404
        %vm5425 = vmand %vm5360, %vm5404
        %vm5426 = vmand %vm5361, %vm5404
        %vm5427 = vmand %vm5362, %vm5404
        %vm5428 = vmand %vm5363, %vm5404
        %vm5429 = vmand %vm5364, %vm5404
        %vm5430 = vmand %vm5365, %vm5404
        %vm5431 = vmand %vm5366, %vm5404
        %vm5432 = vmand %vm5367, %vm5404
        %vm5433 = vmand %vm5368, %vm5404
        %vm5434 = vmand %vm5369, %vm5404
        %vm5435 = vmand %vm5370, %vm5404
        %vm5436 = vmand %vm5371, %vm5404
        %vm5437 = vmand %vm5372, %vm5404
        %vm5438 = vmand %vm5373, %vm5404
        %vm5439 = vmand %vm5374, %vm5404
        %vm5440 = vmand %vm5375, %vm5404
        %vm5441 = vmand %vm5376, %vm5404
        %vm5442 = vmand %vm5377, %vm5404
        %vm5443 = vmand %vm5378, %vm5404
        %vm5444 = vmand %vm5379, %vm5404
        %vm5445 = vmand %vm5380, %vm5404
        %vm5446 = vmand %vm5381, %vm5404
        %vm5447 = vmand %vm5382, %vm5404
        %vm5448 = vmand %vm5383, %vm5404
        %vm5449 = vmand %vm5384, %vm5404
        %vm5450 = vmand %vm5385, %vm5404
        %vm5451 = vmand %vm5386, %vm5404
        %vm5452 = vmand %vm5387, %vm5404
        %vm5453 = vmand %vm5388, %vm5404
        %vm5454 = vmand %vm5389, %vm5404
        %vm5455 = vmand %vm5390, %vm5404
        %vm5456 = vmand %vm5391, %vm5404
        %vm5457 = vmand %vm5392, %vm5404
        %vm5458 = vmand %vm5393, %vm5404
        %vm5459 = vmand %vm5394, %vm5404
        %vm5460 = vmand %vm5395, %vm5404
        %vm5461 = vmand %vm5396, %vm5404
        %vm5462 = vmand %vm5397, %vm5404
        %vm5463 = vmand %vm5398, %vm5404
        %vm5464 = vmand %vm5399, %vm5404
        %vm5465 = vmand %vm5400, %vm5404
        %vm5466 = vmand %vm5401, %vm5404
        %vm5467 = vmand %vm5402, %vm5404
        %vm5468 = vmand %vm5403, %vm5404
        %v5469 = vsel %vm5405, 1, 0
        %v5470 = vsel %vm5406, 1, 0
        %v5471 = vsel %vm5407, 1, 0
        %v5472 = vsel %vm5408, 1, 0
        %v5473 = vsel %vm5409, 1, 0
        %v5474 = vsel %vm5410, 1, 0
        %v5475 = vsel %vm5411, 1, 0
        %v5476 = vsel %vm5412, 1, 0
        %v5477 = vsel %vm5413, 1, 0
        %v5478 = vsel %vm5414, 1, 0
        %v5479 = vsel %vm5415, 1, 0
        %v5480 = vsel %vm5416, 1, 0
        %v5481 = vsel %vm5417, 1, 0
        %v5482 = vsel %vm5418, 1, 0
        %v5483 = vsel %vm5419, 1, 0
        %v5484 = vsel %vm5420, 1, 0
        %v5485 = vsel %vm5421, 1, 0
        %v5486 = vsel %vm5422, 1, 0
        %v5487 = vsel %vm5423, 1, 0
        %v5488 = vsel %vm5424, 1, 0
        %v5489 = vsel %vm5425, 1, 0
        %v5490 = vsel %vm5426, 1, 0
        %v5491 = vsel %vm5427, 1, 0
        %v5492 = vsel %vm5428, 1, 0
        %v5493 = vsel %vm5429, 1, 0
        %v5494 = vsel %vm5430, 1, 0
        %v5495 = vsel %vm5431, 1, 0
        %v5496 = vsel %vm5432, 1, 0
        %v5497 = vsel %vm5433, 1, 0
        %v5498 = vsel %vm5434, 1, 0
        %v5499 = vsel %vm5435, 1, 0
        %v5500 = vsel %vm5436, 1, 0
        %v5501 = vsel %vm5437, 1, 0
        %v5502 = vsel %vm5438, 1, 0
        %v5503 = vsel %vm5439, 1, 0
        %v5504 = vsel %vm5440, 1, 0
        %v5505 = vsel %vm5441, 1, 0
        %v5506 = vsel %vm5442, 1, 0
        %v5507 = vsel %vm5443, 1, 0
        %v5508 = vsel %vm5444, 1, 0
        %v5509 = vsel %vm5445, 1, 0
        %v5510 = vsel %vm5446, 1, 0
        %v5511 = vsel %vm5447, 1, 0
        %v5512 = vsel %vm5448, 1, 0
        %v5513 = vsel %vm5449, 1, 0
        %v5514 = vsel %vm5450, 1, 0
        %v5515 = vsel %vm5451, 1, 0
        %v5516 = vsel %vm5452, 1, 0
        %v5517 = vsel %vm5453, 1, 0
        %v5518 = vsel %vm5454, 1, 0
        %v5519 = vsel %vm5455, 1, 0
        %v5520 = vsel %vm5456, 1, 0
        %v5521 = vsel %vm5457, 1, 0
        %v5522 = vsel %vm5458, 1, 0
        %v5523 = vsel %vm5459, 1, 0
        %v5524 = vsel %vm5460, 1, 0
        %v5525 = vsel %vm5461, 1, 0
        %v5526 = vsel %vm5462, 1, 0
        %v5527 = vsel %vm5463, 1, 0
        %v5528 = vsel %vm5464, 1, 0
        %v5529 = vsel %vm5465, 1, 0
        %v5530 = vsel %vm5466, 1, 0
        %v5531 = vsel %vm5467, 1, 0
        %v5532 = vsel %vm5468, 1, 0
        %v5533 = vcvt.s32.f32 %v5469
        %v5534 = vcvt.s32.f32 %v5470
        %v5535 = vcvt.s32.f32 %v5471
        %v5536 = vcvt.s32.f32 %v5472
        %v5537 = vcvt.s32.f32 %v5473
        %v5538 = vcvt.s32.f32 %v5474
        %v5539 = vcvt.s32.f32 %v5475
        %v5540 = vcvt.s32.f32 %v5476
        %v5541 = vcvt.s32.f32 %v5477
        %v5542 = vcvt.s32.f32 %v5478
        %v5543 = vcvt.s32.f32 %v5479
        %v5544 = vcvt.s32.f32 %v5480
        %v5545 = vcvt.s32.f32 %v5481
        %v5546 = vcvt.s32.f32 %v5482
        %v5547 = vcvt.s32.f32 %v5483
        %v5548 = vcvt.s32.f32 %v5484
        %v5549 = vcvt.s32.f32 %v5485
        %v5550 = vcvt.s32.f32 %v5486
        %v5551 = vcvt.s32.f32 %v5487
        %v5552 = vcvt.s32.f32 %v5488
        %v5553 = vcvt.s32.f32 %v5489
        %v5554 = vcvt.s32.f32 %v5490
        %v5555 = vcvt.s32.f32 %v5491
        %v5556 = vcvt.s32.f32 %v5492
        %v5557 = vcvt.s32.f32 %v5493
        %v5558 = vcvt.s32.f32 %v5494
        %v5559 = vcvt.s32.f32 %v5495
        %v5560 = vcvt.s32.f32 %v5496
        %v5561 = vcvt.s32.f32 %v5497
        %v5562 = vcvt.s32.f32 %v5498
        %v5563 = vcvt.s32.f32 %v5499
        %v5564 = vcvt.s32.f32 %v5500
        %v5565 = vcvt.s32.f32 %v5501
        %v5566 = vcvt.s32.f32 %v5502
        %v5567 = vcvt.s32.f32 %v5503
        %v5568 = vcvt.s32.f32 %v5504
        %v5569 = vcvt.s32.f32 %v5505
        %v5570 = vcvt.s32.f32 %v5506
        %v5571 = vcvt.s32.f32 %v5507
        %v5572 = vcvt.s32.f32 %v5508
        %v5573 = vcvt.s32.f32 %v5509
        %v5574 = vcvt.s32.f32 %v5510
        %v5575 = vcvt.s32.f32 %v5511
        %v5576 = vcvt.s32.f32 %v5512
        %v5577 = vcvt.s32.f32 %v5513
        %v5578 = vcvt.s32.f32 %v5514
        %v5579 = vcvt.s32.f32 %v5515
        %v5580 = vcvt.s32.f32 %v5516
        %v5581 = vcvt.s32.f32 %v5517
        %v5582 = vcvt.s32.f32 %v5518
        %v5583 = vcvt.s32.f32 %v5519
        %v5584 = vcvt.s32.f32 %v5520
        %v5585 = vcvt.s32.f32 %v5521
        %v5586 = vcvt.s32.f32 %v5522
        %v5587 = vcvt.s32.f32 %v5523
        %v5588 = vcvt.s32.f32 %v5524
        %v5589 = vcvt.s32.f32 %v5525
        %v5590 = vcvt.s32.f32 %v5526
        %v5591 = vcvt.s32.f32 %v5527
        %v5592 = vcvt.s32.f32 %v5528
        %v5593 = vcvt.s32.f32 %v5529
        %v5594 = vcvt.s32.f32 %v5530
        %v5595 = vcvt.s32.f32 %v5531
        %v5596 = vcvt.s32.f32 %v5532
        %v5597 = vpack.c.bf16 %v5533, %v5533
        %v5598 = vpack.c.bf16 %v5534, %v5534
        %v5599 = vpack.c.bf16 %v5535, %v5535
        %v5600 = vpack.c.bf16 %v5536, %v5536
        %v5601 = vpack.c.bf16 %v5537, %v5537
        %v5602 = vpack.c.bf16 %v5538, %v5538
        %v5603 = vpack.c.bf16 %v5539, %v5539
        %v5604 = vpack.c.bf16 %v5540, %v5540
        %v5605 = vpack.c.bf16 %v5541, %v5541
        %v5606 = vpack.c.bf16 %v5542, %v5542
        %v5607 = vpack.c.bf16 %v5543, %v5543
        %v5608 = vpack.c.bf16 %v5544, %v5544
        %v5609 = vpack.c.bf16 %v5545, %v5545
        %v5610 = vpack.c.bf16 %v5546, %v5546
        %v5611 = vpack.c.bf16 %v5547, %v5547
        %v5612 = vpack.c.bf16 %v5548, %v5548
        %v5613 = vpack.c.bf16 %v5549, %v5549
        %v5614 = vpack.c.bf16 %v5550, %v5550
        %v5615 = vpack.c.bf16 %v5551, %v5551
        %v5616 = vpack.c.bf16 %v5552, %v5552
        %v5617 = vpack.c.bf16 %v5553, %v5553
        %v5618 = vpack.c.bf16 %v5554, %v5554
        %v5619 = vpack.c.bf16 %v5555, %v5555
        %v5620 = vpack.c.bf16 %v5556, %v5556
        %v5621 = vpack.c.bf16 %v5557, %v5557
        %v5622 = vpack.c.bf16 %v5558, %v5558
        %v5623 = vpack.c.bf16 %v5559, %v5559
        %v5624 = vpack.c.bf16 %v5560, %v5560
        %v5625 = vpack.c.bf16 %v5561, %v5561
        %v5626 = vpack.c.bf16 %v5562, %v5562
        %v5627 = vpack.c.bf16 %v5563, %v5563
        %v5628 = vpack.c.bf16 %v5564, %v5564
        %v5629 = vpack.c.bf16 %v5565, %v5565
        %v5630 = vpack.c.bf16 %v5566, %v5566
        %v5631 = vpack.c.bf16 %v5567, %v5567
        %v5632 = vpack.c.bf16 %v5568, %v5568
        %v5633 = vpack.c.bf16 %v5569, %v5569
        %v5634 = vpack.c.bf16 %v5570, %v5570
        %v5635 = vpack.c.bf16 %v5571, %v5571
        %v5636 = vpack.c.bf16 %v5572, %v5572
        %v5637 = vpack.c.bf16 %v5573, %v5573
        %v5638 = vpack.c.bf16 %v5574, %v5574
        %v5639 = vpack.c.bf16 %v5575, %v5575
        %v5640 = vpack.c.bf16 %v5576, %v5576
        %v5641 = vpack.c.bf16 %v5577, %v5577
        %v5642 = vpack.c.bf16 %v5578, %v5578
        %v5643 = vpack.c.bf16 %v5579, %v5579
        %v5644 = vpack.c.bf16 %v5580, %v5580
        %v5645 = vpack.c.bf16 %v5581, %v5581
        %v5646 = vpack.c.bf16 %v5582, %v5582
        %v5647 = vpack.c.bf16 %v5583, %v5583
        %v5648 = vpack.c.bf16 %v5584, %v5584
        %v5649 = vpack.c.bf16 %v5585, %v5585
        %v5650 = vpack.c.bf16 %v5586, %v5586
        %v5651 = vpack.c.bf16 %v5587, %v5587
        %v5652 = vpack.c.bf16 %v5588, %v5588
        %v5653 = vpack.c.bf16 %v5589, %v5589
        %v5654 = vpack.c.bf16 %v5590, %v5590
        %v5655 = vpack.c.bf16 %v5591, %v5591
        %v5656 = vpack.c.bf16 %v5592, %v5592
        %v5657 = vpack.c.bf16 %v5593, %v5593
        %v5658 = vpack.c.bf16 %v5594, %v5594
        %v5659 = vpack.c.bf16 %v5595, %v5595
        %v5660 = vpack.c.bf16 %v5596, %v5596
        %5661 = vmatprep.subr.bf16.mxu0 %v3834
        %5662 = vmatpush1.bf16.xpose.msra.mxu0 %v3833
        %5663 = vmatprep.subr.bf16.mxu0 %v3898
        %5664 = vmatpush1.bf16.xpose.msra.mxu0 %v3897
        %5665 = vmatprep.subr.bf16.mxu0 %v3962
        %5666 = vmatpush1.bf16.xpose.msra.mxu0 %v3961
        %5667 = vmatprep.subr.bf16.mxu0 %v4026
        %5668 = vmatpush1.bf16.xpose.msra.mxu0 %v4025
        %5669 = vmatprep.subr.bf16.mxu0 %v4090
        %5670 = vmatpush1.bf16.xpose.msra.mxu0 %v4089
        %5671 = vmatprep.subr.bf16.mxu0 %v4154
        %5672 = vmatpush1.bf16.xpose.msra.mxu0 %v4153
        %5673 = vmatprep.subr.bf16.mxu0 %v4218
        %5674 = vmatpush1.bf16.xpose.msra.mxu0 %v4217
        %5675 = vmatprep.subr.bf16.mxu0 %v4282
        %5676 = vmatpush1.bf16.xpose.msra.mxu0 %v4281
        %5677 = vmatprep.subr.bf16.mxu0 0
        %5678 = vmatpush1.bf16.xpose.msra.mxu0 0
        %5679 = vmatprep.subr.bf16.mxu0 0
        %5680 = vmatpush1.bf16.xpose.msra.mxu0 0
        %5681 = vmatprep.subr.bf16.mxu0 0
        %5682 = vmatpush1.bf16.xpose.msra.mxu0 0
        %5683 = vmatprep.subr.bf16.mxu0 0
        %5684 = vmatpush1.bf16.xpose.msra.mxu0 0
        %5685 = vmatprep.subr.bf16.mxu0 0
        %5686 = vmatpush1.bf16.xpose.msra.mxu0 0
        %5687 = vmatprep.subr.bf16.mxu0 0
        %5688 = vmatpush1.bf16.xpose.msra.mxu0 0
        %5689 = vmatprep.subr.bf16.mxu0 0
        %5690 = vmatpush1.bf16.xpose.msra.mxu0 0
        %5691 = vmatprep.subr.bf16.mxu0 0
        %5692 = vmatpush1.bf16.xpose.msra.mxu0 0
        %5693 = vmatprep.mubr.bf16.mxu0 %v5598
        %5694 = vmatmul.mubr.bf16.gmra.mrb[0].mxu0 %v5597
        %v5695 = vpop.f32.mrb[0].mxu0
        %v5696 = vadd.f32 0.0, %v5695
        %v5697 = vpop.f32.mrb[0].mxu0
        %v5698 = vpop.f32.mrb[0].mxu0
        %v5699 = vpop.f32.mrb[0].mxu0
        %5700 = vdwg.mxu0
        %5701 = vmatprep.subr.bf16.mxu0 %v3836
        %5702 = vmatpush1.bf16.xpose.msra.mxu0 %v3835
        %5703 = vmatprep.subr.bf16.mxu0 %v3900
        %5704 = vmatpush1.bf16.xpose.msra.mxu0 %v3899
        %5705 = vmatprep.subr.bf16.mxu0 %v3964
        %5706 = vmatpush1.bf16.xpose.msra.mxu0 %v3963
        %5707 = vmatprep.subr.bf16.mxu0 %v4028
        %5708 = vmatpush1.bf16.xpose.msra.mxu0 %v4027
        %5709 = vmatprep.subr.bf16.mxu0 %v4092
        %5710 = vmatpush1.bf16.xpose.msra.mxu0 %v4091
        %5711 = vmatprep.subr.bf16.mxu0 %v4156
        %5712 = vmatpush1.bf16.xpose.msra.mxu0 %v4155
        %5713 = vmatprep.subr.bf16.mxu0 %v4220
        %5714 = vmatpush1.bf16.xpose.msra.mxu0 %v4219
        %5715 = vmatprep.subr.bf16.mxu0 %v4284
        %5716 = vmatpush1.bf16.xpose.msra.mxu0 %v4283
        %5717 = vmatprep.subr.bf16.mxu0 0
        %5718 = vmatpush1.bf16.xpose.msra.mxu0 0
        %5719 = vmatprep.subr.bf16.mxu0 0
        %5720 = vmatpush1.bf16.xpose.msra.mxu0 0
        %5721 = vmatprep.subr.bf16.mxu0 0
        %5722 = vmatpush1.bf16.xpose.msra.mxu0 0
        %5723 = vmatprep.subr.bf16.mxu0 0
        %5724 = vmatpush1.bf16.xpose.msra.mxu0 0
        %5725 = vmatprep.subr.bf16.mxu0 0
        %5726 = vmatpush1.bf16.xpose.msra.mxu0 0
        %5727 = vmatprep.subr.bf16.mxu0 0
        %5728 = vmatpush1.bf16.xpose.msra.mxu0 0
        %5729 = vmatprep.subr.bf16.mxu0 0
        %5730 = vmatpush1.bf16.xpose.msra.mxu0 0
        %5731 = vmatprep.subr.bf16.mxu0 0
        %5732 = vmatpush1.bf16.xpose.msra.mxu0 0
        %5733 = vmatprep.mubr.bf16.mxu0 %v5600
        %5734 = vmatmul.mubr.bf16.gmra.mrb[0].mxu0 %v5599
        %v5735 = vpop.f32.mrb[0].mxu0
        %v5736 = vadd.f32 %v5696, %v5735
        %v5737 = vpop.f32.mrb[0].mxu0
        %v5738 = vpop.f32.mrb[0].mxu0
        %v5739 = vpop.f32.mrb[0].mxu0
        %5740 = vdwg.mxu0
        %5741 = vmatprep.subr.bf16.mxu0 %v3838
        %5742 = vmatpush1.bf16.xpose.msra.mxu0 %v3837
        %5743 = vmatprep.subr.bf16.mxu0 %v3902
        %5744 = vmatpush1.bf16.xpose.msra.mxu0 %v3901
        %5745 = vmatprep.subr.bf16.mxu0 %v3966
        %5746 = vmatpush1.bf16.xpose.msra.mxu0 %v3965
        %5747 = vmatprep.subr.bf16.mxu0 %v4030
        %5748 = vmatpush1.bf16.xpose.msra.mxu0 %v4029
        %5749 = vmatprep.subr.bf16.mxu0 %v4094
        %5750 = vmatpush1.bf16.xpose.msra.mxu0 %v4093
        %5751 = vmatprep.subr.bf16.mxu0 %v4158
        %5752 = vmatpush1.bf16.xpose.msra.mxu0 %v4157
        %5753 = vmatprep.subr.bf16.mxu0 %v4222
        %5754 = vmatpush1.bf16.xpose.msra.mxu0 %v4221
        %5755 = vmatprep.subr.bf16.mxu0 %v4286
        %5756 = vmatpush1.bf16.xpose.msra.mxu0 %v4285
        %5757 = vmatprep.subr.bf16.mxu0 0
        %5758 = vmatpush1.bf16.xpose.msra.mxu0 0
        %5759 = vmatprep.subr.bf16.mxu0 0
        %5760 = vmatpush1.bf16.xpose.msra.mxu0 0
        %5761 = vmatprep.subr.bf16.mxu0 0
        %5762 = vmatpush1.bf16.xpose.msra.mxu0 0
        %5763 = vmatprep.subr.bf16.mxu0 0
        %5764 = vmatpush1.bf16.xpose.msra.mxu0 0
        %5765 = vmatprep.subr.bf16.mxu0 0
        %5766 = vmatpush1.bf16.xpose.msra.mxu0 0
        %5767 = vmatprep.subr.bf16.mxu0 0
        %5768 = vmatpush1.bf16.xpose.msra.mxu0 0
        %5769 = vmatprep.subr.bf16.mxu0 0
        %5770 = vmatpush1.bf16.xpose.msra.mxu0 0
        %5771 = vmatprep.subr.bf16.mxu0 0
        %5772 = vmatpush1.bf16.xpose.msra.mxu0 0
        %5773 = vmatprep.mubr.bf16.mxu0 %v5602
        %5774 = vmatmul.mubr.bf16.gmra.mrb[0].mxu0 %v5601
        %v5775 = vpop.f32.mrb[0].mxu0
        %v5776 = vadd.f32 %v5736, %v5775
        %v5777 = vpop.f32.mrb[0].mxu0
        %v5778 = vpop.f32.mrb[0].mxu0
        %v5779 = vpop.f32.mrb[0].mxu0
        %5780 = vdwg.mxu0
        %5781 = vmatprep.subr.bf16.mxu0 %v3840
        %5782 = vmatpush1.bf16.xpose.msra.mxu0 %v3839
        %5783 = vmatprep.subr.bf16.mxu0 %v3904
        %5784 = vmatpush1.bf16.xpose.msra.mxu0 %v3903
        %5785 = vmatprep.subr.bf16.mxu0 %v3968
        %5786 = vmatpush1.bf16.xpose.msra.mxu0 %v3967
        %5787 = vmatprep.subr.bf16.mxu0 %v4032
        %5788 = vmatpush1.bf16.xpose.msra.mxu0 %v4031
        %5789 = vmatprep.subr.bf16.mxu0 %v4096
        %5790 = vmatpush1.bf16.xpose.msra.mxu0 %v4095
        %5791 = vmatprep.subr.bf16.mxu0 %v4160
        %5792 = vmatpush1.bf16.xpose.msra.mxu0 %v4159
        %5793 = vmatprep.subr.bf16.mxu0 %v4224
        %5794 = vmatpush1.bf16.xpose.msra.mxu0 %v4223
        %5795 = vmatprep.subr.bf16.mxu0 %v4288
        %5796 = vmatpush1.bf16.xpose.msra.mxu0 %v4287
        %5797 = vmatprep.subr.bf16.mxu0 0
        %5798 = vmatpush1.bf16.xpose.msra.mxu0 0
        %5799 = vmatprep.subr.bf16.mxu0 0
        %5800 = vmatpush1.bf16.xpose.msra.mxu0 0
        %5801 = vmatprep.subr.bf16.mxu0 0
        %5802 = vmatpush1.bf16.xpose.msra.mxu0 0
        %5803 = vmatprep.subr.bf16.mxu0 0
        %5804 = vmatpush1.bf16.xpose.msra.mxu0 0
        %5805 = vmatprep.subr.bf16.mxu0 0
        %5806 = vmatpush1.bf16.xpose.msra.mxu0 0
        %5807 = vmatprep.subr.bf16.mxu0 0
        %5808 = vmatpush1.bf16.xpose.msra.mxu0 0
        %5809 = vmatprep.subr.bf16.mxu0 0
        %5810 = vmatpush1.bf16.xpose.msra.mxu0 0
        %5811 = vmatprep.subr.bf16.mxu0 0
        %5812 = vmatpush1.bf16.xpose.msra.mxu0 0
        %5813 = vmatprep.mubr.bf16.mxu0 %v5604
        %5814 = vmatmul.mubr.bf16.gmra.mrb[0].mxu0 %v5603
        %v5815 = vpop.f32.mrb[0].mxu0
        %v5816 = vadd.f32 %v5776, %v5815
        %v5817 = vpop.f32.mrb[0].mxu0
        %v5818 = vpop.f32.mrb[0].mxu0
        %v5819 = vpop.f32.mrb[0].mxu0
        %5820 = vdwg.mxu0
        %5821 = vmatprep.subr.bf16.mxu0 %v3842
        %5822 = vmatpush1.bf16.xpose.msra.mxu0 %v3841
        %5823 = vmatprep.subr.bf16.mxu0 %v3906
        %5824 = vmatpush1.bf16.xpose.msra.mxu0 %v3905
        %5825 = vmatprep.subr.bf16.mxu0 %v3970
        %5826 = vmatpush1.bf16.xpose.msra.mxu0 %v3969
        %5827 = vmatprep.subr.bf16.mxu0 %v4034
        %5828 = vmatpush1.bf16.xpose.msra.mxu0 %v4033
        %5829 = vmatprep.subr.bf16.mxu0 %v4098
        %5830 = vmatpush1.bf16.xpose.msra.mxu0 %v4097
        %5831 = vmatprep.subr.bf16.mxu0 %v4162
        %5832 = vmatpush1.bf16.xpose.msra.mxu0 %v4161
        %5833 = vmatprep.subr.bf16.mxu0 %v4226
        %5834 = vmatpush1.bf16.xpose.msra.mxu0 %v4225
        %5835 = vmatprep.subr.bf16.mxu0 %v4290
        %5836 = vmatpush1.bf16.xpose.msra.mxu0 %v4289
        %5837 = vmatprep.subr.bf16.mxu0 0
        %5838 = vmatpush1.bf16.xpose.msra.mxu0 0
        %5839 = vmatprep.subr.bf16.mxu0 0
        %5840 = vmatpush1.bf16.xpose.msra.mxu0 0
        %5841 = vmatprep.subr.bf16.mxu0 0
        %5842 = vmatpush1.bf16.xpose.msra.mxu0 0
        %5843 = vmatprep.subr.bf16.mxu0 0
        %5844 = vmatpush1.bf16.xpose.msra.mxu0 0
        %5845 = vmatprep.subr.bf16.mxu0 0
        %5846 = vmatpush1.bf16.xpose.msra.mxu0 0
        %5847 = vmatprep.subr.bf16.mxu0 0
        %5848 = vmatpush1.bf16.xpose.msra.mxu0 0
        %5849 = vmatprep.subr.bf16.mxu0 0
        %5850 = vmatpush1.bf16.xpose.msra.mxu0 0
        %5851 = vmatprep.subr.bf16.mxu0 0
        %5852 = vmatpush1.bf16.xpose.msra.mxu0 0
        %5853 = vmatprep.mubr.bf16.mxu0 %v5606
        %5854 = vmatmul.mubr.bf16.gmra.mrb[0].mxu0 %v5605
        %v5855 = vpop.f32.mrb[0].mxu0
        %v5856 = vadd.f32 %v5816, %v5855
        %v5857 = vpop.f32.mrb[0].mxu0
        %v5858 = vpop.f32.mrb[0].mxu0
        %v5859 = vpop.f32.mrb[0].mxu0
        %5860 = vdwg.mxu0
        %5861 = vmatprep.subr.bf16.mxu0 %v3844
        %5862 = vmatpush1.bf16.xpose.msra.mxu0 %v3843
        %5863 = vmatprep.subr.bf16.mxu0 %v3908
        %5864 = vmatpush1.bf16.xpose.msra.mxu0 %v3907
        %5865 = vmatprep.subr.bf16.mxu0 %v3972
        %5866 = vmatpush1.bf16.xpose.msra.mxu0 %v3971
        %5867 = vmatprep.subr.bf16.mxu0 %v4036
        %5868 = vmatpush1.bf16.xpose.msra.mxu0 %v4035
        %5869 = vmatprep.subr.bf16.mxu0 %v4100
        %5870 = vmatpush1.bf16.xpose.msra.mxu0 %v4099
        %5871 = vmatprep.subr.bf16.mxu0 %v4164
        %5872 = vmatpush1.bf16.xpose.msra.mxu0 %v4163
        %5873 = vmatprep.subr.bf16.mxu0 %v4228
        %5874 = vmatpush1.bf16.xpose.msra.mxu0 %v4227
        %5875 = vmatprep.subr.bf16.mxu0 %v4292
        %5876 = vmatpush1.bf16.xpose.msra.mxu0 %v4291
        %5877 = vmatprep.subr.bf16.mxu0 0
        %5878 = vmatpush1.bf16.xpose.msra.mxu0 0
        %5879 = vmatprep.subr.bf16.mxu0 0
        %5880 = vmatpush1.bf16.xpose.msra.mxu0 0
        %5881 = vmatprep.subr.bf16.mxu0 0
        %5882 = vmatpush1.bf16.xpose.msra.mxu0 0
        %5883 = vmatprep.subr.bf16.mxu0 0
        %5884 = vmatpush1.bf16.xpose.msra.mxu0 0
        %5885 = vmatprep.subr.bf16.mxu0 0
        %5886 = vmatpush1.bf16.xpose.msra.mxu0 0
        %5887 = vmatprep.subr.bf16.mxu0 0
        %5888 = vmatpush1.bf16.xpose.msra.mxu0 0
        %5889 = vmatprep.subr.bf16.mxu0 0
        %5890 = vmatpush1.bf16.xpose.msra.mxu0 0
        %5891 = vmatprep.subr.bf16.mxu0 0
        %5892 = vmatpush1.bf16.xpose.msra.mxu0 0
        %5893 = vmatprep.mubr.bf16.mxu0 %v5608
        %5894 = vmatmul.mubr.bf16.gmra.mrb[0].mxu0 %v5607
        %v5895 = vpop.f32.mrb[0].mxu0
        %v5896 = vadd.f32 %v5856, %v5895
        %v5897 = vpop.f32.mrb[0].mxu0
        %v5898 = vpop.f32.mrb[0].mxu0
        %v5899 = vpop.f32.mrb[0].mxu0
        %5900 = vdwg.mxu0
        %5901 = vmatprep.subr.bf16.mxu0 %v3846
        %5902 = vmatpush1.bf16.xpose.msra.mxu0 %v3845
        %5903 = vmatprep.subr.bf16.mxu0 %v3910
        %5904 = vmatpush1.bf16.xpose.msra.mxu0 %v3909
        %5905 = vmatprep.subr.bf16.mxu0 %v3974
        %5906 = vmatpush1.bf16.xpose.msra.mxu0 %v3973
        %5907 = vmatprep.subr.bf16.mxu0 %v4038
        %5908 = vmatpush1.bf16.xpose.msra.mxu0 %v4037
        %5909 = vmatprep.subr.bf16.mxu0 %v4102
        %5910 = vmatpush1.bf16.xpose.msra.mxu0 %v4101
        %5911 = vmatprep.subr.bf16.mxu0 %v4166
        %5912 = vmatpush1.bf16.xpose.msra.mxu0 %v4165
        %5913 = vmatprep.subr.bf16.mxu0 %v4230
        %5914 = vmatpush1.bf16.xpose.msra.mxu0 %v4229
        %5915 = vmatprep.subr.bf16.mxu0 %v4294
        %5916 = vmatpush1.bf16.xpose.msra.mxu0 %v4293
        %5917 = vmatprep.subr.bf16.mxu0 0
        %5918 = vmatpush1.bf16.xpose.msra.mxu0 0
        %5919 = vmatprep.subr.bf16.mxu0 0
        %5920 = vmatpush1.bf16.xpose.msra.mxu0 0
        %5921 = vmatprep.subr.bf16.mxu0 0
        %5922 = vmatpush1.bf16.xpose.msra.mxu0 0
        %5923 = vmatprep.subr.bf16.mxu0 0
        %5924 = vmatpush1.bf16.xpose.msra.mxu0 0
        %5925 = vmatprep.subr.bf16.mxu0 0
        %5926 = vmatpush1.bf16.xpose.msra.mxu0 0
        %5927 = vmatprep.subr.bf16.mxu0 0
        %5928 = vmatpush1.bf16.xpose.msra.mxu0 0
        %5929 = vmatprep.subr.bf16.mxu0 0
        %5930 = vmatpush1.bf16.xpose.msra.mxu0 0
        %5931 = vmatprep.subr.bf16.mxu0 0
        %5932 = vmatpush1.bf16.xpose.msra.mxu0 0
        %5933 = vmatprep.mubr.bf16.mxu0 %v5610
        %5934 = vmatmul.mubr.bf16.gmra.mrb[0].mxu0 %v5609
        %v5935 = vpop.f32.mrb[0].mxu0
        %v5936 = vadd.f32 %v5896, %v5935
        %v5937 = vpop.f32.mrb[0].mxu0
        %v5938 = vpop.f32.mrb[0].mxu0
        %v5939 = vpop.f32.mrb[0].mxu0
        %5940 = vdwg.mxu0
        %5941 = vmatprep.subr.bf16.mxu0 %v3848
        %5942 = vmatpush1.bf16.xpose.msra.mxu0 %v3847
        %5943 = vmatprep.subr.bf16.mxu0 %v3912
        %5944 = vmatpush1.bf16.xpose.msra.mxu0 %v3911
        %5945 = vmatprep.subr.bf16.mxu0 %v3976
        %5946 = vmatpush1.bf16.xpose.msra.mxu0 %v3975
        %5947 = vmatprep.subr.bf16.mxu0 %v4040
        %5948 = vmatpush1.bf16.xpose.msra.mxu0 %v4039
        %5949 = vmatprep.subr.bf16.mxu0 %v4104
        %5950 = vmatpush1.bf16.xpose.msra.mxu0 %v4103
        %5951 = vmatprep.subr.bf16.mxu0 %v4168
        %5952 = vmatpush1.bf16.xpose.msra.mxu0 %v4167
        %5953 = vmatprep.subr.bf16.mxu0 %v4232
        %5954 = vmatpush1.bf16.xpose.msra.mxu0 %v4231
        %5955 = vmatprep.subr.bf16.mxu0 %v4296
        %5956 = vmatpush1.bf16.xpose.msra.mxu0 %v4295
        %5957 = vmatprep.subr.bf16.mxu0 0
        %5958 = vmatpush1.bf16.xpose.msra.mxu0 0
        %5959 = vmatprep.subr.bf16.mxu0 0
        %5960 = vmatpush1.bf16.xpose.msra.mxu0 0
        %5961 = vmatprep.subr.bf16.mxu0 0
        %5962 = vmatpush1.bf16.xpose.msra.mxu0 0
        %5963 = vmatprep.subr.bf16.mxu0 0
        %5964 = vmatpush1.bf16.xpose.msra.mxu0 0
        %5965 = vmatprep.subr.bf16.mxu0 0
        %5966 = vmatpush1.bf16.xpose.msra.mxu0 0
        %5967 = vmatprep.subr.bf16.mxu0 0
        %5968 = vmatpush1.bf16.xpose.msra.mxu0 0
        %5969 = vmatprep.subr.bf16.mxu0 0
        %5970 = vmatpush1.bf16.xpose.msra.mxu0 0
        %5971 = vmatprep.subr.bf16.mxu0 0
        %5972 = vmatpush1.bf16.xpose.msra.mxu0 0
        %5973 = vmatprep.mubr.bf16.mxu0 %v5612
        %5974 = vmatmul.mubr.bf16.gmra.mrb[0].mxu0 %v5611
        %v5975 = vpop.f32.mrb[0].mxu0
        %v5976 = vadd.f32 %v5936, %v5975
        %v5977 = vpop.f32.mrb[0].mxu0
        %v5978 = vpop.f32.mrb[0].mxu0
        %v5979 = vpop.f32.mrb[0].mxu0
        %5980 = vdwg.mxu0
        %5981 = vmatprep.subr.bf16.mxu0 %v3850
        %5982 = vmatpush1.bf16.xpose.msra.mxu0 %v3849
        %5983 = vmatprep.subr.bf16.mxu0 %v3914
        %5984 = vmatpush1.bf16.xpose.msra.mxu0 %v3913
        %5985 = vmatprep.subr.bf16.mxu0 %v3978
        %5986 = vmatpush1.bf16.xpose.msra.mxu0 %v3977
        %5987 = vmatprep.subr.bf16.mxu0 %v4042
        %5988 = vmatpush1.bf16.xpose.msra.mxu0 %v4041
        %5989 = vmatprep.subr.bf16.mxu0 %v4106
        %5990 = vmatpush1.bf16.xpose.msra.mxu0 %v4105
        %5991 = vmatprep.subr.bf16.mxu0 %v4170
        %5992 = vmatpush1.bf16.xpose.msra.mxu0 %v4169
        %5993 = vmatprep.subr.bf16.mxu0 %v4234
        %5994 = vmatpush1.bf16.xpose.msra.mxu0 %v4233
        %5995 = vmatprep.subr.bf16.mxu0 %v4298
        %5996 = vmatpush1.bf16.xpose.msra.mxu0 %v4297
        %5997 = vmatprep.subr.bf16.mxu0 0
        %5998 = vmatpush1.bf16.xpose.msra.mxu0 0
        %5999 = vmatprep.subr.bf16.mxu0 0
        %6000 = vmatpush1.bf16.xpose.msra.mxu0 0
        %6001 = vmatprep.subr.bf16.mxu0 0
        %6002 = vmatpush1.bf16.xpose.msra.mxu0 0
        %6003 = vmatprep.subr.bf16.mxu0 0
        %6004 = vmatpush1.bf16.xpose.msra.mxu0 0
        %6005 = vmatprep.subr.bf16.mxu0 0
        %6006 = vmatpush1.bf16.xpose.msra.mxu0 0
        %6007 = vmatprep.subr.bf16.mxu0 0
        %6008 = vmatpush1.bf16.xpose.msra.mxu0 0
        %6009 = vmatprep.subr.bf16.mxu0 0
        %6010 = vmatpush1.bf16.xpose.msra.mxu0 0
        %6011 = vmatprep.subr.bf16.mxu0 0
        %6012 = vmatpush1.bf16.xpose.msra.mxu0 0
        %6013 = vmatprep.mubr.bf16.mxu0 %v5614
        %6014 = vmatmul.mubr.bf16.gmra.mrb[0].mxu0 %v5613
        %v6015 = vpop.f32.mrb[0].mxu0
        %v6016 = vadd.f32 %v5976, %v6015
        %v6017 = vpop.f32.mrb[0].mxu0
        %v6018 = vpop.f32.mrb[0].mxu0
        %v6019 = vpop.f32.mrb[0].mxu0
        %6020 = vdwg.mxu0
        %6021 = vmatprep.subr.bf16.mxu0 %v3852
        %6022 = vmatpush1.bf16.xpose.msra.mxu0 %v3851
        %6023 = vmatprep.subr.bf16.mxu0 %v3916
        %6024 = vmatpush1.bf16.xpose.msra.mxu0 %v3915
        %6025 = vmatprep.subr.bf16.mxu0 %v3980
        %6026 = vmatpush1.bf16.xpose.msra.mxu0 %v3979
        %6027 = vmatprep.subr.bf16.mxu0 %v4044
        %6028 = vmatpush1.bf16.xpose.msra.mxu0 %v4043
        %6029 = vmatprep.subr.bf16.mxu0 %v4108
        %6030 = vmatpush1.bf16.xpose.msra.mxu0 %v4107
        %6031 = vmatprep.subr.bf16.mxu0 %v4172
        %6032 = vmatpush1.bf16.xpose.msra.mxu0 %v4171
        %6033 = vmatprep.subr.bf16.mxu0 %v4236
        %6034 = vmatpush1.bf16.xpose.msra.mxu0 %v4235
        %6035 = vmatprep.subr.bf16.mxu0 %v4300
        %6036 = vmatpush1.bf16.xpose.msra.mxu0 %v4299
        %6037 = vmatprep.subr.bf16.mxu0 0
        %6038 = vmatpush1.bf16.xpose.msra.mxu0 0
        %6039 = vmatprep.subr.bf16.mxu0 0
        %6040 = vmatpush1.bf16.xpose.msra.mxu0 0
        %6041 = vmatprep.subr.bf16.mxu0 0
        %6042 = vmatpush1.bf16.xpose.msra.mxu0 0
        %6043 = vmatprep.subr.bf16.mxu0 0
        %6044 = vmatpush1.bf16.xpose.msra.mxu0 0
        %6045 = vmatprep.subr.bf16.mxu0 0
        %6046 = vmatpush1.bf16.xpose.msra.mxu0 0
        %6047 = vmatprep.subr.bf16.mxu0 0
        %6048 = vmatpush1.bf16.xpose.msra.mxu0 0
        %6049 = vmatprep.subr.bf16.mxu0 0
        %6050 = vmatpush1.bf16.xpose.msra.mxu0 0
        %6051 = vmatprep.subr.bf16.mxu0 0
        %6052 = vmatpush1.bf16.xpose.msra.mxu0 0
        %6053 = vmatprep.mubr.bf16.mxu0 %v5616
        %6054 = vmatmul.mubr.bf16.gmra.mrb[0].mxu0 %v5615
        %v6055 = vpop.f32.mrb[0].mxu0
        %v6056 = vadd.f32 %v6016, %v6055
        %v6057 = vpop.f32.mrb[0].mxu0
        %v6058 = vpop.f32.mrb[0].mxu0
        %v6059 = vpop.f32.mrb[0].mxu0
        %6060 = vdwg.mxu0
        %6061 = vmatprep.subr.bf16.mxu0 %v3854
        %6062 = vmatpush1.bf16.xpose.msra.mxu0 %v3853
        %6063 = vmatprep.subr.bf16.mxu0 %v3918
        %6064 = vmatpush1.bf16.xpose.msra.mxu0 %v3917
        %6065 = vmatprep.subr.bf16.mxu0 %v3982
        %6066 = vmatpush1.bf16.xpose.msra.mxu0 %v3981
        %6067 = vmatprep.subr.bf16.mxu0 %v4046
        %6068 = vmatpush1.bf16.xpose.msra.mxu0 %v4045
        %6069 = vmatprep.subr.bf16.mxu0 %v4110
        %6070 = vmatpush1.bf16.xpose.msra.mxu0 %v4109
        %6071 = vmatprep.subr.bf16.mxu0 %v4174
        %6072 = vmatpush1.bf16.xpose.msra.mxu0 %v4173
        %6073 = vmatprep.subr.bf16.mxu0 %v4238
        %6074 = vmatpush1.bf16.xpose.msra.mxu0 %v4237
        %6075 = vmatprep.subr.bf16.mxu0 %v4302
        %6076 = vmatpush1.bf16.xpose.msra.mxu0 %v4301
        %6077 = vmatprep.subr.bf16.mxu0 0
        %6078 = vmatpush1.bf16.xpose.msra.mxu0 0
        %6079 = vmatprep.subr.bf16.mxu0 0
        %6080 = vmatpush1.bf16.xpose.msra.mxu0 0
        %6081 = vmatprep.subr.bf16.mxu0 0
        %6082 = vmatpush1.bf16.xpose.msra.mxu0 0
        %6083 = vmatprep.subr.bf16.mxu0 0
        %6084 = vmatpush1.bf16.xpose.msra.mxu0 0
        %6085 = vmatprep.subr.bf16.mxu0 0
        %6086 = vmatpush1.bf16.xpose.msra.mxu0 0
        %6087 = vmatprep.subr.bf16.mxu0 0
        %6088 = vmatpush1.bf16.xpose.msra.mxu0 0
        %6089 = vmatprep.subr.bf16.mxu0 0
        %6090 = vmatpush1.bf16.xpose.msra.mxu0 0
        %6091 = vmatprep.subr.bf16.mxu0 0
        %6092 = vmatpush1.bf16.xpose.msra.mxu0 0
        %6093 = vmatprep.mubr.bf16.mxu0 %v5618
        %6094 = vmatmul.mubr.bf16.gmra.mrb[0].mxu0 %v5617
        %v6095 = vpop.f32.mrb[0].mxu0
        %v6096 = vadd.f32 %v6056, %v6095
        %v6097 = vpop.f32.mrb[0].mxu0
        %v6098 = vpop.f32.mrb[0].mxu0
        %v6099 = vpop.f32.mrb[0].mxu0
        %6100 = vdwg.mxu0
        %6101 = vmatprep.subr.bf16.mxu0 %v3856
        %6102 = vmatpush1.bf16.xpose.msra.mxu0 %v3855
        %6103 = vmatprep.subr.bf16.mxu0 %v3920
        %6104 = vmatpush1.bf16.xpose.msra.mxu0 %v3919
        %6105 = vmatprep.subr.bf16.mxu0 %v3984
        %6106 = vmatpush1.bf16.xpose.msra.mxu0 %v3983
        %6107 = vmatprep.subr.bf16.mxu0 %v4048
        %6108 = vmatpush1.bf16.xpose.msra.mxu0 %v4047
        %6109 = vmatprep.subr.bf16.mxu0 %v4112
        %6110 = vmatpush1.bf16.xpose.msra.mxu0 %v4111
        %6111 = vmatprep.subr.bf16.mxu0 %v4176
        %6112 = vmatpush1.bf16.xpose.msra.mxu0 %v4175
        %6113 = vmatprep.subr.bf16.mxu0 %v4240
        %6114 = vmatpush1.bf16.xpose.msra.mxu0 %v4239
        %6115 = vmatprep.subr.bf16.mxu0 %v4304
        %6116 = vmatpush1.bf16.xpose.msra.mxu0 %v4303
        %6117 = vmatprep.subr.bf16.mxu0 0
        %6118 = vmatpush1.bf16.xpose.msra.mxu0 0
        %6119 = vmatprep.subr.bf16.mxu0 0
        %6120 = vmatpush1.bf16.xpose.msra.mxu0 0
        %6121 = vmatprep.subr.bf16.mxu0 0
        %6122 = vmatpush1.bf16.xpose.msra.mxu0 0
        %6123 = vmatprep.subr.bf16.mxu0 0
        %6124 = vmatpush1.bf16.xpose.msra.mxu0 0
        %6125 = vmatprep.subr.bf16.mxu0 0
        %6126 = vmatpush1.bf16.xpose.msra.mxu0 0
        %6127 = vmatprep.subr.bf16.mxu0 0
        %6128 = vmatpush1.bf16.xpose.msra.mxu0 0
        %6129 = vmatprep.subr.bf16.mxu0 0
        %6130 = vmatpush1.bf16.xpose.msra.mxu0 0
        %6131 = vmatprep.subr.bf16.mxu0 0
        %6132 = vmatpush1.bf16.xpose.msra.mxu0 0
        %6133 = vmatprep.mubr.bf16.mxu0 %v5620
        %6134 = vmatmul.mubr.bf16.gmra.mrb[0].mxu0 %v5619
        %v6135 = vpop.f32.mrb[0].mxu0
        %v6136 = vadd.f32 %v6096, %v6135
        %v6137 = vpop.f32.mrb[0].mxu0
        %v6138 = vpop.f32.mrb[0].mxu0
        %v6139 = vpop.f32.mrb[0].mxu0
        %6140 = vdwg.mxu0
        %6141 = vmatprep.subr.bf16.mxu0 %v3858
        %6142 = vmatpush1.bf16.xpose.msra.mxu0 %v3857
        %6143 = vmatprep.subr.bf16.mxu0 %v3922
        %6144 = vmatpush1.bf16.xpose.msra.mxu0 %v3921
        %6145 = vmatprep.subr.bf16.mxu0 %v3986
        %6146 = vmatpush1.bf16.xpose.msra.mxu0 %v3985
        %6147 = vmatprep.subr.bf16.mxu0 %v4050
        %6148 = vmatpush1.bf16.xpose.msra.mxu0 %v4049
        %6149 = vmatprep.subr.bf16.mxu0 %v4114
        %6150 = vmatpush1.bf16.xpose.msra.mxu0 %v4113
        %6151 = vmatprep.subr.bf16.mxu0 %v4178
        %6152 = vmatpush1.bf16.xpose.msra.mxu0 %v4177
        %6153 = vmatprep.subr.bf16.mxu0 %v4242
        %6154 = vmatpush1.bf16.xpose.msra.mxu0 %v4241
        %6155 = vmatprep.subr.bf16.mxu0 %v4306
        %6156 = vmatpush1.bf16.xpose.msra.mxu0 %v4305
        %6157 = vmatprep.subr.bf16.mxu0 0
        %6158 = vmatpush1.bf16.xpose.msra.mxu0 0
        %6159 = vmatprep.subr.bf16.mxu0 0
        %6160 = vmatpush1.bf16.xpose.msra.mxu0 0
        %6161 = vmatprep.subr.bf16.mxu0 0
        %6162 = vmatpush1.bf16.xpose.msra.mxu0 0
        %6163 = vmatprep.subr.bf16.mxu0 0
        %6164 = vmatpush1.bf16.xpose.msra.mxu0 0
        %6165 = vmatprep.subr.bf16.mxu0 0
        %6166 = vmatpush1.bf16.xpose.msra.mxu0 0
        %6167 = vmatprep.subr.bf16.mxu0 0
        %6168 = vmatpush1.bf16.xpose.msra.mxu0 0
        %6169 = vmatprep.subr.bf16.mxu0 0
        %6170 = vmatpush1.bf16.xpose.msra.mxu0 0
        %6171 = vmatprep.subr.bf16.mxu0 0
        %6172 = vmatpush1.bf16.xpose.msra.mxu0 0
        %6173 = vmatprep.mubr.bf16.mxu0 %v5622
        %6174 = vmatmul.mubr.bf16.gmra.mrb[0].mxu0 %v5621
        %v6175 = vpop.f32.mrb[0].mxu0
        %v6176 = vadd.f32 %v6136, %v6175
        %v6177 = vpop.f32.mrb[0].mxu0
        %v6178 = vpop.f32.mrb[0].mxu0
        %v6179 = vpop.f32.mrb[0].mxu0
        %6180 = vdwg.mxu0
        %6181 = vmatprep.subr.bf16.mxu0 %v3860
        %6182 = vmatpush1.bf16.xpose.msra.mxu0 %v3859
        %6183 = vmatprep.subr.bf16.mxu0 %v3924
        %6184 = vmatpush1.bf16.xpose.msra.mxu0 %v3923
        %6185 = vmatprep.subr.bf16.mxu0 %v3988
        %6186 = vmatpush1.bf16.xpose.msra.mxu0 %v3987
        %6187 = vmatprep.subr.bf16.mxu0 %v4052
        %6188 = vmatpush1.bf16.xpose.msra.mxu0 %v4051
        %6189 = vmatprep.subr.bf16.mxu0 %v4116
        %6190 = vmatpush1.bf16.xpose.msra.mxu0 %v4115
        %6191 = vmatprep.subr.bf16.mxu0 %v4180
        %6192 = vmatpush1.bf16.xpose.msra.mxu0 %v4179
        %6193 = vmatprep.subr.bf16.mxu0 %v4244
        %6194 = vmatpush1.bf16.xpose.msra.mxu0 %v4243
        %6195 = vmatprep.subr.bf16.mxu0 %v4308
        %6196 = vmatpush1.bf16.xpose.msra.mxu0 %v4307
        %6197 = vmatprep.subr.bf16.mxu0 0
        %6198 = vmatpush1.bf16.xpose.msra.mxu0 0
        %6199 = vmatprep.subr.bf16.mxu0 0
        %6200 = vmatpush1.bf16.xpose.msra.mxu0 0
        %6201 = vmatprep.subr.bf16.mxu0 0
        %6202 = vmatpush1.bf16.xpose.msra.mxu0 0
        %6203 = vmatprep.subr.bf16.mxu0 0
        %6204 = vmatpush1.bf16.xpose.msra.mxu0 0
        %6205 = vmatprep.subr.bf16.mxu0 0
        %6206 = vmatpush1.bf16.xpose.msra.mxu0 0
        %6207 = vmatprep.subr.bf16.mxu0 0
        %6208 = vmatpush1.bf16.xpose.msra.mxu0 0
        %6209 = vmatprep.subr.bf16.mxu0 0
        %6210 = vmatpush1.bf16.xpose.msra.mxu0 0
        %6211 = vmatprep.subr.bf16.mxu0 0
        %6212 = vmatpush1.bf16.xpose.msra.mxu0 0
        %6213 = vmatprep.mubr.bf16.mxu0 %v5624
        %6214 = vmatmul.mubr.bf16.gmra.mrb[0].mxu0 %v5623
        %v6215 = vpop.f32.mrb[0].mxu0
        %v6216 = vadd.f32 %v6176, %v6215
        %v6217 = vpop.f32.mrb[0].mxu0
        %v6218 = vpop.f32.mrb[0].mxu0
        %v6219 = vpop.f32.mrb[0].mxu0
        %6220 = vdwg.mxu0
        %6221 = vmatprep.subr.bf16.mxu0 %v3862
        %6222 = vmatpush1.bf16.xpose.msra.mxu0 %v3861
        %6223 = vmatprep.subr.bf16.mxu0 %v3926
        %6224 = vmatpush1.bf16.xpose.msra.mxu0 %v3925
        %6225 = vmatprep.subr.bf16.mxu0 %v3990
        %6226 = vmatpush1.bf16.xpose.msra.mxu0 %v3989
        %6227 = vmatprep.subr.bf16.mxu0 %v4054
        %6228 = vmatpush1.bf16.xpose.msra.mxu0 %v4053
        %6229 = vmatprep.subr.bf16.mxu0 %v4118
        %6230 = vmatpush1.bf16.xpose.msra.mxu0 %v4117
        %6231 = vmatprep.subr.bf16.mxu0 %v4182
        %6232 = vmatpush1.bf16.xpose.msra.mxu0 %v4181
        %6233 = vmatprep.subr.bf16.mxu0 %v4246
        %6234 = vmatpush1.bf16.xpose.msra.mxu0 %v4245
        %6235 = vmatprep.subr.bf16.mxu0 %v4310
        %6236 = vmatpush1.bf16.xpose.msra.mxu0 %v4309
        %6237 = vmatprep.subr.bf16.mxu0 0
        %6238 = vmatpush1.bf16.xpose.msra.mxu0 0
        %6239 = vmatprep.subr.bf16.mxu0 0
        %6240 = vmatpush1.bf16.xpose.msra.mxu0 0
        %6241 = vmatprep.subr.bf16.mxu0 0
        %6242 = vmatpush1.bf16.xpose.msra.mxu0 0
        %6243 = vmatprep.subr.bf16.mxu0 0
        %6244 = vmatpush1.bf16.xpose.msra.mxu0 0
        %6245 = vmatprep.subr.bf16.mxu0 0
        %6246 = vmatpush1.bf16.xpose.msra.mxu0 0
        %6247 = vmatprep.subr.bf16.mxu0 0
        %6248 = vmatpush1.bf16.xpose.msra.mxu0 0
        %6249 = vmatprep.subr.bf16.mxu0 0
        %6250 = vmatpush1.bf16.xpose.msra.mxu0 0
        %6251 = vmatprep.subr.bf16.mxu0 0
        %6252 = vmatpush1.bf16.xpose.msra.mxu0 0
        %6253 = vmatprep.mubr.bf16.mxu0 %v5626
        %6254 = vmatmul.mubr.bf16.gmra.mrb[0].mxu0 %v5625
        %v6255 = vpop.f32.mrb[0].mxu0
        %v6256 = vadd.f32 %v6216, %v6255
        %v6257 = vpop.f32.mrb[0].mxu0
        %v6258 = vpop.f32.mrb[0].mxu0
        %v6259 = vpop.f32.mrb[0].mxu0
        %6260 = vdwg.mxu0
        %6261 = vmatprep.subr.bf16.mxu0 %v3864
        %6262 = vmatpush1.bf16.xpose.msra.mxu0 %v3863
        %6263 = vmatprep.subr.bf16.mxu0 %v3928
        %6264 = vmatpush1.bf16.xpose.msra.mxu0 %v3927
        %6265 = vmatprep.subr.bf16.mxu0 %v3992
        %6266 = vmatpush1.bf16.xpose.msra.mxu0 %v3991
        %6267 = vmatprep.subr.bf16.mxu0 %v4056
        %6268 = vmatpush1.bf16.xpose.msra.mxu0 %v4055
        %6269 = vmatprep.subr.bf16.mxu0 %v4120
        %6270 = vmatpush1.bf16.xpose.msra.mxu0 %v4119
        %6271 = vmatprep.subr.bf16.mxu0 %v4184
        %6272 = vmatpush1.bf16.xpose.msra.mxu0 %v4183
        %6273 = vmatprep.subr.bf16.mxu0 %v4248
        %6274 = vmatpush1.bf16.xpose.msra.mxu0 %v4247
        %6275 = vmatprep.subr.bf16.mxu0 %v4312
        %6276 = vmatpush1.bf16.xpose.msra.mxu0 %v4311
        %6277 = vmatprep.subr.bf16.mxu0 0
        %6278 = vmatpush1.bf16.xpose.msra.mxu0 0
        %6279 = vmatprep.subr.bf16.mxu0 0
        %6280 = vmatpush1.bf16.xpose.msra.mxu0 0
        %6281 = vmatprep.subr.bf16.mxu0 0
        %6282 = vmatpush1.bf16.xpose.msra.mxu0 0
        %6283 = vmatprep.subr.bf16.mxu0 0
        %6284 = vmatpush1.bf16.xpose.msra.mxu0 0
        %6285 = vmatprep.subr.bf16.mxu0 0
        %6286 = vmatpush1.bf16.xpose.msra.mxu0 0
        %6287 = vmatprep.subr.bf16.mxu0 0
        %6288 = vmatpush1.bf16.xpose.msra.mxu0 0
        %6289 = vmatprep.subr.bf16.mxu0 0
        %6290 = vmatpush1.bf16.xpose.msra.mxu0 0
        %6291 = vmatprep.subr.bf16.mxu0 0
        %6292 = vmatpush1.bf16.xpose.msra.mxu0 0
        %6293 = vmatprep.mubr.bf16.mxu0 %v5628
        %6294 = vmatmul.mubr.bf16.gmra.mrb[0].mxu0 %v5627
        %v6295 = vpop.f32.mrb[0].mxu0
        %v6296 = vadd.f32 %v6256, %v6295
        %v6297 = vpop.f32.mrb[0].mxu0
        %v6298 = vpop.f32.mrb[0].mxu0
        %v6299 = vpop.f32.mrb[0].mxu0
        %6300 = vdwg.mxu0
        %6301 = vmatprep.subr.bf16.mxu0 %v3866
        %6302 = vmatpush1.bf16.xpose.msra.mxu0 %v3865
        %6303 = vmatprep.subr.bf16.mxu0 %v3930
        %6304 = vmatpush1.bf16.xpose.msra.mxu0 %v3929
        %6305 = vmatprep.subr.bf16.mxu0 %v3994
        %6306 = vmatpush1.bf16.xpose.msra.mxu0 %v3993
        %6307 = vmatprep.subr.bf16.mxu0 %v4058
        %6308 = vmatpush1.bf16.xpose.msra.mxu0 %v4057
        %6309 = vmatprep.subr.bf16.mxu0 %v4122
        %6310 = vmatpush1.bf16.xpose.msra.mxu0 %v4121
        %6311 = vmatprep.subr.bf16.mxu0 %v4186
        %6312 = vmatpush1.bf16.xpose.msra.mxu0 %v4185
        %6313 = vmatprep.subr.bf16.mxu0 %v4250
        %6314 = vmatpush1.bf16.xpose.msra.mxu0 %v4249
        %6315 = vmatprep.subr.bf16.mxu0 %v4314
        %6316 = vmatpush1.bf16.xpose.msra.mxu0 %v4313
        %6317 = vmatprep.subr.bf16.mxu0 0
        %6318 = vmatpush1.bf16.xpose.msra.mxu0 0
        %6319 = vmatprep.subr.bf16.mxu0 0
        %6320 = vmatpush1.bf16.xpose.msra.mxu0 0
        %6321 = vmatprep.subr.bf16.mxu0 0
        %6322 = vmatpush1.bf16.xpose.msra.mxu0 0
        %6323 = vmatprep.subr.bf16.mxu0 0
        %6324 = vmatpush1.bf16.xpose.msra.mxu0 0
        %6325 = vmatprep.subr.bf16.mxu0 0
        %6326 = vmatpush1.bf16.xpose.msra.mxu0 0
        %6327 = vmatprep.subr.bf16.mxu0 0
        %6328 = vmatpush1.bf16.xpose.msra.mxu0 0
        %6329 = vmatprep.subr.bf16.mxu0 0
        %6330 = vmatpush1.bf16.xpose.msra.mxu0 0
        %6331 = vmatprep.subr.bf16.mxu0 0
        %6332 = vmatpush1.bf16.xpose.msra.mxu0 0
        %6333 = vmatprep.mubr.bf16.mxu0 %v5630
        %6334 = vmatmul.mubr.bf16.gmra.mrb[0].mxu0 %v5629
        %v6335 = vpop.f32.mrb[0].mxu0
        %v6336 = vadd.f32 %v6296, %v6335
        %v6337 = vpop.f32.mrb[0].mxu0
        %v6338 = vpop.f32.mrb[0].mxu0
        %v6339 = vpop.f32.mrb[0].mxu0
        %6340 = vdwg.mxu0
        %6341 = vmatprep.subr.bf16.mxu0 %v3868
        %6342 = vmatpush1.bf16.xpose.msra.mxu0 %v3867
        %6343 = vmatprep.subr.bf16.mxu0 %v3932
        %6344 = vmatpush1.bf16.xpose.msra.mxu0 %v3931
        %6345 = vmatprep.subr.bf16.mxu0 %v3996
        %6346 = vmatpush1.bf16.xpose.msra.mxu0 %v3995
        %6347 = vmatprep.subr.bf16.mxu0 %v4060
        %6348 = vmatpush1.bf16.xpose.msra.mxu0 %v4059
        %6349 = vmatprep.subr.bf16.mxu0 %v4124
        %6350 = vmatpush1.bf16.xpose.msra.mxu0 %v4123
        %6351 = vmatprep.subr.bf16.mxu0 %v4188
        %6352 = vmatpush1.bf16.xpose.msra.mxu0 %v4187
        %6353 = vmatprep.subr.bf16.mxu0 %v4252
        %6354 = vmatpush1.bf16.xpose.msra.mxu0 %v4251
        %6355 = vmatprep.subr.bf16.mxu0 %v4316
        %6356 = vmatpush1.bf16.xpose.msra.mxu0 %v4315
        %6357 = vmatprep.subr.bf16.mxu0 0
        %6358 = vmatpush1.bf16.xpose.msra.mxu0 0
        %6359 = vmatprep.subr.bf16.mxu0 0
        %6360 = vmatpush1.bf16.xpose.msra.mxu0 0
        %6361 = vmatprep.subr.bf16.mxu0 0
        %6362 = vmatpush1.bf16.xpose.msra.mxu0 0
        %6363 = vmatprep.subr.bf16.mxu0 0
        %6364 = vmatpush1.bf16.xpose.msra.mxu0 0
        %6365 = vmatprep.subr.bf16.mxu0 0
        %6366 = vmatpush1.bf16.xpose.msra.mxu0 0
        %6367 = vmatprep.subr.bf16.mxu0 0
        %6368 = vmatpush1.bf16.xpose.msra.mxu0 0
        %6369 = vmatprep.subr.bf16.mxu0 0
        %6370 = vmatpush1.bf16.xpose.msra.mxu0 0
        %6371 = vmatprep.subr.bf16.mxu0 0
        %6372 = vmatpush1.bf16.xpose.msra.mxu0 0
        %6373 = vmatprep.mubr.bf16.mxu0 %v5632
        %6374 = vmatmul.mubr.bf16.gmra.mrb[0].mxu0 %v5631
        %v6375 = vpop.f32.mrb[0].mxu0
        %v6376 = vadd.f32 %v6336, %v6375
        %v6377 = vpop.f32.mrb[0].mxu0
        %v6378 = vpop.f32.mrb[0].mxu0
        %v6379 = vpop.f32.mrb[0].mxu0
        %6380 = vdwg.mxu0
        %6381 = vmatprep.subr.bf16.mxu0 %v3870
        %6382 = vmatpush1.bf16.xpose.msra.mxu0 %v3869
        %6383 = vmatprep.subr.bf16.mxu0 %v3934
        %6384 = vmatpush1.bf16.xpose.msra.mxu0 %v3933
        %6385 = vmatprep.subr.bf16.mxu0 %v3998
        %6386 = vmatpush1.bf16.xpose.msra.mxu0 %v3997
        %6387 = vmatprep.subr.bf16.mxu0 %v4062
        %6388 = vmatpush1.bf16.xpose.msra.mxu0 %v4061
        %6389 = vmatprep.subr.bf16.mxu0 %v4126
        %6390 = vmatpush1.bf16.xpose.msra.mxu0 %v4125
        %6391 = vmatprep.subr.bf16.mxu0 %v4190
        %6392 = vmatpush1.bf16.xpose.msra.mxu0 %v4189
        %6393 = vmatprep.subr.bf16.mxu0 %v4254
        %6394 = vmatpush1.bf16.xpose.msra.mxu0 %v4253
        %6395 = vmatprep.subr.bf16.mxu0 %v4318
        %6396 = vmatpush1.bf16.xpose.msra.mxu0 %v4317
        %6397 = vmatprep.subr.bf16.mxu0 0
        %6398 = vmatpush1.bf16.xpose.msra.mxu0 0
        %6399 = vmatprep.subr.bf16.mxu0 0
        %6400 = vmatpush1.bf16.xpose.msra.mxu0 0
        %6401 = vmatprep.subr.bf16.mxu0 0
        %6402 = vmatpush1.bf16.xpose.msra.mxu0 0
        %6403 = vmatprep.subr.bf16.mxu0 0
        %6404 = vmatpush1.bf16.xpose.msra.mxu0 0
        %6405 = vmatprep.subr.bf16.mxu0 0
        %6406 = vmatpush1.bf16.xpose.msra.mxu0 0
        %6407 = vmatprep.subr.bf16.mxu0 0
        %6408 = vmatpush1.bf16.xpose.msra.mxu0 0
        %6409 = vmatprep.subr.bf16.mxu0 0
        %6410 = vmatpush1.bf16.xpose.msra.mxu0 0
        %6411 = vmatprep.subr.bf16.mxu0 0
        %6412 = vmatpush1.bf16.xpose.msra.mxu0 0
        %6413 = vmatprep.mubr.bf16.mxu0 %v5634
        %6414 = vmatmul.mubr.bf16.gmra.mrb[0].mxu0 %v5633
        %v6415 = vpop.f32.mrb[0].mxu0
        %v6416 = vadd.f32 %v6376, %v6415
        %v6417 = vpop.f32.mrb[0].mxu0
        %v6418 = vpop.f32.mrb[0].mxu0
        %v6419 = vpop.f32.mrb[0].mxu0
        %6420 = vdwg.mxu0
        %6421 = vmatprep.subr.bf16.mxu0 %v3872
        %6422 = vmatpush1.bf16.xpose.msra.mxu0 %v3871
        %6423 = vmatprep.subr.bf16.mxu0 %v3936
        %6424 = vmatpush1.bf16.xpose.msra.mxu0 %v3935
        %6425 = vmatprep.subr.bf16.mxu0 %v4000
        %6426 = vmatpush1.bf16.xpose.msra.mxu0 %v3999
        %6427 = vmatprep.subr.bf16.mxu0 %v4064
        %6428 = vmatpush1.bf16.xpose.msra.mxu0 %v4063
        %6429 = vmatprep.subr.bf16.mxu0 %v4128
        %6430 = vmatpush1.bf16.xpose.msra.mxu0 %v4127
        %6431 = vmatprep.subr.bf16.mxu0 %v4192
        %6432 = vmatpush1.bf16.xpose.msra.mxu0 %v4191
        %6433 = vmatprep.subr.bf16.mxu0 %v4256
        %6434 = vmatpush1.bf16.xpose.msra.mxu0 %v4255
        %6435 = vmatprep.subr.bf16.mxu0 %v4320
        %6436 = vmatpush1.bf16.xpose.msra.mxu0 %v4319
        %6437 = vmatprep.subr.bf16.mxu0 0
        %6438 = vmatpush1.bf16.xpose.msra.mxu0 0
        %6439 = vmatprep.subr.bf16.mxu0 0
        %6440 = vmatpush1.bf16.xpose.msra.mxu0 0
        %6441 = vmatprep.subr.bf16.mxu0 0
        %6442 = vmatpush1.bf16.xpose.msra.mxu0 0
        %6443 = vmatprep.subr.bf16.mxu0 0
        %6444 = vmatpush1.bf16.xpose.msra.mxu0 0
        %6445 = vmatprep.subr.bf16.mxu0 0
        %6446 = vmatpush1.bf16.xpose.msra.mxu0 0
        %6447 = vmatprep.subr.bf16.mxu0 0
        %6448 = vmatpush1.bf16.xpose.msra.mxu0 0
        %6449 = vmatprep.subr.bf16.mxu0 0
        %6450 = vmatpush1.bf16.xpose.msra.mxu0 0
        %6451 = vmatprep.subr.bf16.mxu0 0
        %6452 = vmatpush1.bf16.xpose.msra.mxu0 0
        %6453 = vmatprep.mubr.bf16.mxu0 %v5636
        %6454 = vmatmul.mubr.bf16.gmra.mrb[0].mxu0 %v5635
        %v6455 = vpop.f32.mrb[0].mxu0
        %v6456 = vadd.f32 %v6416, %v6455
        %v6457 = vpop.f32.mrb[0].mxu0
        %v6458 = vpop.f32.mrb[0].mxu0
        %v6459 = vpop.f32.mrb[0].mxu0
        %6460 = vdwg.mxu0
        %6461 = vmatprep.subr.bf16.mxu0 %v3874
        %6462 = vmatpush1.bf16.xpose.msra.mxu0 %v3873
        %6463 = vmatprep.subr.bf16.mxu0 %v3938
        %6464 = vmatpush1.bf16.xpose.msra.mxu0 %v3937
        %6465 = vmatprep.subr.bf16.mxu0 %v4002
        %6466 = vmatpush1.bf16.xpose.msra.mxu0 %v4001
        %6467 = vmatprep.subr.bf16.mxu0 %v4066
        %6468 = vmatpush1.bf16.xpose.msra.mxu0 %v4065
        %6469 = vmatprep.subr.bf16.mxu0 %v4130
        %6470 = vmatpush1.bf16.xpose.msra.mxu0 %v4129
        %6471 = vmatprep.subr.bf16.mxu0 %v4194
        %6472 = vmatpush1.bf16.xpose.msra.mxu0 %v4193
        %6473 = vmatprep.subr.bf16.mxu0 %v4258
        %6474 = vmatpush1.bf16.xpose.msra.mxu0 %v4257
        %6475 = vmatprep.subr.bf16.mxu0 %v4322
        %6476 = vmatpush1.bf16.xpose.msra.mxu0 %v4321
        %6477 = vmatprep.subr.bf16.mxu0 0
        %6478 = vmatpush1.bf16.xpose.msra.mxu0 0
        %6479 = vmatprep.subr.bf16.mxu0 0
        %6480 = vmatpush1.bf16.xpose.msra.mxu0 0
        %6481 = vmatprep.subr.bf16.mxu0 0
        %6482 = vmatpush1.bf16.xpose.msra.mxu0 0
        %6483 = vmatprep.subr.bf16.mxu0 0
        %6484 = vmatpush1.bf16.xpose.msra.mxu0 0
        %6485 = vmatprep.subr.bf16.mxu0 0
        %6486 = vmatpush1.bf16.xpose.msra.mxu0 0
        %6487 = vmatprep.subr.bf16.mxu0 0
        %6488 = vmatpush1.bf16.xpose.msra.mxu0 0
        %6489 = vmatprep.subr.bf16.mxu0 0
        %6490 = vmatpush1.bf16.xpose.msra.mxu0 0
        %6491 = vmatprep.subr.bf16.mxu0 0
        %6492 = vmatpush1.bf16.xpose.msra.mxu0 0
        %6493 = vmatprep.mubr.bf16.mxu0 %v5638
        %6494 = vmatmul.mubr.bf16.gmra.mrb[0].mxu0 %v5637
        %v6495 = vpop.f32.mrb[0].mxu0
        %v6496 = vadd.f32 %v6456, %v6495
        %v6497 = vpop.f32.mrb[0].mxu0
        %v6498 = vpop.f32.mrb[0].mxu0
        %v6499 = vpop.f32.mrb[0].mxu0
        %6500 = vdwg.mxu0
        %6501 = vmatprep.subr.bf16.mxu0 %v3876
        %6502 = vmatpush1.bf16.xpose.msra.mxu0 %v3875
        %6503 = vmatprep.subr.bf16.mxu0 %v3940
        %6504 = vmatpush1.bf16.xpose.msra.mxu0 %v3939
        %6505 = vmatprep.subr.bf16.mxu0 %v4004
        %6506 = vmatpush1.bf16.xpose.msra.mxu0 %v4003
        %6507 = vmatprep.subr.bf16.mxu0 %v4068
        %6508 = vmatpush1.bf16.xpose.msra.mxu0 %v4067
        %6509 = vmatprep.subr.bf16.mxu0 %v4132
        %6510 = vmatpush1.bf16.xpose.msra.mxu0 %v4131
        %6511 = vmatprep.subr.bf16.mxu0 %v4196
        %6512 = vmatpush1.bf16.xpose.msra.mxu0 %v4195
        %6513 = vmatprep.subr.bf16.mxu0 %v4260
        %6514 = vmatpush1.bf16.xpose.msra.mxu0 %v4259
        %6515 = vmatprep.subr.bf16.mxu0 %v4324
        %6516 = vmatpush1.bf16.xpose.msra.mxu0 %v4323
        %6517 = vmatprep.subr.bf16.mxu0 0
        %6518 = vmatpush1.bf16.xpose.msra.mxu0 0
        %6519 = vmatprep.subr.bf16.mxu0 0
        %6520 = vmatpush1.bf16.xpose.msra.mxu0 0
        %6521 = vmatprep.subr.bf16.mxu0 0
        %6522 = vmatpush1.bf16.xpose.msra.mxu0 0
        %6523 = vmatprep.subr.bf16.mxu0 0
        %6524 = vmatpush1.bf16.xpose.msra.mxu0 0
        %6525 = vmatprep.subr.bf16.mxu0 0
        %6526 = vmatpush1.bf16.xpose.msra.mxu0 0
        %6527 = vmatprep.subr.bf16.mxu0 0
        %6528 = vmatpush1.bf16.xpose.msra.mxu0 0
        %6529 = vmatprep.subr.bf16.mxu0 0
        %6530 = vmatpush1.bf16.xpose.msra.mxu0 0
        %6531 = vmatprep.subr.bf16.mxu0 0
        %6532 = vmatpush1.bf16.xpose.msra.mxu0 0
        %6533 = vmatprep.mubr.bf16.mxu0 %v5640
        %6534 = vmatmul.mubr.bf16.gmra.mrb[0].mxu0 %v5639
        %v6535 = vpop.f32.mrb[0].mxu0
        %v6536 = vadd.f32 %v6496, %v6535
        %v6537 = vpop.f32.mrb[0].mxu0
        %v6538 = vpop.f32.mrb[0].mxu0
        %v6539 = vpop.f32.mrb[0].mxu0
        %6540 = vdwg.mxu0
        %6541 = vmatprep.subr.bf16.mxu0 %v3878
        %6542 = vmatpush1.bf16.xpose.msra.mxu0 %v3877
        %6543 = vmatprep.subr.bf16.mxu0 %v3942
        %6544 = vmatpush1.bf16.xpose.msra.mxu0 %v3941
        %6545 = vmatprep.subr.bf16.mxu0 %v4006
        %6546 = vmatpush1.bf16.xpose.msra.mxu0 %v4005
        %6547 = vmatprep.subr.bf16.mxu0 %v4070
        %6548 = vmatpush1.bf16.xpose.msra.mxu0 %v4069
        %6549 = vmatprep.subr.bf16.mxu0 %v4134
        %6550 = vmatpush1.bf16.xpose.msra.mxu0 %v4133
        %6551 = vmatprep.subr.bf16.mxu0 %v4198
        %6552 = vmatpush1.bf16.xpose.msra.mxu0 %v4197
        %6553 = vmatprep.subr.bf16.mxu0 %v4262
        %6554 = vmatpush1.bf16.xpose.msra.mxu0 %v4261
        %6555 = vmatprep.subr.bf16.mxu0 %v4326
        %6556 = vmatpush1.bf16.xpose.msra.mxu0 %v4325
        %6557 = vmatprep.subr.bf16.mxu0 0
        %6558 = vmatpush1.bf16.xpose.msra.mxu0 0
        %6559 = vmatprep.subr.bf16.mxu0 0
        %6560 = vmatpush1.bf16.xpose.msra.mxu0 0
        %6561 = vmatprep.subr.bf16.mxu0 0
        %6562 = vmatpush1.bf16.xpose.msra.mxu0 0
        %6563 = vmatprep.subr.bf16.mxu0 0
        %6564 = vmatpush1.bf16.xpose.msra.mxu0 0
        %6565 = vmatprep.subr.bf16.mxu0 0
        %6566 = vmatpush1.bf16.xpose.msra.mxu0 0
        %6567 = vmatprep.subr.bf16.mxu0 0
        %6568 = vmatpush1.bf16.xpose.msra.mxu0 0
        %6569 = vmatprep.subr.bf16.mxu0 0
        %6570 = vmatpush1.bf16.xpose.msra.mxu0 0
        %6571 = vmatprep.subr.bf16.mxu0 0
        %6572 = vmatpush1.bf16.xpose.msra.mxu0 0
        %6573 = vmatprep.mubr.bf16.mxu0 %v5642
        %6574 = vmatmul.mubr.bf16.gmra.mrb[0].mxu0 %v5641
        %v6575 = vpop.f32.mrb[0].mxu0
        %v6576 = vadd.f32 %v6536, %v6575
        %v6577 = vpop.f32.mrb[0].mxu0
        %v6578 = vpop.f32.mrb[0].mxu0
        %v6579 = vpop.f32.mrb[0].mxu0
        %6580 = vdwg.mxu0
        %6581 = vmatprep.subr.bf16.mxu0 %v3880
        %6582 = vmatpush1.bf16.xpose.msra.mxu0 %v3879
        %6583 = vmatprep.subr.bf16.mxu0 %v3944
        %6584 = vmatpush1.bf16.xpose.msra.mxu0 %v3943
        %6585 = vmatprep.subr.bf16.mxu0 %v4008
        %6586 = vmatpush1.bf16.xpose.msra.mxu0 %v4007
        %6587 = vmatprep.subr.bf16.mxu0 %v4072
        %6588 = vmatpush1.bf16.xpose.msra.mxu0 %v4071
        %6589 = vmatprep.subr.bf16.mxu0 %v4136
        %6590 = vmatpush1.bf16.xpose.msra.mxu0 %v4135
        %6591 = vmatprep.subr.bf16.mxu0 %v4200
        %6592 = vmatpush1.bf16.xpose.msra.mxu0 %v4199
        %6593 = vmatprep.subr.bf16.mxu0 %v4264
        %6594 = vmatpush1.bf16.xpose.msra.mxu0 %v4263
        %6595 = vmatprep.subr.bf16.mxu0 %v4328
        %6596 = vmatpush1.bf16.xpose.msra.mxu0 %v4327
        %6597 = vmatprep.subr.bf16.mxu0 0
        %6598 = vmatpush1.bf16.xpose.msra.mxu0 0
        %6599 = vmatprep.subr.bf16.mxu0 0
        %6600 = vmatpush1.bf16.xpose.msra.mxu0 0
        %6601 = vmatprep.subr.bf16.mxu0 0
        %6602 = vmatpush1.bf16.xpose.msra.mxu0 0
        %6603 = vmatprep.subr.bf16.mxu0 0
        %6604 = vmatpush1.bf16.xpose.msra.mxu0 0
        %6605 = vmatprep.subr.bf16.mxu0 0
        %6606 = vmatpush1.bf16.xpose.msra.mxu0 0
        %6607 = vmatprep.subr.bf16.mxu0 0
        %6608 = vmatpush1.bf16.xpose.msra.mxu0 0
        %6609 = vmatprep.subr.bf16.mxu0 0
        %6610 = vmatpush1.bf16.xpose.msra.mxu0 0
        %6611 = vmatprep.subr.bf16.mxu0 0
        %6612 = vmatpush1.bf16.xpose.msra.mxu0 0
        %6613 = vmatprep.mubr.bf16.mxu0 %v5644
        %6614 = vmatmul.mubr.bf16.gmra.mrb[0].mxu0 %v5643
        %v6615 = vpop.f32.mrb[0].mxu0
        %v6616 = vadd.f32 %v6576, %v6615
        %v6617 = vpop.f32.mrb[0].mxu0
        %v6618 = vpop.f32.mrb[0].mxu0
        %v6619 = vpop.f32.mrb[0].mxu0
        %6620 = vdwg.mxu0
        %6621 = vmatprep.subr.bf16.mxu0 %v3882
        %6622 = vmatpush1.bf16.xpose.msra.mxu0 %v3881
        %6623 = vmatprep.subr.bf16.mxu0 %v3946
        %6624 = vmatpush1.bf16.xpose.msra.mxu0 %v3945
        %6625 = vmatprep.subr.bf16.mxu0 %v4010
        %6626 = vmatpush1.bf16.xpose.msra.mxu0 %v4009
        %6627 = vmatprep.subr.bf16.mxu0 %v4074
        %6628 = vmatpush1.bf16.xpose.msra.mxu0 %v4073
        %6629 = vmatprep.subr.bf16.mxu0 %v4138
        %6630 = vmatpush1.bf16.xpose.msra.mxu0 %v4137
        %6631 = vmatprep.subr.bf16.mxu0 %v4202
        %6632 = vmatpush1.bf16.xpose.msra.mxu0 %v4201
        %6633 = vmatprep.subr.bf16.mxu0 %v4266
        %6634 = vmatpush1.bf16.xpose.msra.mxu0 %v4265
        %6635 = vmatprep.subr.bf16.mxu0 %v4330
        %6636 = vmatpush1.bf16.xpose.msra.mxu0 %v4329
        %6637 = vmatprep.subr.bf16.mxu0 0
        %6638 = vmatpush1.bf16.xpose.msra.mxu0 0
        %6639 = vmatprep.subr.bf16.mxu0 0
        %6640 = vmatpush1.bf16.xpose.msra.mxu0 0
        %6641 = vmatprep.subr.bf16.mxu0 0
        %6642 = vmatpush1.bf16.xpose.msra.mxu0 0
        %6643 = vmatprep.subr.bf16.mxu0 0
        %6644 = vmatpush1.bf16.xpose.msra.mxu0 0
        %6645 = vmatprep.subr.bf16.mxu0 0
        %6646 = vmatpush1.bf16.xpose.msra.mxu0 0
        %6647 = vmatprep.subr.bf16.mxu0 0
        %6648 = vmatpush1.bf16.xpose.msra.mxu0 0
        %6649 = vmatprep.subr.bf16.mxu0 0
        %6650 = vmatpush1.bf16.xpose.msra.mxu0 0
        %6651 = vmatprep.subr.bf16.mxu0 0
        %6652 = vmatpush1.bf16.xpose.msra.mxu0 0
        %6653 = vmatprep.mubr.bf16.mxu0 %v5646
        %6654 = vmatmul.mubr.bf16.gmra.mrb[0].mxu0 %v5645
        %v6655 = vpop.f32.mrb[0].mxu0
        %v6656 = vadd.f32 %v6616, %v6655
        %v6657 = vpop.f32.mrb[0].mxu0
        %v6658 = vpop.f32.mrb[0].mxu0
        %v6659 = vpop.f32.mrb[0].mxu0
        %6660 = vdwg.mxu0
        %6661 = vmatprep.subr.bf16.mxu0 %v3884
        %6662 = vmatpush1.bf16.xpose.msra.mxu0 %v3883
        %6663 = vmatprep.subr.bf16.mxu0 %v3948
        %6664 = vmatpush1.bf16.xpose.msra.mxu0 %v3947
        %6665 = vmatprep.subr.bf16.mxu0 %v4012
        %6666 = vmatpush1.bf16.xpose.msra.mxu0 %v4011
        %6667 = vmatprep.subr.bf16.mxu0 %v4076
        %6668 = vmatpush1.bf16.xpose.msra.mxu0 %v4075
        %6669 = vmatprep.subr.bf16.mxu0 %v4140
        %6670 = vmatpush1.bf16.xpose.msra.mxu0 %v4139
        %6671 = vmatprep.subr.bf16.mxu0 %v4204
        %6672 = vmatpush1.bf16.xpose.msra.mxu0 %v4203
        %6673 = vmatprep.subr.bf16.mxu0 %v4268
        %6674 = vmatpush1.bf16.xpose.msra.mxu0 %v4267
        %6675 = vmatprep.subr.bf16.mxu0 %v4332
        %6676 = vmatpush1.bf16.xpose.msra.mxu0 %v4331
        %6677 = vmatprep.subr.bf16.mxu0 0
        %6678 = vmatpush1.bf16.xpose.msra.mxu0 0
        %6679 = vmatprep.subr.bf16.mxu0 0
        %6680 = vmatpush1.bf16.xpose.msra.mxu0 0
        %6681 = vmatprep.subr.bf16.mxu0 0
        %6682 = vmatpush1.bf16.xpose.msra.mxu0 0
        %6683 = vmatprep.subr.bf16.mxu0 0
        %6684 = vmatpush1.bf16.xpose.msra.mxu0 0
        %6685 = vmatprep.subr.bf16.mxu0 0
        %6686 = vmatpush1.bf16.xpose.msra.mxu0 0
        %6687 = vmatprep.subr.bf16.mxu0 0
        %6688 = vmatpush1.bf16.xpose.msra.mxu0 0
        %6689 = vmatprep.subr.bf16.mxu0 0
        %6690 = vmatpush1.bf16.xpose.msra.mxu0 0
        %6691 = vmatprep.subr.bf16.mxu0 0
        %6692 = vmatpush1.bf16.xpose.msra.mxu0 0
        %6693 = vmatprep.mubr.bf16.mxu0 %v5648
        %6694 = vmatmul.mubr.bf16.gmra.mrb[0].mxu0 %v5647
        %v6695 = vpop.f32.mrb[0].mxu0
        %v6696 = vadd.f32 %v6656, %v6695
        %v6697 = vpop.f32.mrb[0].mxu0
        %v6698 = vpop.f32.mrb[0].mxu0
        %v6699 = vpop.f32.mrb[0].mxu0
        %6700 = vdwg.mxu0
        %6701 = vmatprep.subr.bf16.mxu0 %v3886
        %6702 = vmatpush1.bf16.xpose.msra.mxu0 %v3885
        %6703 = vmatprep.subr.bf16.mxu0 %v3950
        %6704 = vmatpush1.bf16.xpose.msra.mxu0 %v3949
        %6705 = vmatprep.subr.bf16.mxu0 %v4014
        %6706 = vmatpush1.bf16.xpose.msra.mxu0 %v4013
        %6707 = vmatprep.subr.bf16.mxu0 %v4078
        %6708 = vmatpush1.bf16.xpose.msra.mxu0 %v4077
        %6709 = vmatprep.subr.bf16.mxu0 %v4142
        %6710 = vmatpush1.bf16.xpose.msra.mxu0 %v4141
        %6711 = vmatprep.subr.bf16.mxu0 %v4206
        %6712 = vmatpush1.bf16.xpose.msra.mxu0 %v4205
        %6713 = vmatprep.subr.bf16.mxu0 %v4270
        %6714 = vmatpush1.bf16.xpose.msra.mxu0 %v4269
        %6715 = vmatprep.subr.bf16.mxu0 %v4334
        %6716 = vmatpush1.bf16.xpose.msra.mxu0 %v4333
        %6717 = vmatprep.subr.bf16.mxu0 0
        %6718 = vmatpush1.bf16.xpose.msra.mxu0 0
        %6719 = vmatprep.subr.bf16.mxu0 0
        %6720 = vmatpush1.bf16.xpose.msra.mxu0 0
        %6721 = vmatprep.subr.bf16.mxu0 0
        %6722 = vmatpush1.bf16.xpose.msra.mxu0 0
        %6723 = vmatprep.subr.bf16.mxu0 0
        %6724 = vmatpush1.bf16.xpose.msra.mxu0 0
        %6725 = vmatprep.subr.bf16.mxu0 0
        %6726 = vmatpush1.bf16.xpose.msra.mxu0 0
        %6727 = vmatprep.subr.bf16.mxu0 0
        %6728 = vmatpush1.bf16.xpose.msra.mxu0 0
        %6729 = vmatprep.subr.bf16.mxu0 0
        %6730 = vmatpush1.bf16.xpose.msra.mxu0 0
        %6731 = vmatprep.subr.bf16.mxu0 0
        %6732 = vmatpush1.bf16.xpose.msra.mxu0 0
        %6733 = vmatprep.mubr.bf16.mxu0 %v5650
        %6734 = vmatmul.mubr.bf16.gmra.mrb[0].mxu0 %v5649
        %v6735 = vpop.f32.mrb[0].mxu0
        %v6736 = vadd.f32 %v6696, %v6735
        %v6737 = vpop.f32.mrb[0].mxu0
        %v6738 = vpop.f32.mrb[0].mxu0
        %v6739 = vpop.f32.mrb[0].mxu0
        %6740 = vdwg.mxu0
        %6741 = vmatprep.subr.bf16.mxu0 %v3888
        %6742 = vmatpush1.bf16.xpose.msra.mxu0 %v3887
        %6743 = vmatprep.subr.bf16.mxu0 %v3952
        %6744 = vmatpush1.bf16.xpose.msra.mxu0 %v3951
        %6745 = vmatprep.subr.bf16.mxu0 %v4016
        %6746 = vmatpush1.bf16.xpose.msra.mxu0 %v4015
        %6747 = vmatprep.subr.bf16.mxu0 %v4080
        %6748 = vmatpush1.bf16.xpose.msra.mxu0 %v4079
        %6749 = vmatprep.subr.bf16.mxu0 %v4144
        %6750 = vmatpush1.bf16.xpose.msra.mxu0 %v4143
        %6751 = vmatprep.subr.bf16.mxu0 %v4208
        %6752 = vmatpush1.bf16.xpose.msra.mxu0 %v4207
        %6753 = vmatprep.subr.bf16.mxu0 %v4272
        %6754 = vmatpush1.bf16.xpose.msra.mxu0 %v4271
        %6755 = vmatprep.subr.bf16.mxu0 %v4336
        %6756 = vmatpush1.bf16.xpose.msra.mxu0 %v4335
        %6757 = vmatprep.subr.bf16.mxu0 0
        %6758 = vmatpush1.bf16.xpose.msra.mxu0 0
        %6759 = vmatprep.subr.bf16.mxu0 0
        %6760 = vmatpush1.bf16.xpose.msra.mxu0 0
        %6761 = vmatprep.subr.bf16.mxu0 0
        %6762 = vmatpush1.bf16.xpose.msra.mxu0 0
        %6763 = vmatprep.subr.bf16.mxu0 0
        %6764 = vmatpush1.bf16.xpose.msra.mxu0 0
        %6765 = vmatprep.subr.bf16.mxu0 0
        %6766 = vmatpush1.bf16.xpose.msra.mxu0 0
        %6767 = vmatprep.subr.bf16.mxu0 0
        %6768 = vmatpush1.bf16.xpose.msra.mxu0 0
        %6769 = vmatprep.subr.bf16.mxu0 0
        %6770 = vmatpush1.bf16.xpose.msra.mxu0 0
        %6771 = vmatprep.subr.bf16.mxu0 0
        %6772 = vmatpush1.bf16.xpose.msra.mxu0 0
        %6773 = vmatprep.mubr.bf16.mxu0 %v5652
        %6774 = vmatmul.mubr.bf16.gmra.mrb[0].mxu0 %v5651
        %v6775 = vpop.f32.mrb[0].mxu0
        %v6776 = vadd.f32 %v6736, %v6775
        %v6777 = vpop.f32.mrb[0].mxu0
        %v6778 = vpop.f32.mrb[0].mxu0
        %v6779 = vpop.f32.mrb[0].mxu0
        %6780 = vdwg.mxu0
        %6781 = vmatprep.subr.bf16.mxu0 %v3890
        %6782 = vmatpush1.bf16.xpose.msra.mxu0 %v3889
        %6783 = vmatprep.subr.bf16.mxu0 %v3954
        %6784 = vmatpush1.bf16.xpose.msra.mxu0 %v3953
        %6785 = vmatprep.subr.bf16.mxu0 %v4018
        %6786 = vmatpush1.bf16.xpose.msra.mxu0 %v4017
        %6787 = vmatprep.subr.bf16.mxu0 %v4082
        %6788 = vmatpush1.bf16.xpose.msra.mxu0 %v4081
        %6789 = vmatprep.subr.bf16.mxu0 %v4146
        %6790 = vmatpush1.bf16.xpose.msra.mxu0 %v4145
        %6791 = vmatprep.subr.bf16.mxu0 %v4210
        %6792 = vmatpush1.bf16.xpose.msra.mxu0 %v4209
        %6793 = vmatprep.subr.bf16.mxu0 %v4274
        %6794 = vmatpush1.bf16.xpose.msra.mxu0 %v4273
        %6795 = vmatprep.subr.bf16.mxu0 %v4338
        %6796 = vmatpush1.bf16.xpose.msra.mxu0 %v4337
        %6797 = vmatprep.subr.bf16.mxu0 0
        %6798 = vmatpush1.bf16.xpose.msra.mxu0 0
        %6799 = vmatprep.subr.bf16.mxu0 0
        %6800 = vmatpush1.bf16.xpose.msra.mxu0 0
        %6801 = vmatprep.subr.bf16.mxu0 0
        %6802 = vmatpush1.bf16.xpose.msra.mxu0 0
        %6803 = vmatprep.subr.bf16.mxu0 0
        %6804 = vmatpush1.bf16.xpose.msra.mxu0 0
        %6805 = vmatprep.subr.bf16.mxu0 0
        %6806 = vmatpush1.bf16.xpose.msra.mxu0 0
        %6807 = vmatprep.subr.bf16.mxu0 0
        %6808 = vmatpush1.bf16.xpose.msra.mxu0 0
        %6809 = vmatprep.subr.bf16.mxu0 0
        %6810 = vmatpush1.bf16.xpose.msra.mxu0 0
        %6811 = vmatprep.subr.bf16.mxu0 0
        %6812 = vmatpush1.bf16.xpose.msra.mxu0 0
        %6813 = vmatprep.mubr.bf16.mxu0 %v5654
        %6814 = vmatmul.mubr.bf16.gmra.mrb[0].mxu0 %v5653
        %v6815 = vpop.f32.mrb[0].mxu0
        %v6816 = vadd.f32 %v6776, %v6815
        %v6817 = vpop.f32.mrb[0].mxu0
        %v6818 = vpop.f32.mrb[0].mxu0
        %v6819 = vpop.f32.mrb[0].mxu0
        %6820 = vdwg.mxu0
        %6821 = vmatprep.subr.bf16.mxu0 %v3892
        %6822 = vmatpush1.bf16.xpose.msra.mxu0 %v3891
        %6823 = vmatprep.subr.bf16.mxu0 %v3956
        %6824 = vmatpush1.bf16.xpose.msra.mxu0 %v3955
        %6825 = vmatprep.subr.bf16.mxu0 %v4020
        %6826 = vmatpush1.bf16.xpose.msra.mxu0 %v4019
        %6827 = vmatprep.subr.bf16.mxu0 %v4084
        %6828 = vmatpush1.bf16.xpose.msra.mxu0 %v4083
        %6829 = vmatprep.subr.bf16.mxu0 %v4148
        %6830 = vmatpush1.bf16.xpose.msra.mxu0 %v4147
        %6831 = vmatprep.subr.bf16.mxu0 %v4212
        %6832 = vmatpush1.bf16.xpose.msra.mxu0 %v4211
        %6833 = vmatprep.subr.bf16.mxu0 %v4276
        %6834 = vmatpush1.bf16.xpose.msra.mxu0 %v4275
        %6835 = vmatprep.subr.bf16.mxu0 %v4340
        %6836 = vmatpush1.bf16.xpose.msra.mxu0 %v4339
        %6837 = vmatprep.subr.bf16.mxu0 0
        %6838 = vmatpush1.bf16.xpose.msra.mxu0 0
        %6839 = vmatprep.subr.bf16.mxu0 0
        %6840 = vmatpush1.bf16.xpose.msra.mxu0 0
        %6841 = vmatprep.subr.bf16.mxu0 0
        %6842 = vmatpush1.bf16.xpose.msra.mxu0 0
        %6843 = vmatprep.subr.bf16.mxu0 0
        %6844 = vmatpush1.bf16.xpose.msra.mxu0 0
        %6845 = vmatprep.subr.bf16.mxu0 0
        %6846 = vmatpush1.bf16.xpose.msra.mxu0 0
        %6847 = vmatprep.subr.bf16.mxu0 0
        %6848 = vmatpush1.bf16.xpose.msra.mxu0 0
        %6849 = vmatprep.subr.bf16.mxu0 0
        %6850 = vmatpush1.bf16.xpose.msra.mxu0 0
        %6851 = vmatprep.subr.bf16.mxu0 0
        %6852 = vmatpush1.bf16.xpose.msra.mxu0 0
        %6853 = vmatprep.mubr.bf16.mxu0 %v5656
        %6854 = vmatmul.mubr.bf16.gmra.mrb[0].mxu0 %v5655
        %v6855 = vpop.f32.mrb[0].mxu0
        %v6856 = vadd.f32 %v6816, %v6855
        %v6857 = vpop.f32.mrb[0].mxu0
        %v6858 = vpop.f32.mrb[0].mxu0
        %v6859 = vpop.f32.mrb[0].mxu0
        %6860 = vdwg.mxu0
        %6861 = vmatprep.subr.bf16.mxu0 %v3894
        %6862 = vmatpush1.bf16.xpose.msra.mxu0 %v3893
        %6863 = vmatprep.subr.bf16.mxu0 %v3958
        %6864 = vmatpush1.bf16.xpose.msra.mxu0 %v3957
        %6865 = vmatprep.subr.bf16.mxu0 %v4022
        %6866 = vmatpush1.bf16.xpose.msra.mxu0 %v4021
        %6867 = vmatprep.subr.bf16.mxu0 %v4086
        %6868 = vmatpush1.bf16.xpose.msra.mxu0 %v4085
        %6869 = vmatprep.subr.bf16.mxu0 %v4150
        %6870 = vmatpush1.bf16.xpose.msra.mxu0 %v4149
        %6871 = vmatprep.subr.bf16.mxu0 %v4214
        %6872 = vmatpush1.bf16.xpose.msra.mxu0 %v4213
        %6873 = vmatprep.subr.bf16.mxu0 %v4278
        %6874 = vmatpush1.bf16.xpose.msra.mxu0 %v4277
        %6875 = vmatprep.subr.bf16.mxu0 %v4342
        %6876 = vmatpush1.bf16.xpose.msra.mxu0 %v4341
        %6877 = vmatprep.subr.bf16.mxu0 0
        %6878 = vmatpush1.bf16.xpose.msra.mxu0 0
        %6879 = vmatprep.subr.bf16.mxu0 0
        %6880 = vmatpush1.bf16.xpose.msra.mxu0 0
        %6881 = vmatprep.subr.bf16.mxu0 0
        %6882 = vmatpush1.bf16.xpose.msra.mxu0 0
        %6883 = vmatprep.subr.bf16.mxu0 0
        %6884 = vmatpush1.bf16.xpose.msra.mxu0 0
        %6885 = vmatprep.subr.bf16.mxu0 0
        %6886 = vmatpush1.bf16.xpose.msra.mxu0 0
        %6887 = vmatprep.subr.bf16.mxu0 0
        %6888 = vmatpush1.bf16.xpose.msra.mxu0 0
        %6889 = vmatprep.subr.bf16.mxu0 0
        %6890 = vmatpush1.bf16.xpose.msra.mxu0 0
        %6891 = vmatprep.subr.bf16.mxu0 0
        %6892 = vmatpush1.bf16.xpose.msra.mxu0 0
        %6893 = vmatprep.mubr.bf16.mxu0 %v5658
        %6894 = vmatmul.mubr.bf16.gmra.mrb[0].mxu0 %v5657
        %v6895 = vpop.f32.mrb[0].mxu0
        %v6896 = vadd.f32 %v6856, %v6895
        %v6897 = vpop.f32.mrb[0].mxu0
        %v6898 = vpop.f32.mrb[0].mxu0
        %v6899 = vpop.f32.mrb[0].mxu0
        %6900 = vdwg.mxu0
        %6901 = vmatprep.subr.bf16.mxu0 %v3896
        %6902 = vmatpush1.bf16.xpose.msra.mxu0 %v3895
        %6903 = vmatprep.subr.bf16.mxu0 %v3960
        %6904 = vmatpush1.bf16.xpose.msra.mxu0 %v3959
        %6905 = vmatprep.subr.bf16.mxu0 %v4024
        %6906 = vmatpush1.bf16.xpose.msra.mxu0 %v4023
        %6907 = vmatprep.subr.bf16.mxu0 %v4088
        %6908 = vmatpush1.bf16.xpose.msra.mxu0 %v4087
        %6909 = vmatprep.subr.bf16.mxu0 %v4152
        %6910 = vmatpush1.bf16.xpose.msra.mxu0 %v4151
        %6911 = vmatprep.subr.bf16.mxu0 %v4216
        %6912 = vmatpush1.bf16.xpose.msra.mxu0 %v4215
        %6913 = vmatprep.subr.bf16.mxu0 %v4280
        %6914 = vmatpush1.bf16.xpose.msra.mxu0 %v4279
        %6915 = vmatprep.subr.bf16.mxu0 %v4344
        %6916 = vmatpush1.bf16.xpose.msra.mxu0 %v4343
        %6917 = vmatprep.subr.bf16.mxu0 0
        %6918 = vmatpush1.bf16.xpose.msra.mxu0 0
        %6919 = vmatprep.subr.bf16.mxu0 0
        %6920 = vmatpush1.bf16.xpose.msra.mxu0 0
        %6921 = vmatprep.subr.bf16.mxu0 0
        %6922 = vmatpush1.bf16.xpose.msra.mxu0 0
        %6923 = vmatprep.subr.bf16.mxu0 0
        %6924 = vmatpush1.bf16.xpose.msra.mxu0 0
        %6925 = vmatprep.subr.bf16.mxu0 0
        %6926 = vmatpush1.bf16.xpose.msra.mxu0 0
        %6927 = vmatprep.subr.bf16.mxu0 0
        %6928 = vmatpush1.bf16.xpose.msra.mxu0 0
        %6929 = vmatprep.subr.bf16.mxu0 0
        %6930 = vmatpush1.bf16.xpose.msra.mxu0 0
        %6931 = vmatprep.subr.bf16.mxu0 0
        %6932 = vmatpush1.bf16.xpose.msra.mxu0 0
        %6933 = vmatprep.mubr.bf16.mxu0 %v5660
        %6934 = vmatmul.mubr.bf16.gmra.mrb[0].mxu0 %v5659
        %v6935 = vpop.f32.mrb[0].mxu0
        %v6936 = vadd.f32 %v6896, %v6935
        %v6937 = vpop.f32.mrb[0].mxu0
        %v6938 = vpop.f32.mrb[0].mxu0
        %v6939 = vpop.f32.mrb[0].mxu0
        %6940 = vdwg.mxu0
        %p6941 = scmp.eq.s32.totalorder %s28, 0
        // Predicated region
        $region29: #{_stats_pallas.1} parent=23 // pred_check
          %p6942 = pneg %p6941
        $region30: #{_stats_pallas.1} parent=23 // pred_check_branch
          %6944 = sbr.rel (%p6942) target = $region32
        $region31: #{_stats_pallas.1} parent=23 // pred_region
          %6945 = vst [vmem:[%s153] sm:$0xff] 0.0
        $region32: #{_stats_pallas.1} parent=23 // pred_fallthru
          _
        %v6946 = vld [vmem:[%s153] sm:$0xff]
        %v6947 = vadd.f32 %v6946, %v6936
        %6948 = vst [vmem:[%s153] sm:$0xff] %v6947
        %s6949 = sand.u32 %s71, 1
        %s6950 = scalar_lea.sflag [#allocation6], %s6949
        %s6951 = sand.u32 %s71, 1
        %s6952 = smul.addr %s6951, 8
        %s6953 = scalar_lea.vmem [#allocation7], %s6952
        // Predicated region
        $region33: #{_stats_pallas.1} parent=23 // pred_check
          %p6954 = pneg %p81
        $region34: #{_stats_pallas.1} parent=23 // pred_check_branch
          %6956 = sbr.rel (%p6954) target = $region36
        $region35: #{_stats_pallas.1} parent=23 // pred_region
          %s6958 = ssub.s32 128, 128
          %6959 = vsyncadd %s6950, %s6958
          %s6960 = smul.addr %s27, 128
          %s6961 = scalar_lea.hbm %s2, %s6960
          %s6963 = sshll.u32 %s6953, 4
          %s6964 = int_to_ptr.vmem [resolvable:$true] %s6963
          %6966 = dma.vmem_to_hbm [thread:$0]  %s6964, 128, %s6961, %s6950
        $region36: #{_stats_pallas.1} parent=23 // pred_fallthru
          _
      $region24: #{_stats_pallas.1} parent=5 // pred_fallthru
        _
      %p6967 = scmp.le.s32.totalorder 2, %s18
      // Predicated region
      $region37: #{_stats_pallas.1} parent=5 // pred_check
        %p6968 = pneg %p6967
      $region38: #{_stats_pallas.1} parent=5 // pred_check_branch
        %6970 = sbr.rel (%p6968) target = $region40
      $region39: #{_stats_pallas.1} parent=5 // pred_region
        %s6971 = ssub.s32 %s18, 2
        // Predicated region
        $region41: #{_stats_pallas.1} parent=39 // pred_check
          %p6972 = pneg %p87
        $region42: #{_stats_pallas.1} parent=39 // pred_check_branch
          %6974 = sbr.rel (%p6972) target = $region44
        $region43: #{_stats_pallas.1} parent=39 // pred_region
          %s6975 = sand.u32 %s72, 1
          %s6976 = scalar_lea.sflag [#allocation6], %s6975
          %s6977 = sand.u32 %s72, 1
          %s6978 = smul.addr %s6977, 8
          %s6979 = scalar_lea.vmem [#allocation7], %s6978
          %6980 = dma.done %s6976, 128
        $region44: #{_stats_pallas.1} parent=39 // pred_fallthru
          _
      $region40: #{_stats_pallas.1} parent=5 // pred_fallthru
        _
    $region6: #{_stats_pallas.1} parent=1 // loop_footer
      %s22 = sadd.s32 1, %s18
    $region7: #{_stats_pallas.1} parent=1 // loop_footer_branch
      %17 = sbr.rel target = $region3
    $region8: #{_stats_pallas.1} parent=1 // loop_exit
      _
    %6981 = vsyncpa [#allocation5], 1
    %s6982 = scalar_lea.sflag [#allocation5], 1
    %6983 = vsyncpa %s6982, 1
    %6984 = vsyncpa [#allocation6], 1
    %s6985 = scalar_lea.sflag [#allocation6], 1
    %6986 = vsyncpa %s6985, 1

</llo_original>
